<compile_context>
chip_gen: v7x
topology: tpu7x:2x2x1
jax: 0.10.0
libtpu: 0.0.40
codegen_flags: <defaults>
</compile_context>

<pallas_src>
import jax
import jax.numpy as jnp
import numpy as np
from jax import lax
from jax.experimental import pallas as pl
from jax.experimental.pallas import tpu as pltpu

EPS = 1e-5  # LayerNorm eps (matches WithBias_LayerNorm)


def _round_up(x, m):
    return ((x + m - 1) // m) * m


def _pick_row_tile(n_rows, row_floats, budget_bytes=8 * 1024 * 1024, max_tile=512):
    """Largest multiple-of-8 row tile whose double-buffered tiles fit the budget.

    `row_floats` = number of f32 elements streamed per row (inputs + outputs).
    The 8 MiB budget keeps 2x double-buffered tiles comfortably inside the
    default scoped-VMEM limit on v5e/v6e and within v7x's 64 MiB VMEM.
    max_tile=512 keeps several grid steps even for modest R (megacore sharding).
    """
    t = budget_bytes // max(1, row_floats * 4 * 2)
    t = max(8, min(max_tile, (t // 8) * 8))
    t = min(t, _round_up(n_rows, 8))
    return int(t)


def _gelu_tanh(x):
    # tanh-approximate GELU.
    # TODO(synk): PyTorch F.gelu defaults to the exact erf form; erf has no
    # guaranteed Mosaic lowering, so the tanh approximation (|err| ~< 1e-3) is used
    # in both the kernel and the reference.
    c = 0.7978845608028654  # sqrt(2/pi)
    return 0.5 * x * (1.0 + jnp.tanh(c * (x + 0.044715 * x * x * x)))


# ---------------------------------------------------------------------------
# Kernel 1: WithBias LayerNorm fused with a 1x1-conv (channel matmul)
# ---------------------------------------------------------------------------
def _ln_matmul_kernel(x_ref, g_ref, b_ref, w_ref, wb_ref, o_ref):
    x = x_ref[...].astype(jnp.float32)                         # (TR, C)
    mu = jnp.mean(x, axis=-1, keepdims=True)
    xc = x - mu
    var = jnp.mean(xc * xc, axis=-1, keepdims=True)            # unbiased=False
    xn = xc * lax.rsqrt(var + EPS)                             # rsqrt -> EUP, no VPU divide
    y = xn * g_ref[...].astype(jnp.float32) + b_ref[...].astype(jnp.float32)
    out = jnp.dot(y, w_ref[...].astype(jnp.float32),
                  preferred_element_type=jnp.float32)
    o_ref[...] = (out + wb_ref[...].astype(jnp.float32)).astype(o_ref.dtype)


def ln_matmul(x, ln_w, ln_b, w, b):
    """LayerNorm_withbias(x) @ w + b     x: (R, C), w: (C, N)."""
    R, C = x.shape
    N = w.shape[1]
    tr = _pick_row_tile(R, C + N)
    return pl.pallas_call(
        _ln_matmul_kernel,
        out_shape=jax.ShapeDtypeStruct((R, N), x.dtype),
        grid_spec=pltpu.PrefetchScalarGridSpec(
            num_scalar_prefetch=0,
            grid=(pl.cdiv(R, tr),),                            # ragged tail masked, no pad copy
            in_specs=[
                pl.BlockSpec((tr, C), lambda i: (i, 0)),
                pl.BlockSpec((1, C), lambda i: (0, 0)),
                pl.BlockSpec((1, C), lambda i: (0, 0)),
                pl.BlockSpec((C, N), lambda i: (0, 0)),
                pl.BlockSpec((1, N), lambda i: (0, 0)),
            ],
            out_specs=pl.BlockSpec((tr, N), lambda i: (i, 0)),
        ),
        compiler_params=pltpu.CompilerParams(dimension_semantics=("parallel",)),
    )(x, ln_w.reshape(1, C), ln_b.reshape(1, C), w, b.reshape(1, N))


# ---------------------------------------------------------------------------
# Kernel 2: depthwise 3x3 convolution (channels-last, stride 1, padding 1)
# ---------------------------------------------------------------------------
def _dwconv3x3_kernel(xp_ref, w_ref, b_ref, o_ref):
    _, Ho, Wo, _ = o_ref.shape
    xp = xp_ref[...].astype(jnp.float32)                       # (1, H+2, W+2, Cm)
    acc = jnp.zeros(o_ref.shape, jnp.float32)
    for dy in range(3):
        for dx in range(3):
            tap = xp[:, dy:dy + Ho, dx:dx + Wo, :]
            wv = w_ref[dy * 3 + dx:dy * 3 + dx + 1, :].astype(jnp.float32)   # (1, Cm)
            acc = acc + tap * wv
    o_ref[...] = (acc + b_ref[...].astype(jnp.float32)).astype(o_ref.dtype)


def dwconv3x3(x, w9, bias):
    """Depthwise 3x3 conv.  x: (B, H, W, Cm), w9: (9, Cm) with w9[dy*3+dx, c]."""
    B, H, W, Cm = x.shape
    xp = jnp.pad(x, ((0, 0), (1, 1), (1, 1), (0, 0)))          # small halo pad (inherent to conv)
    return pl.pallas_call(
        _dwconv3x3_kernel,
        out_shape=jax.ShapeDtypeStruct((B, H, W, Cm), x.dtype),
        grid_spec=pltpu.PrefetchScalarGridSpec(
            num_scalar_prefetch=0,
            grid=(B,),
            in_specs=[
                pl.BlockSpec((1, H + 2, W + 2, Cm), lambda i: (i, 0, 0, 0)),
                pl.BlockSpec((9, Cm), lambda i: (0, 0)),
                pl.BlockSpec((1, Cm), lambda i: (0, 0)),
            ],
            out_specs=pl.BlockSpec((1, H, W, Cm), lambda i: (i, 0, 0, 0)),
        ),
        compiler_params=pltpu.CompilerParams(dimension_semantics=("parallel",)),
    )(xp, w9, bias.reshape(1, Cm))


# ---------------------------------------------------------------------------
# Kernel 3: channel attention core, one (batch, head) per grid step
# ---------------------------------------------------------------------------
def _attention_kernel(q_ref, k_ref, v_ref, t_ref, o_ref):
    q = q_ref[0, 0].astype(jnp.float32)                        # (d, S)
    k = k_ref[0, 0].astype(jnp.float32)
    v = v_ref[0, 0].astype(jnp.float32)
    # L2-normalize over the spatial axis; rsqrt on the (d,1) stats runs on the EUP.
    qn = q * lax.rsqrt(jnp.sum(q * q, axis=-1, keepdims=True) + 1e-24)
    kn = k * lax.rsqrt(jnp.sum(k * k, axis=-1, keepdims=True) + 1e-24)
    s = lax.dot_general(qn, kn, (((1,), (1,)), ((), ())),
                        preferred_element_type=jnp.float32)     # (d, d) = q @ k^T
    s = s * t_ref[0]                                            # per-head temperature
    s = s - jnp.max(s, axis=-1, keepdims=True)
    p = jnp.exp(s)
    p = p * pl.reciprocal(jnp.sum(p, axis=-1, keepdims=True), approx=False)
    o_ref[0, 0] = jnp.dot(p, v, preferred_element_type=jnp.float32).astype(o_ref.dtype)


def attention_core(q, k, v, temperature):
    """q, k, v: (B, NH, d, S); temperature: (NH,) -> (B, NH, d, S)."""
    B, NH, d, S = q.shape
    t = temperature.reshape(NH, 1, 1).astype(jnp.float32)
    qkv_spec = lambda: pl.BlockSpec((1, 1, d, S), lambda b, h: (b, h, 0, 0))
    return pl.pallas_call(
        _attention_kernel,
        out_shape=jax.ShapeDtypeStruct((B, NH, d, S), q.dtype),
        grid_spec=pltpu.PrefetchScalarGridSpec(
            num_scalar_prefetch=0,
            grid=(B, NH),
            in_specs=[
                qkv_spec(), qkv_spec(), qkv_spec(),
                pl.BlockSpec((1, 1, 1), lambda b, h: (h, 0, 0)),
            ],
            out_specs=qkv_spec(),
        ),
        compiler_params=pltpu.CompilerParams(
            dimension_semantics=("parallel", "parallel")),
    )(q, k, v, t)


# ---------------------------------------------------------------------------
# Kernel 4: 1x1-conv matmul + bias + residual add
# ---------------------------------------------------------------------------
def _matmul_bias_residual_kernel(x_ref, w_ref, b_ref, r_ref, o_ref):
    out = jnp.dot(x_ref[...].astype(jnp.float32), w_ref[...].astype(jnp.float32),
                  preferred_element_type=jnp.float32)
    o_ref[...] = (out + b_ref[...].astype(jnp.float32)
                  + r_ref[...].astype(jnp.float32)).astype(o_ref.dtype)


def matmul_bias_residual(x, w, b, res):
    """res + x @ w + b     x: (R, K), w: (K, N), res: (R, N)."""
    R, K = x.shape
    N = w.shape[1]
    tr = _pick_row_tile(R, K + 2 * N)
    return pl.pallas_call(
        _matmul_bias_residual_kernel,
        out_shape=jax.ShapeDtypeStruct((R, N), res.dtype),
        grid_spec=pltpu.PrefetchScalarGridSpec(
            num_scalar_prefetch=0,
            grid=(pl.cdiv(R, tr),),
            in_specs=[
                pl.BlockSpec((tr, K), lambda i: (i, 0)),
                pl.BlockSpec((K, N), lambda i: (0, 0)),
                pl.BlockSpec((1, N), lambda i: (0, 0)),
                pl.BlockSpec((tr, N), lambda i: (i, 0)),
            ],
            out_specs=pl.BlockSpec((tr, N), lambda i: (i, 0)),
        ),
        compiler_params=pltpu.CompilerParams(dimension_semantics=("parallel",)),
    )(x, w, b.reshape(1, N), res)


# ---------------------------------------------------------------------------
# Kernel 5: gated GELU + project_out matmul + bias + residual add
# ---------------------------------------------------------------------------
def _gated_ffn_kernel(y_ref, w_ref, b_ref, r_ref, o_ref):
    hid = y_ref.shape[-1] // 2
    a = y_ref[:, :hid].astype(jnp.float32)
    g = y_ref[:, hid:].astype(jnp.float32)
    gate = _gelu_tanh(a) * g
    out = jnp.dot(gate, w_ref[...].astype(jnp.float32),
                  preferred_element_type=jnp.float32)
    o_ref[...] = (out + b_ref[...].astype(jnp.float32)
                  + r_ref[...].astype(jnp.float32)).astype(o_ref.dtype)


def gated_gelu_matmul_residual(y, w, b, res):
    """res + (gelu(y[:, :hid]) * y[:, hid:]) @ w + b     y: (R, 2*hid)."""
    R, H2 = y.shape
    hid = H2 // 2
    N = w.shape[1]
    tr = _pick_row_tile(R, H2 + 2 * N)
    return pl.pallas_call(
        _gated_ffn_kernel,
        out_shape=jax.ShapeDtypeStruct((R, N), res.dtype),
        grid_spec=pltpu.PrefetchScalarGridSpec(
            num_scalar_prefetch=0,
            grid=(pl.cdiv(R, tr),),
            in_specs=[
                pl.BlockSpec((tr, H2), lambda i: (i, 0)),
                pl.BlockSpec((hid, N), lambda i: (0, 0)),
                pl.BlockSpec((1, N), lambda i: (0, 0)),
                pl.BlockSpec((tr, N), lambda i: (i, 0)),
            ],
            out_specs=pl.BlockSpec((tr, N), lambda i: (i, 0)),
        ),
        compiler_params=pltpu.CompilerParams(dimension_semantics=("parallel",)),
    )(y, w, b.reshape(1, N), res)


# ---------------------------------------------------------------------------
# Full TransformerBlock forward
# ---------------------------------------------------------------------------
def _block_single(params, x):
    """TransformerBlock body on one NCHW tensor (B, C, H, W)."""
    B, C, H, W = x.shape
    NH = params["temperature"].shape[0]
    d = C // NH
    S = H * W
    R = B * S

    # to_3d: 'b c h w -> b (h w) c', flattened to channels-last rows (R, C)
    x_cl = jnp.transpose(x, (0, 2, 3, 1)).reshape(R, C)

    # ---- x = x + attn(norm1(x)) -------------------------------------------
    qkv = ln_matmul(x_cl, params["ln1_w"], params["ln1_b"],
                    params["w_qkv"], params["b_qkv"])                  # (R, 3C)
    qkv = dwconv3x3(qkv.reshape(B, H, W, 3 * C),
                    params["w_qkv_dw"], params["b_qkv_dw"])            # (B, H, W, 3C)

    def to_heads(t):  # (B, H, W, C) -> (B, NH, d, S)  ['b (head c) h w -> b head c (h w)']
        return t.reshape(B, H, W, NH, d).transpose(0, 3, 4, 1, 2).reshape(B, NH, d, S)

    q = to_heads(qkv[..., :C])
    k = to_heads(qkv[..., C:2 * C])
    v = to_heads(qkv[..., 2 * C:])
    attn = attention_core(q, k, v, params["temperature"])              # (B, NH, d, S)
    attn_cl = (attn.reshape(B, NH, d, H, W)
                   .transpose(0, 3, 4, 1, 2).reshape(R, C))
    x_cl = matmul_bias_residual(attn_cl, params["w_attn_out"],
                                params["b_attn_out"], x_cl)            # (R, C)

    # ---- x = x + ffn(norm2(x)) --------------------------------------------
    y = ln_matmul(x_cl, params["ln2_w"], params["ln2_b"],
                  params["w_ffn_in"], params["b_ffn_in"])              # (R, 2*hidden)
    H2 = y.shape[-1]
    y = dwconv3x3(y.reshape(B, H, W, H2),
                  params["w_ffn_dw"], params["b_ffn_dw"]).reshape(R, H2)
    x_cl = gated_gelu_matmul_residual(y, params["w_ffn_out"],
                                      params["b_ffn_out"], x_cl)       # (R, C)

    # to_4d
    return x_cl.reshape(B, H, W, C).transpose(0, 3, 1, 2)


def transformer_block_forward(params, x1, x2):
    """Matches TransformerBlock.forward(x1, x2): both streams share the weights."""
    b1 = x1.shape[0]
    x = jnp.concatenate([x1, x2], axis=0)   # batch the two streams -> fewer launches
    y = _block_single(params, x)
    return y[:b1], y[b1:]


# ---------------------------------------------------------------------------
# Pure-JAX reference (PyTorch-faithful NCHW formulation)
# ---------------------------------------------------------------------------
def _reference_block(params, x):
    B, C, H, W = x.shape
    NH = params["temperature"].shape[0]
    d = C // NH
    hp = lax.Precision.HIGHEST

    def ln(t, g, b):
        tc = jnp.transpose(t, (0, 2, 3, 1))
        mu = tc.mean(-1, keepdims=True)
        var = ((tc - mu) ** 2).mean(-1, keepdims=True)
        y = (tc - mu) / jnp.sqrt(var + EPS) * g + b
        return jnp.transpose(y, (0, 3, 1, 2))

    def conv1x1(t, w_io, b_o):
        return (jnp.einsum("bchw,cd->bdhw", t, w_io, precision=hp)
                + b_o[None, :, None, None])

    def dwconv(t, w9, b_o):
        tp = jnp.pad(t, ((0, 0), (0, 0), (1, 1), (1, 1)))
        acc = jnp.zeros_like(t)
        for dy in range(3):
            for dx in range(3):
                acc = acc + tp[:, :, dy:dy + H, dx:dx + W] * w9[dy * 3 + dx][None, :, None, None]
        return acc + b_o[None, :, None, None]

    def attention(t):
        qkv = dwconv(conv1x1(t, params["w_qkv"], params["b_qkv"]),
                     params["w_qkv_dw"], params["b_qkv_dw"])
        q, k, v = jnp.split(qkv, 3, axis=1)
        q = q.reshape(B, NH, d, H * W)
        k = k.reshape(B, NH, d, H * W)
        v = v.reshape(B, NH, d, H * W)
        q = q / jnp.maximum(jnp.linalg.norm(q, axis=-1, keepdims=True), 1e-12)
        k = k / jnp.maximum(jnp.linalg.norm(k, axis=-1, keepdims=True), 1e-12)
        attn = jnp.einsum("bhcs,bhds->bhcd", q, k, precision=hp)
        attn = attn * params["temperature"][None, :, None, None]
        attn = jax.nn.softmax(attn, axis=-1)
        out = jnp.einsum("bhcd,bhds->bhcs", attn, v, precision=hp).reshape(B, C, H, W)
        return conv1x1(out, params["w_attn_out"], params["b_attn_out"])

    def ffn(t):
        y = dwconv(conv1x1(t, params["w_ffn_in"], params["b_ffn_in"]),
                   params["w_ffn_dw"], params["b_ffn_dw"])
        a, g = jnp.split(y, 2, axis=1)
        y = _gelu_tanh(a) * g
        return conv1x1(y, params["w_ffn_out"], params["b_ffn_out"])

    x = x + attention(ln(x, params["ln1_w"], params["ln1_b"]))
    x = x + ffn(ln(x, params["ln2_w"], params["ln2_b"]))
    return x


if __name__ == "__main__":
    # TransformerBlock(dim=16, num_heads=2, ffn_expansion_factor=2, bias=True,
    #                  LayerNorm_type='WithBias');  x1, x2: (B, dim, H, W) NCHW.
    dim, num_heads, ffn_factor = 16, 2, 2
    hidden = int(dim * ffn_factor)
    B, H, W = 2, 16, 16

    key = jax.random.PRNGKey(0)
    ks = jax.random.split(key, 19)

    def nrm(k, shape, scale=1.0):
        return scale * jax.random.normal(k, shape, dtype=jnp.float32)

    params = {
        # norm1 / norm2 (WithBias LayerNorm affine)
        "ln1_w": 1.0 + 0.1 * nrm(ks[0], (dim,)),
        "ln1_b": 0.1 * nrm(ks[1], (dim,)),
        "ln2_w": 1.0 + 0.1 * nrm(ks[2], (dim,)),
        "ln2_b": 0.1 * nrm(ks[3], (dim,)),
        # attention: temperature, qkv 1x1 conv, qkv depthwise 3x3, project_out
        "temperature": 1.0 + 0.1 * nrm(ks[4], (num_heads,)),
        "w_qkv": nrm(ks[5], (dim, 3 * dim), 1.0 / float(np.sqrt(dim))),   # (Cin, Cout)
        "b_qkv": 0.1 * nrm(ks[6], (3 * dim,)),
        "w_qkv_dw": nrm(ks[7], (9, 3 * dim), 1.0 / 3.0),                  # w[dy*3+dx, c]
        "b_qkv_dw": 0.1 * nrm(ks[8], (3 * dim,)),
        "w_attn_out": nrm(ks[9], (dim, dim), 1.0 / float(np.sqrt(dim))),
        "b_attn_out": 0.1 * nrm(ks[10], (dim,)),
        # feed-forward: project_in, depthwise 3x3, project_out
        "w_ffn_in": nrm(ks[11], (dim, 2 * hidden), 1.0 / float(np.sqrt(dim))),
        "b_ffn_in": 0.1 * nrm(ks[12], (2 * hidden,)),
        "w_ffn_dw": nrm(ks[13], (9, 2 * hidden), 1.0 / 3.0),
        "b_ffn_dw": 0.1 * nrm(ks[14], (2 * hidden,)),
        "w_ffn_out": nrm(ks[15], (hidden, dim), 1.0 / float(np.sqrt(hidden))),
        "b_ffn_out": 0.1 * nrm(ks[16], (dim,)),
    }

    x1 = nrm(ks[17], (B, dim, H, W))
    x2 = nrm(ks[18], (B, dim, H, W))

    fwd = jax.jit(transformer_block_forward)
    y1, y2 = fwd(params, x1, x2)
    y1, y2 = jax.block_until_ready((y1, y2))

    r1 = _reference_block(params, x1)
    r2 = _reference_block(params, x2)
    # Tolerance absorbs differing default f32-matmul precisions between the MXU
    # (Mosaic kernel) and the XLA reference; a semantic bug is orders-of-magnitude larger.
    np.testing.assert_allclose(np.asarray(y1), np.asarray(r1), rtol=2e-2, atol=2e-2)
    np.testing.assert_allclose(np.asarray(y2), np.asarray(r2), rtol=2e-2, atol=2e-2)
    print("KERNEL_OK")
</pallas_src>

<mosaic_0001>
module attributes {stable_mosaic.version = 11 : i64} {
  func.func @_ln_matmul_kernel(%arg0: i32, %arg1: memref<512x16xf32, #tpu.memory_space<vmem>>, %arg2: memref<1x16xf32, #tpu.memory_space<vmem>>, %arg3: memref<1x16xf32, #tpu.memory_space<vmem>>, %arg4: memref<16x48xf32, #tpu.memory_space<vmem>>, %arg5: memref<1x48xf32, #tpu.memory_space<vmem>>, %arg6: memref<512x48xf32, #tpu.memory_space<vmem>>) attributes {dimension_semantics = [#tpu.dimension_semantics<parallel>], iteration_bounds = array<i64: 2>, scalar_prefetch = 0 : i64, scratch_operands = 0 : i64, tpu.core_type = #tpu.core_type<tc>, window_params = [{transform_indices = @transform_0, window_bounds = array<i64: 512, 16>}, {pipeline_mode = #tpu.pipeline_mode<synchronous>, transform_indices = @transform_1, window_bounds = array<i64: 1, 16>}, {pipeline_mode = #tpu.pipeline_mode<synchronous>, transform_indices = @transform_2, window_bounds = array<i64: 1, 16>}, {pipeline_mode = #tpu.pipeline_mode<synchronous>, transform_indices = @transform_3, window_bounds = array<i64: 16, 48>}, {pipeline_mode = #tpu.pipeline_mode<synchronous>, transform_indices = @transform_4, window_bounds = array<i64: 1, 48>}, {transform_indices = @transform_5, window_bounds = array<i64: 512, 48>}]} {
    %c0 = arith.constant 0 : index
    %c0_0 = arith.constant 0 : index
    %0 = vector.load %arg1[%c0, %c0_0] : memref<512x16xf32, #tpu.memory_space<vmem>>, vector<512x16xf32>
    %cst = arith.constant dense<0.000000e+00> : vector<512xf32>
    %1 = vector.multi_reduction <add>, %0, %cst [1] : vector<512x16xf32> to vector<512xf32>
    %2 = vector.shape_cast %1 : vector<512xf32> to vector<512x1xf32>
    %cst_1 = arith.constant 1.600000e+01 : f32
    %3 = vector.broadcast %cst_1 : f32 to vector<512x1xf32>
    %4 = arith.divf %2, %3 : vector<512x1xf32>
    %5 = vector.broadcast %4 : vector<512x1xf32> to vector<512x16xf32>
    %6 = arith.subf %0, %5 : vector<512x16xf32>
    %7 = arith.mulf %6, %6 : vector<512x16xf32>
    %cst_2 = arith.constant dense<0.000000e+00> : vector<512xf32>
    %8 = vector.multi_reduction <add>, %7, %cst_2 [1] : vector<512x16xf32> to vector<512xf32>
    %9 = vector.shape_cast %8 : vector<512xf32> to vector<512x1xf32>
    %cst_3 = arith.constant 1.600000e+01 : f32
    %10 = vector.broadcast %cst_3 : f32 to vector<512x1xf32>
    %11 = arith.divf %9, %10 : vector<512x1xf32>
    %cst_4 = arith.constant 9.99999974E-6 : f32
    %12 = vector.broadcast %cst_4 : f32 to vector<512x1xf32>
    %13 = arith.addf %11, %12 : vector<512x1xf32>
    %14 = math.rsqrt %13 : vector<512x1xf32>
    %15 = vector.broadcast %14 : vector<512x1xf32> to vector<512x16xf32>
    %16 = arith.mulf %6, %15 : vector<512x16xf32>
    %c0_5 = arith.constant 0 : index
    %c0_6 = arith.constant 0 : index
    %17 = vector.load %arg2[%c0_5, %c0_6] : memref<1x16xf32, #tpu.memory_space<vmem>>, vector<1x16xf32>
    %18 = vector.broadcast %17 : vector<1x16xf32> to vector<512x16xf32>
    %19 = arith.mulf %16, %18 : vector<512x16xf32>
    %c0_7 = arith.constant 0 : index
    %c0_8 = arith.constant 0 : index
    %20 = vector.load %arg3[%c0_7, %c0_8] : memref<1x16xf32, #tpu.memory_space<vmem>>, vector<1x16xf32>
    %21 = vector.broadcast %20 : vector<1x16xf32> to vector<512x16xf32>
    %22 = arith.addf %19, %21 : vector<512x16xf32>
    %c0_9 = arith.constant 0 : index
    %c0_10 = arith.constant 0 : index
    %23 = vector.load %arg4[%c0_9, %c0_10] : memref<16x48xf32, #tpu.memory_space<vmem>>, vector<16x48xf32>
    %cst_11 = arith.constant dense<0.000000e+00> : vector<512x48xf32>
    %24 = tpu.matmul %22, %23, %cst_11 {dimension_numbers = #tpu.dot_dimension_numbers<[1], [0], [0], [1], [0, 0, 1, 1], [], []>} : vector<512x16xf32>, vector<16x48xf32>, vector<512x48xf32> -> vector<512x48xf32>
    %c0_12 = arith.constant 0 : index
    %c0_13 = arith.constant 0 : index
    %25 = vector.load %arg5[%c0_12, %c0_13] : memref<1x48xf32, #tpu.memory_space<vmem>>, vector<1x48xf32>
    %26 = vector.broadcast %25 : vector<1x48xf32> to vector<512x48xf32>
    %27 = arith.addf %24, %26 : vector<512x48xf32>
    %c0_14 = arith.constant 0 : index
    %c0_15 = arith.constant 0 : index
    %28 = vector.load %arg6[%c0_14, %c0_15] : memref<512x48xf32, #tpu.memory_space<vmem>>, vector<512x48xf32>
    tpu.vector_store %arg6[%c0_14, %c0_15], %27 {strides = array<i32>} : memref<512x48xf32, #tpu.memory_space<vmem>>, vector<512x48xf32>,
    return
  }
  func.func @transform_0(%arg0: i32) -> (i32, i32) {
    %c0_i32 = arith.constant 0 : i32
    %c0_i32_0 = arith.constant 0 : i32
    return %arg0, %c0_i32 : i32, i32
  }
  func.func @transform_1(%arg0: i32) -> (i32, i32) {
    %c0_i32 = arith.constant 0 : i32
    %c0_i32_0 = arith.constant 0 : i32
    %c0_i32_1 = arith.constant 0 : i32
    return %c0_i32, %c0_i32_0 : i32, i32
  }
  func.func @transform_2(%arg0: i32) -> (i32, i32) {
    %c0_i32 = arith.constant 0 : i32
    %c0_i32_0 = arith.constant 0 : i32
    %c0_i32_1 = arith.constant 0 : i32
    return %c0_i32, %c0_i32_0 : i32, i32
  }
  func.func @transform_3(%arg0: i32) -> (i32, i32) {
    %c0_i32 = arith.constant 0 : i32
    %c0_i32_0 = arith.constant 0 : i32
    %c0_i32_1 = arith.constant 0 : i32
    return %c0_i32, %c0_i32_0 : i32, i32
  }
  func.func @transform_4(%arg0: i32) -> (i32, i32) {
    %c0_i32 = arith.constant 0 : i32
    %c0_i32_0 = arith.constant 0 : i32
    %c0_i32_1 = arith.constant 0 : i32
    return %c0_i32, %c0_i32_0 : i32, i32
  }
  func.func @transform_5(%arg0: i32) -> (i32, i32) {
    %c0_i32 = arith.constant 0 : i32
    %c0_i32_0 = arith.constant 0 : i32
    return %arg0, %c0_i32 : i32, i32
  }
}

module attributes {stable_mosaic.version = 11 : i64} {
  func.func @_dwconv3x3_kernel(%arg0: i32, %arg1: memref<1x18x18x48xf32, #tpu.memory_space<vmem>>, %arg2: memref<9x48xf32, #tpu.memory_space<vmem>>, %arg3: memref<1x48xf32, #tpu.memory_space<vmem>>, %arg4: memref<1x16x16x48xf32, #tpu.memory_space<vmem>>) attributes {dimension_semantics = [#tpu.dimension_semantics<parallel>], iteration_bounds = array<i64: 4>, scalar_prefetch = 0 : i64, scratch_operands = 0 : i64, tpu.core_type = #tpu.core_type<tc>, window_params = [{transform_indices = @transform_0, window_bounds = array<i64: 1, 18, 18, 48>}, {pipeline_mode = #tpu.pipeline_mode<synchronous>, transform_indices = @transform_1, window_bounds = array<i64: 9, 48>}, {pipeline_mode = #tpu.pipeline_mode<synchronous>, transform_indices = @transform_2, window_bounds = array<i64: 1, 48>}, {transform_indices = @transform_3, window_bounds = array<i64: 1, 16, 16, 48>}]} {
    %c0 = arith.constant 0 : index
    %c0_0 = arith.constant 0 : index
    %c0_1 = arith.constant 0 : index
    %c0_2 = arith.constant 0 : index
    %0 = vector.load %arg1[%c0, %c0_0, %c0_1, %c0_2] : memref<1x18x18x48xf32, #tpu.memory_space<vmem>>, vector<1x18x18x48xf32>
    %cst = arith.constant 0.000000e+00 : f32
    %1 = vector.broadcast %cst : f32 to vector<1x16x16x48xf32>
    %2 = vector.extract_strided_slice %0 {offsets = [0, 0, 0, 0], sizes = [1, 16, 16, 48], strides = [1, 1, 1, 1]} : vector<1x18x18x48xf32> to vector<1x16x16x48xf32>
    %c0_3 = arith.constant 0 : index
    %c0_4 = arith.constant 0 : index
    %3 = vector.load %arg2[%c0_3, %c0_4] : memref<9x48xf32, #tpu.memory_space<vmem>>, vector<1x48xf32>
    %4 = vector.shape_cast %3 : vector<1x48xf32> to vector<1x1x1x48xf32>
    %5 = vector.broadcast %4 : vector<1x1x1x48xf32> to vector<1x16x16x48xf32>
    %6 = arith.mulf %2, %5 : vector<1x16x16x48xf32>
    %7 = arith.addf %1, %6 : vector<1x16x16x48xf32>
    %8 = vector.extract_strided_slice %0 {offsets = [0, 0, 1, 0], sizes = [1, 16, 16, 48], strides = [1, 1, 1, 1]} : vector<1x18x18x48xf32> to vector<1x16x16x48xf32>
    %c1 = arith.constant 1 : index
    %c0_5 = arith.constant 0 : index
    %9 = vector.load %arg2[%c1, %c0_5] : memref<9x48xf32, #tpu.memory_space<vmem>>, vector<1x48xf32>
    %10 = vector.shape_cast %9 : vector<1x48xf32> to vector<1x1x1x48xf32>
    %11 = vector.broadcast %10 : vector<1x1x1x48xf32> to vector<1x16x16x48xf32>
    %12 = arith.mulf %8, %11 : vector<1x16x16x48xf32>
    %13 = arith.addf %7, %12 : vector<1x16x16x48xf32>
    %14 = vector.extract_strided_slice %0 {offsets = [0, 0, 2, 0], sizes = [1, 16, 16, 48], strides = [1, 1, 1, 1]} : vector<1x18x18x48xf32> to vector<1x16x16x48xf32>
    %c2 = arith.constant 2 : index
    %c0_6 = arith.constant 0 : index
    %15 = vector.load %arg2[%c2, %c0_6] : memref<9x48xf32, #tpu.memory_space<vmem>>, vector<1x48xf32>
    %16 = vector.shape_cast %15 : vector<1x48xf32> to vector<1x1x1x48xf32>
    %17 = vector.broadcast %16 : vector<1x1x1x48xf32> to vector<1x16x16x48xf32>
    %18 = arith.mulf %14, %17 : vector<1x16x16x48xf32>
    %19 = arith.addf %13, %18 : vector<1x16x16x48xf32>
    %20 = vector.extract_strided_slice %0 {offsets = [0, 1, 0, 0], sizes = [1, 16, 16, 48], strides = [1, 1, 1, 1]} : vector<1x18x18x48xf32> to vector<1x16x16x48xf32>
    %c3 = arith.constant 3 : index
    %c0_7 = arith.constant 0 : index
    %21 = vector.load %arg2[%c3, %c0_7] : memref<9x48xf32, #tpu.memory_space<vmem>>, vector<1x48xf32>
    %22 = vector.shape_cast %21 : vector<1x48xf32> to vector<1x1x1x48xf32>
    %23 = vector.broadcast %22 : vector<1x1x1x48xf32> to vector<1x16x16x48xf32>
    %24 = arith.mulf %20, %23 : vector<1x16x16x48xf32>
    %25 = arith.addf %19, %24 : vector<1x16x16x48xf32>
    %26 = vector.extract_strided_slice %0 {offsets = [0, 1, 1, 0], sizes = [1, 16, 16, 48], strides = [1, 1, 1, 1]} : vector<1x18x18x48xf32> to vector<1x16x16x48xf32>
    %c4 = arith.constant 4 : index
    %c0_8 = arith.constant 0 : index
    %27 = vector.load %arg2[%c4, %c0_8] : memref<9x48xf32, #tpu.memory_space<vmem>>, vector<1x48xf32>
    %28 = vector.shape_cast %27 : vector<1x48xf32> to vector<1x1x1x48xf32>
    %29 = vector.broadcast %28 : vector<1x1x1x48xf32> to vector<1x16x16x48xf32>
    %30 = arith.mulf %26, %29 : vector<1x16x16x48xf32>
    %31 = arith.addf %25, %30 : vector<1x16x16x48xf32>
    %32 = vector.extract_strided_slice %0 {offsets = [0, 1, 2, 0], sizes = [1, 16, 16, 48], strides = [1, 1, 1, 1]} : vector<1x18x18x48xf32> to vector<1x16x16x48xf32>
    %c5 = arith.constant 5 : index
    %c0_9 = arith.constant 0 : index
    %33 = vector.load %arg2[%c5, %c0_9] : memref<9x48xf32, #tpu.memory_space<vmem>>, vector<1x48xf32>
    %34 = vector.shape_cast %33 : vector<1x48xf32> to vector<1x1x1x48xf32>
    %35 = vector.broadcast %34 : vector<1x1x1x48xf32> to vector<1x16x16x48xf32>
    %36 = arith.mulf %32, %35 : vector<1x16x16x48xf32>
    %37 = arith.addf %31, %36 : vector<1x16x16x48xf32>
    %38 = vector.extract_strided_slice %0 {offsets = [0, 2, 0, 0], sizes = [1, 16, 16, 48], strides = [1, 1, 1, 1]} : vector<1x18x18x48xf32> to vector<1x16x16x48xf32>
    %c6 = arith.constant 6 : index
    %c0_10 = arith.constant 0 : index
    %39 = vector.load %arg2[%c6, %c0_10] : memref<9x48xf32, #tpu.memory_space<vmem>>, vector<1x48xf32>
    %40 = vector.shape_cast %39 : vector<1x48xf32> to vector<1x1x1x48xf32>
    %41 = vector.broadcast %40 : vector<1x1x1x48xf32> to vector<1x16x16x48xf32>
    %42 = arith.mulf %38, %41 : vector<1x16x16x48xf32>
    %43 = arith.addf %37, %42 : vector<1x16x16x48xf32>
    %44 = vector.extract_strided_slice %0 {offsets = [0, 2, 1, 0], sizes = [1, 16, 16, 48], strides = [1, 1, 1, 1]} : vector<1x18x18x48xf32> to vector<1x16x16x48xf32>
    %c7 = arith.constant 7 : index
    %c0_11 = arith.constant 0 : index
    %45 = vector.load %arg2[%c7, %c0_11] : memref<9x48xf32, #tpu.memory_space<vmem>>, vector<1x48xf32>
    %46 = vector.shape_cast %45 : vector<1x48xf32> to vector<1x1x1x48xf32>
    %47 = vector.broadcast %46 : vector<1x1x1x48xf32> to vector<1x16x16x48xf32>
    %48 = arith.mulf %44, %47 : vector<1x16x16x48xf32>
    %49 = arith.addf %43, %48 : vector<1x16x16x48xf32>
    %50 = vector.extract_strided_slice %0 {offsets = [0, 2, 2, 0], sizes = [1, 16, 16, 48], strides = [1, 1, 1, 1]} : vector<1x18x18x48xf32> to vector<1x16x16x48xf32>
    %c8 = arith.constant 8 : index
    %c0_12 = arith.constant 0 : index
    %51 = vector.load %arg2[%c8, %c0_12] : memref<9x48xf32, #tpu.memory_space<vmem>>, vector<1x48xf32>
    %52 = vector.shape_cast %51 : vector<1x48xf32> to vector<1x1x1x48xf32>
    %53 = vector.broadcast %52 : vector<1x1x1x48xf32> to vector<1x16x16x48xf32>
    %54 = arith.mulf %50, %53 : vector<1x16x16x48xf32>
    %55 = arith.addf %49, %54 : vector<1x16x16x48xf32>
    %c0_13 = arith.constant 0 : index
    %c0_14 = arith.constant 0 : index
    %56 = vector.load %arg3[%c0_13, %c0_14] : memref<1x48xf32, #tpu.memory_space<vmem>>, vector<1x48xf32>
    %57 = vector.shape_cast %56 : vector<1x48xf32> to vector<1x1x1x48xf32>
    %58 = vector.broadcast %57 : vector<1x1x1x48xf32> to vector<1x16x16x48xf32>
    %59 = arith.addf %55, %58 : vector<1x16x16x48xf32>
    %c0_15 = arith.constant 0 : index
    %c0_16 = arith.constant 0 : index
    %c0_17 = arith.constant 0 : index
    %c0_18 = arith.constant 0 : index
    %60 = vector.load %arg4[%c0_15, %c0_16, %c0_17, %c0_18] : memref<1x16x16x48xf32, #tpu.memory_space<vmem>>, vector<1x16x16x48xf32>
    tpu.vector_store %arg4[%c0_15, %c0_16, %c0_17, %c0_18], %59 {strides = array<i32>} : memref<1x16x16x48xf32, #tpu.memory_space<vmem>>, vector<1x16x16x48xf32>,
    return
  }
  func.func @transform_0(%arg0: i32) -> (i32, i32, i32, i32) {
    %c0_i32 = arith.constant 0 : i32
    %c0_i32_0 = arith.constant 0 : i32
    %c0_i32_1 = arith.constant 0 : i32
    %c0_i32_2 = arith.constant 0 : i32
    return %arg0, %c0_i32, %c0_i32_0, %c0_i32_1 : i32, i32, i32, i32
  }
  func.func @transform_1(%arg0: i32) -> (i32, i32) {
    %c0_i32 = arith.constant 0 : i32
    %c0_i32_0 = arith.constant 0 : i32
    %c0_i32_1 = arith.constant 0 : i32
    return %c0_i32, %c0_i32_0 : i32, i32
  }
  func.func @transform_2(%arg0: i32) -> (i32, i32) {
    %c0_i32 = arith.constant 0 : i32
    %c0_i32_0 = arith.constant 0 : i32
    %c0_i32_1 = arith.constant 0 : i32
    return %c0_i32, %c0_i32_0 : i32, i32
  }
  func.func @transform_3(%arg0: i32) -> (i32, i32, i32, i32) {
    %c0_i32 = arith.constant 0 : i32
    %c0_i32_0 = arith.constant 0 : i32
    %c0_i32_1 = arith.constant 0 : i32
    %c0_i32_2 = arith.constant 0 : i32
    return %arg0, %c0_i32, %c0_i32_0, %c0_i32_1 : i32, i32, i32, i32
  }
}

module attributes {stable_mosaic.version = 11 : i64} {
  func.func @_matmul_bias_residual_kernel(%arg0: i32, %arg1: memref<512x16xf32, #tpu.memory_space<vmem>>, %arg2: memref<16x16xf32, #tpu.memory_space<vmem>>, %arg3: memref<1x16xf32, #tpu.memory_space<vmem>>, %arg4: memref<512x16xf32, #tpu.memory_space<vmem>>, %arg5: memref<512x16xf32, #tpu.memory_space<vmem>>) attributes {dimension_semantics = [#tpu.dimension_semantics<parallel>], iteration_bounds = array<i64: 2>, scalar_prefetch = 0 : i64, scratch_operands = 0 : i64, tpu.core_type = #tpu.core_type<tc>, window_params = [{transform_indices = @transform_0, window_bounds = array<i64: 512, 16>}, {pipeline_mode = #tpu.pipeline_mode<synchronous>, transform_indices = @transform_1, window_bounds = array<i64: 16, 16>}, {pipeline_mode = #tpu.pipeline_mode<synchronous>, transform_indices = @transform_2, window_bounds = array<i64: 1, 16>}, {transform_indices = @transform_3, window_bounds = array<i64: 512, 16>}, {transform_indices = @transform_4, window_bounds = array<i64: 512, 16>}]} {
    %c0 = arith.constant 0 : index
    %c0_0 = arith.constant 0 : index
    %0 = vector.load %arg1[%c0, %c0_0] : memref<512x16xf32, #tpu.memory_space<vmem>>, vector<512x16xf32>
    %c0_1 = arith.constant 0 : index
    %c0_2 = arith.constant 0 : index
    %1 = vector.load %arg2[%c0_1, %c0_2] : memref<16x16xf32, #tpu.memory_space<vmem>>, vector<16x16xf32>
    %cst = arith.constant dense<0.000000e+00> : vector<512x16xf32>
    %2 = tpu.matmul %0, %1, %cst {dimension_numbers = #tpu.dot_dimension_numbers<[1], [0], [0], [1], [0, 0, 1, 1], [], []>} : vector<512x16xf32>, vector<16x16xf32>, vector<512x16xf32> -> vector<512x16xf32>
    %c0_3 = arith.constant 0 : index
    %c0_4 = arith.constant 0 : index
    %3 = vector.load %arg3[%c0_3, %c0_4] : memref<1x16xf32, #tpu.memory_space<vmem>>, vector<1x16xf32>
    %4 = vector.broadcast %3 : vector<1x16xf32> to vector<512x16xf32>
    %5 = arith.addf %2, %4 : vector<512x16xf32>
    %c0_5 = arith.constant 0 : index
    %c0_6 = arith.constant 0 : index
    %6 = vector.load %arg4[%c0_5, %c0_6] : memref<512x16xf32, #tpu.memory_space<vmem>>, vector<512x16xf32>
    %7 = arith.addf %5, %6 : vector<512x16xf32>
    %c0_7 = arith.constant 0 : index
    %c0_8 = arith.constant 0 : index
    %8 = vector.load %arg5[%c0_7, %c0_8] : memref<512x16xf32, #tpu.memory_space<vmem>>, vector<512x16xf32>
    tpu.vector_store %arg5[%c0_7, %c0_8], %7 {strides = array<i32>} : memref<512x16xf32, #tpu.memory_space<vmem>>, vector<512x16xf32>,
    return
  }
  func.func @transform_0(%arg0: i32) -> (i32, i32) {
    %c0_i32 = arith.constant 0 : i32
    %c0_i32_0 = arith.constant 0 : i32
    return %arg0, %c0_i32 : i32, i32
  }
  func.func @transform_1(%arg0: i32) -> (i32, i32) {
    %c0_i32 = arith.constant 0 : i32
    %c0_i32_0 = arith.constant 0 : i32
    %c0_i32_1 = arith.constant 0 : i32
    return %c0_i32, %c0_i32_0 : i32, i32
  }
  func.func @transform_2(%arg0: i32) -> (i32, i32) {
    %c0_i32 = arith.constant 0 : i32
    %c0_i32_0 = arith.constant 0 : i32
    %c0_i32_1 = arith.constant 0 : i32
    return %c0_i32, %c0_i32_0 : i32, i32
  }
  func.func @transform_3(%arg0: i32) -> (i32, i32) {
    %c0_i32 = arith.constant 0 : i32
    %c0_i32_0 = arith.constant 0 : i32
    return %arg0, %c0_i32 : i32, i32
  }
  func.func @transform_4(%arg0: i32) -> (i32, i32) {
    %c0_i32 = arith.constant 0 : i32
    %c0_i32_0 = arith.constant 0 : i32
    return %arg0, %c0_i32 : i32, i32
  }
}

module attributes {stable_mosaic.version = 11 : i64} {
  func.func @_attention_kernel(%arg0: i32, %arg1: i32, %arg2: memref<1x1x8x256xf32, #tpu.memory_space<vmem>>, %arg3: memref<1x1x8x256xf32, #tpu.memory_space<vmem>>, %arg4: memref<1x1x8x256xf32, #tpu.memory_space<vmem>>, %arg5: memref<1x1x1xf32, #tpu.memory_space<vmem>>, %arg6: memref<1x1x8x256xf32, #tpu.memory_space<vmem>>) attributes {dimension_semantics = [#tpu.dimension_semantics<parallel>, #tpu.dimension_semantics<parallel>], iteration_bounds = array<i64: 4, 2>, scalar_prefetch = 0 : i64, scratch_operands = 0 : i64, tpu.core_type = #tpu.core_type<tc>, window_params = [{transform_indices = @transform_0, window_bounds = array<i64: 1, 1, 8, 256>}, {transform_indices = @transform_1, window_bounds = array<i64: 1, 1, 8, 256>}, {transform_indices = @transform_2, window_bounds = array<i64: 1, 1, 8, 256>}, {transform_indices = @transform_3, window_bounds = array<i64: 1, 1, 1>}, {transform_indices = @transform_4, window_bounds = array<i64: 1, 1, 8, 256>}]} {
    %c0 = arith.constant 0 : index
    %c0_0 = arith.constant 0 : index
    %c0_1 = arith.constant 0 : index
    %c0_2 = arith.constant 0 : index
    %0 = vector.load %arg2[%c0, %c0_0, %c0_1, %c0_2] : memref<1x1x8x256xf32, #tpu.memory_space<vmem>>, vector<1x1x8x256xf32>
    %1 = vector.shape_cast %0 : vector<1x1x8x256xf32> to vector<8x256xf32>
    %c0_3 = arith.constant 0 : index
    %c0_4 = arith.constant 0 : index
    %c0_5 = arith.constant 0 : index
    %c0_6 = arith.constant 0 : index
    %2 = vector.load %arg3[%c0_3, %c0_4, %c0_5, %c0_6] : memref<1x1x8x256xf32, #tpu.memory_space<vmem>>, vector<1x1x8x256xf32>
    %3 = vector.shape_cast %2 : vector<1x1x8x256xf32> to vector<8x256xf32>
    %c0_7 = arith.constant 0 : index
    %c0_8 = arith.constant 0 : index
    %c0_9 = arith.constant 0 : index
    %c0_10 = arith.constant 0 : index
    %4 = vector.load %arg4[%c0_7, %c0_8, %c0_9, %c0_10] : memref<1x1x8x256xf32, #tpu.memory_space<vmem>>, vector<1x1x8x256xf32>
    %5 = vector.shape_cast %4 : vector<1x1x8x256xf32> to vector<8x256xf32>
    %6 = arith.mulf %1, %1 : vector<8x256xf32>
    %cst = arith.constant dense<0.000000e+00> : vector<8xf32>
    %7 = vector.multi_reduction <add>, %6, %cst [1] : vector<8x256xf32> to vector<8xf32>
    %8 = vector.shape_cast %7 : vector<8xf32> to vector<8x1xf32>
    %cst_11 = arith.constant 1.000000e-24 : f32
    %9 = vector.broadcast %cst_11 : f32 to vector<8x1xf32>
    %10 = arith.addf %8, %9 : vector<8x1xf32>
    %11 = math.rsqrt %10 : vector<8x1xf32>
    %12 = vector.broadcast %11 : vector<8x1xf32> to vector<8x256xf32>
    %13 = arith.mulf %1, %12 : vector<8x256xf32>
    %14 = arith.mulf %3, %3 : vector<8x256xf32>
    %cst_12 = arith.constant dense<0.000000e+00> : vector<8xf32>
    %15 = vector.multi_reduction <add>, %14, %cst_12 [1] : vector<8x256xf32> to vector<8xf32>
    %16 = vector.shape_cast %15 : vector<8xf32> to vector<8x1xf32>
    %cst_13 = arith.constant 1.000000e-24 : f32
    %17 = vector.broadcast %cst_13 : f32 to vector<8x1xf32>
    %18 = arith.addf %16, %17 : vector<8x1xf32>
    %19 = math.rsqrt %18 : vector<8x1xf32>
    %20 = vector.broadcast %19 : vector<8x1xf32> to vector<8x256xf32>
    %21 = arith.mulf %3, %20 : vector<8x256xf32>
    %cst_14 = arith.constant dense<0.000000e+00> : vector<8x8xf32>
    %22 = tpu.matmul %13, %21, %cst_14 {dimension_numbers = #tpu.dot_dimension_numbers<[1], [1], [0], [0], [0, 0, 1, 0], [], []>} : vector<8x256xf32>, vector<8x256xf32>, vector<8x8xf32> -> vector<8x8xf32>
    %c0_15 = arith.constant 0 : index
    %c0_16 = arith.constant 0 : index
    %c0_17 = arith.constant 0 : index
    %23 = vector.load %arg5[%c0_15, %c0_16, %c0_17] : memref<1x1x1xf32, #tpu.memory_space<vmem>>, vector<1x1x1xf32>
    %24 = vector.shape_cast %23 : vector<1x1x1xf32> to vector<1x1xf32>
    %25 = vector.broadcast %24 : vector<1x1xf32> to vector<8x8xf32>
    %26 = arith.mulf %22, %25 : vector<8x8xf32>
    %cst_18 = arith.constant dense<0xFF800000> : vector<8xf32>
    %27 = vector.multi_reduction <maximumf>, %26, %cst_18 [1] : vector<8x8xf32> to vector<8xf32>
    %28 = vector.shape_cast %27 : vector<8xf32> to vector<8x1xf32>
    %29 = vector.broadcast %28 : vector<8x1xf32> to vector<8x8xf32>
    %30 = arith.subf %26, %29 : vector<8x8xf32>
    %31 = math.exp %30 : vector<8x8xf32>
    %cst_19 = arith.constant dense<0.000000e+00> : vector<8xf32>
    %32 = vector.multi_reduction <add>, %31, %cst_19 [1] : vector<8x8xf32> to vector<8xf32>
    %33 = vector.shape_cast %32 : vector<8xf32> to vector<8x1xf32>
    %34 = tpu.reciprocal %33 : vector<8x1xf32> -> vector<8x1xf32>
    %35 = vector.broadcast %34 : vector<8x1xf32> to vector<8x8xf32>
    %36 = arith.mulf %31, %35 : vector<8x8xf32>
    %cst_20 = arith.constant dense<0.000000e+00> : vector<8x256xf32>
    %37 = tpu.matmul %36, %5, %cst_20 {dimension_numbers = #tpu.dot_dimension_numbers<[1], [0], [0], [1], [0, 0, 1, 1], [], []>} : vector<8x8xf32>, vector<8x256xf32>, vector<8x256xf32> -> vector<8x256xf32>
    %c0_21 = arith.constant 0 : index
    %c0_22 = arith.constant 0 : index
    %c0_23 = arith.constant 0 : index
    %c0_24 = arith.constant 0 : index
    %38 = vector.load %arg6[%c0_21, %c0_22, %c0_23, %c0_24] : memref<1x1x8x256xf32, #tpu.memory_space<vmem>>, vector<1x1x8x256xf32>
    %39 = vector.shape_cast %38 : vector<1x1x8x256xf32> to vector<8x256xf32>
    %40 = vector.shape_cast %37 : vector<8x256xf32> to vector<1x1x8x256xf32>
    tpu.vector_store %arg6[%c0_21, %c0_22, %c0_23, %c0_24], %40 {strides = array<i32>} : memref<1x1x8x256xf32, #tpu.memory_space<vmem>>, vector<1x1x8x256xf32>,
    return
  }
  func.func @transform_0(%arg0: i32, %arg1: i32) -> (i32, i32, i32, i32) {
    %c0_i32 = arith.constant 0 : i32
    %c0_i32_0 = arith.constant 0 : i32
    %c0_i32_1 = arith.constant 0 : i32
    return %arg0, %arg1, %c0_i32, %c0_i32_0 : i32, i32, i32, i32
  }
  func.func @transform_1(%arg0: i32, %arg1: i32) -> (i32, i32, i32, i32) {
    %c0_i32 = arith.constant 0 : i32
    %c0_i32_0 = arith.constant 0 : i32
    %c0_i32_1 = arith.constant 0 : i32
    return %arg0, %arg1, %c0_i32, %c0_i32_0 : i32, i32, i32, i32
  }
  func.func @transform_2(%arg0: i32, %arg1: i32) -> (i32, i32, i32, i32) {
    %c0_i32 = arith.constant 0 : i32
    %c0_i32_0 = arith.constant 0 : i32
    %c0_i32_1 = arith.constant 0 : i32
    return %arg0, %arg1, %c0_i32, %c0_i32_0 : i32, i32, i32, i32
  }
  func.func @transform_3(%arg0: i32, %arg1: i32) -> (i32, i32, i32) {
    %c0_i32 = arith.constant 0 : i32
    %c0_i32_0 = arith.constant 0 : i32
    %c0_i32_1 = arith.constant 0 : i32
    return %arg1, %c0_i32, %c0_i32_0 : i32, i32, i32
  }
  func.func @transform_4(%arg0: i32, %arg1: i32) -> (i32, i32, i32, i32) {
    %c0_i32 = arith.constant 0 : i32
    %c0_i32_0 = arith.constant 0 : i32
    %c0_i32_1 = arith.constant 0 : i32
    return %arg0, %arg1, %c0_i32, %c0_i32_0 : i32, i32, i32, i32
  }
}

module attributes {stable_mosaic.version = 11 : i64} {
  func.func @_ln_matmul_kernel(%arg0: i32, %arg1: memref<512x16xf32, #tpu.memory_space<vmem>>, %arg2: memref<1x16xf32, #tpu.memory_space<vmem>>, %arg3: memref<1x16xf32, #tpu.memory_space<vmem>>, %arg4: memref<16x64xf32, #tpu.memory_space<vmem>>, %arg5: memref<1x64xf32, #tpu.memory_space<vmem>>, %arg6: memref<512x64xf32, #tpu.memory_space<vmem>>) attributes {dimension_semantics = [#tpu.dimension_semantics<parallel>], iteration_bounds = array<i64: 2>, scalar_prefetch = 0 : i64, scratch_operands = 0 : i64, tpu.core_type = #tpu.core_type<tc>, window_params = [{transform_indices = @transform_0, window_bounds = array<i64: 512, 16>}, {pipeline_mode = #tpu.pipeline_mode<synchronous>, transform_indices = @transform_1, window_bounds = array<i64: 1, 16>}, {pipeline_mode = #tpu.pipeline_mode<synchronous>, transform_indices = @transform_2, window_bounds = array<i64: 1, 16>}, {pipeline_mode = #tpu.pipeline_mode<synchronous>, transform_indices = @transform_3, window_bounds = array<i64: 16, 64>}, {pipeline_mode = #tpu.pipeline_mode<synchronous>, transform_indices = @transform_4, window_bounds = array<i64: 1, 64>}, {transform_indices = @transform_5, window_bounds = array<i64: 512, 64>}]} {
    %c0 = arith.constant 0 : index
    %c0_0 = arith.constant 0 : index
    %0 = vector.load %arg1[%c0, %c0_0] : memref<512x16xf32, #tpu.memory_space<vmem>>, vector<512x16xf32>
    %cst = arith.constant dense<0.000000e+00> : vector<512xf32>
    %1 = vector.multi_reduction <add>, %0, %cst [1] : vector<512x16xf32> to vector<512xf32>
    %2 = vector.shape_cast %1 : vector<512xf32> to vector<512x1xf32>
    %cst_1 = arith.constant 1.600000e+01 : f32
    %3 = vector.broadcast %cst_1 : f32 to vector<512x1xf32>
    %4 = arith.divf %2, %3 : vector<512x1xf32>
    %5 = vector.broadcast %4 : vector<512x1xf32> to vector<512x16xf32>
    %6 = arith.subf %0, %5 : vector<512x16xf32>
    %7 = arith.mulf %6, %6 : vector<512x16xf32>
    %cst_2 = arith.constant dense<0.000000e+00> : vector<512xf32>
    %8 = vector.multi_reduction <add>, %7, %cst_2 [1] : vector<512x16xf32> to vector<512xf32>
    %9 = vector.shape_cast %8 : vector<512xf32> to vector<512x1xf32>
    %cst_3 = arith.constant 1.600000e+01 : f32
    %10 = vector.broadcast %cst_3 : f32 to vector<512x1xf32>
    %11 = arith.divf %9, %10 : vector<512x1xf32>
    %cst_4 = arith.constant 9.99999974E-6 : f32
    %12 = vector.broadcast %cst_4 : f32 to vector<512x1xf32>
    %13 = arith.addf %11, %12 : vector<512x1xf32>
    %14 = math.rsqrt %13 : vector<512x1xf32>
    %15 = vector.broadcast %14 : vector<512x1xf32> to vector<512x16xf32>
    %16 = arith.mulf %6, %15 : vector<512x16xf32>
    %c0_5 = arith.constant 0 : index
    %c0_6 = arith.constant 0 : index
    %17 = vector.load %arg2[%c0_5, %c0_6] : memref<1x16xf32, #tpu.memory_space<vmem>>, vector<1x16xf32>
    %18 = vector.broadcast %17 : vector<1x16xf32> to vector<512x16xf32>
    %19 = arith.mulf %16, %18 : vector<512x16xf32>
    %c0_7 = arith.constant 0 : index
    %c0_8 = arith.constant 0 : index
    %20 = vector.load %arg3[%c0_7, %c0_8] : memref<1x16xf32, #tpu.memory_space<vmem>>, vector<1x16xf32>
    %21 = vector.broadcast %20 : vector<1x16xf32> to vector<512x16xf32>
    %22 = arith.addf %19, %21 : vector<512x16xf32>
    %c0_9 = arith.constant 0 : index
    %c0_10 = arith.constant 0 : index
    %23 = vector.load %arg4[%c0_9, %c0_10] : memref<16x64xf32, #tpu.memory_space<vmem>>, vector<16x64xf32>
    %cst_11 = arith.constant dense<0.000000e+00> : vector<512x64xf32>
    %24 = tpu.matmul %22, %23, %cst_11 {dimension_numbers = #tpu.dot_dimension_numbers<[1], [0], [0], [1], [0, 0, 1, 1], [], []>} : vector<512x16xf32>, vector<16x64xf32>, vector<512x64xf32> -> vector<512x64xf32>
    %c0_12 = arith.constant 0 : index
    %c0_13 = arith.constant 0 : index
    %25 = vector.load %arg5[%c0_12, %c0_13] : memref<1x64xf32, #tpu.memory_space<vmem>>, vector<1x64xf32>
    %26 = vector.broadcast %25 : vector<1x64xf32> to vector<512x64xf32>
    %27 = arith.addf %24, %26 : vector<512x64xf32>
    %c0_14 = arith.constant 0 : index
    %c0_15 = arith.constant 0 : index
    %28 = vector.load %arg6[%c0_14, %c0_15] : memref<512x64xf32, #tpu.memory_space<vmem>>, vector<512x64xf32>
    tpu.vector_store %arg6[%c0_14, %c0_15], %27 {strides = array<i32>} : memref<512x64xf32, #tpu.memory_space<vmem>>, vector<512x64xf32>,
    return
  }
  func.func @transform_0(%arg0: i32) -> (i32, i32) {
    %c0_i32 = arith.constant 0 : i32
    %c0_i32_0 = arith.constant 0 : i32
    return %arg0, %c0_i32 : i32, i32
  }
  func.func @transform_1(%arg0: i32) -> (i32, i32) {
    %c0_i32 = arith.constant 0 : i32
    %c0_i32_0 = arith.constant 0 : i32
    %c0_i32_1 = arith.constant 0 : i32
    return %c0_i32, %c0_i32_0 : i32, i32
  }
  func.func @transform_2(%arg0: i32) -> (i32, i32) {
    %c0_i32 = arith.constant 0 : i32
    %c0_i32_0 = arith.constant 0 : i32
    %c0_i32_1 = arith.constant 0 : i32
    return %c0_i32, %c0_i32_0 : i32, i32
  }
  func.func @transform_3(%arg0: i32) -> (i32, i32) {
    %c0_i32 = arith.constant 0 : i32
    %c0_i32_0 = arith.constant 0 : i32
    %c0_i32_1 = arith.constant 0 : i32
    return %c0_i32, %c0_i32_0 : i32, i32
  }
  func.func @transform_4(%arg0: i32) -> (i32, i32) {
    %c0_i32 = arith.constant 0 : i32
    %c0_i32_0 = arith.constant 0 : i32
    %c0_i32_1 = arith.constant 0 : i32
    return %c0_i32, %c0_i32_0 : i32, i32
  }
  func.func @transform_5(%arg0: i32) -> (i32, i32) {
    %c0_i32 = arith.constant 0 : i32
    %c0_i32_0 = arith.constant 0 : i32
    return %arg0, %c0_i32 : i32, i32
  }
}

module attributes {stable_mosaic.version = 11 : i64} {
  func.func @_dwconv3x3_kernel(%arg0: i32, %arg1: memref<1x18x18x64xf32, #tpu.memory_space<vmem>>, %arg2: memref<9x64xf32, #tpu.memory_space<vmem>>, %arg3: memref<1x64xf32, #tpu.memory_space<vmem>>, %arg4: memref<1x16x16x64xf32, #tpu.memory_space<vmem>>) attributes {dimension_semantics = [#tpu.dimension_semantics<parallel>], iteration_bounds = array<i64: 4>, scalar_prefetch = 0 : i64, scratch_operands = 0 : i64, tpu.core_type = #tpu.core_type<tc>, window_params = [{transform_indices = @transform_0, window_bounds = array<i64: 1, 18, 18, 64>}, {pipeline_mode = #tpu.pipeline_mode<synchronous>, transform_indices = @transform_1, window_bounds = array<i64: 9, 64>}, {pipeline_mode = #tpu.pipeline_mode<synchronous>, transform_indices = @transform_2, window_bounds = array<i64: 1, 64>}, {transform_indices = @transform_3, window_bounds = array<i64: 1, 16, 16, 64>}]} {
    %c0 = arith.constant 0 : index
    %c0_0 = arith.constant 0 : index
    %c0_1 = arith.constant 0 : index
    %c0_2 = arith.constant 0 : index
    %0 = vector.load %arg1[%c0, %c0_0, %c0_1, %c0_2] : memref<1x18x18x64xf32, #tpu.memory_space<vmem>>, vector<1x18x18x64xf32>
    %cst = arith.constant 0.000000e+00 : f32
    %1 = vector.broadcast %cst : f32 to vector<1x16x16x64xf32>
    %2 = vector.extract_strided_slice %0 {offsets = [0, 0, 0, 0], sizes = [1, 16, 16, 64], strides = [1, 1, 1, 1]} : vector<1x18x18x64xf32> to vector<1x16x16x64xf32>
    %c0_3 = arith.constant 0 : index
    %c0_4 = arith.constant 0 : index
    %3 = vector.load %arg2[%c0_3, %c0_4] : memref<9x64xf32, #tpu.memory_space<vmem>>, vector<1x64xf32>
    %4 = vector.shape_cast %3 : vector<1x64xf32> to vector<1x1x1x64xf32>
    %5 = vector.broadcast %4 : vector<1x1x1x64xf32> to vector<1x16x16x64xf32>
    %6 = arith.mulf %2, %5 : vector<1x16x16x64xf32>
    %7 = arith.addf %1, %6 : vector<1x16x16x64xf32>
    %8 = vector.extract_strided_slice %0 {offsets = [0, 0, 1, 0], sizes = [1, 16, 16, 64], strides = [1, 1, 1, 1]} : vector<1x18x18x64xf32> to vector<1x16x16x64xf32>
    %c1 = arith.constant 1 : index
    %c0_5 = arith.constant 0 : index
    %9 = vector.load %arg2[%c1, %c0_5] : memref<9x64xf32, #tpu.memory_space<vmem>>, vector<1x64xf32>
    %10 = vector.shape_cast %9 : vector<1x64xf32> to vector<1x1x1x64xf32>
    %11 = vector.broadcast %10 : vector<1x1x1x64xf32> to vector<1x16x16x64xf32>
    %12 = arith.mulf %8, %11 : vector<1x16x16x64xf32>
    %13 = arith.addf %7, %12 : vector<1x16x16x64xf32>
    %14 = vector.extract_strided_slice %0 {offsets = [0, 0, 2, 0], sizes = [1, 16, 16, 64], strides = [1, 1, 1, 1]} : vector<1x18x18x64xf32> to vector<1x16x16x64xf32>
    %c2 = arith.constant 2 : index
    %c0_6 = arith.constant 0 : index
    %15 = vector.load %arg2[%c2, %c0_6] : memref<9x64xf32, #tpu.memory_space<vmem>>, vector<1x64xf32>
    %16 = vector.shape_cast %15 : vector<1x64xf32> to vector<1x1x1x64xf32>
    %17 = vector.broadcast %16 : vector<1x1x1x64xf32> to vector<1x16x16x64xf32>
    %18 = arith.mulf %14, %17 : vector<1x16x16x64xf32>
    %19 = arith.addf %13, %18 : vector<1x16x16x64xf32>
    %20 = vector.extract_strided_slice %0 {offsets = [0, 1, 0, 0], sizes = [1, 16, 16, 64], strides = [1, 1, 1, 1]} : vector<1x18x18x64xf32> to vector<1x16x16x64xf32>
    %c3 = arith.constant 3 : index
    %c0_7 = arith.constant 0 : index
    %21 = vector.load %arg2[%c3, %c0_7] : memref<9x64xf32, #tpu.memory_space<vmem>>, vector<1x64xf32>
    %22 = vector.shape_cast %21 : vector<1x64xf32> to vector<1x1x1x64xf32>
    %23 = vector.broadcast %22 : vector<1x1x1x64xf32> to vector<1x16x16x64xf32>
    %24 = arith.mulf %20, %23 : vector<1x16x16x64xf32>
    %25 = arith.addf %19, %24 : vector<1x16x16x64xf32>
    %26 = vector.extract_strided_slice %0 {offsets = [0, 1, 1, 0], sizes = [1, 16, 16, 64], strides = [1, 1, 1, 1]} : vector<1x18x18x64xf32> to vector<1x16x16x64xf32>
    %c4 = arith.constant 4 : index
    %c0_8 = arith.constant 0 : index
    %27 = vector.load %arg2[%c4, %c0_8] : memref<9x64xf32, #tpu.memory_space<vmem>>, vector<1x64xf32>
    %28 = vector.shape_cast %27 : vector<1x64xf32> to vector<1x1x1x64xf32>
    %29 = vector.broadcast %28 : vector<1x1x1x64xf32> to vector<1x16x16x64xf32>
    %30 = arith.mulf %26, %29 : vector<1x16x16x64xf32>
    %31 = arith.addf %25, %30 : vector<1x16x16x64xf32>
    %32 = vector.extract_strided_slice %0 {offsets = [0, 1, 2, 0], sizes = [1, 16, 16, 64], strides = [1, 1, 1, 1]} : vector<1x18x18x64xf32> to vector<1x16x16x64xf32>
    %c5 = arith.constant 5 : index
    %c0_9 = arith.constant 0 : index
    %33 = vector.load %arg2[%c5, %c0_9] : memref<9x64xf32, #tpu.memory_space<vmem>>, vector<1x64xf32>
    %34 = vector.shape_cast %33 : vector<1x64xf32> to vector<1x1x1x64xf32>
    %35 = vector.broadcast %34 : vector<1x1x1x64xf32> to vector<1x16x16x64xf32>
    %36 = arith.mulf %32, %35 : vector<1x16x16x64xf32>
    %37 = arith.addf %31, %36 : vector<1x16x16x64xf32>
    %38 = vector.extract_strided_slice %0 {offsets = [0, 2, 0, 0], sizes = [1, 16, 16, 64], strides = [1, 1, 1, 1]} : vector<1x18x18x64xf32> to vector<1x16x16x64xf32>
    %c6 = arith.constant 6 : index
    %c0_10 = arith.constant 0 : index
    %39 = vector.load %arg2[%c6, %c0_10] : memref<9x64xf32, #tpu.memory_space<vmem>>, vector<1x64xf32>
    %40 = vector.shape_cast %39 : vector<1x64xf32> to vector<1x1x1x64xf32>
    %41 = vector.broadcast %40 : vector<1x1x1x64xf32> to vector<1x16x16x64xf32>
    %42 = arith.mulf %38, %41 : vector<1x16x16x64xf32>
    %43 = arith.addf %37, %42 : vector<1x16x16x64xf32>
    %44 = vector.extract_strided_slice %0 {offsets = [0, 2, 1, 0], sizes = [1, 16, 16, 64], strides = [1, 1, 1, 1]} : vector<1x18x18x64xf32> to vector<1x16x16x64xf32>
    %c7 = arith.constant 7 : index
    %c0_11 = arith.constant 0 : index
    %45 = vector.load %arg2[%c7, %c0_11] : memref<9x64xf32, #tpu.memory_space<vmem>>, vector<1x64xf32>
    %46 = vector.shape_cast %45 : vector<1x64xf32> to vector<1x1x1x64xf32>
    %47 = vector.broadcast %46 : vector<1x1x1x64xf32> to vector<1x16x16x64xf32>
    %48 = arith.mulf %44, %47 : vector<1x16x16x64xf32>
    %49 = arith.addf %43, %48 : vector<1x16x16x64xf32>
    %50 = vector.extract_strided_slice %0 {offsets = [0, 2, 2, 0], sizes = [1, 16, 16, 64], strides = [1, 1, 1, 1]} : vector<1x18x18x64xf32> to vector<1x16x16x64xf32>
    %c8 = arith.constant 8 : index
    %c0_12 = arith.constant 0 : index
    %51 = vector.load %arg2[%c8, %c0_12] : memref<9x64xf32, #tpu.memory_space<vmem>>, vector<1x64xf32>
    %52 = vector.shape_cast %51 : vector<1x64xf32> to vector<1x1x1x64xf32>
    %53 = vector.broadcast %52 : vector<1x1x1x64xf32> to vector<1x16x16x64xf32>
    %54 = arith.mulf %50, %53 : vector<1x16x16x64xf32>
    %55 = arith.addf %49, %54 : vector<1x16x16x64xf32>
    %c0_13 = arith.constant 0 : index
    %c0_14 = arith.constant 0 : index
    %56 = vector.load %arg3[%c0_13, %c0_14] : memref<1x64xf32, #tpu.memory_space<vmem>>, vector<1x64xf32>
    %57 = vector.shape_cast %56 : vector<1x64xf32> to vector<1x1x1x64xf32>
    %58 = vector.broadcast %57 : vector<1x1x1x64xf32> to vector<1x16x16x64xf32>
    %59 = arith.addf %55, %58 : vector<1x16x16x64xf32>
    %c0_15 = arith.constant 0 : index
    %c0_16 = arith.constant 0 : index
    %c0_17 = arith.constant 0 : index
    %c0_18 = arith.constant 0 : index
    %60 = vector.load %arg4[%c0_15, %c0_16, %c0_17, %c0_18] : memref<1x16x16x64xf32, #tpu.memory_space<vmem>>, vector<1x16x16x64xf32>
    tpu.vector_store %arg4[%c0_15, %c0_16, %c0_17, %c0_18], %59 {strides = array<i32>} : memref<1x16x16x64xf32, #tpu.memory_space<vmem>>, vector<1x16x16x64xf32>,
    return
  }
  func.func @transform_0(%arg0: i32) -> (i32, i32, i32, i32) {
    %c0_i32 = arith.constant 0 : i32
    %c0_i32_0 = arith.constant 0 : i32
    %c0_i32_1 = arith.constant 0 : i32
    %c0_i32_2 = arith.constant 0 : i32
    return %arg0, %c0_i32, %c0_i32_0, %c0_i32_1 : i32, i32, i32, i32
  }
  func.func @transform_1(%arg0: i32) -> (i32, i32) {
    %c0_i32 = arith.constant 0 : i32
    %c0_i32_0 = arith.constant 0 : i32
    %c0_i32_1 = arith.constant 0 : i32
    return %c0_i32, %c0_i32_0 : i32, i32
  }
  func.func @transform_2(%arg0: i32) -> (i32, i32) {
    %c0_i32 = arith.constant 0 : i32
    %c0_i32_0 = arith.constant 0 : i32
    %c0_i32_1 = arith.constant 0 : i32
    return %c0_i32, %c0_i32_0 : i32, i32
  }
  func.func @transform_3(%arg0: i32) -> (i32, i32, i32, i32) {
    %c0_i32 = arith.constant 0 : i32
    %c0_i32_0 = arith.constant 0 : i32
    %c0_i32_1 = arith.constant 0 : i32
    %c0_i32_2 = arith.constant 0 : i32
    return %arg0, %c0_i32, %c0_i32_0, %c0_i32_1 : i32, i32, i32, i32
  }
}

module attributes {stable_mosaic.version = 11 : i64} {
  func.func @_gated_ffn_kernel(%arg0: i32, %arg1: memref<512x64xf32, #tpu.memory_space<vmem>>, %arg2: memref<32x16xf32, #tpu.memory_space<vmem>>, %arg3: memref<1x16xf32, #tpu.memory_space<vmem>>, %arg4: memref<512x16xf32, #tpu.memory_space<vmem>>, %arg5: memref<512x16xf32, #tpu.memory_space<vmem>>) attributes {dimension_semantics = [#tpu.dimension_semantics<parallel>], iteration_bounds = array<i64: 2>, scalar_prefetch = 0 : i64, scratch_operands = 0 : i64, tpu.core_type = #tpu.core_type<tc>, window_params = [{transform_indices = @transform_0, window_bounds = array<i64: 512, 64>}, {pipeline_mode = #tpu.pipeline_mode<synchronous>, transform_indices = @transform_1, window_bounds = array<i64: 32, 16>}, {pipeline_mode = #tpu.pipeline_mode<synchronous>, transform_indices = @transform_2, window_bounds = array<i64: 1, 16>}, {transform_indices = @transform_3, window_bounds = array<i64: 512, 16>}, {transform_indices = @transform_4, window_bounds = array<i64: 512, 16>}]} {
    %c0 = arith.constant 0 : index
    %c0_0 = arith.constant 0 : index
    %0 = vector.load %arg1[%c0, %c0_0] : memref<512x64xf32, #tpu.memory_space<vmem>>, vector<512x32xf32>
    %c0_1 = arith.constant 0 : index
    %c32 = arith.constant 32 : index
    %1 = vector.load %arg1[%c0_1, %c32] : memref<512x64xf32, #tpu.memory_space<vmem>>, vector<512x32xf32>
    %cst = arith.constant 5.000000e-01 : f32
    %2 = vector.broadcast %cst : f32 to vector<512x32xf32>
    %3 = arith.mulf %2, %0 : vector<512x32xf32>
    %cst_2 = arith.constant 4.471500e-02 : f32
    %4 = vector.broadcast %cst_2 : f32 to vector<512x32xf32>
    %5 = arith.mulf %4, %0 : vector<512x32xf32>
    %6 = arith.mulf %5, %0 : vector<512x32xf32>
    %7 = arith.mulf %6, %0 : vector<512x32xf32>
    %8 = arith.addf %0, %7 : vector<512x32xf32>
    %cst_3 = arith.constant 0.797884583 : f32
    %9 = vector.broadcast %cst_3 : f32 to vector<512x32xf32>
    %10 = arith.mulf %9, %8 : vector<512x32xf32>
    %11 = math.tanh %10 : vector<512x32xf32>
    %cst_4 = arith.constant 1.000000e+00 : f32
    %12 = vector.broadcast %cst_4 : f32 to vector<512x32xf32>
    %13 = arith.addf %12, %11 : vector<512x32xf32>
    %14 = arith.mulf %3, %13 : vector<512x32xf32>
    %15 = arith.mulf %14, %1 : vector<512x32xf32>
    %c0_5 = arith.constant 0 : index
    %c0_6 = arith.constant 0 : index
    %16 = vector.load %arg2[%c0_5, %c0_6] : memref<32x16xf32, #tpu.memory_space<vmem>>, vector<32x16xf32>
    %cst_7 = arith.constant dense<0.000000e+00> : vector<512x16xf32>
    %17 = tpu.matmul %15, %16, %cst_7 {dimension_numbers = #tpu.dot_dimension_numbers<[1], [0], [0], [1], [0, 0, 1, 1], [], []>} : vector<512x32xf32>, vector<32x16xf32>, vector<512x16xf32> -> vector<512x16xf32>
    %c0_8 = arith.constant 0 : index
    %c0_9 = arith.constant 0 : index
    %18 = vector.load %arg3[%c0_8, %c0_9] : memref<1x16xf32, #tpu.memory_space<vmem>>, vector<1x16xf32>
    %19 = vector.broadcast %18 : vector<1x16xf32> to vector<512x16xf32>
    %20 = arith.addf %17, %19 : vector<512x16xf32>
    %c0_10 = arith.constant 0 : index
    %c0_11 = arith.constant 0 : index
    %21 = vector.load %arg4[%c0_10, %c0_11] : memref<512x16xf32, #tpu.memory_space<vmem>>, vector<512x16xf32>
    %22 = arith.addf %20, %21 : vector<512x16xf32>
    %c0_12 = arith.constant 0 : index
    %c0_13 = arith.constant 0 : index
    %23 = vector.load %arg5[%c0_12, %c0_13] : memref<512x16xf32, #tpu.memory_space<vmem>>, vector<512x16xf32>
    tpu.vector_store %arg5[%c0_12, %c0_13], %22 {strides = array<i32>} : memref<512x16xf32, #tpu.memory_space<vmem>>, vector<512x16xf32>,
    return
  }
  func.func @transform_0(%arg0: i32) -> (i32, i32) {
    %c0_i32 = arith.constant 0 : i32
    %c0_i32_0 = arith.constant 0 : i32
    return %arg0, %c0_i32 : i32, i32
  }
  func.func @transform_1(%arg0: i32) -> (i32, i32) {
    %c0_i32 = arith.constant 0 : i32
    %c0_i32_0 = arith.constant 0 : i32
    %c0_i32_1 = arith.constant 0 : i32
    return %c0_i32, %c0_i32_0 : i32, i32
  }
  func.func @transform_2(%arg0: i32) -> (i32, i32) {
    %c0_i32 = arith.constant 0 : i32
    %c0_i32_0 = arith.constant 0 : i32
    %c0_i32_1 = arith.constant 0 : i32
    return %c0_i32, %c0_i32_0 : i32, i32
  }
  func.func @transform_3(%arg0: i32) -> (i32, i32) {
    %c0_i32 = arith.constant 0 : i32
    %c0_i32_0 = arith.constant 0 : i32
    return %arg0, %c0_i32 : i32, i32
  }
  func.func @transform_4(%arg0: i32) -> (i32, i32) {
    %c0_i32 = arith.constant 0 : i32
    %c0_i32_0 = arith.constant 0 : i32
    return %arg0, %c0_i32 : i32, i32
  }
}

</mosaic_0001>

<llo_original>
// kernel: transformer_block_forward.7
$region0: #{transformer_block_forward.7}
  #allocation0 [shape = 'u32[]', space=smem, size = 0x4, offset = 0x4, fixed_abs, tag = 'smem constant byte address 0x4 - core index']
  #allocation1 [shape = 'u32[144,128]{1,0:T(1,128)}', space=vmem, size = 0x12000, scoped, tag = 'internal scratch']
  %s0 = inlined_call_operand.vmem [shape: f32[1024,16], index: 0, kind: input, shape index: {}]
  %s1 = inlined_call_operand.vmem [shape: f32[1,16], index: 1, kind: input, shape index: {}]
  %s2 = inlined_call_operand.vmem [shape: f32[1,16], index: 2, kind: input, shape index: {}]
  %s3 = inlined_call_operand.vmem [shape: f32[16,48], index: 3, kind: input, shape index: {}]
  %s4 = inlined_call_operand.vmem [shape: f32[1,48], index: 4, kind: input, shape index: {}]
  %s5 = inlined_call_operand.vmem [shape: f32[1024,48], index: 5, kind: output, shape index: {}]
  %s6 = sld [smem:[#allocation0]]
  $region53: #{transformer_block_forward.7} parent=0
    _
  %s8 = ssub.s32 1, %s6
  %s9 = scalar_select 0, %s8, %s6
  loop: start=0, step=1, limit=4
  $region2: #{transformer_block_forward.7} parent=0 // loop_pre_header
    _
  $region3: #{transformer_block_forward.7} parent=0 // loop_header
    %s11 = sphi 0, %s15
    %p12 = scmp.ge.s32.totalorder %s11, 4
    %s21 = sphi 0, %s23
    %s24 = sphi 0, %s21
    %s25 = sphi 0, %s24
    %s41 = sphi 0, %s25
    %s45 = sphi 0, %s45
    %s47 = sphi 0, %s45
    %s48 = sphi 0, %s47
    %s62 = sphi 0, %s48
    %s66 = sphi 0, %s66
    %s68 = sphi 0, %s66
    %s69 = sphi 0, %s68
    %s83 = sphi 0, %s69
    %s87 = sphi 0, %s87
    %s89 = sphi 0, %s87
    %s90 = sphi 0, %s89
    %s104 = sphi 0, %s90
    %s108 = sphi 0, %s108
    %s110 = sphi 0, %s108
    %s111 = sphi 0, %s110
    %s125 = sphi 0, %s111
    %s131 = sphi 0, %s133
    %s134 = sphi 0, %s131
    %s135 = sphi 0, %s134
    %s151 = sphi 0, %s135
  $region4: #{transformer_block_forward.7} parent=0 // loop_header_branch
    %14 = sbr.rel (%p12) target = $region8
  $region5: #{transformer_block_forward.7} parent=0 // loop_body
    %s16 = ssub.s32 %s11, 1
    %s17 = ssub.s32 %s11, 2
    %s18 = sadd.s32 %s11, 1
    %s19 = ssub.s32 %s11, %s18
    %p20 = scmp.eq.s32.totalorder %s19, 0
    %s22 = sadd.s32 %s21, 1
    %s23 = scalar_select %p20, %s21, %s22
    %p26 = pneg %p20
    %p27 = scmp.eq.s32.totalorder %s11, 1
    %p28 = por %p26, %p27
    %p29 = scmp.ne.s32.totalorder %s21, %s24
    %p30 = scmp.eq.s32.totalorder %s11, 0
    %p31 = por %p29, %p30
    %p32 = scmp.ne.s32.totalorder %s21, %s24
    %p33 = scmp.eq.s32.totalorder %s16, 1
    %p34 = por %p32, %p33
    %p35 = scmp.ne.s32.totalorder %s24, %s25
    %p36 = scmp.eq.s32.totalorder %s16, 0
    %p37 = por %p35, %p36
    %p38 = scmp.ne.s32.totalorder %s24, %s25
    %p39 = scmp.eq.s32.totalorder %s17, 1
    %p40 = por %p38, %p39
    %p42 = scmp.ne.s32.totalorder %s25, %s41
    %p43 = scmp.eq.s32.totalorder %s17, 0
    %p44 = por %p42, %p43
    %s46 = sadd.s32 %s45, 1
    %p49 = scmp.eq.s32.totalorder %s11, 1
    %p50 = scmp.ne.s32.totalorder %s45, %s47
    %p51 = scmp.eq.s32.totalorder %s11, 0
    %p52 = por %p50, %p51
    %p53 = scmp.ne.s32.totalorder %s45, %s47
    %p54 = scmp.eq.s32.totalorder %s16, 1
    %p55 = por %p53, %p54
    %p56 = scmp.ne.s32.totalorder %s47, %s48
    %p57 = scmp.eq.s32.totalorder %s16, 0
    %p58 = por %p56, %p57
    %p59 = scmp.ne.s32.totalorder %s47, %s48
    %p60 = scmp.eq.s32.totalorder %s17, 1
    %p61 = por %p59, %p60
    %p63 = scmp.ne.s32.totalorder %s48, %s62
    %p64 = scmp.eq.s32.totalorder %s17, 0
    %p65 = por %p63, %p64
    %s67 = sadd.s32 %s66, 1
    %p70 = scmp.eq.s32.totalorder %s11, 1
    %p71 = scmp.ne.s32.totalorder %s66, %s68
    %p72 = scmp.eq.s32.totalorder %s11, 0
    %p73 = por %p71, %p72
    %p74 = scmp.ne.s32.totalorder %s66, %s68
    %p75 = scmp.eq.s32.totalorder %s16, 1
    %p76 = por %p74, %p75
    %p77 = scmp.ne.s32.totalorder %s68, %s69
    %p78 = scmp.eq.s32.totalorder %s16, 0
    %p79 = por %p77, %p78
    %p80 = scmp.ne.s32.totalorder %s68, %s69
    %p81 = scmp.eq.s32.totalorder %s17, 1
    %p82 = por %p80, %p81
    %p84 = scmp.ne.s32.totalorder %s69, %s83
    %p85 = scmp.eq.s32.totalorder %s17, 0
    %p86 = por %p84, %p85
    %s88 = sadd.s32 %s87, 1
    %p91 = scmp.eq.s32.totalorder %s11, 1
    %p92 = scmp.ne.s32.totalorder %s87, %s89
    %p93 = scmp.eq.s32.totalorder %s11, 0
    %p94 = por %p92, %p93
    %p95 = scmp.ne.s32.totalorder %s87, %s89
    %p96 = scmp.eq.s32.totalorder %s16, 1
    %p97 = por %p95, %p96
    %p98 = scmp.ne.s32.totalorder %s89, %s90
    %p99 = scmp.eq.s32.totalorder %s16, 0
    %p100 = por %p98, %p99
    %p101 = scmp.ne.s32.totalorder %s89, %s90
    %p102 = scmp.eq.s32.totalorder %s17, 1
    %p103 = por %p101, %p102
    %p105 = scmp.ne.s32.totalorder %s90, %s104
    %p106 = scmp.eq.s32.totalorder %s17, 0
    %p107 = por %p105, %p106
    %s109 = sadd.s32 %s108, 1
    %p112 = scmp.eq.s32.totalorder %s11, 1
    %p113 = scmp.ne.s32.totalorder %s108, %s110
    %p114 = scmp.eq.s32.totalorder %s11, 0
    %p115 = por %p113, %p114
    %p116 = scmp.ne.s32.totalorder %s108, %s110
    %p117 = scmp.eq.s32.totalorder %s16, 1
    %p118 = por %p116, %p117
    %p119 = scmp.ne.s32.totalorder %s110, %s111
    %p120 = scmp.eq.s32.totalorder %s16, 0
    %p121 = por %p119, %p120
    %p122 = scmp.ne.s32.totalorder %s110, %s111
    %p123 = scmp.eq.s32.totalorder %s17, 1
    %p124 = por %p122, %p123
    %p126 = scmp.ne.s32.totalorder %s111, %s125
    %p127 = scmp.eq.s32.totalorder %s17, 0
    %p128 = por %p126, %p127
    %s129 = ssub.s32 %s11, %s18
    %p130 = scmp.eq.s32.totalorder %s129, 0
    %s132 = sadd.s32 %s131, 1
    %s133 = scalar_select %p130, %s131, %s132
    %p136 = pneg %p130
    %p137 = scmp.eq.s32.totalorder %s11, 1
    %p138 = por %p136, %p137
    %p139 = scmp.ne.s32.totalorder %s131, %s134
    %p140 = scmp.eq.s32.totalorder %s11, 0
    %p141 = por %p139, %p140
    %p142 = scmp.ne.s32.totalorder %s131, %s134
    %p143 = scmp.eq.s32.totalorder %s16, 1
    %p144 = por %p142, %p143
    %p145 = scmp.ne.s32.totalorder %s134, %s135
    %p146 = scmp.eq.s32.totalorder %s16, 0
    %p147 = por %p145, %p146
    %p148 = scmp.ne.s32.totalorder %s134, %s135
    %p149 = scmp.eq.s32.totalorder %s17, 1
    %p150 = por %p148, %p149
    %p152 = scmp.ne.s32.totalorder %s135, %s151
    %p153 = scmp.eq.s32.totalorder %s17, 0
    %p154 = por %p152, %p153
    %p155 = scmp.le.s32.totalorder 1, %s11
    %p156 = scmp.lt.s32.totalorder %s11, 3
    %p157 = pnand %p155, %p156
    %p158 = pneg %p157
    // Predicated region
    $region9: #{transformer_block_forward.7} parent=5 // pred_check
      _
    $region10: #{transformer_block_forward.7} parent=5 // pred_check_branch
      %160 = sbr.rel (%p157) target = $region12
    $region11: #{transformer_block_forward.7} parent=5 // pred_region
      %s161 = ssub.s32 %s11, 1
      // Predicated region
      $region13: #{transformer_block_forward.7} parent=11 // pred_check
        %p162 = pneg %p58
      $region14: #{transformer_block_forward.7} parent=11 // pred_check_branch
        %164 = sbr.rel (%p162) target = $region16
      $region15: #{transformer_block_forward.7} parent=11 // pred_region
        _
      $region16: #{transformer_block_forward.7} parent=11 // pred_fallthru
        _
      // Predicated region
      $region17: #{transformer_block_forward.7} parent=11 // pred_check
        %p165 = pneg %p79
      $region18: #{transformer_block_forward.7} parent=11 // pred_check_branch
        %167 = sbr.rel (%p165) target = $region20
      $region19: #{transformer_block_forward.7} parent=11 // pred_region
        _
      $region20: #{transformer_block_forward.7} parent=11 // pred_fallthru
        _
      // Predicated region
      $region21: #{transformer_block_forward.7} parent=11 // pred_check
        %p168 = pneg %p100
      $region22: #{transformer_block_forward.7} parent=11 // pred_check_branch
        %170 = sbr.rel (%p168) target = $region24
      $region23: #{transformer_block_forward.7} parent=11 // pred_region
        _
      $region24: #{transformer_block_forward.7} parent=11 // pred_fallthru
        _
      // Predicated region
      $region25: #{transformer_block_forward.7} parent=11 // pred_check
        %p171 = pneg %p121
      $region26: #{transformer_block_forward.7} parent=11 // pred_check_branch
        %173 = sbr.rel (%p171) target = $region28
      $region27: #{transformer_block_forward.7} parent=11 // pred_region
        _
      $region28: #{transformer_block_forward.7} parent=11 // pred_fallthru
        _
    $region12: #{transformer_block_forward.7} parent=5 // pred_fallthru
      _
    %p174 = scmp.lt.s32.totalorder %s11, 2
    // Predicated region
    $region29: #{transformer_block_forward.7} parent=5 // pred_check
      %p175 = pneg %p174
    $region30: #{transformer_block_forward.7} parent=5 // pred_check_branch
      %177 = sbr.rel (%p175) target = $region32
    $region31: #{transformer_block_forward.7} parent=5 // pred_region
      // Predicated region
      $region33: #{transformer_block_forward.7} parent=31 // pred_check
        %p178 = pneg %p31
      $region34: #{transformer_block_forward.7} parent=31 // pred_check_branch
        %180 = sbr.rel (%p178) target = $region36
      $region35: #{transformer_block_forward.7} parent=31 // pred_region
        %s181 = smul.u32 64, %s11
        %p182 = scmp.lt.s32.totalorder %s181, 127
        %s183 = scalar_select %p182, %s181, 127
        %s184 = smul.addr %s183, 8
        %s185 = scalar_lea.vmem %s0, %s184
        %s186 = smul.u32 64, %s11
      $region36: #{transformer_block_forward.7} parent=31 // pred_fallthru
        _
    $region32: #{transformer_block_forward.7} parent=5 // pred_fallthru
      _
    %p187 = scmp.le.s32.totalorder 1, %s11
    %p188 = scmp.lt.s32.totalorder %s11, 3
    %p189 = pnand %p187, %p188
    %p190 = pneg %p189
    // Predicated region
    $region37: #{transformer_block_forward.7} parent=5 // pred_check
      _
    $region38: #{transformer_block_forward.7} parent=5 // pred_check_branch
      %192 = sbr.rel (%p189) target = $region40
    $region39: #{transformer_block_forward.7} parent=5 // pred_region
      %s193 = ssub.s32 %s11, 1
      %s194 = smul.u32 64, %s16
      %p195 = scmp.lt.s32.totalorder %s194, 127
      %s196 = scalar_select %p195, %s194, 127
      %s197 = smul.addr %s196, 8
      %s198 = scalar_lea.vmem %s0, %s197
      %p199 = pneg %p37
      %p200 = pneg %p34
      %p201 = pneg %p58
      %p202 = pneg %p55
      %p203 = pneg %p79
      %p204 = pneg %p76
      %p205 = pneg %p100
      %p206 = pneg %p97
      %p207 = pneg %p121
      %p208 = pneg %p118
      %p209 = pneg %p147
      %p210 = pneg %p144
      %s211 = smul.u32 64, %s16
      %p212 = scmp.lt.s32.totalorder %s211, 127
      %s213 = scalar_select %p212, %s211, 127
      %s214 = smul.addr %s213, 8
      %s215 = scalar_lea.vmem %s5, %s214
      %s216 = smul.u32 64, %s16
      %p217 = scmp.lt.s32.totalorder %s216, 127
      %s218 = scalar_select %p217, %s216, 127
      %s219 = smul.addr %s218, 8
      %s220 = scalar_lea.vmem %s0, %s219
      %s221 = smul.u32 64, %s16
      %s222 = smul.u32 64, %s16
      %p223 = scmp.lt.s32.totalorder %s222, 127
      %s224 = scalar_select %p223, %s222, 127
      %s225 = smul.addr %s224, 8
      %s226 = scalar_lea.vmem %s5, %s225
      %s227 = smul.u32 64, %s16
      %v228 = vld [vmem:[%s220] sm:$0xff]
      %v229 = vld [vmem:[%s220 + $0x8] sm:$0xff]
      %v230 = vld [vmem:[%s220 + $0x10] sm:$0xff]
      %v231 = vld [vmem:[%s220 + $0x18] sm:$0xff]
      %v232 = vld [vmem:[%s220 + $0x20] sm:$0xff]
      %v233 = vld [vmem:[%s220 + $0x28] sm:$0xff]
      %v234 = vld [vmem:[%s220 + $0x30] sm:$0xff]
      %v235 = vld [vmem:[%s220 + $0x38] sm:$0xff]
      %v236 = vld [vmem:[%s220 + $0x40] sm:$0xff]
      %v237 = vld [vmem:[%s220 + $0x48] sm:$0xff]
      %v238 = vld [vmem:[%s220 + $0x50] sm:$0xff]
      %v239 = vld [vmem:[%s220 + $0x58] sm:$0xff]
      %v240 = vld [vmem:[%s220 + $0x60] sm:$0xff]
      %v241 = vld [vmem:[%s220 + $0x68] sm:$0xff]
      %v242 = vld [vmem:[%s220 + $0x70] sm:$0xff]
      %v243 = vld [vmem:[%s220 + $0x78] sm:$0xff]
      %v244 = vld [vmem:[%s220 + $0x80] sm:$0xff]
      %v245 = vld [vmem:[%s220 + $0x88] sm:$0xff]
      %v246 = vld [vmem:[%s220 + $0x90] sm:$0xff]
      %v247 = vld [vmem:[%s220 + $0x98] sm:$0xff]
      %v248 = vld [vmem:[%s220 + $0xa0] sm:$0xff]
      %v249 = vld [vmem:[%s220 + $0xa8] sm:$0xff]
      %v250 = vld [vmem:[%s220 + $0xb0] sm:$0xff]
      %v251 = vld [vmem:[%s220 + $0xb8] sm:$0xff]
      %v252 = vld [vmem:[%s220 + $0xc0] sm:$0xff]
      %v253 = vld [vmem:[%s220 + $0xc8] sm:$0xff]
      %v254 = vld [vmem:[%s220 + $0xd0] sm:$0xff]
      %v255 = vld [vmem:[%s220 + $0xd8] sm:$0xff]
      %v256 = vld [vmem:[%s220 + $0xe0] sm:$0xff]
      %v257 = vld [vmem:[%s220 + $0xe8] sm:$0xff]
      %v258 = vld [vmem:[%s220 + $0xf0] sm:$0xff]
      %v259 = vld [vmem:[%s220 + $0xf8] sm:$0xff]
      %v260 = vld [vmem:[%s220 + $0x100] sm:$0xff]
      %v261 = vld [vmem:[%s220 + $0x108] sm:$0xff]
      %v262 = vld [vmem:[%s220 + $0x110] sm:$0xff]
      %v263 = vld [vmem:[%s220 + $0x118] sm:$0xff]
      %v264 = vld [vmem:[%s220 + $0x120] sm:$0xff]
      %v265 = vld [vmem:[%s220 + $0x128] sm:$0xff]
      %v266 = vld [vmem:[%s220 + $0x130] sm:$0xff]
      %v267 = vld [vmem:[%s220 + $0x138] sm:$0xff]
      %v268 = vld [vmem:[%s220 + $0x140] sm:$0xff]
      %v269 = vld [vmem:[%s220 + $0x148] sm:$0xff]
      %v270 = vld [vmem:[%s220 + $0x150] sm:$0xff]
      %v271 = vld [vmem:[%s220 + $0x158] sm:$0xff]
      %v272 = vld [vmem:[%s220 + $0x160] sm:$0xff]
      %v273 = vld [vmem:[%s220 + $0x168] sm:$0xff]
      %v274 = vld [vmem:[%s220 + $0x170] sm:$0xff]
      %v275 = vld [vmem:[%s220 + $0x178] sm:$0xff]
      %v276 = vld [vmem:[%s220 + $0x180] sm:$0xff]
      %v277 = vld [vmem:[%s220 + $0x188] sm:$0xff]
      %v278 = vld [vmem:[%s220 + $0x190] sm:$0xff]
      %v279 = vld [vmem:[%s220 + $0x198] sm:$0xff]
      %v280 = vld [vmem:[%s220 + $0x1a0] sm:$0xff]
      %v281 = vld [vmem:[%s220 + $0x1a8] sm:$0xff]
      %v282 = vld [vmem:[%s220 + $0x1b0] sm:$0xff]
      %v283 = vld [vmem:[%s220 + $0x1b8] sm:$0xff]
      %v284 = vld [vmem:[%s220 + $0x1c0] sm:$0xff]
      %v285 = vld [vmem:[%s220 + $0x1c8] sm:$0xff]
      %v286 = vld [vmem:[%s220 + $0x1d0] sm:$0xff]
      %v287 = vld [vmem:[%s220 + $0x1d8] sm:$0xff]
      %v288 = vld [vmem:[%s220 + $0x1e0] sm:$0xff]
      %v289 = vld [vmem:[%s220 + $0x1e8] sm:$0xff]
      %v290 = vld [vmem:[%s220 + $0x1f0] sm:$0xff]
      %v291 = vld [vmem:[%s220 + $0x1f8] sm:$0xff]
      %vm292 = vcmask 130048
      %v293 = vsel %vm292, %v228, 0.0
      %294 = vadd.xlane.f32.xlu0 %v293
      %v295 = vpop.xlane.xlu0 %294
      %v296 = vsel %vm292, %v229, 0.0
      %297 = vadd.xlane.f32.xlu0 %v296
      %v298 = vpop.xlane.xlu0 %297
      %v299 = vsel %vm292, %v230, 0.0
      %300 = vadd.xlane.f32.xlu0 %v299
      %v301 = vpop.xlane.xlu0 %300
      %v302 = vsel %vm292, %v231, 0.0
      %303 = vadd.xlane.f32.xlu0 %v302
      %v304 = vpop.xlane.xlu0 %303
      %v305 = vsel %vm292, %v232, 0.0
      %306 = vadd.xlane.f32.xlu0 %v305
      %v307 = vpop.xlane.xlu0 %306
      %v308 = vsel %vm292, %v233, 0.0
      %309 = vadd.xlane.f32.xlu0 %v308
      %v310 = vpop.xlane.xlu0 %309
      %v311 = vsel %vm292, %v234, 0.0
      %312 = vadd.xlane.f32.xlu0 %v311
      %v313 = vpop.xlane.xlu0 %312
      %v314 = vsel %vm292, %v235, 0.0
      %315 = vadd.xlane.f32.xlu0 %v314
      %v316 = vpop.xlane.xlu0 %315
      %v317 = vsel %vm292, %v236, 0.0
      %318 = vadd.xlane.f32.xlu0 %v317
      %v319 = vpop.xlane.xlu0 %318
      %v320 = vsel %vm292, %v237, 0.0
      %321 = vadd.xlane.f32.xlu0 %v320
      %v322 = vpop.xlane.xlu0 %321
      %v323 = vsel %vm292, %v238, 0.0
      %324 = vadd.xlane.f32.xlu0 %v323
      %v325 = vpop.xlane.xlu0 %324
      %v326 = vsel %vm292, %v239, 0.0
      %327 = vadd.xlane.f32.xlu0 %v326
      %v328 = vpop.xlane.xlu0 %327
      %v329 = vsel %vm292, %v240, 0.0
      %330 = vadd.xlane.f32.xlu0 %v329
      %v331 = vpop.xlane.xlu0 %330
      %v332 = vsel %vm292, %v241, 0.0
      %333 = vadd.xlane.f32.xlu0 %v332
      %v334 = vpop.xlane.xlu0 %333
      %v335 = vsel %vm292, %v242, 0.0
      %336 = vadd.xlane.f32.xlu0 %v335
      %v337 = vpop.xlane.xlu0 %336
      %v338 = vsel %vm292, %v243, 0.0
      %339 = vadd.xlane.f32.xlu0 %v338
      %v340 = vpop.xlane.xlu0 %339
      %v341 = vsel %vm292, %v244, 0.0
      %342 = vadd.xlane.f32.xlu0 %v341
      %v343 = vpop.xlane.xlu0 %342
      %v344 = vsel %vm292, %v245, 0.0
      %345 = vadd.xlane.f32.xlu0 %v344
      %v346 = vpop.xlane.xlu0 %345
      %v347 = vsel %vm292, %v246, 0.0
      %348 = vadd.xlane.f32.xlu0 %v347
      %v349 = vpop.xlane.xlu0 %348
      %v350 = vsel %vm292, %v247, 0.0
      %351 = vadd.xlane.f32.xlu0 %v350
      %v352 = vpop.xlane.xlu0 %351
      %v353 = vsel %vm292, %v248, 0.0
      %354 = vadd.xlane.f32.xlu0 %v353
      %v355 = vpop.xlane.xlu0 %354
      %v356 = vsel %vm292, %v249, 0.0
      %357 = vadd.xlane.f32.xlu0 %v356
      %v358 = vpop.xlane.xlu0 %357
      %v359 = vsel %vm292, %v250, 0.0
      %360 = vadd.xlane.f32.xlu0 %v359
      %v361 = vpop.xlane.xlu0 %360
      %v362 = vsel %vm292, %v251, 0.0
      %363 = vadd.xlane.f32.xlu0 %v362
      %v364 = vpop.xlane.xlu0 %363
      %v365 = vsel %vm292, %v252, 0.0
      %366 = vadd.xlane.f32.xlu0 %v365
      %v367 = vpop.xlane.xlu0 %366
      %v368 = vsel %vm292, %v253, 0.0
      %369 = vadd.xlane.f32.xlu0 %v368
      %v370 = vpop.xlane.xlu0 %369
      %v371 = vsel %vm292, %v254, 0.0
      %372 = vadd.xlane.f32.xlu0 %v371
      %v373 = vpop.xlane.xlu0 %372
      %v374 = vsel %vm292, %v255, 0.0
      %375 = vadd.xlane.f32.xlu0 %v374
      %v376 = vpop.xlane.xlu0 %375
      %v377 = vsel %vm292, %v256, 0.0
      %378 = vadd.xlane.f32.xlu0 %v377
      %v379 = vpop.xlane.xlu0 %378
      %v380 = vsel %vm292, %v257, 0.0
      %381 = vadd.xlane.f32.xlu0 %v380
      %v382 = vpop.xlane.xlu0 %381
      %v383 = vsel %vm292, %v258, 0.0
      %384 = vadd.xlane.f32.xlu0 %v383
      %v385 = vpop.xlane.xlu0 %384
      %v386 = vsel %vm292, %v259, 0.0
      %387 = vadd.xlane.f32.xlu0 %v386
      %v388 = vpop.xlane.xlu0 %387
      %v389 = vsel %vm292, %v260, 0.0
      %390 = vadd.xlane.f32.xlu0 %v389
      %v391 = vpop.xlane.xlu0 %390
      %v392 = vsel %vm292, %v261, 0.0
      %393 = vadd.xlane.f32.xlu0 %v392
      %v394 = vpop.xlane.xlu0 %393
      %v395 = vsel %vm292, %v262, 0.0
      %396 = vadd.xlane.f32.xlu0 %v395
      %v397 = vpop.xlane.xlu0 %396
      %v398 = vsel %vm292, %v263, 0.0
      %399 = vadd.xlane.f32.xlu0 %v398
      %v400 = vpop.xlane.xlu0 %399
      %v401 = vsel %vm292, %v264, 0.0
      %402 = vadd.xlane.f32.xlu0 %v401
      %v403 = vpop.xlane.xlu0 %402
      %v404 = vsel %vm292, %v265, 0.0
      %405 = vadd.xlane.f32.xlu0 %v404
      %v406 = vpop.xlane.xlu0 %405
      %v407 = vsel %vm292, %v266, 0.0
      %408 = vadd.xlane.f32.xlu0 %v407
      %v409 = vpop.xlane.xlu0 %408
      %v410 = vsel %vm292, %v267, 0.0
      %411 = vadd.xlane.f32.xlu0 %v410
      %v412 = vpop.xlane.xlu0 %411
      %v413 = vsel %vm292, %v268, 0.0
      %414 = vadd.xlane.f32.xlu0 %v413
      %v415 = vpop.xlane.xlu0 %414
      %v416 = vsel %vm292, %v269, 0.0
      %417 = vadd.xlane.f32.xlu0 %v416
      %v418 = vpop.xlane.xlu0 %417
      %v419 = vsel %vm292, %v270, 0.0
      %420 = vadd.xlane.f32.xlu0 %v419
      %v421 = vpop.xlane.xlu0 %420
      %v422 = vsel %vm292, %v271, 0.0
      %423 = vadd.xlane.f32.xlu0 %v422
      %v424 = vpop.xlane.xlu0 %423
      %v425 = vsel %vm292, %v272, 0.0
      %426 = vadd.xlane.f32.xlu0 %v425
      %v427 = vpop.xlane.xlu0 %426
      %v428 = vsel %vm292, %v273, 0.0
      %429 = vadd.xlane.f32.xlu0 %v428
      %v430 = vpop.xlane.xlu0 %429
      %v431 = vsel %vm292, %v274, 0.0
      %432 = vadd.xlane.f32.xlu0 %v431
      %v433 = vpop.xlane.xlu0 %432
      %v434 = vsel %vm292, %v275, 0.0
      %435 = vadd.xlane.f32.xlu0 %v434
      %v436 = vpop.xlane.xlu0 %435
      %v437 = vsel %vm292, %v276, 0.0
      %438 = vadd.xlane.f32.xlu0 %v437
      %v439 = vpop.xlane.xlu0 %438
      %v440 = vsel %vm292, %v277, 0.0
      %441 = vadd.xlane.f32.xlu0 %v440
      %v442 = vpop.xlane.xlu0 %441
      %v443 = vsel %vm292, %v278, 0.0
      %444 = vadd.xlane.f32.xlu0 %v443
      %v445 = vpop.xlane.xlu0 %444
      %v446 = vsel %vm292, %v279, 0.0
      %447 = vadd.xlane.f32.xlu0 %v446
      %v448 = vpop.xlane.xlu0 %447
      %v449 = vsel %vm292, %v280, 0.0
      %450 = vadd.xlane.f32.xlu0 %v449
      %v451 = vpop.xlane.xlu0 %450
      %v452 = vsel %vm292, %v281, 0.0
      %453 = vadd.xlane.f32.xlu0 %v452
      %v454 = vpop.xlane.xlu0 %453
      %v455 = vsel %vm292, %v282, 0.0
      %456 = vadd.xlane.f32.xlu0 %v455
      %v457 = vpop.xlane.xlu0 %456
      %v458 = vsel %vm292, %v283, 0.0
      %459 = vadd.xlane.f32.xlu0 %v458
      %v460 = vpop.xlane.xlu0 %459
      %v461 = vsel %vm292, %v284, 0.0
      %462 = vadd.xlane.f32.xlu0 %v461
      %v463 = vpop.xlane.xlu0 %462
      %v464 = vsel %vm292, %v285, 0.0
      %465 = vadd.xlane.f32.xlu0 %v464
      %v466 = vpop.xlane.xlu0 %465
      %v467 = vsel %vm292, %v286, 0.0
      %468 = vadd.xlane.f32.xlu0 %v467
      %v469 = vpop.xlane.xlu0 %468
      %v470 = vsel %vm292, %v287, 0.0
      %471 = vadd.xlane.f32.xlu0 %v470
      %v472 = vpop.xlane.xlu0 %471
      %v473 = vsel %vm292, %v288, 0.0
      %474 = vadd.xlane.f32.xlu0 %v473
      %v475 = vpop.xlane.xlu0 %474
      %v476 = vsel %vm292, %v289, 0.0
      %477 = vadd.xlane.f32.xlu0 %v476
      %v478 = vpop.xlane.xlu0 %477
      %v479 = vsel %vm292, %v290, 0.0
      %480 = vadd.xlane.f32.xlu0 %v479
      %v481 = vpop.xlane.xlu0 %480
      %v482 = vsel %vm292, %v291, 0.0
      %483 = vadd.xlane.f32.xlu0 %v482
      %v484 = vpop.xlane.xlu0 %483
      %v485 = vrcp.pop 16.0
      %v486 = vmul.f32 %v295, %v485
      %v487 = vmul.f32 %v298, %v485
      %v488 = vmul.f32 %v301, %v485
      %v489 = vmul.f32 %v304, %v485
      %v490 = vmul.f32 %v307, %v485
      %v491 = vmul.f32 %v310, %v485
      %v492 = vmul.f32 %v313, %v485
      %v493 = vmul.f32 %v316, %v485
      %v494 = vmul.f32 %v319, %v485
      %v495 = vmul.f32 %v322, %v485
      %v496 = vmul.f32 %v325, %v485
      %v497 = vmul.f32 %v328, %v485
      %v498 = vmul.f32 %v331, %v485
      %v499 = vmul.f32 %v334, %v485
      %v500 = vmul.f32 %v337, %v485
      %v501 = vmul.f32 %v340, %v485
      %v502 = vmul.f32 %v343, %v485
      %v503 = vmul.f32 %v346, %v485
      %v504 = vmul.f32 %v349, %v485
      %v505 = vmul.f32 %v352, %v485
      %v506 = vmul.f32 %v355, %v485
      %v507 = vmul.f32 %v358, %v485
      %v508 = vmul.f32 %v361, %v485
      %v509 = vmul.f32 %v364, %v485
      %v510 = vmul.f32 %v367, %v485
      %v511 = vmul.f32 %v370, %v485
      %v512 = vmul.f32 %v373, %v485
      %v513 = vmul.f32 %v376, %v485
      %v514 = vmul.f32 %v379, %v485
      %v515 = vmul.f32 %v382, %v485
      %v516 = vmul.f32 %v385, %v485
      %v517 = vmul.f32 %v388, %v485
      %v518 = vmul.f32 %v391, %v485
      %v519 = vmul.f32 %v394, %v485
      %v520 = vmul.f32 %v397, %v485
      %v521 = vmul.f32 %v400, %v485
      %v522 = vmul.f32 %v403, %v485
      %v523 = vmul.f32 %v406, %v485
      %v524 = vmul.f32 %v409, %v485
      %v525 = vmul.f32 %v412, %v485
      %v526 = vmul.f32 %v415, %v485
      %v527 = vmul.f32 %v418, %v485
      %v528 = vmul.f32 %v421, %v485
      %v529 = vmul.f32 %v424, %v485
      %v530 = vmul.f32 %v427, %v485
      %v531 = vmul.f32 %v430, %v485
      %v532 = vmul.f32 %v433, %v485
      %v533 = vmul.f32 %v436, %v485
      %v534 = vmul.f32 %v439, %v485
      %v535 = vmul.f32 %v442, %v485
      %v536 = vmul.f32 %v445, %v485
      %v537 = vmul.f32 %v448, %v485
      %v538 = vmul.f32 %v451, %v485
      %v539 = vmul.f32 %v454, %v485
      %v540 = vmul.f32 %v457, %v485
      %v541 = vmul.f32 %v460, %v485
      %v542 = vmul.f32 %v463, %v485
      %v543 = vmul.f32 %v466, %v485
      %v544 = vmul.f32 %v469, %v485
      %v545 = vmul.f32 %v472, %v485
      %v546 = vmul.f32 %v475, %v485
      %v547 = vmul.f32 %v478, %v485
      %v548 = vmul.f32 %v481, %v485
      %v549 = vmul.f32 %v484, %v485
      %v550 = vsub.f32 %v228, %v486
      %v551 = vsub.f32 %v229, %v487
      %v552 = vsub.f32 %v230, %v488
      %v553 = vsub.f32 %v231, %v489
      %v554 = vsub.f32 %v232, %v490
      %v555 = vsub.f32 %v233, %v491
      %v556 = vsub.f32 %v234, %v492
      %v557 = vsub.f32 %v235, %v493
      %v558 = vsub.f32 %v236, %v494
      %v559 = vsub.f32 %v237, %v495
      %v560 = vsub.f32 %v238, %v496
      %v561 = vsub.f32 %v239, %v497
      %v562 = vsub.f32 %v240, %v498
      %v563 = vsub.f32 %v241, %v499
      %v564 = vsub.f32 %v242, %v500
      %v565 = vsub.f32 %v243, %v501
      %v566 = vsub.f32 %v244, %v502
      %v567 = vsub.f32 %v245, %v503
      %v568 = vsub.f32 %v246, %v504
      %v569 = vsub.f32 %v247, %v505
      %v570 = vsub.f32 %v248, %v506
      %v571 = vsub.f32 %v249, %v507
      %v572 = vsub.f32 %v250, %v508
      %v573 = vsub.f32 %v251, %v509
      %v574 = vsub.f32 %v252, %v510
      %v575 = vsub.f32 %v253, %v511
      %v576 = vsub.f32 %v254, %v512
      %v577 = vsub.f32 %v255, %v513
      %v578 = vsub.f32 %v256, %v514
      %v579 = vsub.f32 %v257, %v515
      %v580 = vsub.f32 %v258, %v516
      %v581 = vsub.f32 %v259, %v517
      %v582 = vsub.f32 %v260, %v518
      %v583 = vsub.f32 %v261, %v519
      %v584 = vsub.f32 %v262, %v520
      %v585 = vsub.f32 %v263, %v521
      %v586 = vsub.f32 %v264, %v522
      %v587 = vsub.f32 %v265, %v523
      %v588 = vsub.f32 %v266, %v524
      %v589 = vsub.f32 %v267, %v525
      %v590 = vsub.f32 %v268, %v526
      %v591 = vsub.f32 %v269, %v527
      %v592 = vsub.f32 %v270, %v528
      %v593 = vsub.f32 %v271, %v529
      %v594 = vsub.f32 %v272, %v530
      %v595 = vsub.f32 %v273, %v531
      %v596 = vsub.f32 %v274, %v532
      %v597 = vsub.f32 %v275, %v533
      %v598 = vsub.f32 %v276, %v534
      %v599 = vsub.f32 %v277, %v535
      %v600 = vsub.f32 %v278, %v536
      %v601 = vsub.f32 %v279, %v537
      %v602 = vsub.f32 %v280, %v538
      %v603 = vsub.f32 %v281, %v539
      %v604 = vsub.f32 %v282, %v540
      %v605 = vsub.f32 %v283, %v541
      %v606 = vsub.f32 %v284, %v542
      %v607 = vsub.f32 %v285, %v543
      %v608 = vsub.f32 %v286, %v544
      %v609 = vsub.f32 %v287, %v545
      %v610 = vsub.f32 %v288, %v546
      %v611 = vsub.f32 %v289, %v547
      %v612 = vsub.f32 %v290, %v548
      %v613 = vsub.f32 %v291, %v549
      %v614 = vmul.f32 %v550, %v550
      %v615 = vmul.f32 %v551, %v551
      %v616 = vmul.f32 %v552, %v552
      %v617 = vmul.f32 %v553, %v553
      %v618 = vmul.f32 %v554, %v554
      %v619 = vmul.f32 %v555, %v555
      %v620 = vmul.f32 %v556, %v556
      %v621 = vmul.f32 %v557, %v557
      %v622 = vmul.f32 %v558, %v558
      %v623 = vmul.f32 %v559, %v559
      %v624 = vmul.f32 %v560, %v560
      %v625 = vmul.f32 %v561, %v561
      %v626 = vmul.f32 %v562, %v562
      %v627 = vmul.f32 %v563, %v563
      %v628 = vmul.f32 %v564, %v564
      %v629 = vmul.f32 %v565, %v565
      %v630 = vmul.f32 %v566, %v566
      %v631 = vmul.f32 %v567, %v567
      %v632 = vmul.f32 %v568, %v568
      %v633 = vmul.f32 %v569, %v569
      %v634 = vmul.f32 %v570, %v570
      %v635 = vmul.f32 %v571, %v571
      %v636 = vmul.f32 %v572, %v572
      %v637 = vmul.f32 %v573, %v573
      %v638 = vmul.f32 %v574, %v574
      %v639 = vmul.f32 %v575, %v575
      %v640 = vmul.f32 %v576, %v576
      %v641 = vmul.f32 %v577, %v577
      %v642 = vmul.f32 %v578, %v578
      %v643 = vmul.f32 %v579, %v579
      %v644 = vmul.f32 %v580, %v580
      %v645 = vmul.f32 %v581, %v581
      %v646 = vmul.f32 %v582, %v582
      %v647 = vmul.f32 %v583, %v583
      %v648 = vmul.f32 %v584, %v584
      %v649 = vmul.f32 %v585, %v585
      %v650 = vmul.f32 %v586, %v586
      %v651 = vmul.f32 %v587, %v587
      %v652 = vmul.f32 %v588, %v588
      %v653 = vmul.f32 %v589, %v589
      %v654 = vmul.f32 %v590, %v590
      %v655 = vmul.f32 %v591, %v591
      %v656 = vmul.f32 %v592, %v592
      %v657 = vmul.f32 %v593, %v593
      %v658 = vmul.f32 %v594, %v594
      %v659 = vmul.f32 %v595, %v595
      %v660 = vmul.f32 %v596, %v596
      %v661 = vmul.f32 %v597, %v597
      %v662 = vmul.f32 %v598, %v598
      %v663 = vmul.f32 %v599, %v599
      %v664 = vmul.f32 %v600, %v600
      %v665 = vmul.f32 %v601, %v601
      %v666 = vmul.f32 %v602, %v602
      %v667 = vmul.f32 %v603, %v603
      %v668 = vmul.f32 %v604, %v604
      %v669 = vmul.f32 %v605, %v605
      %v670 = vmul.f32 %v606, %v606
      %v671 = vmul.f32 %v607, %v607
      %v672 = vmul.f32 %v608, %v608
      %v673 = vmul.f32 %v609, %v609
      %v674 = vmul.f32 %v610, %v610
      %v675 = vmul.f32 %v611, %v611
      %v676 = vmul.f32 %v612, %v612
      %v677 = vmul.f32 %v613, %v613
      %v678 = vsel %vm292, %v614, 0.0
      %679 = vadd.xlane.f32.xlu0 %v678
      %v680 = vpop.xlane.xlu0 %679
      %v681 = vsel %vm292, %v615, 0.0
      %682 = vadd.xlane.f32.xlu0 %v681
      %v683 = vpop.xlane.xlu0 %682
      %v684 = vsel %vm292, %v616, 0.0
      %685 = vadd.xlane.f32.xlu0 %v684
      %v686 = vpop.xlane.xlu0 %685
      %v687 = vsel %vm292, %v617, 0.0
      %688 = vadd.xlane.f32.xlu0 %v687
      %v689 = vpop.xlane.xlu0 %688
      %v690 = vsel %vm292, %v618, 0.0
      %691 = vadd.xlane.f32.xlu0 %v690
      %v692 = vpop.xlane.xlu0 %691
      %v693 = vsel %vm292, %v619, 0.0
      %694 = vadd.xlane.f32.xlu0 %v693
      %v695 = vpop.xlane.xlu0 %694
      %v696 = vsel %vm292, %v620, 0.0
      %697 = vadd.xlane.f32.xlu0 %v696
      %v698 = vpop.xlane.xlu0 %697
      %v699 = vsel %vm292, %v621, 0.0
      %700 = vadd.xlane.f32.xlu0 %v699
      %v701 = vpop.xlane.xlu0 %700
      %v702 = vsel %vm292, %v622, 0.0
      %703 = vadd.xlane.f32.xlu0 %v702
      %v704 = vpop.xlane.xlu0 %703
      %v705 = vsel %vm292, %v623, 0.0
      %706 = vadd.xlane.f32.xlu0 %v705
      %v707 = vpop.xlane.xlu0 %706
      %v708 = vsel %vm292, %v624, 0.0
      %709 = vadd.xlane.f32.xlu0 %v708
      %v710 = vpop.xlane.xlu0 %709
      %v711 = vsel %vm292, %v625, 0.0
      %712 = vadd.xlane.f32.xlu0 %v711
      %v713 = vpop.xlane.xlu0 %712
      %v714 = vsel %vm292, %v626, 0.0
      %715 = vadd.xlane.f32.xlu0 %v714
      %v716 = vpop.xlane.xlu0 %715
      %v717 = vsel %vm292, %v627, 0.0
      %718 = vadd.xlane.f32.xlu0 %v717
      %v719 = vpop.xlane.xlu0 %718
      %v720 = vsel %vm292, %v628, 0.0
      %721 = vadd.xlane.f32.xlu0 %v720
      %v722 = vpop.xlane.xlu0 %721
      %v723 = vsel %vm292, %v629, 0.0
      %724 = vadd.xlane.f32.xlu0 %v723
      %v725 = vpop.xlane.xlu0 %724
      %v726 = vsel %vm292, %v630, 0.0
      %727 = vadd.xlane.f32.xlu0 %v726
      %v728 = vpop.xlane.xlu0 %727
      %v729 = vsel %vm292, %v631, 0.0
      %730 = vadd.xlane.f32.xlu0 %v729
      %v731 = vpop.xlane.xlu0 %730
      %v732 = vsel %vm292, %v632, 0.0
      %733 = vadd.xlane.f32.xlu0 %v732
      %v734 = vpop.xlane.xlu0 %733
      %v735 = vsel %vm292, %v633, 0.0
      %736 = vadd.xlane.f32.xlu0 %v735
      %v737 = vpop.xlane.xlu0 %736
      %v738 = vsel %vm292, %v634, 0.0
      %739 = vadd.xlane.f32.xlu0 %v738
      %v740 = vpop.xlane.xlu0 %739
      %v741 = vsel %vm292, %v635, 0.0
      %742 = vadd.xlane.f32.xlu0 %v741
      %v743 = vpop.xlane.xlu0 %742
      %v744 = vsel %vm292, %v636, 0.0
      %745 = vadd.xlane.f32.xlu0 %v744
      %v746 = vpop.xlane.xlu0 %745
      %v747 = vsel %vm292, %v637, 0.0
      %748 = vadd.xlane.f32.xlu0 %v747
      %v749 = vpop.xlane.xlu0 %748
      %v750 = vsel %vm292, %v638, 0.0
      %751 = vadd.xlane.f32.xlu0 %v750
      %v752 = vpop.xlane.xlu0 %751
      %v753 = vsel %vm292, %v639, 0.0
      %754 = vadd.xlane.f32.xlu0 %v753
      %v755 = vpop.xlane.xlu0 %754
      %v756 = vsel %vm292, %v640, 0.0
      %757 = vadd.xlane.f32.xlu0 %v756
      %v758 = vpop.xlane.xlu0 %757
      %v759 = vsel %vm292, %v641, 0.0
      %760 = vadd.xlane.f32.xlu0 %v759
      %v761 = vpop.xlane.xlu0 %760
      %v762 = vsel %vm292, %v642, 0.0
      %763 = vadd.xlane.f32.xlu0 %v762
      %v764 = vpop.xlane.xlu0 %763
      %v765 = vsel %vm292, %v643, 0.0
      %766 = vadd.xlane.f32.xlu0 %v765
      %v767 = vpop.xlane.xlu0 %766
      %v768 = vsel %vm292, %v644, 0.0
      %769 = vadd.xlane.f32.xlu0 %v768
      %v770 = vpop.xlane.xlu0 %769
      %v771 = vsel %vm292, %v645, 0.0
      %772 = vadd.xlane.f32.xlu0 %v771
      %v773 = vpop.xlane.xlu0 %772
      %v774 = vsel %vm292, %v646, 0.0
      %775 = vadd.xlane.f32.xlu0 %v774
      %v776 = vpop.xlane.xlu0 %775
      %v777 = vsel %vm292, %v647, 0.0
      %778 = vadd.xlane.f32.xlu0 %v777
      %v779 = vpop.xlane.xlu0 %778
      %v780 = vsel %vm292, %v648, 0.0
      %781 = vadd.xlane.f32.xlu0 %v780
      %v782 = vpop.xlane.xlu0 %781
      %v783 = vsel %vm292, %v649, 0.0
      %784 = vadd.xlane.f32.xlu0 %v783
      %v785 = vpop.xlane.xlu0 %784
      %v786 = vsel %vm292, %v650, 0.0
      %787 = vadd.xlane.f32.xlu0 %v786
      %v788 = vpop.xlane.xlu0 %787
      %v789 = vsel %vm292, %v651, 0.0
      %790 = vadd.xlane.f32.xlu0 %v789
      %v791 = vpop.xlane.xlu0 %790
      %v792 = vsel %vm292, %v652, 0.0
      %793 = vadd.xlane.f32.xlu0 %v792
      %v794 = vpop.xlane.xlu0 %793
      %v795 = vsel %vm292, %v653, 0.0
      %796 = vadd.xlane.f32.xlu0 %v795
      %v797 = vpop.xlane.xlu0 %796
      %v798 = vsel %vm292, %v654, 0.0
      %799 = vadd.xlane.f32.xlu0 %v798
      %v800 = vpop.xlane.xlu0 %799
      %v801 = vsel %vm292, %v655, 0.0
      %802 = vadd.xlane.f32.xlu0 %v801
      %v803 = vpop.xlane.xlu0 %802
      %v804 = vsel %vm292, %v656, 0.0
      %805 = vadd.xlane.f32.xlu0 %v804
      %v806 = vpop.xlane.xlu0 %805
      %v807 = vsel %vm292, %v657, 0.0
      %808 = vadd.xlane.f32.xlu0 %v807
      %v809 = vpop.xlane.xlu0 %808
      %v810 = vsel %vm292, %v658, 0.0
      %811 = vadd.xlane.f32.xlu0 %v810
      %v812 = vpop.xlane.xlu0 %811
      %v813 = vsel %vm292, %v659, 0.0
      %814 = vadd.xlane.f32.xlu0 %v813
      %v815 = vpop.xlane.xlu0 %814
      %v816 = vsel %vm292, %v660, 0.0
      %817 = vadd.xlane.f32.xlu0 %v816
      %v818 = vpop.xlane.xlu0 %817
      %v819 = vsel %vm292, %v661, 0.0
      %820 = vadd.xlane.f32.xlu0 %v819
      %v821 = vpop.xlane.xlu0 %820
      %v822 = vsel %vm292, %v662, 0.0
      %823 = vadd.xlane.f32.xlu0 %v822
      %v824 = vpop.xlane.xlu0 %823
      %v825 = vsel %vm292, %v663, 0.0
      %826 = vadd.xlane.f32.xlu0 %v825
      %v827 = vpop.xlane.xlu0 %826
      %v828 = vsel %vm292, %v664, 0.0
      %829 = vadd.xlane.f32.xlu0 %v828
      %v830 = vpop.xlane.xlu0 %829
      %v831 = vsel %vm292, %v665, 0.0
      %832 = vadd.xlane.f32.xlu0 %v831
      %v833 = vpop.xlane.xlu0 %832
      %v834 = vsel %vm292, %v666, 0.0
      %835 = vadd.xlane.f32.xlu0 %v834
      %v836 = vpop.xlane.xlu0 %835
      %v837 = vsel %vm292, %v667, 0.0
      %838 = vadd.xlane.f32.xlu0 %v837
      %v839 = vpop.xlane.xlu0 %838
      %v840 = vsel %vm292, %v668, 0.0
      %841 = vadd.xlane.f32.xlu0 %v840
      %v842 = vpop.xlane.xlu0 %841
      %v843 = vsel %vm292, %v669, 0.0
      %844 = vadd.xlane.f32.xlu0 %v843
      %v845 = vpop.xlane.xlu0 %844
      %v846 = vsel %vm292, %v670, 0.0
      %847 = vadd.xlane.f32.xlu0 %v846
      %v848 = vpop.xlane.xlu0 %847
      %v849 = vsel %vm292, %v671, 0.0
      %850 = vadd.xlane.f32.xlu0 %v849
      %v851 = vpop.xlane.xlu0 %850
      %v852 = vsel %vm292, %v672, 0.0
      %853 = vadd.xlane.f32.xlu0 %v852
      %v854 = vpop.xlane.xlu0 %853
      %v855 = vsel %vm292, %v673, 0.0
      %856 = vadd.xlane.f32.xlu0 %v855
      %v857 = vpop.xlane.xlu0 %856
      %v858 = vsel %vm292, %v674, 0.0
      %859 = vadd.xlane.f32.xlu0 %v858
      %v860 = vpop.xlane.xlu0 %859
      %v861 = vsel %vm292, %v675, 0.0
      %862 = vadd.xlane.f32.xlu0 %v861
      %v863 = vpop.xlane.xlu0 %862
      %v864 = vsel %vm292, %v676, 0.0
      %865 = vadd.xlane.f32.xlu0 %v864
      %v866 = vpop.xlane.xlu0 %865
      %v867 = vsel %vm292, %v677, 0.0
      %868 = vadd.xlane.f32.xlu0 %v867
      %v869 = vpop.xlane.xlu0 %868
      %v870 = vmul.f32 %v680, %v485
      %v871 = vmul.f32 %v683, %v485
      %v872 = vmul.f32 %v686, %v485
      %v873 = vmul.f32 %v689, %v485
      %v874 = vmul.f32 %v692, %v485
      %v875 = vmul.f32 %v695, %v485
      %v876 = vmul.f32 %v698, %v485
      %v877 = vmul.f32 %v701, %v485
      %v878 = vmul.f32 %v704, %v485
      %v879 = vmul.f32 %v707, %v485
      %v880 = vmul.f32 %v710, %v485
      %v881 = vmul.f32 %v713, %v485
      %v882 = vmul.f32 %v716, %v485
      %v883 = vmul.f32 %v719, %v485
      %v884 = vmul.f32 %v722, %v485
      %v885 = vmul.f32 %v725, %v485
      %v886 = vmul.f32 %v728, %v485
      %v887 = vmul.f32 %v731, %v485
      %v888 = vmul.f32 %v734, %v485
      %v889 = vmul.f32 %v737, %v485
      %v890 = vmul.f32 %v740, %v485
      %v891 = vmul.f32 %v743, %v485
      %v892 = vmul.f32 %v746, %v485
      %v893 = vmul.f32 %v749, %v485
      %v894 = vmul.f32 %v752, %v485
      %v895 = vmul.f32 %v755, %v485
      %v896 = vmul.f32 %v758, %v485
      %v897 = vmul.f32 %v761, %v485
      %v898 = vmul.f32 %v764, %v485
      %v899 = vmul.f32 %v767, %v485
      %v900 = vmul.f32 %v770, %v485
      %v901 = vmul.f32 %v773, %v485
      %v902 = vmul.f32 %v776, %v485
      %v903 = vmul.f32 %v779, %v485
      %v904 = vmul.f32 %v782, %v485
      %v905 = vmul.f32 %v785, %v485
      %v906 = vmul.f32 %v788, %v485
      %v907 = vmul.f32 %v791, %v485
      %v908 = vmul.f32 %v794, %v485
      %v909 = vmul.f32 %v797, %v485
      %v910 = vmul.f32 %v800, %v485
      %v911 = vmul.f32 %v803, %v485
      %v912 = vmul.f32 %v806, %v485
      %v913 = vmul.f32 %v809, %v485
      %v914 = vmul.f32 %v812, %v485
      %v915 = vmul.f32 %v815, %v485
      %v916 = vmul.f32 %v818, %v485
      %v917 = vmul.f32 %v821, %v485
      %v918 = vmul.f32 %v824, %v485
      %v919 = vmul.f32 %v827, %v485
      %v920 = vmul.f32 %v830, %v485
      %v921 = vmul.f32 %v833, %v485
      %v922 = vmul.f32 %v836, %v485
      %v923 = vmul.f32 %v839, %v485
      %v924 = vmul.f32 %v842, %v485
      %v925 = vmul.f32 %v845, %v485
      %v926 = vmul.f32 %v848, %v485
      %v927 = vmul.f32 %v851, %v485
      %v928 = vmul.f32 %v854, %v485
      %v929 = vmul.f32 %v857, %v485
      %v930 = vmul.f32 %v860, %v485
      %v931 = vmul.f32 %v863, %v485
      %v932 = vmul.f32 %v866, %v485
      %v933 = vmul.f32 %v869, %v485
      %v934 = vadd.f32 %v870, 1e-05
      %v935 = vadd.f32 %v871, 1e-05
      %v936 = vadd.f32 %v872, 1e-05
      %v937 = vadd.f32 %v873, 1e-05
      %v938 = vadd.f32 %v874, 1e-05
      %v939 = vadd.f32 %v875, 1e-05
      %v940 = vadd.f32 %v876, 1e-05
      %v941 = vadd.f32 %v877, 1e-05
      %v942 = vadd.f32 %v878, 1e-05
      %v943 = vadd.f32 %v879, 1e-05
      %v944 = vadd.f32 %v880, 1e-05
      %v945 = vadd.f32 %v881, 1e-05
      %v946 = vadd.f32 %v882, 1e-05
      %v947 = vadd.f32 %v883, 1e-05
      %v948 = vadd.f32 %v884, 1e-05
      %v949 = vadd.f32 %v885, 1e-05
      %v950 = vadd.f32 %v886, 1e-05
      %v951 = vadd.f32 %v887, 1e-05
      %v952 = vadd.f32 %v888, 1e-05
      %v953 = vadd.f32 %v889, 1e-05
      %v954 = vadd.f32 %v890, 1e-05
      %v955 = vadd.f32 %v891, 1e-05
      %v956 = vadd.f32 %v892, 1e-05
      %v957 = vadd.f32 %v893, 1e-05
      %v958 = vadd.f32 %v894, 1e-05
      %v959 = vadd.f32 %v895, 1e-05
      %v960 = vadd.f32 %v896, 1e-05
      %v961 = vadd.f32 %v897, 1e-05
      %v962 = vadd.f32 %v898, 1e-05
      %v963 = vadd.f32 %v899, 1e-05
      %v964 = vadd.f32 %v900, 1e-05
      %v965 = vadd.f32 %v901, 1e-05
      %v966 = vadd.f32 %v902, 1e-05
      %v967 = vadd.f32 %v903, 1e-05
      %v968 = vadd.f32 %v904, 1e-05
      %v969 = vadd.f32 %v905, 1e-05
      %v970 = vadd.f32 %v906, 1e-05
      %v971 = vadd.f32 %v907, 1e-05
      %v972 = vadd.f32 %v908, 1e-05
      %v973 = vadd.f32 %v909, 1e-05
      %v974 = vadd.f32 %v910, 1e-05
      %v975 = vadd.f32 %v911, 1e-05
      %v976 = vadd.f32 %v912, 1e-05
      %v977 = vadd.f32 %v913, 1e-05
      %v978 = vadd.f32 %v914, 1e-05
      %v979 = vadd.f32 %v915, 1e-05
      %v980 = vadd.f32 %v916, 1e-05
      %v981 = vadd.f32 %v917, 1e-05
      %v982 = vadd.f32 %v918, 1e-05
      %v983 = vadd.f32 %v919, 1e-05
      %v984 = vadd.f32 %v920, 1e-05
      %v985 = vadd.f32 %v921, 1e-05
      %v986 = vadd.f32 %v922, 1e-05
      %v987 = vadd.f32 %v923, 1e-05
      %v988 = vadd.f32 %v924, 1e-05
      %v989 = vadd.f32 %v925, 1e-05
      %v990 = vadd.f32 %v926, 1e-05
      %v991 = vadd.f32 %v927, 1e-05
      %v992 = vadd.f32 %v928, 1e-05
      %v993 = vadd.f32 %v929, 1e-05
      %v994 = vadd.f32 %v930, 1e-05
      %v995 = vadd.f32 %v931, 1e-05
      %v996 = vadd.f32 %v932, 1e-05
      %v997 = vadd.f32 %v933, 1e-05
      %v998 = vrsqrt.pop %v934
      %v999 = vrsqrt.pop %v935
      %v1000 = vrsqrt.pop %v936
      %v1001 = vrsqrt.pop %v937
      %v1002 = vrsqrt.pop %v938
      %v1003 = vrsqrt.pop %v939
      %v1004 = vrsqrt.pop %v940
      %v1005 = vrsqrt.pop %v941
      %v1006 = vrsqrt.pop %v942
      %v1007 = vrsqrt.pop %v943
      %v1008 = vrsqrt.pop %v944
      %v1009 = vrsqrt.pop %v945
      %v1010 = vrsqrt.pop %v946
      %v1011 = vrsqrt.pop %v947
      %v1012 = vrsqrt.pop %v948
      %v1013 = vrsqrt.pop %v949
      %v1014 = vrsqrt.pop %v950
      %v1015 = vrsqrt.pop %v951
      %v1016 = vrsqrt.pop %v952
      %v1017 = vrsqrt.pop %v953
      %v1018 = vrsqrt.pop %v954
      %v1019 = vrsqrt.pop %v955
      %v1020 = vrsqrt.pop %v956
      %v1021 = vrsqrt.pop %v957
      %v1022 = vrsqrt.pop %v958
      %v1023 = vrsqrt.pop %v959
      %v1024 = vrsqrt.pop %v960
      %v1025 = vrsqrt.pop %v961
      %v1026 = vrsqrt.pop %v962
      %v1027 = vrsqrt.pop %v963
      %v1028 = vrsqrt.pop %v964
      %v1029 = vrsqrt.pop %v965
      %v1030 = vrsqrt.pop %v966
      %v1031 = vrsqrt.pop %v967
      %v1032 = vrsqrt.pop %v968
      %v1033 = vrsqrt.pop %v969
      %v1034 = vrsqrt.pop %v970
      %v1035 = vrsqrt.pop %v971
      %v1036 = vrsqrt.pop %v972
      %v1037 = vrsqrt.pop %v973
      %v1038 = vrsqrt.pop %v974
      %v1039 = vrsqrt.pop %v975
      %v1040 = vrsqrt.pop %v976
      %v1041 = vrsqrt.pop %v977
      %v1042 = vrsqrt.pop %v978
      %v1043 = vrsqrt.pop %v979
      %v1044 = vrsqrt.pop %v980
      %v1045 = vrsqrt.pop %v981
      %v1046 = vrsqrt.pop %v982
      %v1047 = vrsqrt.pop %v983
      %v1048 = vrsqrt.pop %v984
      %v1049 = vrsqrt.pop %v985
      %v1050 = vrsqrt.pop %v986
      %v1051 = vrsqrt.pop %v987
      %v1052 = vrsqrt.pop %v988
      %v1053 = vrsqrt.pop %v989
      %v1054 = vrsqrt.pop %v990
      %v1055 = vrsqrt.pop %v991
      %v1056 = vrsqrt.pop %v992
      %v1057 = vrsqrt.pop %v993
      %v1058 = vrsqrt.pop %v994
      %v1059 = vrsqrt.pop %v995
      %v1060 = vrsqrt.pop %v996
      %v1061 = vrsqrt.pop %v997
      %v1062 = vmul.f32 %v550, %v998
      %v1063 = vmul.f32 %v551, %v999
      %v1064 = vmul.f32 %v552, %v1000
      %v1065 = vmul.f32 %v553, %v1001
      %v1066 = vmul.f32 %v554, %v1002
      %v1067 = vmul.f32 %v555, %v1003
      %v1068 = vmul.f32 %v556, %v1004
      %v1069 = vmul.f32 %v557, %v1005
      %v1070 = vmul.f32 %v558, %v1006
      %v1071 = vmul.f32 %v559, %v1007
      %v1072 = vmul.f32 %v560, %v1008
      %v1073 = vmul.f32 %v561, %v1009
      %v1074 = vmul.f32 %v562, %v1010
      %v1075 = vmul.f32 %v563, %v1011
      %v1076 = vmul.f32 %v564, %v1012
      %v1077 = vmul.f32 %v565, %v1013
      %v1078 = vmul.f32 %v566, %v1014
      %v1079 = vmul.f32 %v567, %v1015
      %v1080 = vmul.f32 %v568, %v1016
      %v1081 = vmul.f32 %v569, %v1017
      %v1082 = vmul.f32 %v570, %v1018
      %v1083 = vmul.f32 %v571, %v1019
      %v1084 = vmul.f32 %v572, %v1020
      %v1085 = vmul.f32 %v573, %v1021
      %v1086 = vmul.f32 %v574, %v1022
      %v1087 = vmul.f32 %v575, %v1023
      %v1088 = vmul.f32 %v576, %v1024
      %v1089 = vmul.f32 %v577, %v1025
      %v1090 = vmul.f32 %v578, %v1026
      %v1091 = vmul.f32 %v579, %v1027
      %v1092 = vmul.f32 %v580, %v1028
      %v1093 = vmul.f32 %v581, %v1029
      %v1094 = vmul.f32 %v582, %v1030
      %v1095 = vmul.f32 %v583, %v1031
      %v1096 = vmul.f32 %v584, %v1032
      %v1097 = vmul.f32 %v585, %v1033
      %v1098 = vmul.f32 %v586, %v1034
      %v1099 = vmul.f32 %v587, %v1035
      %v1100 = vmul.f32 %v588, %v1036
      %v1101 = vmul.f32 %v589, %v1037
      %v1102 = vmul.f32 %v590, %v1038
      %v1103 = vmul.f32 %v591, %v1039
      %v1104 = vmul.f32 %v592, %v1040
      %v1105 = vmul.f32 %v593, %v1041
      %v1106 = vmul.f32 %v594, %v1042
      %v1107 = vmul.f32 %v595, %v1043
      %v1108 = vmul.f32 %v596, %v1044
      %v1109 = vmul.f32 %v597, %v1045
      %v1110 = vmul.f32 %v598, %v1046
      %v1111 = vmul.f32 %v599, %v1047
      %v1112 = vmul.f32 %v600, %v1048
      %v1113 = vmul.f32 %v601, %v1049
      %v1114 = vmul.f32 %v602, %v1050
      %v1115 = vmul.f32 %v603, %v1051
      %v1116 = vmul.f32 %v604, %v1052
      %v1117 = vmul.f32 %v605, %v1053
      %v1118 = vmul.f32 %v606, %v1054
      %v1119 = vmul.f32 %v607, %v1055
      %v1120 = vmul.f32 %v608, %v1056
      %v1121 = vmul.f32 %v609, %v1057
      %v1122 = vmul.f32 %v610, %v1058
      %v1123 = vmul.f32 %v611, %v1059
      %v1124 = vmul.f32 %v612, %v1060
      %v1125 = vmul.f32 %v613, %v1061
      %v1126 = vld [vmem:[%s1] sm:$0x1]
      %v1128 = vlaneseq
      %v1129 = vshrl.u32 %v1128, 7
      %v1130 = vsub.s32 0, %v1129
      %v1131 = vrot.slane %v1126, %v1130
      %v1133 = vmul.f32 %v1062, %v1131
      %v1134 = vmul.f32 %v1063, %v1131
      %v1135 = vmul.f32 %v1064, %v1131
      %v1136 = vmul.f32 %v1065, %v1131
      %v1137 = vmul.f32 %v1066, %v1131
      %v1138 = vmul.f32 %v1067, %v1131
      %v1139 = vmul.f32 %v1068, %v1131
      %v1140 = vmul.f32 %v1069, %v1131
      %v1141 = vmul.f32 %v1070, %v1131
      %v1142 = vmul.f32 %v1071, %v1131
      %v1143 = vmul.f32 %v1072, %v1131
      %v1144 = vmul.f32 %v1073, %v1131
      %v1145 = vmul.f32 %v1074, %v1131
      %v1146 = vmul.f32 %v1075, %v1131
      %v1147 = vmul.f32 %v1076, %v1131
      %v1148 = vmul.f32 %v1077, %v1131
      %v1149 = vmul.f32 %v1078, %v1131
      %v1150 = vmul.f32 %v1079, %v1131
      %v1151 = vmul.f32 %v1080, %v1131
      %v1152 = vmul.f32 %v1081, %v1131
      %v1153 = vmul.f32 %v1082, %v1131
      %v1154 = vmul.f32 %v1083, %v1131
      %v1155 = vmul.f32 %v1084, %v1131
      %v1156 = vmul.f32 %v1085, %v1131
      %v1157 = vmul.f32 %v1086, %v1131
      %v1158 = vmul.f32 %v1087, %v1131
      %v1159 = vmul.f32 %v1088, %v1131
      %v1160 = vmul.f32 %v1089, %v1131
      %v1161 = vmul.f32 %v1090, %v1131
      %v1162 = vmul.f32 %v1091, %v1131
      %v1163 = vmul.f32 %v1092, %v1131
      %v1164 = vmul.f32 %v1093, %v1131
      %v1165 = vmul.f32 %v1094, %v1131
      %v1166 = vmul.f32 %v1095, %v1131
      %v1167 = vmul.f32 %v1096, %v1131
      %v1168 = vmul.f32 %v1097, %v1131
      %v1169 = vmul.f32 %v1098, %v1131
      %v1170 = vmul.f32 %v1099, %v1131
      %v1171 = vmul.f32 %v1100, %v1131
      %v1172 = vmul.f32 %v1101, %v1131
      %v1173 = vmul.f32 %v1102, %v1131
      %v1174 = vmul.f32 %v1103, %v1131
      %v1175 = vmul.f32 %v1104, %v1131
      %v1176 = vmul.f32 %v1105, %v1131
      %v1177 = vmul.f32 %v1106, %v1131
      %v1178 = vmul.f32 %v1107, %v1131
      %v1179 = vmul.f32 %v1108, %v1131
      %v1180 = vmul.f32 %v1109, %v1131
      %v1181 = vmul.f32 %v1110, %v1131
      %v1182 = vmul.f32 %v1111, %v1131
      %v1183 = vmul.f32 %v1112, %v1131
      %v1184 = vmul.f32 %v1113, %v1131
      %v1185 = vmul.f32 %v1114, %v1131
      %v1186 = vmul.f32 %v1115, %v1131
      %v1187 = vmul.f32 %v1116, %v1131
      %v1188 = vmul.f32 %v1117, %v1131
      %v1189 = vmul.f32 %v1118, %v1131
      %v1190 = vmul.f32 %v1119, %v1131
      %v1191 = vmul.f32 %v1120, %v1131
      %v1192 = vmul.f32 %v1121, %v1131
      %v1193 = vmul.f32 %v1122, %v1131
      %v1194 = vmul.f32 %v1123, %v1131
      %v1195 = vmul.f32 %v1124, %v1131
      %v1196 = vmul.f32 %v1125, %v1131
      %v1197 = vld [vmem:[%s2] sm:$0x1]
      %v1199 = vlaneseq
      %v1200 = vshrl.u32 %v1199, 7
      %v1201 = vsub.s32 0, %v1200
      %v1202 = vrot.slane %v1197, %v1201
      %v1204 = vadd.f32 %v1133, %v1202
      %v1205 = vadd.f32 %v1134, %v1202
      %v1206 = vadd.f32 %v1135, %v1202
      %v1207 = vadd.f32 %v1136, %v1202
      %v1208 = vadd.f32 %v1137, %v1202
      %v1209 = vadd.f32 %v1138, %v1202
      %v1210 = vadd.f32 %v1139, %v1202
      %v1211 = vadd.f32 %v1140, %v1202
      %v1212 = vadd.f32 %v1141, %v1202
      %v1213 = vadd.f32 %v1142, %v1202
      %v1214 = vadd.f32 %v1143, %v1202
      %v1215 = vadd.f32 %v1144, %v1202
      %v1216 = vadd.f32 %v1145, %v1202
      %v1217 = vadd.f32 %v1146, %v1202
      %v1218 = vadd.f32 %v1147, %v1202
      %v1219 = vadd.f32 %v1148, %v1202
      %v1220 = vadd.f32 %v1149, %v1202
      %v1221 = vadd.f32 %v1150, %v1202
      %v1222 = vadd.f32 %v1151, %v1202
      %v1223 = vadd.f32 %v1152, %v1202
      %v1224 = vadd.f32 %v1153, %v1202
      %v1225 = vadd.f32 %v1154, %v1202
      %v1226 = vadd.f32 %v1155, %v1202
      %v1227 = vadd.f32 %v1156, %v1202
      %v1228 = vadd.f32 %v1157, %v1202
      %v1229 = vadd.f32 %v1158, %v1202
      %v1230 = vadd.f32 %v1159, %v1202
      %v1231 = vadd.f32 %v1160, %v1202
      %v1232 = vadd.f32 %v1161, %v1202
      %v1233 = vadd.f32 %v1162, %v1202
      %v1234 = vadd.f32 %v1163, %v1202
      %v1235 = vadd.f32 %v1164, %v1202
      %v1236 = vadd.f32 %v1165, %v1202
      %v1237 = vadd.f32 %v1166, %v1202
      %v1238 = vadd.f32 %v1167, %v1202
      %v1239 = vadd.f32 %v1168, %v1202
      %v1240 = vadd.f32 %v1169, %v1202
      %v1241 = vadd.f32 %v1170, %v1202
      %v1242 = vadd.f32 %v1171, %v1202
      %v1243 = vadd.f32 %v1172, %v1202
      %v1244 = vadd.f32 %v1173, %v1202
      %v1245 = vadd.f32 %v1174, %v1202
      %v1246 = vadd.f32 %v1175, %v1202
      %v1247 = vadd.f32 %v1176, %v1202
      %v1248 = vadd.f32 %v1177, %v1202
      %v1249 = vadd.f32 %v1178, %v1202
      %v1250 = vadd.f32 %v1179, %v1202
      %v1251 = vadd.f32 %v1180, %v1202
      %v1252 = vadd.f32 %v1181, %v1202
      %v1253 = vadd.f32 %v1182, %v1202
      %v1254 = vadd.f32 %v1183, %v1202
      %v1255 = vadd.f32 %v1184, %v1202
      %v1256 = vadd.f32 %v1185, %v1202
      %v1257 = vadd.f32 %v1186, %v1202
      %v1258 = vadd.f32 %v1187, %v1202
      %v1259 = vadd.f32 %v1188, %v1202
      %v1260 = vadd.f32 %v1189, %v1202
      %v1261 = vadd.f32 %v1190, %v1202
      %v1262 = vadd.f32 %v1191, %v1202
      %v1263 = vadd.f32 %v1192, %v1202
      %v1264 = vadd.f32 %v1193, %v1202
      %v1265 = vadd.f32 %v1194, %v1202
      %v1266 = vadd.f32 %v1195, %v1202
      %v1267 = vadd.f32 %v1196, %v1202
      %v1268 = vld [vmem:[%s3] sm:$0xff]
      %v1269 = vld [vmem:[%s3 + $0x8] sm:$0xff]
      %v1270 = vld [vmem:[%s4] sm:$0x1]
      %v1272 = vlaneseq
      %v1273 = vshrl.u32 %v1272, 7
      %v1274 = vsub.s32 0, %v1273
      %v1275 = vrot.slane %v1270, %v1274
      %v1278 = vsel %vm292, %v1204, 0
      %v1281 = vsel %vm292, %v1205, 0
      %v1284 = vsel %vm292, %v1206, 0
      %v1287 = vsel %vm292, %v1207, 0
      %v1290 = vsel %vm292, %v1208, 0
      %v1293 = vsel %vm292, %v1209, 0
      %v1296 = vsel %vm292, %v1210, 0
      %v1299 = vsel %vm292, %v1211, 0
      %v1302 = vsel %vm292, %v1212, 0
      %v1305 = vsel %vm292, %v1213, 0
      %v1308 = vsel %vm292, %v1214, 0
      %v1311 = vsel %vm292, %v1215, 0
      %v1314 = vsel %vm292, %v1216, 0
      %v1317 = vsel %vm292, %v1217, 0
      %v1320 = vsel %vm292, %v1218, 0
      %v1323 = vsel %vm292, %v1219, 0
      %v1326 = vsel %vm292, %v1220, 0
      %v1329 = vsel %vm292, %v1221, 0
      %v1332 = vsel %vm292, %v1222, 0
      %v1335 = vsel %vm292, %v1223, 0
      %v1338 = vsel %vm292, %v1224, 0
      %v1341 = vsel %vm292, %v1225, 0
      %v1344 = vsel %vm292, %v1226, 0
      %v1347 = vsel %vm292, %v1227, 0
      %v1350 = vsel %vm292, %v1228, 0
      %v1353 = vsel %vm292, %v1229, 0
      %v1356 = vsel %vm292, %v1230, 0
      %v1359 = vsel %vm292, %v1231, 0
      %v1362 = vsel %vm292, %v1232, 0
      %v1365 = vsel %vm292, %v1233, 0
      %v1368 = vsel %vm292, %v1234, 0
      %v1371 = vsel %vm292, %v1235, 0
      %v1374 = vsel %vm292, %v1236, 0
      %v1377 = vsel %vm292, %v1237, 0
      %v1380 = vsel %vm292, %v1238, 0
      %v1383 = vsel %vm292, %v1239, 0
      %v1386 = vsel %vm292, %v1240, 0
      %v1389 = vsel %vm292, %v1241, 0
      %v1392 = vsel %vm292, %v1242, 0
      %v1395 = vsel %vm292, %v1243, 0
      %v1398 = vsel %vm292, %v1244, 0
      %v1401 = vsel %vm292, %v1245, 0
      %v1404 = vsel %vm292, %v1246, 0
      %v1407 = vsel %vm292, %v1247, 0
      %v1410 = vsel %vm292, %v1248, 0
      %v1413 = vsel %vm292, %v1249, 0
      %v1416 = vsel %vm292, %v1250, 0
      %v1419 = vsel %vm292, %v1251, 0
      %v1422 = vsel %vm292, %v1252, 0
      %v1425 = vsel %vm292, %v1253, 0
      %v1428 = vsel %vm292, %v1254, 0
      %v1431 = vsel %vm292, %v1255, 0
      %v1434 = vsel %vm292, %v1256, 0
      %v1437 = vsel %vm292, %v1257, 0
      %v1440 = vsel %vm292, %v1258, 0
      %v1443 = vsel %vm292, %v1259, 0
      %v1446 = vsel %vm292, %v1260, 0
      %v1449 = vsel %vm292, %v1261, 0
      %v1452 = vsel %vm292, %v1262, 0
      %v1455 = vsel %vm292, %v1263, 0
      %v1458 = vsel %vm292, %v1264, 0
      %v1461 = vsel %vm292, %v1265, 0
      %v1464 = vsel %vm292, %v1266, 0
      %v1467 = vsel %vm292, %v1267, 0
      %1469 = vmatprep.subr.mxu0 0.0
      %1470 = vmatpush1.msra.mxu0 %v1268
      %1471 = vmatprep.subr.mxu0 0.0
      %1472 = vmatpush1.msra.mxu0 %v1269
      %1473 = vmatprep.subr.mxu0 0.0
      %1474 = vmatpush1.msra.mxu0 0.0
      %1475 = vmatprep.subr.mxu0 0.0
      %1476 = vmatpush1.msra.mxu0 0.0
      %1477 = vmatprep.subr.mxu0 0.0
      %1478 = vmatpush1.msra.mxu0 0.0
      %1479 = vmatprep.subr.mxu0 0.0
      %1480 = vmatpush1.msra.mxu0 0.0
      %1481 = vmatprep.subr.mxu0 0.0
      %1482 = vmatpush1.msra.mxu0 0.0
      %1483 = vmatprep.subr.mxu0 0.0
      %1484 = vmatpush1.msra.mxu0 0.0
      %1485 = vmatprep.subr.mxu0 0.0
      %1486 = vmatpush1.msra.mxu0 0.0
      %1487 = vmatprep.subr.mxu0 0.0
      %1488 = vmatpush1.msra.mxu0 0.0
      %1489 = vmatprep.subr.mxu0 0.0
      %1490 = vmatpush1.msra.mxu0 0.0
      %1491 = vmatprep.subr.mxu0 0.0
      %1492 = vmatpush1.msra.mxu0 0.0
      %1493 = vmatprep.subr.mxu0 0.0
      %1494 = vmatpush1.msra.mxu0 0.0
      %1495 = vmatprep.subr.mxu0 0.0
      %1496 = vmatpush1.msra.mxu0 0.0
      %1497 = vmatprep.subr.mxu0 0.0
      %1498 = vmatpush1.msra.mxu0 0.0
      %1499 = vmatprep.subr.mxu0 0.0
      %1500 = vmatpush1.msra.mxu0 0.0
      %1501 = vmatprep.subr.mxu0 0.0
      %1502 = vmatpush1.msra.mxu0 0.0
      %1503 = vmatprep.subr.mxu0 0.0
      %1504 = vmatpush1.msra.mxu0 0.0
      %1505 = vmatprep.subr.mxu0 0.0
      %1506 = vmatpush1.msra.mxu0 0.0
      %1507 = vmatprep.subr.mxu0 0.0
      %1508 = vmatpush1.msra.mxu0 0.0
      %1509 = vmatprep.subr.mxu0 0.0
      %1510 = vmatpush1.msra.mxu0 0.0
      %1511 = vmatprep.subr.mxu0 0.0
      %1512 = vmatpush1.msra.mxu0 0.0
      %1513 = vmatprep.subr.mxu0 0.0
      %1514 = vmatpush1.msra.mxu0 0.0
      %1515 = vmatprep.subr.mxu0 0.0
      %1516 = vmatpush1.msra.mxu0 0.0
      %1517 = vmatprep.subr.mxu0 0.0
      %1518 = vmatpush1.msra.mxu0 0.0
      %1519 = vmatprep.subr.mxu0 0.0
      %1520 = vmatpush1.msra.mxu0 0.0
      %1521 = vmatprep.subr.mxu0 0.0
      %1522 = vmatpush1.msra.mxu0 0.0
      %1523 = vmatprep.subr.mxu0 0.0
      %1524 = vmatpush1.msra.mxu0 0.0
      %1525 = vmatprep.subr.mxu0 0.0
      %1526 = vmatpush1.msra.mxu0 0.0
      %1527 = vmatprep.subr.mxu0 0.0
      %1528 = vmatpush1.msra.mxu0 0.0
      %1529 = vmatprep.subr.mxu0 0.0
      %1530 = vmatpush1.msra.mxu0 0.0
      %1531 = vmatprep.subr.mxu0 0.0
      %1532 = vmatpush1.msra.mxu0 0.0
      %1533 = vmatprep.mubr.f32.mxu0 0.0
      %1534 = vmatmul.mubr.f32.gmra.mrb[0].mxu0 %v1278
      %v1535 = vpop.f32.mrb[0].mxu0
      %v1536 = vadd.f32 %v1275, %v1535
      %v1537 = vpop.f32.mrb[0].mxu0
      %1538 = vmatprep.mubr.f32.mxu0 0.0
      %1539 = vmatmul.mubr.f32.gmra.mrb[0].mxu0 %v1281
      %v1540 = vpop.f32.mrb[0].mxu0
      %v1541 = vadd.f32 %v1275, %v1540
      %v1542 = vpop.f32.mrb[0].mxu0
      %1543 = vmatprep.mubr.f32.mxu0 0.0
      %1544 = vmatmul.mubr.f32.gmra.mrb[0].mxu0 %v1284
      %v1545 = vpop.f32.mrb[0].mxu0
      %v1546 = vadd.f32 %v1275, %v1545
      %v1547 = vpop.f32.mrb[0].mxu0
      %1548 = vmatprep.mubr.f32.mxu0 0.0
      %1549 = vmatmul.mubr.f32.gmra.mrb[0].mxu0 %v1287
      %v1550 = vpop.f32.mrb[0].mxu0
      %v1551 = vadd.f32 %v1275, %v1550
      %v1552 = vpop.f32.mrb[0].mxu0
      %1553 = vmatprep.mubr.f32.mxu0 0.0
      %1554 = vmatmul.mubr.f32.gmra.mrb[0].mxu0 %v1290
      %v1555 = vpop.f32.mrb[0].mxu0
      %v1556 = vadd.f32 %v1275, %v1555
      %v1557 = vpop.f32.mrb[0].mxu0
      %1558 = vmatprep.mubr.f32.mxu0 0.0
      %1559 = vmatmul.mubr.f32.gmra.mrb[0].mxu0 %v1293
      %v1560 = vpop.f32.mrb[0].mxu0
      %v1561 = vadd.f32 %v1275, %v1560
      %v1562 = vpop.f32.mrb[0].mxu0
      %1563 = vmatprep.mubr.f32.mxu0 0.0
      %1564 = vmatmul.mubr.f32.gmra.mrb[0].mxu0 %v1296
      %v1565 = vpop.f32.mrb[0].mxu0
      %v1566 = vadd.f32 %v1275, %v1565
      %v1567 = vpop.f32.mrb[0].mxu0
      %1568 = vmatprep.mubr.f32.mxu0 0.0
      %1569 = vmatmul.mubr.f32.gmra.mrb[0].mxu0 %v1299
      %v1570 = vpop.f32.mrb[0].mxu0
      %v1571 = vadd.f32 %v1275, %v1570
      %v1572 = vpop.f32.mrb[0].mxu0
      %1573 = vmatprep.mubr.f32.mxu0 0.0
      %1574 = vmatmul.mubr.f32.gmra.mrb[0].mxu0 %v1302
      %v1575 = vpop.f32.mrb[0].mxu0
      %v1576 = vadd.f32 %v1275, %v1575
      %v1577 = vpop.f32.mrb[0].mxu0
      %1578 = vmatprep.mubr.f32.mxu0 0.0
      %1579 = vmatmul.mubr.f32.gmra.mrb[0].mxu0 %v1305
      %v1580 = vpop.f32.mrb[0].mxu0
      %v1581 = vadd.f32 %v1275, %v1580
      %v1582 = vpop.f32.mrb[0].mxu0
      %1583 = vmatprep.mubr.f32.mxu0 0.0
      %1584 = vmatmul.mubr.f32.gmra.mrb[0].mxu0 %v1308
      %v1585 = vpop.f32.mrb[0].mxu0
      %v1586 = vadd.f32 %v1275, %v1585
      %v1587 = vpop.f32.mrb[0].mxu0
      %1588 = vmatprep.mubr.f32.mxu0 0.0
      %1589 = vmatmul.mubr.f32.gmra.mrb[0].mxu0 %v1311
      %v1590 = vpop.f32.mrb[0].mxu0
      %v1591 = vadd.f32 %v1275, %v1590
      %v1592 = vpop.f32.mrb[0].mxu0
      %1593 = vmatprep.mubr.f32.mxu0 0.0
      %1594 = vmatmul.mubr.f32.gmra.mrb[0].mxu0 %v1314
      %v1595 = vpop.f32.mrb[0].mxu0
      %v1596 = vadd.f32 %v1275, %v1595
      %v1597 = vpop.f32.mrb[0].mxu0
      %1598 = vmatprep.mubr.f32.mxu0 0.0
      %1599 = vmatmul.mubr.f32.gmra.mrb[0].mxu0 %v1317
      %v1600 = vpop.f32.mrb[0].mxu0
      %v1601 = vadd.f32 %v1275, %v1600
      %v1602 = vpop.f32.mrb[0].mxu0
      %1603 = vmatprep.mubr.f32.mxu0 0.0
      %1604 = vmatmul.mubr.f32.gmra.mrb[0].mxu0 %v1320
      %v1605 = vpop.f32.mrb[0].mxu0
      %v1606 = vadd.f32 %v1275, %v1605
      %v1607 = vpop.f32.mrb[0].mxu0
      %1608 = vmatprep.mubr.f32.mxu0 0.0
      %1609 = vmatmul.mubr.f32.gmra.mrb[0].mxu0 %v1323
      %v1610 = vpop.f32.mrb[0].mxu0
      %v1611 = vadd.f32 %v1275, %v1610
      %v1612 = vpop.f32.mrb[0].mxu0
      %1613 = vmatprep.mubr.f32.mxu0 0.0
      %1614 = vmatmul.mubr.f32.gmra.mrb[0].mxu0 %v1326
      %v1615 = vpop.f32.mrb[0].mxu0
      %v1616 = vadd.f32 %v1275, %v1615
      %v1617 = vpop.f32.mrb[0].mxu0
      %1618 = vmatprep.mubr.f32.mxu0 0.0
      %1619 = vmatmul.mubr.f32.gmra.mrb[0].mxu0 %v1329
      %v1620 = vpop.f32.mrb[0].mxu0
      %v1621 = vadd.f32 %v1275, %v1620
      %v1622 = vpop.f32.mrb[0].mxu0
      %1623 = vmatprep.mubr.f32.mxu0 0.0
      %1624 = vmatmul.mubr.f32.gmra.mrb[0].mxu0 %v1332
      %v1625 = vpop.f32.mrb[0].mxu0
      %v1626 = vadd.f32 %v1275, %v1625
      %v1627 = vpop.f32.mrb[0].mxu0
      %1628 = vmatprep.mubr.f32.mxu0 0.0
      %1629 = vmatmul.mubr.f32.gmra.mrb[0].mxu0 %v1335
      %v1630 = vpop.f32.mrb[0].mxu0
      %v1631 = vadd.f32 %v1275, %v1630
      %v1632 = vpop.f32.mrb[0].mxu0
      %1633 = vmatprep.mubr.f32.mxu0 0.0
      %1634 = vmatmul.mubr.f32.gmra.mrb[0].mxu0 %v1338
      %v1635 = vpop.f32.mrb[0].mxu0
      %v1636 = vadd.f32 %v1275, %v1635
      %v1637 = vpop.f32.mrb[0].mxu0
      %1638 = vmatprep.mubr.f32.mxu0 0.0
      %1639 = vmatmul.mubr.f32.gmra.mrb[0].mxu0 %v1341
      %v1640 = vpop.f32.mrb[0].mxu0
      %v1641 = vadd.f32 %v1275, %v1640
      %v1642 = vpop.f32.mrb[0].mxu0
      %1643 = vmatprep.mubr.f32.mxu0 0.0
      %1644 = vmatmul.mubr.f32.gmra.mrb[0].mxu0 %v1344
      %v1645 = vpop.f32.mrb[0].mxu0
      %v1646 = vadd.f32 %v1275, %v1645
      %v1647 = vpop.f32.mrb[0].mxu0
      %1648 = vmatprep.mubr.f32.mxu0 0.0
      %1649 = vmatmul.mubr.f32.gmra.mrb[0].mxu0 %v1347
      %v1650 = vpop.f32.mrb[0].mxu0
      %v1651 = vadd.f32 %v1275, %v1650
      %v1652 = vpop.f32.mrb[0].mxu0
      %1653 = vmatprep.mubr.f32.mxu0 0.0
      %1654 = vmatmul.mubr.f32.gmra.mrb[0].mxu0 %v1350
      %v1655 = vpop.f32.mrb[0].mxu0
      %v1656 = vadd.f32 %v1275, %v1655
      %v1657 = vpop.f32.mrb[0].mxu0
      %1658 = vmatprep.mubr.f32.mxu0 0.0
      %1659 = vmatmul.mubr.f32.gmra.mrb[0].mxu0 %v1353
      %v1660 = vpop.f32.mrb[0].mxu0
      %v1661 = vadd.f32 %v1275, %v1660
      %v1662 = vpop.f32.mrb[0].mxu0
      %1663 = vmatprep.mubr.f32.mxu0 0.0
      %1664 = vmatmul.mubr.f32.gmra.mrb[0].mxu0 %v1356
      %v1665 = vpop.f32.mrb[0].mxu0
      %v1666 = vadd.f32 %v1275, %v1665
      %v1667 = vpop.f32.mrb[0].mxu0
      %1668 = vmatprep.mubr.f32.mxu0 0.0
      %1669 = vmatmul.mubr.f32.gmra.mrb[0].mxu0 %v1359
      %v1670 = vpop.f32.mrb[0].mxu0
      %v1671 = vadd.f32 %v1275, %v1670
      %v1672 = vpop.f32.mrb[0].mxu0
      %1673 = vmatprep.mubr.f32.mxu0 0.0
      %1674 = vmatmul.mubr.f32.gmra.mrb[0].mxu0 %v1362
      %v1675 = vpop.f32.mrb[0].mxu0
      %v1676 = vadd.f32 %v1275, %v1675
      %v1677 = vpop.f32.mrb[0].mxu0
      %1678 = vmatprep.mubr.f32.mxu0 0.0
      %1679 = vmatmul.mubr.f32.gmra.mrb[0].mxu0 %v1365
      %v1680 = vpop.f32.mrb[0].mxu0
      %v1681 = vadd.f32 %v1275, %v1680
      %v1682 = vpop.f32.mrb[0].mxu0
      %1683 = vmatprep.mubr.f32.mxu0 0.0
      %1684 = vmatmul.mubr.f32.gmra.mrb[0].mxu0 %v1368
      %v1685 = vpop.f32.mrb[0].mxu0
      %v1686 = vadd.f32 %v1275, %v1685
      %v1687 = vpop.f32.mrb[0].mxu0
      %1688 = vmatprep.mubr.f32.mxu0 0.0
      %1689 = vmatmul.mubr.f32.gmra.mrb[0].mxu0 %v1371
      %v1690 = vpop.f32.mrb[0].mxu0
      %v1691 = vadd.f32 %v1275, %v1690
      %v1692 = vpop.f32.mrb[0].mxu0
      %1693 = vmatprep.mubr.f32.mxu0 0.0
      %1694 = vmatmul.mubr.f32.gmra.mrb[0].mxu0 %v1374
      %v1695 = vpop.f32.mrb[0].mxu0
      %v1696 = vadd.f32 %v1275, %v1695
      %v1697 = vpop.f32.mrb[0].mxu0
      %1698 = vmatprep.mubr.f32.mxu0 0.0
      %1699 = vmatmul.mubr.f32.gmra.mrb[0].mxu0 %v1377
      %v1700 = vpop.f32.mrb[0].mxu0
      %v1701 = vadd.f32 %v1275, %v1700
      %v1702 = vpop.f32.mrb[0].mxu0
      %1703 = vmatprep.mubr.f32.mxu0 0.0
      %1704 = vmatmul.mubr.f32.gmra.mrb[0].mxu0 %v1380
      %v1705 = vpop.f32.mrb[0].mxu0
      %v1706 = vadd.f32 %v1275, %v1705
      %v1707 = vpop.f32.mrb[0].mxu0
      %1708 = vmatprep.mubr.f32.mxu0 0.0
      %1709 = vmatmul.mubr.f32.gmra.mrb[0].mxu0 %v1383
      %v1710 = vpop.f32.mrb[0].mxu0
      %v1711 = vadd.f32 %v1275, %v1710
      %v1712 = vpop.f32.mrb[0].mxu0
      %1713 = vmatprep.mubr.f32.mxu0 0.0
      %1714 = vmatmul.mubr.f32.gmra.mrb[0].mxu0 %v1386
      %v1715 = vpop.f32.mrb[0].mxu0
      %v1716 = vadd.f32 %v1275, %v1715
      %v1717 = vpop.f32.mrb[0].mxu0
      %1718 = vmatprep.mubr.f32.mxu0 0.0
      %1719 = vmatmul.mubr.f32.gmra.mrb[0].mxu0 %v1389
      %v1720 = vpop.f32.mrb[0].mxu0
      %v1721 = vadd.f32 %v1275, %v1720
      %v1722 = vpop.f32.mrb[0].mxu0
      %1723 = vmatprep.mubr.f32.mxu0 0.0
      %1724 = vmatmul.mubr.f32.gmra.mrb[0].mxu0 %v1392
      %v1725 = vpop.f32.mrb[0].mxu0
      %v1726 = vadd.f32 %v1275, %v1725
      %v1727 = vpop.f32.mrb[0].mxu0
      %1728 = vmatprep.mubr.f32.mxu0 0.0
      %1729 = vmatmul.mubr.f32.gmra.mrb[0].mxu0 %v1395
      %v1730 = vpop.f32.mrb[0].mxu0
      %v1731 = vadd.f32 %v1275, %v1730
      %v1732 = vpop.f32.mrb[0].mxu0
      %1733 = vmatprep.mubr.f32.mxu0 0.0
      %1734 = vmatmul.mubr.f32.gmra.mrb[0].mxu0 %v1398
      %v1735 = vpop.f32.mrb[0].mxu0
      %v1736 = vadd.f32 %v1275, %v1735
      %v1737 = vpop.f32.mrb[0].mxu0
      %1738 = vmatprep.mubr.f32.mxu0 0.0
      %1739 = vmatmul.mubr.f32.gmra.mrb[0].mxu0 %v1401
      %v1740 = vpop.f32.mrb[0].mxu0
      %v1741 = vadd.f32 %v1275, %v1740
      %v1742 = vpop.f32.mrb[0].mxu0
      %1743 = vmatprep.mubr.f32.mxu0 0.0
      %1744 = vmatmul.mubr.f32.gmra.mrb[0].mxu0 %v1404
      %v1745 = vpop.f32.mrb[0].mxu0
      %v1746 = vadd.f32 %v1275, %v1745
      %v1747 = vpop.f32.mrb[0].mxu0
      %1748 = vmatprep.mubr.f32.mxu0 0.0
      %1749 = vmatmul.mubr.f32.gmra.mrb[0].mxu0 %v1407
      %v1750 = vpop.f32.mrb[0].mxu0
      %v1751 = vadd.f32 %v1275, %v1750
      %v1752 = vpop.f32.mrb[0].mxu0
      %1753 = vmatprep.mubr.f32.mxu0 0.0
      %1754 = vmatmul.mubr.f32.gmra.mrb[0].mxu0 %v1410
      %v1755 = vpop.f32.mrb[0].mxu0
      %v1756 = vadd.f32 %v1275, %v1755
      %v1757 = vpop.f32.mrb[0].mxu0
      %1758 = vmatprep.mubr.f32.mxu0 0.0
      %1759 = vmatmul.mubr.f32.gmra.mrb[0].mxu0 %v1413
      %v1760 = vpop.f32.mrb[0].mxu0
      %v1761 = vadd.f32 %v1275, %v1760
      %v1762 = vpop.f32.mrb[0].mxu0
      %1763 = vmatprep.mubr.f32.mxu0 0.0
      %1764 = vmatmul.mubr.f32.gmra.mrb[0].mxu0 %v1416
      %v1765 = vpop.f32.mrb[0].mxu0
      %v1766 = vadd.f32 %v1275, %v1765
      %v1767 = vpop.f32.mrb[0].mxu0
      %1768 = vmatprep.mubr.f32.mxu0 0.0
      %1769 = vmatmul.mubr.f32.gmra.mrb[0].mxu0 %v1419
      %v1770 = vpop.f32.mrb[0].mxu0
      %v1771 = vadd.f32 %v1275, %v1770
      %v1772 = vpop.f32.mrb[0].mxu0
      %1773 = vmatprep.mubr.f32.mxu0 0.0
      %1774 = vmatmul.mubr.f32.gmra.mrb[0].mxu0 %v1422
      %v1775 = vpop.f32.mrb[0].mxu0
      %v1776 = vadd.f32 %v1275, %v1775
      %v1777 = vpop.f32.mrb[0].mxu0
      %1778 = vmatprep.mubr.f32.mxu0 0.0
      %1779 = vmatmul.mubr.f32.gmra.mrb[0].mxu0 %v1425
      %v1780 = vpop.f32.mrb[0].mxu0
      %v1781 = vadd.f32 %v1275, %v1780
      %v1782 = vpop.f32.mrb[0].mxu0
      %1783 = vmatprep.mubr.f32.mxu0 0.0
      %1784 = vmatmul.mubr.f32.gmra.mrb[0].mxu0 %v1428
      %v1785 = vpop.f32.mrb[0].mxu0
      %v1786 = vadd.f32 %v1275, %v1785
      %v1787 = vpop.f32.mrb[0].mxu0
      %1788 = vmatprep.mubr.f32.mxu0 0.0
      %1789 = vmatmul.mubr.f32.gmra.mrb[0].mxu0 %v1431
      %v1790 = vpop.f32.mrb[0].mxu0
      %v1791 = vadd.f32 %v1275, %v1790
      %v1792 = vpop.f32.mrb[0].mxu0
      %1793 = vmatprep.mubr.f32.mxu0 0.0
      %1794 = vmatmul.mubr.f32.gmra.mrb[0].mxu0 %v1434
      %v1795 = vpop.f32.mrb[0].mxu0
      %v1796 = vadd.f32 %v1275, %v1795
      %v1797 = vpop.f32.mrb[0].mxu0
      %1798 = vmatprep.mubr.f32.mxu0 0.0
      %1799 = vmatmul.mubr.f32.gmra.mrb[0].mxu0 %v1437
      %v1800 = vpop.f32.mrb[0].mxu0
      %v1801 = vadd.f32 %v1275, %v1800
      %v1802 = vpop.f32.mrb[0].mxu0
      %1803 = vmatprep.mubr.f32.mxu0 0.0
      %1804 = vmatmul.mubr.f32.gmra.mrb[0].mxu0 %v1440
      %v1805 = vpop.f32.mrb[0].mxu0
      %v1806 = vadd.f32 %v1275, %v1805
      %v1807 = vpop.f32.mrb[0].mxu0
      %1808 = vmatprep.mubr.f32.mxu0 0.0
      %1809 = vmatmul.mubr.f32.gmra.mrb[0].mxu0 %v1443
      %v1810 = vpop.f32.mrb[0].mxu0
      %v1811 = vadd.f32 %v1275, %v1810
      %v1812 = vpop.f32.mrb[0].mxu0
      %1813 = vmatprep.mubr.f32.mxu0 0.0
      %1814 = vmatmul.mubr.f32.gmra.mrb[0].mxu0 %v1446
      %v1815 = vpop.f32.mrb[0].mxu0
      %v1816 = vadd.f32 %v1275, %v1815
      %v1817 = vpop.f32.mrb[0].mxu0
      %1818 = vmatprep.mubr.f32.mxu0 0.0
      %1819 = vmatmul.mubr.f32.gmra.mrb[0].mxu0 %v1449
      %v1820 = vpop.f32.mrb[0].mxu0
      %v1821 = vadd.f32 %v1275, %v1820
      %v1822 = vpop.f32.mrb[0].mxu0
      %1823 = vmatprep.mubr.f32.mxu0 0.0
      %1824 = vmatmul.mubr.f32.gmra.mrb[0].mxu0 %v1452
      %v1825 = vpop.f32.mrb[0].mxu0
      %v1826 = vadd.f32 %v1275, %v1825
      %v1827 = vpop.f32.mrb[0].mxu0
      %1828 = vmatprep.mubr.f32.mxu0 0.0
      %1829 = vmatmul.mubr.f32.gmra.mrb[0].mxu0 %v1455
      %v1830 = vpop.f32.mrb[0].mxu0
      %v1831 = vadd.f32 %v1275, %v1830
      %v1832 = vpop.f32.mrb[0].mxu0
      %1833 = vmatprep.mubr.f32.mxu0 0.0
      %1834 = vmatmul.mubr.f32.gmra.mrb[0].mxu0 %v1458
      %v1835 = vpop.f32.mrb[0].mxu0
      %v1836 = vadd.f32 %v1275, %v1835
      %v1837 = vpop.f32.mrb[0].mxu0
      %1838 = vmatprep.mubr.f32.mxu0 0.0
      %1839 = vmatmul.mubr.f32.gmra.mrb[0].mxu0 %v1461
      %v1840 = vpop.f32.mrb[0].mxu0
      %v1841 = vadd.f32 %v1275, %v1840
      %v1842 = vpop.f32.mrb[0].mxu0
      %1843 = vmatprep.mubr.f32.mxu0 0.0
      %1844 = vmatmul.mubr.f32.gmra.mrb[0].mxu0 %v1464
      %v1845 = vpop.f32.mrb[0].mxu0
      %v1846 = vadd.f32 %v1275, %v1845
      %v1847 = vpop.f32.mrb[0].mxu0
      %1848 = vmatprep.mubr.f32.mxu0 0.0
      %1849 = vmatmul.mubr.f32.gmra.mrb[0].mxu0 %v1467
      %v1850 = vpop.f32.mrb[0].mxu0
      %v1851 = vadd.f32 %v1275, %v1850
      %v1852 = vpop.f32.mrb[0].mxu0
      %1853 = vdwg.mxu0
      %vm1854 = vcmask 392192
      %1855 = vst.msk [vmem:[%s226] sm:$0xff] %vm1854, %v1536
      %1856 = vst.msk [vmem:[%s226 + $0x8] sm:$0xff] %vm1854, %v1541
      %1857 = vst.msk [vmem:[%s226 + $0x10] sm:$0xff] %vm1854, %v1546
      %1858 = vst.msk [vmem:[%s226 + $0x18] sm:$0xff] %vm1854, %v1551
      %1859 = vst.msk [vmem:[%s226 + $0x20] sm:$0xff] %vm1854, %v1556
      %1860 = vst.msk [vmem:[%s226 + $0x28] sm:$0xff] %vm1854, %v1561
      %1861 = vst.msk [vmem:[%s226 + $0x30] sm:$0xff] %vm1854, %v1566
      %1862 = vst.msk [vmem:[%s226 + $0x38] sm:$0xff] %vm1854, %v1571
      %1863 = vst.msk [vmem:[%s226 + $0x40] sm:$0xff] %vm1854, %v1576
      %1864 = vst.msk [vmem:[%s226 + $0x48] sm:$0xff] %vm1854, %v1581
      %1865 = vst.msk [vmem:[%s226 + $0x50] sm:$0xff] %vm1854, %v1586
      %1866 = vst.msk [vmem:[%s226 + $0x58] sm:$0xff] %vm1854, %v1591
      %1867 = vst.msk [vmem:[%s226 + $0x60] sm:$0xff] %vm1854, %v1596
      %1868 = vst.msk [vmem:[%s226 + $0x68] sm:$0xff] %vm1854, %v1601
      %1869 = vst.msk [vmem:[%s226 + $0x70] sm:$0xff] %vm1854, %v1606
      %1870 = vst.msk [vmem:[%s226 + $0x78] sm:$0xff] %vm1854, %v1611
      %1871 = vst.msk [vmem:[%s226 + $0x80] sm:$0xff] %vm1854, %v1616
      %1872 = vst.msk [vmem:[%s226 + $0x88] sm:$0xff] %vm1854, %v1621
      %1873 = vst.msk [vmem:[%s226 + $0x90] sm:$0xff] %vm1854, %v1626
      %1874 = vst.msk [vmem:[%s226 + $0x98] sm:$0xff] %vm1854, %v1631
      %1875 = vst.msk [vmem:[%s226 + $0xa0] sm:$0xff] %vm1854, %v1636
      %1876 = vst.msk [vmem:[%s226 + $0xa8] sm:$0xff] %vm1854, %v1641
      %1877 = vst.msk [vmem:[%s226 + $0xb0] sm:$0xff] %vm1854, %v1646
      %1878 = vst.msk [vmem:[%s226 + $0xb8] sm:$0xff] %vm1854, %v1651
      %1879 = vst.msk [vmem:[%s226 + $0xc0] sm:$0xff] %vm1854, %v1656
      %1880 = vst.msk [vmem:[%s226 + $0xc8] sm:$0xff] %vm1854, %v1661
      %1881 = vst.msk [vmem:[%s226 + $0xd0] sm:$0xff] %vm1854, %v1666
      %1882 = vst.msk [vmem:[%s226 + $0xd8] sm:$0xff] %vm1854, %v1671
      %1883 = vst.msk [vmem:[%s226 + $0xe0] sm:$0xff] %vm1854, %v1676
      %1884 = vst.msk [vmem:[%s226 + $0xe8] sm:$0xff] %vm1854, %v1681
      %1885 = vst.msk [vmem:[%s226 + $0xf0] sm:$0xff] %vm1854, %v1686
      %1886 = vst.msk [vmem:[%s226 + $0xf8] sm:$0xff] %vm1854, %v1691
      %1887 = vst.msk [vmem:[%s226 + $0x100] sm:$0xff] %vm1854, %v1696
      %1888 = vst.msk [vmem:[%s226 + $0x108] sm:$0xff] %vm1854, %v1701
      %1889 = vst.msk [vmem:[%s226 + $0x110] sm:$0xff] %vm1854, %v1706
      %1890 = vst.msk [vmem:[%s226 + $0x118] sm:$0xff] %vm1854, %v1711
      %1891 = vst.msk [vmem:[%s226 + $0x120] sm:$0xff] %vm1854, %v1716
      %1892 = vst.msk [vmem:[%s226 + $0x128] sm:$0xff] %vm1854, %v1721
      %1893 = vst.msk [vmem:[%s226 + $0x130] sm:$0xff] %vm1854, %v1726
      %1894 = vst.msk [vmem:[%s226 + $0x138] sm:$0xff] %vm1854, %v1731
      %1895 = vst.msk [vmem:[%s226 + $0x140] sm:$0xff] %vm1854, %v1736
      %1896 = vst.msk [vmem:[%s226 + $0x148] sm:$0xff] %vm1854, %v1741
      %1897 = vst.msk [vmem:[%s226 + $0x150] sm:$0xff] %vm1854, %v1746
      %1898 = vst.msk [vmem:[%s226 + $0x158] sm:$0xff] %vm1854, %v1751
      %1899 = vst.msk [vmem:[%s226 + $0x160] sm:$0xff] %vm1854, %v1756
      %1900 = vst.msk [vmem:[%s226 + $0x168] sm:$0xff] %vm1854, %v1761
      %1901 = vst.msk [vmem:[%s226 + $0x170] sm:$0xff] %vm1854, %v1766
      %1902 = vst.msk [vmem:[%s226 + $0x178] sm:$0xff] %vm1854, %v1771
      %1903 = vst.msk [vmem:[%s226 + $0x180] sm:$0xff] %vm1854, %v1776
      %1904 = vst.msk [vmem:[%s226 + $0x188] sm:$0xff] %vm1854, %v1781
      %1905 = vst.msk [vmem:[%s226 + $0x190] sm:$0xff] %vm1854, %v1786
      %1906 = vst.msk [vmem:[%s226 + $0x198] sm:$0xff] %vm1854, %v1791
      %1907 = vst.msk [vmem:[%s226 + $0x1a0] sm:$0xff] %vm1854, %v1796
      %1908 = vst.msk [vmem:[%s226 + $0x1a8] sm:$0xff] %vm1854, %v1801
      %1909 = vst.msk [vmem:[%s226 + $0x1b0] sm:$0xff] %vm1854, %v1806
      %1910 = vst.msk [vmem:[%s226 + $0x1b8] sm:$0xff] %vm1854, %v1811
      %1911 = vst.msk [vmem:[%s226 + $0x1c0] sm:$0xff] %vm1854, %v1816
      %1912 = vst.msk [vmem:[%s226 + $0x1c8] sm:$0xff] %vm1854, %v1821
      %1913 = vst.msk [vmem:[%s226 + $0x1d0] sm:$0xff] %vm1854, %v1826
      %1914 = vst.msk [vmem:[%s226 + $0x1d8] sm:$0xff] %vm1854, %v1831
      %1915 = vst.msk [vmem:[%s226 + $0x1e0] sm:$0xff] %vm1854, %v1836
      %1916 = vst.msk [vmem:[%s226 + $0x1e8] sm:$0xff] %vm1854, %v1841
      %1917 = vst.msk [vmem:[%s226 + $0x1f0] sm:$0xff] %vm1854, %v1846
      %1918 = vst.msk [vmem:[%s226 + $0x1f8] sm:$0xff] %vm1854, %v1851
      %s1919 = smul.u32 64, %s16
      %p1920 = scmp.lt.s32.totalorder %s1919, 127
      %s1921 = scalar_select %p1920, %s1919, 127
      %s1922 = smul.addr %s1921, 8
      %s1923 = scalar_lea.vmem %s5, %s1922
      // Predicated region
      $region41: #{transformer_block_forward.7} parent=39 // pred_check
        %p1924 = pneg %p144
      $region42: #{transformer_block_forward.7} parent=39 // pred_check_branch
        %1926 = sbr.rel (%p1924) target = $region44
      $region43: #{transformer_block_forward.7} parent=39 // pred_region
        %s1927 = smul.u32 64, %s16
      $region44: #{transformer_block_forward.7} parent=39 // pred_fallthru
        _
    $region40: #{transformer_block_forward.7} parent=5 // pred_fallthru
      _
    %p1928 = scmp.le.s32.totalorder 2, %s11
    // Predicated region
    $region45: #{transformer_block_forward.7} parent=5 // pred_check
      %p1929 = pneg %p1928
    $region46: #{transformer_block_forward.7} parent=5 // pred_check_branch
      %1931 = sbr.rel (%p1929) target = $region48
    $region47: #{transformer_block_forward.7} parent=5 // pred_region
      %s1932 = ssub.s32 %s11, 2
      // Predicated region
      $region49: #{transformer_block_forward.7} parent=47 // pred_check
        %p1933 = pneg %p150
      $region50: #{transformer_block_forward.7} parent=47 // pred_check_branch
        %1935 = sbr.rel (%p1933) target = $region52
      $region51: #{transformer_block_forward.7} parent=47 // pred_region
        %s1936 = smul.u32 64, %s17
        %p1937 = scmp.lt.s32.totalorder %s1936, 127
        %s1938 = scalar_select %p1937, %s1936, 127
        %s1939 = smul.addr %s1938, 8
        %s1940 = scalar_lea.vmem %s5, %s1939
      $region52: #{transformer_block_forward.7} parent=47 // pred_fallthru
        _
    $region48: #{transformer_block_forward.7} parent=5 // pred_fallthru
      _
  $region6: #{transformer_block_forward.7} parent=0 // loop_footer
    %s15 = sadd.s32 1, %s11
  $region7: #{transformer_block_forward.7} parent=0 // loop_footer_branch
    %10 = sbr.rel target = $region3
  $region8: #{transformer_block_forward.7} parent=0 // loop_exit
    _

// kernel: transformer_block_forward.8
$region0: #{transformer_block_forward.8}
  #allocation0 [shape = 'u32[]', space=smem, size = 0x4, offset = 0x4, fixed_abs, tag = 'smem constant byte address 0x4 - core index']
  #allocation1 [shape = 'u32[144,128]{1,0:T(1,128)}', space=vmem, size = 0x12000, scoped, tag = 'internal scratch']
  %s0 = inlined_call_operand.vmem [shape: f32[4,18,18,48], index: 0, kind: input, shape index: {}]
  %s1 = inlined_call_operand.vmem [shape: f32[9,48], index: 1, kind: input, shape index: {}]
  %s2 = inlined_call_operand.vmem [shape: f32[1,48], index: 2, kind: input, shape index: {}]
  %s3 = inlined_call_operand.vmem [shape: f32[4,16,16,48], index: 3, kind: output, shape index: {}]
  %s4 = sld [smem:[#allocation0]]
  $region45: #{transformer_block_forward.8} parent=0
    _
  %s6 = ssub.s32 1, %s4
  %s7 = scalar_select 0, %s6, %s4
  loop: start=0, step=1, limit=6
  $region2: #{transformer_block_forward.8} parent=0 // loop_pre_header
    _
  $region3: #{transformer_block_forward.8} parent=0 // loop_header
    %s9 = sphi 0, %s13
    %p10 = scmp.ge.s32.totalorder %s9, 6
    %s19 = sphi 0, %s21
    %s22 = sphi 0, %s19
    %s23 = sphi 0, %s22
    %s39 = sphi 0, %s23
    %s43 = sphi 0, %s43
    %s45 = sphi 0, %s43
    %s46 = sphi 0, %s45
    %s60 = sphi 0, %s46
    %s64 = sphi 0, %s64
    %s66 = sphi 0, %s64
    %s67 = sphi 0, %s66
    %s81 = sphi 0, %s67
    %s87 = sphi 0, %s89
    %s90 = sphi 0, %s87
    %s91 = sphi 0, %s90
    %s107 = sphi 0, %s91
  $region4: #{transformer_block_forward.8} parent=0 // loop_header_branch
    %12 = sbr.rel (%p10) target = $region8
  $region5: #{transformer_block_forward.8} parent=0 // loop_body
    %s14 = ssub.s32 %s9, 1
    %s15 = ssub.s32 %s9, 2
    %s16 = sadd.s32 %s9, 1
    %s17 = ssub.s32 %s9, %s16
    %p18 = scmp.eq.s32.totalorder %s17, 0
    %s20 = sadd.s32 %s19, 1
    %s21 = scalar_select %p18, %s19, %s20
    %p24 = pneg %p18
    %p25 = scmp.eq.s32.totalorder %s9, 3
    %p26 = por %p24, %p25
    %p27 = scmp.ne.s32.totalorder %s19, %s22
    %p28 = scmp.eq.s32.totalorder %s9, 0
    %p29 = por %p27, %p28
    %p30 = scmp.ne.s32.totalorder %s19, %s22
    %p31 = scmp.eq.s32.totalorder %s14, 3
    %p32 = por %p30, %p31
    %p33 = scmp.ne.s32.totalorder %s22, %s23
    %p34 = scmp.eq.s32.totalorder %s14, 0
    %p35 = por %p33, %p34
    %p36 = scmp.ne.s32.totalorder %s22, %s23
    %p37 = scmp.eq.s32.totalorder %s15, 3
    %p38 = por %p36, %p37
    %p40 = scmp.ne.s32.totalorder %s23, %s39
    %p41 = scmp.eq.s32.totalorder %s15, 0
    %p42 = por %p40, %p41
    %s44 = sadd.s32 %s43, 1
    %p47 = scmp.eq.s32.totalorder %s9, 3
    %p48 = scmp.ne.s32.totalorder %s43, %s45
    %p49 = scmp.eq.s32.totalorder %s9, 0
    %p50 = por %p48, %p49
    %p51 = scmp.ne.s32.totalorder %s43, %s45
    %p52 = scmp.eq.s32.totalorder %s14, 3
    %p53 = por %p51, %p52
    %p54 = scmp.ne.s32.totalorder %s45, %s46
    %p55 = scmp.eq.s32.totalorder %s14, 0
    %p56 = por %p54, %p55
    %p57 = scmp.ne.s32.totalorder %s45, %s46
    %p58 = scmp.eq.s32.totalorder %s15, 3
    %p59 = por %p57, %p58
    %p61 = scmp.ne.s32.totalorder %s46, %s60
    %p62 = scmp.eq.s32.totalorder %s15, 0
    %p63 = por %p61, %p62
    %s65 = sadd.s32 %s64, 1
    %p68 = scmp.eq.s32.totalorder %s9, 3
    %p69 = scmp.ne.s32.totalorder %s64, %s66
    %p70 = scmp.eq.s32.totalorder %s9, 0
    %p71 = por %p69, %p70
    %p72 = scmp.ne.s32.totalorder %s64, %s66
    %p73 = scmp.eq.s32.totalorder %s14, 3
    %p74 = por %p72, %p73
    %p75 = scmp.ne.s32.totalorder %s66, %s67
    %p76 = scmp.eq.s32.totalorder %s14, 0
    %p77 = por %p75, %p76
    %p78 = scmp.ne.s32.totalorder %s66, %s67
    %p79 = scmp.eq.s32.totalorder %s15, 3
    %p80 = por %p78, %p79
    %p82 = scmp.ne.s32.totalorder %s67, %s81
    %p83 = scmp.eq.s32.totalorder %s15, 0
    %p84 = por %p82, %p83
    %s85 = ssub.s32 %s9, %s16
    %p86 = scmp.eq.s32.totalorder %s85, 0
    %s88 = sadd.s32 %s87, 1
    %s89 = scalar_select %p86, %s87, %s88
    %p92 = pneg %p86
    %p93 = scmp.eq.s32.totalorder %s9, 3
    %p94 = por %p92, %p93
    %p95 = scmp.ne.s32.totalorder %s87, %s90
    %p96 = scmp.eq.s32.totalorder %s9, 0
    %p97 = por %p95, %p96
    %p98 = scmp.ne.s32.totalorder %s87, %s90
    %p99 = scmp.eq.s32.totalorder %s14, 3
    %p100 = por %p98, %p99
    %p101 = scmp.ne.s32.totalorder %s90, %s91
    %p102 = scmp.eq.s32.totalorder %s14, 0
    %p103 = por %p101, %p102
    %p104 = scmp.ne.s32.totalorder %s90, %s91
    %p105 = scmp.eq.s32.totalorder %s15, 3
    %p106 = por %p104, %p105
    %p108 = scmp.ne.s32.totalorder %s91, %s107
    %p109 = scmp.eq.s32.totalorder %s15, 0
    %p110 = por %p108, %p109
    %p111 = scmp.le.s32.totalorder 1, %s9
    %p112 = scmp.lt.s32.totalorder %s9, 5
    %p113 = pnand %p111, %p112
    %p114 = pneg %p113
    // Predicated region
    $region9: #{transformer_block_forward.8} parent=5 // pred_check
      _
    $region10: #{transformer_block_forward.8} parent=5 // pred_check_branch
      %116 = sbr.rel (%p113) target = $region12
    $region11: #{transformer_block_forward.8} parent=5 // pred_region
      %s117 = ssub.s32 %s9, 1
      // Predicated region
      $region13: #{transformer_block_forward.8} parent=11 // pred_check
        %p118 = pneg %p56
      $region14: #{transformer_block_forward.8} parent=11 // pred_check_branch
        %120 = sbr.rel (%p118) target = $region16
      $region15: #{transformer_block_forward.8} parent=11 // pred_region
        _
      $region16: #{transformer_block_forward.8} parent=11 // pred_fallthru
        _
      // Predicated region
      $region17: #{transformer_block_forward.8} parent=11 // pred_check
        %p121 = pneg %p77
      $region18: #{transformer_block_forward.8} parent=11 // pred_check_branch
        %123 = sbr.rel (%p121) target = $region20
      $region19: #{transformer_block_forward.8} parent=11 // pred_region
        _
      $region20: #{transformer_block_forward.8} parent=11 // pred_fallthru
        _
    $region12: #{transformer_block_forward.8} parent=5 // pred_fallthru
      _
    %p124 = scmp.lt.s32.totalorder %s9, 4
    // Predicated region
    $region21: #{transformer_block_forward.8} parent=5 // pred_check
      %p125 = pneg %p124
    $region22: #{transformer_block_forward.8} parent=5 // pred_check_branch
      %127 = sbr.rel (%p125) target = $region24
    $region23: #{transformer_block_forward.8} parent=5 // pred_region
      // Predicated region
      $region25: #{transformer_block_forward.8} parent=23 // pred_check
        %p128 = pneg %p29
      $region26: #{transformer_block_forward.8} parent=23 // pred_check_branch
        %130 = sbr.rel (%p128) target = $region28
      $region27: #{transformer_block_forward.8} parent=23 // pred_region
        %p131 = scmp.lt.s32.totalorder %s9, 3
        %s132 = scalar_select %p131, %s9, 3
        %s133 = smul.addr %s132, 54
        %s134 = smul.addr %s133, 8
        %s135 = scalar_lea.vmem %s0, %s134
      $region28: #{transformer_block_forward.8} parent=23 // pred_fallthru
        _
    $region24: #{transformer_block_forward.8} parent=5 // pred_fallthru
      _
    %p136 = scmp.le.s32.totalorder 1, %s9
    %p137 = scmp.lt.s32.totalorder %s9, 5
    %p138 = pnand %p136, %p137
    %p139 = pneg %p138
    // Predicated region
    $region29: #{transformer_block_forward.8} parent=5 // pred_check
      _
    $region30: #{transformer_block_forward.8} parent=5 // pred_check_branch
      %141 = sbr.rel (%p138) target = $region32
    $region31: #{transformer_block_forward.8} parent=5 // pred_region
      %s142 = ssub.s32 %s9, 1
      %p143 = scmp.lt.s32.totalorder %s14, 3
      %s144 = scalar_select %p143, %s14, 3
      %s145 = smul.addr %s144, 54
      %s146 = smul.addr %s145, 8
      %s147 = scalar_lea.vmem %s0, %s146
      %p148 = pneg %p35
      %p149 = pneg %p32
      %p150 = pneg %p56
      %p151 = pneg %p53
      %p152 = pneg %p77
      %p153 = pneg %p74
      %p154 = pneg %p103
      %p155 = pneg %p100
      %p156 = scmp.lt.s32.totalorder %s14, 3
      %s157 = scalar_select %p156, %s14, 3
      %s158 = smul.addr %s157, 32
      %s159 = smul.addr %s158, 8
      %s160 = scalar_lea.vmem %s3, %s159
      %p161 = scmp.lt.s32.totalorder %s14, 3
      %s162 = scalar_select %p161, %s14, 3
      %s163 = smul.addr %s162, 54
      %s164 = smul.addr %s163, 8
      %s165 = scalar_lea.vmem %s0, %s164
      %p166 = scmp.lt.s32.totalorder %s14, 3
      %s167 = scalar_select %p166, %s14, 3
      %s168 = smul.addr %s167, 32
      %s169 = smul.addr %s168, 8
      %s170 = scalar_lea.vmem %s3, %s169
      %v171 = vld [vmem:[%s165] sm:$0xff]
      %v172 = vld [vmem:[%s165 + $0x8] sm:$0xff]
      %v173 = vld [vmem:[%s165 + $0x10] sm:$0x3]
      %v174 = vld [vmem:[%s165 + $0x18] sm:$0xff]
      %v175 = vld [vmem:[%s165 + $0x20] sm:$0xff]
      %v176 = vld [vmem:[%s165 + $0x28] sm:$0x3]
      %v177 = vld [vmem:[%s165 + $0x30] sm:$0xff]
      %v178 = vld [vmem:[%s165 + $0x38] sm:$0xff]
      %v179 = vld [vmem:[%s165 + $0x40] sm:$0x3]
      %v180 = vld [vmem:[%s165 + $0x48] sm:$0xff]
      %v181 = vld [vmem:[%s165 + $0x50] sm:$0xff]
      %v182 = vld [vmem:[%s165 + $0x58] sm:$0x3]
      %v183 = vld [vmem:[%s165 + $0x60] sm:$0xff]
      %v184 = vld [vmem:[%s165 + $0x68] sm:$0xff]
      %v185 = vld [vmem:[%s165 + $0x70] sm:$0x3]
      %v186 = vld [vmem:[%s165 + $0x78] sm:$0xff]
      %v187 = vld [vmem:[%s165 + $0x80] sm:$0xff]
      %v188 = vld [vmem:[%s165 + $0x88] sm:$0x3]
      %v189 = vld [vmem:[%s165 + $0x90] sm:$0xff]
      %v190 = vld [vmem:[%s165 + $0x98] sm:$0xff]
      %v191 = vld [vmem:[%s165 + $0xa0] sm:$0x3]
      %v192 = vld [vmem:[%s165 + $0xa8] sm:$0xff]
      %v193 = vld [vmem:[%s165 + $0xb0] sm:$0xff]
      %v194 = vld [vmem:[%s165 + $0xb8] sm:$0x3]
      %v195 = vld [vmem:[%s165 + $0xc0] sm:$0xff]
      %v196 = vld [vmem:[%s165 + $0xc8] sm:$0xff]
      %v197 = vld [vmem:[%s165 + $0xd0] sm:$0x3]
      %v198 = vld [vmem:[%s165 + $0xd8] sm:$0xff]
      %v199 = vld [vmem:[%s165 + $0xe0] sm:$0xff]
      %v200 = vld [vmem:[%s165 + $0xe8] sm:$0x3]
      %v201 = vld [vmem:[%s165 + $0xf0] sm:$0xff]
      %v202 = vld [vmem:[%s165 + $0xf8] sm:$0xff]
      %v203 = vld [vmem:[%s165 + $0x100] sm:$0x3]
      %v204 = vld [vmem:[%s165 + $0x108] sm:$0xff]
      %v205 = vld [vmem:[%s165 + $0x110] sm:$0xff]
      %v206 = vld [vmem:[%s165 + $0x118] sm:$0x3]
      %v207 = vld [vmem:[%s165 + $0x120] sm:$0xff]
      %v208 = vld [vmem:[%s165 + $0x128] sm:$0xff]
      %v209 = vld [vmem:[%s165 + $0x130] sm:$0x3]
      %v210 = vld [vmem:[%s165 + $0x138] sm:$0xff]
      %v211 = vld [vmem:[%s165 + $0x140] sm:$0xff]
      %v212 = vld [vmem:[%s165 + $0x148] sm:$0x3]
      %v213 = vld [vmem:[%s165 + $0x150] sm:$0xff]
      %v214 = vld [vmem:[%s165 + $0x158] sm:$0xff]
      %v215 = vld [vmem:[%s165 + $0x160] sm:$0x3]
      %v216 = vld [vmem:[%s165 + $0x168] sm:$0xff]
      %v217 = vld [vmem:[%s165 + $0x170] sm:$0xff]
      %v218 = vld [vmem:[%s165 + $0x178] sm:$0x3]
      %v219 = vld [vmem:[%s165 + $0x180] sm:$0xff]
      %v220 = vld [vmem:[%s165 + $0x188] sm:$0xff]
      %v221 = vld [vmem:[%s165 + $0x190] sm:$0x3]
      %v222 = vld [vmem:[%s165 + $0x198] sm:$0xff]
      %v223 = vld [vmem:[%s165 + $0x1a0] sm:$0xff]
      %v224 = vld [vmem:[%s165 + $0x1a8] sm:$0x3]
      %v225 = vld [vmem:[%s1] sm:$0x1]
      %v226 = vlaneseq
      %v227 = vshrl.u32 %v226, 7
      %v228 = vsub.s32 0, %v227
      %v229 = vrot.slane %v225, %v228
      %v230 = vmul.f32 %v171, %v229
      %v231 = vmul.f32 %v172, %v229
      %v232 = vmul.f32 %v174, %v229
      %v233 = vmul.f32 %v175, %v229
      %v234 = vmul.f32 %v177, %v229
      %v235 = vmul.f32 %v178, %v229
      %v236 = vmul.f32 %v180, %v229
      %v237 = vmul.f32 %v181, %v229
      %v238 = vmul.f32 %v183, %v229
      %v239 = vmul.f32 %v184, %v229
      %v240 = vmul.f32 %v186, %v229
      %v241 = vmul.f32 %v187, %v229
      %v242 = vmul.f32 %v189, %v229
      %v243 = vmul.f32 %v190, %v229
      %v244 = vmul.f32 %v192, %v229
      %v245 = vmul.f32 %v193, %v229
      %v246 = vmul.f32 %v195, %v229
      %v247 = vmul.f32 %v196, %v229
      %v248 = vmul.f32 %v198, %v229
      %v249 = vmul.f32 %v199, %v229
      %v250 = vmul.f32 %v201, %v229
      %v251 = vmul.f32 %v202, %v229
      %v252 = vmul.f32 %v204, %v229
      %v253 = vmul.f32 %v205, %v229
      %v254 = vmul.f32 %v207, %v229
      %v255 = vmul.f32 %v208, %v229
      %v256 = vmul.f32 %v210, %v229
      %v257 = vmul.f32 %v211, %v229
      %v258 = vmul.f32 %v213, %v229
      %v259 = vmul.f32 %v214, %v229
      %v260 = vmul.f32 %v216, %v229
      %v261 = vmul.f32 %v217, %v229
      %v262 = vadd.f32 %v230, 0.0
      %v263 = vadd.f32 %v231, 0.0
      %v264 = vadd.f32 %v232, 0.0
      %v265 = vadd.f32 %v233, 0.0
      %v266 = vadd.f32 %v234, 0.0
      %v267 = vadd.f32 %v235, 0.0
      %v268 = vadd.f32 %v236, 0.0
      %v269 = vadd.f32 %v237, 0.0
      %v270 = vadd.f32 %v238, 0.0
      %v271 = vadd.f32 %v239, 0.0
      %v272 = vadd.f32 %v240, 0.0
      %v273 = vadd.f32 %v241, 0.0
      %v274 = vadd.f32 %v242, 0.0
      %v275 = vadd.f32 %v243, 0.0
      %v276 = vadd.f32 %v244, 0.0
      %v277 = vadd.f32 %v245, 0.0
      %v278 = vadd.f32 %v246, 0.0
      %v279 = vadd.f32 %v247, 0.0
      %v280 = vadd.f32 %v248, 0.0
      %v281 = vadd.f32 %v249, 0.0
      %v282 = vadd.f32 %v250, 0.0
      %v283 = vadd.f32 %v251, 0.0
      %v284 = vadd.f32 %v252, 0.0
      %v285 = vadd.f32 %v253, 0.0
      %v286 = vadd.f32 %v254, 0.0
      %v287 = vadd.f32 %v255, 0.0
      %v288 = vadd.f32 %v256, 0.0
      %v289 = vadd.f32 %v257, 0.0
      %v290 = vadd.f32 %v258, 0.0
      %v291 = vadd.f32 %v259, 0.0
      %v292 = vadd.f32 %v260, 0.0
      %v293 = vadd.f32 %v261, 0.0
      %v294 = vld [vmem:[%s1 + $0x1] sm:$0x1]
      %v295 = vlaneseq
      %v296 = vshrl.u32 %v295, 7
      %v297 = vsub.s32 0, %v296
      %v298 = vrot.slane %v294, %v297
      %v299 = vmul.f32 %v171, %v298
      %v300 = vmul.f32 %v172, %v298
      %v301 = vmul.f32 %v173, %v298
      %v302 = vmul.f32 %v174, %v298
      %v303 = vmul.f32 %v175, %v298
      %v304 = vmul.f32 %v176, %v298
      %v305 = vmul.f32 %v177, %v298
      %v306 = vmul.f32 %v178, %v298
      %v307 = vmul.f32 %v179, %v298
      %v308 = vmul.f32 %v180, %v298
      %v309 = vmul.f32 %v181, %v298
      %v310 = vmul.f32 %v182, %v298
      %v311 = vmul.f32 %v183, %v298
      %v312 = vmul.f32 %v184, %v298
      %v313 = vmul.f32 %v185, %v298
      %v314 = vmul.f32 %v186, %v298
      %v315 = vmul.f32 %v187, %v298
      %v316 = vmul.f32 %v188, %v298
      %v317 = vmul.f32 %v189, %v298
      %v318 = vmul.f32 %v190, %v298
      %v319 = vmul.f32 %v191, %v298
      %v320 = vmul.f32 %v192, %v298
      %v321 = vmul.f32 %v193, %v298
      %v322 = vmul.f32 %v194, %v298
      %v323 = vmul.f32 %v195, %v298
      %v324 = vmul.f32 %v196, %v298
      %v325 = vmul.f32 %v197, %v298
      %v326 = vmul.f32 %v198, %v298
      %v327 = vmul.f32 %v199, %v298
      %v328 = vmul.f32 %v200, %v298
      %v329 = vmul.f32 %v201, %v298
      %v330 = vmul.f32 %v202, %v298
      %v331 = vmul.f32 %v203, %v298
      %v332 = vmul.f32 %v204, %v298
      %v333 = vmul.f32 %v205, %v298
      %v334 = vmul.f32 %v206, %v298
      %v335 = vmul.f32 %v207, %v298
      %v336 = vmul.f32 %v208, %v298
      %v337 = vmul.f32 %v209, %v298
      %v338 = vmul.f32 %v210, %v298
      %v339 = vmul.f32 %v211, %v298
      %v340 = vmul.f32 %v212, %v298
      %v341 = vmul.f32 %v213, %v298
      %v342 = vmul.f32 %v214, %v298
      %v343 = vmul.f32 %v215, %v298
      %v344 = vmul.f32 %v216, %v298
      %v345 = vmul.f32 %v217, %v298
      %v346 = vmul.f32 %v218, %v298
      %vm395 = vcmask 1046528
      %v396 = vrot.slane %v299, 1
      %v397 = vrot.slane %v300, 1
      %v398 = vsel %vm395, %v396, %v397
      %v399 = vrot.slane %v301, 1
      %v400 = vsel %vm395, %v397, %v399
      %v401 = vrot.slane %v302, 1
      %v402 = vrot.slane %v303, 1
      %v403 = vsel %vm395, %v401, %v402
      %v404 = vrot.slane %v304, 1
      %v405 = vsel %vm395, %v402, %v404
      %v406 = vrot.slane %v305, 1
      %v407 = vrot.slane %v306, 1
      %v408 = vsel %vm395, %v406, %v407
      %v409 = vrot.slane %v307, 1
      %v410 = vsel %vm395, %v407, %v409
      %v411 = vrot.slane %v308, 1
      %v412 = vrot.slane %v309, 1
      %v413 = vsel %vm395, %v411, %v412
      %v414 = vrot.slane %v310, 1
      %v415 = vsel %vm395, %v412, %v414
      %v416 = vrot.slane %v311, 1
      %v417 = vrot.slane %v312, 1
      %v418 = vsel %vm395, %v416, %v417
      %v419 = vrot.slane %v313, 1
      %v420 = vsel %vm395, %v417, %v419
      %v421 = vrot.slane %v314, 1
      %v422 = vrot.slane %v315, 1
      %v423 = vsel %vm395, %v421, %v422
      %v424 = vrot.slane %v316, 1
      %v425 = vsel %vm395, %v422, %v424
      %v426 = vrot.slane %v317, 1
      %v427 = vrot.slane %v318, 1
      %v428 = vsel %vm395, %v426, %v427
      %v429 = vrot.slane %v319, 1
      %v430 = vsel %vm395, %v427, %v429
      %v431 = vrot.slane %v320, 1
      %v432 = vrot.slane %v321, 1
      %v433 = vsel %vm395, %v431, %v432
      %v434 = vrot.slane %v322, 1
      %v435 = vsel %vm395, %v432, %v434
      %v436 = vrot.slane %v323, 1
      %v437 = vrot.slane %v324, 1
      %v438 = vsel %vm395, %v436, %v437
      %v439 = vrot.slane %v325, 1
      %v440 = vsel %vm395, %v437, %v439
      %v441 = vrot.slane %v326, 1
      %v442 = vrot.slane %v327, 1
      %v443 = vsel %vm395, %v441, %v442
      %v444 = vrot.slane %v328, 1
      %v445 = vsel %vm395, %v442, %v444
      %v446 = vrot.slane %v329, 1
      %v447 = vrot.slane %v330, 1
      %v448 = vsel %vm395, %v446, %v447
      %v449 = vrot.slane %v331, 1
      %v450 = vsel %vm395, %v447, %v449
      %v451 = vrot.slane %v332, 1
      %v452 = vrot.slane %v333, 1
      %v453 = vsel %vm395, %v451, %v452
      %v454 = vrot.slane %v334, 1
      %v455 = vsel %vm395, %v452, %v454
      %v456 = vrot.slane %v335, 1
      %v457 = vrot.slane %v336, 1
      %v458 = vsel %vm395, %v456, %v457
      %v459 = vrot.slane %v337, 1
      %v460 = vsel %vm395, %v457, %v459
      %v461 = vrot.slane %v338, 1
      %v462 = vrot.slane %v339, 1
      %v463 = vsel %vm395, %v461, %v462
      %v464 = vrot.slane %v340, 1
      %v465 = vsel %vm395, %v462, %v464
      %v466 = vrot.slane %v341, 1
      %v467 = vrot.slane %v342, 1
      %v468 = vsel %vm395, %v466, %v467
      %v469 = vrot.slane %v343, 1
      %v470 = vsel %vm395, %v467, %v469
      %v471 = vrot.slane %v344, 1
      %v472 = vrot.slane %v345, 1
      %v473 = vsel %vm395, %v471, %v472
      %v474 = vrot.slane %v346, 1
      %v475 = vsel %vm395, %v472, %v474
      %v508 = vadd.f32 %v262, %v398
      %v509 = vadd.f32 %v263, %v400
      %v510 = vadd.f32 %v264, %v403
      %v511 = vadd.f32 %v265, %v405
      %v512 = vadd.f32 %v266, %v408
      %v513 = vadd.f32 %v267, %v410
      %v514 = vadd.f32 %v268, %v413
      %v515 = vadd.f32 %v269, %v415
      %v516 = vadd.f32 %v270, %v418
      %v517 = vadd.f32 %v271, %v420
      %v518 = vadd.f32 %v272, %v423
      %v519 = vadd.f32 %v273, %v425
      %v520 = vadd.f32 %v274, %v428
      %v521 = vadd.f32 %v275, %v430
      %v522 = vadd.f32 %v276, %v433
      %v523 = vadd.f32 %v277, %v435
      %v524 = vadd.f32 %v278, %v438
      %v525 = vadd.f32 %v279, %v440
      %v526 = vadd.f32 %v280, %v443
      %v527 = vadd.f32 %v281, %v445
      %v528 = vadd.f32 %v282, %v448
      %v529 = vadd.f32 %v283, %v450
      %v530 = vadd.f32 %v284, %v453
      %v531 = vadd.f32 %v285, %v455
      %v532 = vadd.f32 %v286, %v458
      %v533 = vadd.f32 %v287, %v460
      %v534 = vadd.f32 %v288, %v463
      %v535 = vadd.f32 %v289, %v465
      %v536 = vadd.f32 %v290, %v468
      %v537 = vadd.f32 %v291, %v470
      %v538 = vadd.f32 %v292, %v473
      %v539 = vadd.f32 %v293, %v475
      %v540 = vld [vmem:[%s1 + $0x2] sm:$0x1]
      %v541 = vlaneseq
      %v542 = vshrl.u32 %v541, 7
      %v543 = vsub.s32 0, %v542
      %v544 = vrot.slane %v540, %v543
      %v545 = vmul.f32 %v171, %v544
      %v546 = vmul.f32 %v172, %v544
      %v547 = vmul.f32 %v173, %v544
      %v548 = vmul.f32 %v174, %v544
      %v549 = vmul.f32 %v175, %v544
      %v550 = vmul.f32 %v176, %v544
      %v551 = vmul.f32 %v177, %v544
      %v552 = vmul.f32 %v178, %v544
      %v553 = vmul.f32 %v179, %v544
      %v554 = vmul.f32 %v180, %v544
      %v555 = vmul.f32 %v181, %v544
      %v556 = vmul.f32 %v182, %v544
      %v557 = vmul.f32 %v183, %v544
      %v558 = vmul.f32 %v184, %v544
      %v559 = vmul.f32 %v185, %v544
      %v560 = vmul.f32 %v186, %v544
      %v561 = vmul.f32 %v187, %v544
      %v562 = vmul.f32 %v188, %v544
      %v563 = vmul.f32 %v189, %v544
      %v564 = vmul.f32 %v190, %v544
      %v565 = vmul.f32 %v191, %v544
      %v566 = vmul.f32 %v192, %v544
      %v567 = vmul.f32 %v193, %v544
      %v568 = vmul.f32 %v194, %v544
      %v569 = vmul.f32 %v195, %v544
      %v570 = vmul.f32 %v196, %v544
      %v571 = vmul.f32 %v197, %v544
      %v572 = vmul.f32 %v198, %v544
      %v573 = vmul.f32 %v199, %v544
      %v574 = vmul.f32 %v200, %v544
      %v575 = vmul.f32 %v201, %v544
      %v576 = vmul.f32 %v202, %v544
      %v577 = vmul.f32 %v203, %v544
      %v578 = vmul.f32 %v204, %v544
      %v579 = vmul.f32 %v205, %v544
      %v580 = vmul.f32 %v206, %v544
      %v581 = vmul.f32 %v207, %v544
      %v582 = vmul.f32 %v208, %v544
      %v583 = vmul.f32 %v209, %v544
      %v584 = vmul.f32 %v210, %v544
      %v585 = vmul.f32 %v211, %v544
      %v586 = vmul.f32 %v212, %v544
      %v587 = vmul.f32 %v213, %v544
      %v588 = vmul.f32 %v214, %v544
      %v589 = vmul.f32 %v215, %v544
      %v590 = vmul.f32 %v216, %v544
      %v591 = vmul.f32 %v217, %v544
      %v592 = vmul.f32 %v218, %v544
      %vm641 = vcmask 1045504
      %v642 = vrot.slane %v545, 2
      %v643 = vrot.slane %v546, 2
      %v644 = vsel %vm641, %v642, %v643
      %v645 = vrot.slane %v547, 2
      %v646 = vsel %vm641, %v643, %v645
      %v647 = vrot.slane %v548, 2
      %v648 = vrot.slane %v549, 2
      %v649 = vsel %vm641, %v647, %v648
      %v650 = vrot.slane %v550, 2
      %v651 = vsel %vm641, %v648, %v650
      %v652 = vrot.slane %v551, 2
      %v653 = vrot.slane %v552, 2
      %v654 = vsel %vm641, %v652, %v653
      %v655 = vrot.slane %v553, 2
      %v656 = vsel %vm641, %v653, %v655
      %v657 = vrot.slane %v554, 2
      %v658 = vrot.slane %v555, 2
      %v659 = vsel %vm641, %v657, %v658
      %v660 = vrot.slane %v556, 2
      %v661 = vsel %vm641, %v658, %v660
      %v662 = vrot.slane %v557, 2
      %v663 = vrot.slane %v558, 2
      %v664 = vsel %vm641, %v662, %v663
      %v665 = vrot.slane %v559, 2
      %v666 = vsel %vm641, %v663, %v665
      %v667 = vrot.slane %v560, 2
      %v668 = vrot.slane %v561, 2
      %v669 = vsel %vm641, %v667, %v668
      %v670 = vrot.slane %v562, 2
      %v671 = vsel %vm641, %v668, %v670
      %v672 = vrot.slane %v563, 2
      %v673 = vrot.slane %v564, 2
      %v674 = vsel %vm641, %v672, %v673
      %v675 = vrot.slane %v565, 2
      %v676 = vsel %vm641, %v673, %v675
      %v677 = vrot.slane %v566, 2
      %v678 = vrot.slane %v567, 2
      %v679 = vsel %vm641, %v677, %v678
      %v680 = vrot.slane %v568, 2
      %v681 = vsel %vm641, %v678, %v680
      %v682 = vrot.slane %v569, 2
      %v683 = vrot.slane %v570, 2
      %v684 = vsel %vm641, %v682, %v683
      %v685 = vrot.slane %v571, 2
      %v686 = vsel %vm641, %v683, %v685
      %v687 = vrot.slane %v572, 2
      %v688 = vrot.slane %v573, 2
      %v689 = vsel %vm641, %v687, %v688
      %v690 = vrot.slane %v574, 2
      %v691 = vsel %vm641, %v688, %v690
      %v692 = vrot.slane %v575, 2
      %v693 = vrot.slane %v576, 2
      %v694 = vsel %vm641, %v692, %v693
      %v695 = vrot.slane %v577, 2
      %v696 = vsel %vm641, %v693, %v695
      %v697 = vrot.slane %v578, 2
      %v698 = vrot.slane %v579, 2
      %v699 = vsel %vm641, %v697, %v698
      %v700 = vrot.slane %v580, 2
      %v701 = vsel %vm641, %v698, %v700
      %v702 = vrot.slane %v581, 2
      %v703 = vrot.slane %v582, 2
      %v704 = vsel %vm641, %v702, %v703
      %v705 = vrot.slane %v583, 2
      %v706 = vsel %vm641, %v703, %v705
      %v707 = vrot.slane %v584, 2
      %v708 = vrot.slane %v585, 2
      %v709 = vsel %vm641, %v707, %v708
      %v710 = vrot.slane %v586, 2
      %v711 = vsel %vm641, %v708, %v710
      %v712 = vrot.slane %v587, 2
      %v713 = vrot.slane %v588, 2
      %v714 = vsel %vm641, %v712, %v713
      %v715 = vrot.slane %v589, 2
      %v716 = vsel %vm641, %v713, %v715
      %v717 = vrot.slane %v590, 2
      %v718 = vrot.slane %v591, 2
      %v719 = vsel %vm641, %v717, %v718
      %v720 = vrot.slane %v592, 2
      %v721 = vsel %vm641, %v718, %v720
      %v754 = vadd.f32 %v508, %v644
      %v755 = vadd.f32 %v509, %v646
      %v756 = vadd.f32 %v510, %v649
      %v757 = vadd.f32 %v511, %v651
      %v758 = vadd.f32 %v512, %v654
      %v759 = vadd.f32 %v513, %v656
      %v760 = vadd.f32 %v514, %v659
      %v761 = vadd.f32 %v515, %v661
      %v762 = vadd.f32 %v516, %v664
      %v763 = vadd.f32 %v517, %v666
      %v764 = vadd.f32 %v518, %v669
      %v765 = vadd.f32 %v519, %v671
      %v766 = vadd.f32 %v520, %v674
      %v767 = vadd.f32 %v521, %v676
      %v768 = vadd.f32 %v522, %v679
      %v769 = vadd.f32 %v523, %v681
      %v770 = vadd.f32 %v524, %v684
      %v771 = vadd.f32 %v525, %v686
      %v772 = vadd.f32 %v526, %v689
      %v773 = vadd.f32 %v527, %v691
      %v774 = vadd.f32 %v528, %v694
      %v775 = vadd.f32 %v529, %v696
      %v776 = vadd.f32 %v530, %v699
      %v777 = vadd.f32 %v531, %v701
      %v778 = vadd.f32 %v532, %v704
      %v779 = vadd.f32 %v533, %v706
      %v780 = vadd.f32 %v534, %v709
      %v781 = vadd.f32 %v535, %v711
      %v782 = vadd.f32 %v536, %v714
      %v783 = vadd.f32 %v537, %v716
      %v784 = vadd.f32 %v538, %v719
      %v785 = vadd.f32 %v539, %v721
      %v786 = vld [vmem:[%s1 + $0x3] sm:$0x1]
      %v787 = vlaneseq
      %v788 = vshrl.u32 %v787, 7
      %v789 = vsub.s32 0, %v788
      %v790 = vrot.slane %v786, %v789
      %v791 = vmul.f32 %v174, %v790
      %v792 = vmul.f32 %v175, %v790
      %v793 = vmul.f32 %v177, %v790
      %v794 = vmul.f32 %v178, %v790
      %v795 = vmul.f32 %v180, %v790
      %v796 = vmul.f32 %v181, %v790
      %v797 = vmul.f32 %v183, %v790
      %v798 = vmul.f32 %v184, %v790
      %v799 = vmul.f32 %v186, %v790
      %v800 = vmul.f32 %v187, %v790
      %v801 = vmul.f32 %v189, %v790
      %v802 = vmul.f32 %v190, %v790
      %v803 = vmul.f32 %v192, %v790
      %v804 = vmul.f32 %v193, %v790
      %v805 = vmul.f32 %v195, %v790
      %v806 = vmul.f32 %v196, %v790
      %v807 = vmul.f32 %v198, %v790
      %v808 = vmul.f32 %v199, %v790
      %v809 = vmul.f32 %v201, %v790
      %v810 = vmul.f32 %v202, %v790
      %v811 = vmul.f32 %v204, %v790
      %v812 = vmul.f32 %v205, %v790
      %v813 = vmul.f32 %v207, %v790
      %v814 = vmul.f32 %v208, %v790
      %v815 = vmul.f32 %v210, %v790
      %v816 = vmul.f32 %v211, %v790
      %v817 = vmul.f32 %v213, %v790
      %v818 = vmul.f32 %v214, %v790
      %v819 = vmul.f32 %v216, %v790
      %v820 = vmul.f32 %v217, %v790
      %v821 = vmul.f32 %v219, %v790
      %v822 = vmul.f32 %v220, %v790
      %v823 = vadd.f32 %v754, %v791
      %v824 = vadd.f32 %v755, %v792
      %v825 = vadd.f32 %v756, %v793
      %v826 = vadd.f32 %v757, %v794
      %v827 = vadd.f32 %v758, %v795
      %v828 = vadd.f32 %v759, %v796
      %v829 = vadd.f32 %v760, %v797
      %v830 = vadd.f32 %v761, %v798
      %v831 = vadd.f32 %v762, %v799
      %v832 = vadd.f32 %v763, %v800
      %v833 = vadd.f32 %v764, %v801
      %v834 = vadd.f32 %v765, %v802
      %v835 = vadd.f32 %v766, %v803
      %v836 = vadd.f32 %v767, %v804
      %v837 = vadd.f32 %v768, %v805
      %v838 = vadd.f32 %v769, %v806
      %v839 = vadd.f32 %v770, %v807
      %v840 = vadd.f32 %v771, %v808
      %v841 = vadd.f32 %v772, %v809
      %v842 = vadd.f32 %v773, %v810
      %v843 = vadd.f32 %v774, %v811
      %v844 = vadd.f32 %v775, %v812
      %v845 = vadd.f32 %v776, %v813
      %v846 = vadd.f32 %v777, %v814
      %v847 = vadd.f32 %v778, %v815
      %v848 = vadd.f32 %v779, %v816
      %v849 = vadd.f32 %v780, %v817
      %v850 = vadd.f32 %v781, %v818
      %v851 = vadd.f32 %v782, %v819
      %v852 = vadd.f32 %v783, %v820
      %v853 = vadd.f32 %v784, %v821
      %v854 = vadd.f32 %v785, %v822
      %v855 = vld [vmem:[%s1 + $0x4] sm:$0x1]
      %v856 = vlaneseq
      %v857 = vshrl.u32 %v856, 7
      %v858 = vsub.s32 0, %v857
      %v859 = vrot.slane %v855, %v858
      %v860 = vmul.f32 %v174, %v859
      %v861 = vmul.f32 %v175, %v859
      %v862 = vmul.f32 %v176, %v859
      %v863 = vmul.f32 %v177, %v859
      %v864 = vmul.f32 %v178, %v859
      %v865 = vmul.f32 %v179, %v859
      %v866 = vmul.f32 %v180, %v859
      %v867 = vmul.f32 %v181, %v859
      %v868 = vmul.f32 %v182, %v859
      %v869 = vmul.f32 %v183, %v859
      %v870 = vmul.f32 %v184, %v859
      %v871 = vmul.f32 %v185, %v859
      %v872 = vmul.f32 %v186, %v859
      %v873 = vmul.f32 %v187, %v859
      %v874 = vmul.f32 %v188, %v859
      %v875 = vmul.f32 %v189, %v859
      %v876 = vmul.f32 %v190, %v859
      %v877 = vmul.f32 %v191, %v859
      %v878 = vmul.f32 %v192, %v859
      %v879 = vmul.f32 %v193, %v859
      %v880 = vmul.f32 %v194, %v859
      %v881 = vmul.f32 %v195, %v859
      %v882 = vmul.f32 %v196, %v859
      %v883 = vmul.f32 %v197, %v859
      %v884 = vmul.f32 %v198, %v859
      %v885 = vmul.f32 %v199, %v859
      %v886 = vmul.f32 %v200, %v859
      %v887 = vmul.f32 %v201, %v859
      %v888 = vmul.f32 %v202, %v859
      %v889 = vmul.f32 %v203, %v859
      %v890 = vmul.f32 %v204, %v859
      %v891 = vmul.f32 %v205, %v859
      %v892 = vmul.f32 %v206, %v859
      %v893 = vmul.f32 %v207, %v859
      %v894 = vmul.f32 %v208, %v859
      %v895 = vmul.f32 %v209, %v859
      %v896 = vmul.f32 %v210, %v859
      %v897 = vmul.f32 %v211, %v859
      %v898 = vmul.f32 %v212, %v859
      %v899 = vmul.f32 %v213, %v859
      %v900 = vmul.f32 %v214, %v859
      %v901 = vmul.f32 %v215, %v859
      %v902 = vmul.f32 %v216, %v859
      %v903 = vmul.f32 %v217, %v859
      %v904 = vmul.f32 %v218, %v859
      %v905 = vmul.f32 %v219, %v859
      %v906 = vmul.f32 %v220, %v859
      %v907 = vmul.f32 %v221, %v859
      %v956 = vrot.slane %v860, 1
      %v957 = vrot.slane %v861, 1
      %v958 = vsel %vm395, %v956, %v957
      %v959 = vrot.slane %v862, 1
      %v960 = vsel %vm395, %v957, %v959
      %v961 = vrot.slane %v863, 1
      %v962 = vrot.slane %v864, 1
      %v963 = vsel %vm395, %v961, %v962
      %v964 = vrot.slane %v865, 1
      %v965 = vsel %vm395, %v962, %v964
      %v966 = vrot.slane %v866, 1
      %v967 = vrot.slane %v867, 1
      %v968 = vsel %vm395, %v966, %v967
      %v969 = vrot.slane %v868, 1
      %v970 = vsel %vm395, %v967, %v969
      %v971 = vrot.slane %v869, 1
      %v972 = vrot.slane %v870, 1
      %v973 = vsel %vm395, %v971, %v972
      %v974 = vrot.slane %v871, 1
      %v975 = vsel %vm395, %v972, %v974
      %v976 = vrot.slane %v872, 1
      %v977 = vrot.slane %v873, 1
      %v978 = vsel %vm395, %v976, %v977
      %v979 = vrot.slane %v874, 1
      %v980 = vsel %vm395, %v977, %v979
      %v981 = vrot.slane %v875, 1
      %v982 = vrot.slane %v876, 1
      %v983 = vsel %vm395, %v981, %v982
      %v984 = vrot.slane %v877, 1
      %v985 = vsel %vm395, %v982, %v984
      %v986 = vrot.slane %v878, 1
      %v987 = vrot.slane %v879, 1
      %v988 = vsel %vm395, %v986, %v987
      %v989 = vrot.slane %v880, 1
      %v990 = vsel %vm395, %v987, %v989
      %v991 = vrot.slane %v881, 1
      %v992 = vrot.slane %v882, 1
      %v993 = vsel %vm395, %v991, %v992
      %v994 = vrot.slane %v883, 1
      %v995 = vsel %vm395, %v992, %v994
      %v996 = vrot.slane %v884, 1
      %v997 = vrot.slane %v885, 1
      %v998 = vsel %vm395, %v996, %v997
      %v999 = vrot.slane %v886, 1
      %v1000 = vsel %vm395, %v997, %v999
      %v1001 = vrot.slane %v887, 1
      %v1002 = vrot.slane %v888, 1
      %v1003 = vsel %vm395, %v1001, %v1002
      %v1004 = vrot.slane %v889, 1
      %v1005 = vsel %vm395, %v1002, %v1004
      %v1006 = vrot.slane %v890, 1
      %v1007 = vrot.slane %v891, 1
      %v1008 = vsel %vm395, %v1006, %v1007
      %v1009 = vrot.slane %v892, 1
      %v1010 = vsel %vm395, %v1007, %v1009
      %v1011 = vrot.slane %v893, 1
      %v1012 = vrot.slane %v894, 1
      %v1013 = vsel %vm395, %v1011, %v1012
      %v1014 = vrot.slane %v895, 1
      %v1015 = vsel %vm395, %v1012, %v1014
      %v1016 = vrot.slane %v896, 1
      %v1017 = vrot.slane %v897, 1
      %v1018 = vsel %vm395, %v1016, %v1017
      %v1019 = vrot.slane %v898, 1
      %v1020 = vsel %vm395, %v1017, %v1019
      %v1021 = vrot.slane %v899, 1
      %v1022 = vrot.slane %v900, 1
      %v1023 = vsel %vm395, %v1021, %v1022
      %v1024 = vrot.slane %v901, 1
      %v1025 = vsel %vm395, %v1022, %v1024
      %v1026 = vrot.slane %v902, 1
      %v1027 = vrot.slane %v903, 1
      %v1028 = vsel %vm395, %v1026, %v1027
      %v1029 = vrot.slane %v904, 1
      %v1030 = vsel %vm395, %v1027, %v1029
      %v1031 = vrot.slane %v905, 1
      %v1032 = vrot.slane %v906, 1
      %v1033 = vsel %vm395, %v1031, %v1032
      %v1034 = vrot.slane %v907, 1
      %v1035 = vsel %vm395, %v1032, %v1034
      %v1068 = vadd.f32 %v823, %v958
      %v1069 = vadd.f32 %v824, %v960
      %v1070 = vadd.f32 %v825, %v963
      %v1071 = vadd.f32 %v826, %v965
      %v1072 = vadd.f32 %v827, %v968
      %v1073 = vadd.f32 %v828, %v970
      %v1074 = vadd.f32 %v829, %v973
      %v1075 = vadd.f32 %v830, %v975
      %v1076 = vadd.f32 %v831, %v978
      %v1077 = vadd.f32 %v832, %v980
      %v1078 = vadd.f32 %v833, %v983
      %v1079 = vadd.f32 %v834, %v985
      %v1080 = vadd.f32 %v835, %v988
      %v1081 = vadd.f32 %v836, %v990
      %v1082 = vadd.f32 %v837, %v993
      %v1083 = vadd.f32 %v838, %v995
      %v1084 = vadd.f32 %v839, %v998
      %v1085 = vadd.f32 %v840, %v1000
      %v1086 = vadd.f32 %v841, %v1003
      %v1087 = vadd.f32 %v842, %v1005
      %v1088 = vadd.f32 %v843, %v1008
      %v1089 = vadd.f32 %v844, %v1010
      %v1090 = vadd.f32 %v845, %v1013
      %v1091 = vadd.f32 %v846, %v1015
      %v1092 = vadd.f32 %v847, %v1018
      %v1093 = vadd.f32 %v848, %v1020
      %v1094 = vadd.f32 %v849, %v1023
      %v1095 = vadd.f32 %v850, %v1025
      %v1096 = vadd.f32 %v851, %v1028
      %v1097 = vadd.f32 %v852, %v1030
      %v1098 = vadd.f32 %v853, %v1033
      %v1099 = vadd.f32 %v854, %v1035
      %v1100 = vld [vmem:[%s1 + $0x5] sm:$0x1]
      %v1101 = vlaneseq
      %v1102 = vshrl.u32 %v1101, 7
      %v1103 = vsub.s32 0, %v1102
      %v1104 = vrot.slane %v1100, %v1103
      %v1105 = vmul.f32 %v174, %v1104
      %v1106 = vmul.f32 %v175, %v1104
      %v1107 = vmul.f32 %v176, %v1104
      %v1108 = vmul.f32 %v177, %v1104
      %v1109 = vmul.f32 %v178, %v1104
      %v1110 = vmul.f32 %v179, %v1104
      %v1111 = vmul.f32 %v180, %v1104
      %v1112 = vmul.f32 %v181, %v1104
      %v1113 = vmul.f32 %v182, %v1104
      %v1114 = vmul.f32 %v183, %v1104
      %v1115 = vmul.f32 %v184, %v1104
      %v1116 = vmul.f32 %v185, %v1104
      %v1117 = vmul.f32 %v186, %v1104
      %v1118 = vmul.f32 %v187, %v1104
      %v1119 = vmul.f32 %v188, %v1104
      %v1120 = vmul.f32 %v189, %v1104
      %v1121 = vmul.f32 %v190, %v1104
      %v1122 = vmul.f32 %v191, %v1104
      %v1123 = vmul.f32 %v192, %v1104
      %v1124 = vmul.f32 %v193, %v1104
      %v1125 = vmul.f32 %v194, %v1104
      %v1126 = vmul.f32 %v195, %v1104
      %v1127 = vmul.f32 %v196, %v1104
      %v1128 = vmul.f32 %v197, %v1104
      %v1129 = vmul.f32 %v198, %v1104
      %v1130 = vmul.f32 %v199, %v1104
      %v1131 = vmul.f32 %v200, %v1104
      %v1132 = vmul.f32 %v201, %v1104
      %v1133 = vmul.f32 %v202, %v1104
      %v1134 = vmul.f32 %v203, %v1104
      %v1135 = vmul.f32 %v204, %v1104
      %v1136 = vmul.f32 %v205, %v1104
      %v1137 = vmul.f32 %v206, %v1104
      %v1138 = vmul.f32 %v207, %v1104
      %v1139 = vmul.f32 %v208, %v1104
      %v1140 = vmul.f32 %v209, %v1104
      %v1141 = vmul.f32 %v210, %v1104
      %v1142 = vmul.f32 %v211, %v1104
      %v1143 = vmul.f32 %v212, %v1104
      %v1144 = vmul.f32 %v213, %v1104
      %v1145 = vmul.f32 %v214, %v1104
      %v1146 = vmul.f32 %v215, %v1104
      %v1147 = vmul.f32 %v216, %v1104
      %v1148 = vmul.f32 %v217, %v1104
      %v1149 = vmul.f32 %v218, %v1104
      %v1150 = vmul.f32 %v219, %v1104
      %v1151 = vmul.f32 %v220, %v1104
      %v1152 = vmul.f32 %v221, %v1104
      %v1201 = vrot.slane %v1105, 2
      %v1202 = vrot.slane %v1106, 2
      %v1203 = vsel %vm641, %v1201, %v1202
      %v1204 = vrot.slane %v1107, 2
      %v1205 = vsel %vm641, %v1202, %v1204
      %v1206 = vrot.slane %v1108, 2
      %v1207 = vrot.slane %v1109, 2
      %v1208 = vsel %vm641, %v1206, %v1207
      %v1209 = vrot.slane %v1110, 2
      %v1210 = vsel %vm641, %v1207, %v1209
      %v1211 = vrot.slane %v1111, 2
      %v1212 = vrot.slane %v1112, 2
      %v1213 = vsel %vm641, %v1211, %v1212
      %v1214 = vrot.slane %v1113, 2
      %v1215 = vsel %vm641, %v1212, %v1214
      %v1216 = vrot.slane %v1114, 2
      %v1217 = vrot.slane %v1115, 2
      %v1218 = vsel %vm641, %v1216, %v1217
      %v1219 = vrot.slane %v1116, 2
      %v1220 = vsel %vm641, %v1217, %v1219
      %v1221 = vrot.slane %v1117, 2
      %v1222 = vrot.slane %v1118, 2
      %v1223 = vsel %vm641, %v1221, %v1222
      %v1224 = vrot.slane %v1119, 2
      %v1225 = vsel %vm641, %v1222, %v1224
      %v1226 = vrot.slane %v1120, 2
      %v1227 = vrot.slane %v1121, 2
      %v1228 = vsel %vm641, %v1226, %v1227
      %v1229 = vrot.slane %v1122, 2
      %v1230 = vsel %vm641, %v1227, %v1229
      %v1231 = vrot.slane %v1123, 2
      %v1232 = vrot.slane %v1124, 2
      %v1233 = vsel %vm641, %v1231, %v1232
      %v1234 = vrot.slane %v1125, 2
      %v1235 = vsel %vm641, %v1232, %v1234
      %v1236 = vrot.slane %v1126, 2
      %v1237 = vrot.slane %v1127, 2
      %v1238 = vsel %vm641, %v1236, %v1237
      %v1239 = vrot.slane %v1128, 2
      %v1240 = vsel %vm641, %v1237, %v1239
      %v1241 = vrot.slane %v1129, 2
      %v1242 = vrot.slane %v1130, 2
      %v1243 = vsel %vm641, %v1241, %v1242
      %v1244 = vrot.slane %v1131, 2
      %v1245 = vsel %vm641, %v1242, %v1244
      %v1246 = vrot.slane %v1132, 2
      %v1247 = vrot.slane %v1133, 2
      %v1248 = vsel %vm641, %v1246, %v1247
      %v1249 = vrot.slane %v1134, 2
      %v1250 = vsel %vm641, %v1247, %v1249
      %v1251 = vrot.slane %v1135, 2
      %v1252 = vrot.slane %v1136, 2
      %v1253 = vsel %vm641, %v1251, %v1252
      %v1254 = vrot.slane %v1137, 2
      %v1255 = vsel %vm641, %v1252, %v1254
      %v1256 = vrot.slane %v1138, 2
      %v1257 = vrot.slane %v1139, 2
      %v1258 = vsel %vm641, %v1256, %v1257
      %v1259 = vrot.slane %v1140, 2
      %v1260 = vsel %vm641, %v1257, %v1259
      %v1261 = vrot.slane %v1141, 2
      %v1262 = vrot.slane %v1142, 2
      %v1263 = vsel %vm641, %v1261, %v1262
      %v1264 = vrot.slane %v1143, 2
      %v1265 = vsel %vm641, %v1262, %v1264
      %v1266 = vrot.slane %v1144, 2
      %v1267 = vrot.slane %v1145, 2
      %v1268 = vsel %vm641, %v1266, %v1267
      %v1269 = vrot.slane %v1146, 2
      %v1270 = vsel %vm641, %v1267, %v1269
      %v1271 = vrot.slane %v1147, 2
      %v1272 = vrot.slane %v1148, 2
      %v1273 = vsel %vm641, %v1271, %v1272
      %v1274 = vrot.slane %v1149, 2
      %v1275 = vsel %vm641, %v1272, %v1274
      %v1276 = vrot.slane %v1150, 2
      %v1277 = vrot.slane %v1151, 2
      %v1278 = vsel %vm641, %v1276, %v1277
      %v1279 = vrot.slane %v1152, 2
      %v1280 = vsel %vm641, %v1277, %v1279
      %v1313 = vadd.f32 %v1068, %v1203
      %v1314 = vadd.f32 %v1069, %v1205
      %v1315 = vadd.f32 %v1070, %v1208
      %v1316 = vadd.f32 %v1071, %v1210
      %v1317 = vadd.f32 %v1072, %v1213
      %v1318 = vadd.f32 %v1073, %v1215
      %v1319 = vadd.f32 %v1074, %v1218
      %v1320 = vadd.f32 %v1075, %v1220
      %v1321 = vadd.f32 %v1076, %v1223
      %v1322 = vadd.f32 %v1077, %v1225
      %v1323 = vadd.f32 %v1078, %v1228
      %v1324 = vadd.f32 %v1079, %v1230
      %v1325 = vadd.f32 %v1080, %v1233
      %v1326 = vadd.f32 %v1081, %v1235
      %v1327 = vadd.f32 %v1082, %v1238
      %v1328 = vadd.f32 %v1083, %v1240
      %v1329 = vadd.f32 %v1084, %v1243
      %v1330 = vadd.f32 %v1085, %v1245
      %v1331 = vadd.f32 %v1086, %v1248
      %v1332 = vadd.f32 %v1087, %v1250
      %v1333 = vadd.f32 %v1088, %v1253
      %v1334 = vadd.f32 %v1089, %v1255
      %v1335 = vadd.f32 %v1090, %v1258
      %v1336 = vadd.f32 %v1091, %v1260
      %v1337 = vadd.f32 %v1092, %v1263
      %v1338 = vadd.f32 %v1093, %v1265
      %v1339 = vadd.f32 %v1094, %v1268
      %v1340 = vadd.f32 %v1095, %v1270
      %v1341 = vadd.f32 %v1096, %v1273
      %v1342 = vadd.f32 %v1097, %v1275
      %v1343 = vadd.f32 %v1098, %v1278
      %v1344 = vadd.f32 %v1099, %v1280
      %v1345 = vld [vmem:[%s1 + $0x6] sm:$0x1]
      %v1346 = vlaneseq
      %v1347 = vshrl.u32 %v1346, 7
      %v1348 = vsub.s32 0, %v1347
      %v1349 = vrot.slane %v1345, %v1348
      %v1350 = vmul.f32 %v177, %v1349
      %v1351 = vmul.f32 %v178, %v1349
      %v1352 = vmul.f32 %v180, %v1349
      %v1353 = vmul.f32 %v181, %v1349
      %v1354 = vmul.f32 %v183, %v1349
      %v1355 = vmul.f32 %v184, %v1349
      %v1356 = vmul.f32 %v186, %v1349
      %v1357 = vmul.f32 %v187, %v1349
      %v1358 = vmul.f32 %v189, %v1349
      %v1359 = vmul.f32 %v190, %v1349
      %v1360 = vmul.f32 %v192, %v1349
      %v1361 = vmul.f32 %v193, %v1349
      %v1362 = vmul.f32 %v195, %v1349
      %v1363 = vmul.f32 %v196, %v1349
      %v1364 = vmul.f32 %v198, %v1349
      %v1365 = vmul.f32 %v199, %v1349
      %v1366 = vmul.f32 %v201, %v1349
      %v1367 = vmul.f32 %v202, %v1349
      %v1368 = vmul.f32 %v204, %v1349
      %v1369 = vmul.f32 %v205, %v1349
      %v1370 = vmul.f32 %v207, %v1349
      %v1371 = vmul.f32 %v208, %v1349
      %v1372 = vmul.f32 %v210, %v1349
      %v1373 = vmul.f32 %v211, %v1349
      %v1374 = vmul.f32 %v213, %v1349
      %v1375 = vmul.f32 %v214, %v1349
      %v1376 = vmul.f32 %v216, %v1349
      %v1377 = vmul.f32 %v217, %v1349
      %v1378 = vmul.f32 %v219, %v1349
      %v1379 = vmul.f32 %v220, %v1349
      %v1380 = vmul.f32 %v222, %v1349
      %v1381 = vmul.f32 %v223, %v1349
      %v1382 = vadd.f32 %v1313, %v1350
      %v1383 = vadd.f32 %v1314, %v1351
      %v1384 = vadd.f32 %v1315, %v1352
      %v1385 = vadd.f32 %v1316, %v1353
      %v1386 = vadd.f32 %v1317, %v1354
      %v1387 = vadd.f32 %v1318, %v1355
      %v1388 = vadd.f32 %v1319, %v1356
      %v1389 = vadd.f32 %v1320, %v1357
      %v1390 = vadd.f32 %v1321, %v1358
      %v1391 = vadd.f32 %v1322, %v1359
      %v1392 = vadd.f32 %v1323, %v1360
      %v1393 = vadd.f32 %v1324, %v1361
      %v1394 = vadd.f32 %v1325, %v1362
      %v1395 = vadd.f32 %v1326, %v1363
      %v1396 = vadd.f32 %v1327, %v1364
      %v1397 = vadd.f32 %v1328, %v1365
      %v1398 = vadd.f32 %v1329, %v1366
      %v1399 = vadd.f32 %v1330, %v1367
      %v1400 = vadd.f32 %v1331, %v1368
      %v1401 = vadd.f32 %v1332, %v1369
      %v1402 = vadd.f32 %v1333, %v1370
      %v1403 = vadd.f32 %v1334, %v1371
      %v1404 = vadd.f32 %v1335, %v1372
      %v1405 = vadd.f32 %v1336, %v1373
      %v1406 = vadd.f32 %v1337, %v1374
      %v1407 = vadd.f32 %v1338, %v1375
      %v1408 = vadd.f32 %v1339, %v1376
      %v1409 = vadd.f32 %v1340, %v1377
      %v1410 = vadd.f32 %v1341, %v1378
      %v1411 = vadd.f32 %v1342, %v1379
      %v1412 = vadd.f32 %v1343, %v1380
      %v1413 = vadd.f32 %v1344, %v1381
      %v1414 = vld [vmem:[%s1 + $0x7] sm:$0x1]
      %v1415 = vlaneseq
      %v1416 = vshrl.u32 %v1415, 7
      %v1417 = vsub.s32 0, %v1416
      %v1418 = vrot.slane %v1414, %v1417
      %v1419 = vmul.f32 %v177, %v1418
      %v1420 = vmul.f32 %v178, %v1418
      %v1421 = vmul.f32 %v179, %v1418
      %v1422 = vmul.f32 %v180, %v1418
      %v1423 = vmul.f32 %v181, %v1418
      %v1424 = vmul.f32 %v182, %v1418
      %v1425 = vmul.f32 %v183, %v1418
      %v1426 = vmul.f32 %v184, %v1418
      %v1427 = vmul.f32 %v185, %v1418
      %v1428 = vmul.f32 %v186, %v1418
      %v1429 = vmul.f32 %v187, %v1418
      %v1430 = vmul.f32 %v188, %v1418
      %v1431 = vmul.f32 %v189, %v1418
      %v1432 = vmul.f32 %v190, %v1418
      %v1433 = vmul.f32 %v191, %v1418
      %v1434 = vmul.f32 %v192, %v1418
      %v1435 = vmul.f32 %v193, %v1418
      %v1436 = vmul.f32 %v194, %v1418
      %v1437 = vmul.f32 %v195, %v1418
      %v1438 = vmul.f32 %v196, %v1418
      %v1439 = vmul.f32 %v197, %v1418
      %v1440 = vmul.f32 %v198, %v1418
      %v1441 = vmul.f32 %v199, %v1418
      %v1442 = vmul.f32 %v200, %v1418
      %v1443 = vmul.f32 %v201, %v1418
      %v1444 = vmul.f32 %v202, %v1418
      %v1445 = vmul.f32 %v203, %v1418
      %v1446 = vmul.f32 %v204, %v1418
      %v1447 = vmul.f32 %v205, %v1418
      %v1448 = vmul.f32 %v206, %v1418
      %v1449 = vmul.f32 %v207, %v1418
      %v1450 = vmul.f32 %v208, %v1418
      %v1451 = vmul.f32 %v209, %v1418
      %v1452 = vmul.f32 %v210, %v1418
      %v1453 = vmul.f32 %v211, %v1418
      %v1454 = vmul.f32 %v212, %v1418
      %v1455 = vmul.f32 %v213, %v1418
      %v1456 = vmul.f32 %v214, %v1418
      %v1457 = vmul.f32 %v215, %v1418
      %v1458 = vmul.f32 %v216, %v1418
      %v1459 = vmul.f32 %v217, %v1418
      %v1460 = vmul.f32 %v218, %v1418
      %v1461 = vmul.f32 %v219, %v1418
      %v1462 = vmul.f32 %v220, %v1418
      %v1463 = vmul.f32 %v221, %v1418
      %v1464 = vmul.f32 %v222, %v1418
      %v1465 = vmul.f32 %v223, %v1418
      %v1466 = vmul.f32 %v224, %v1418
      %v1515 = vrot.slane %v1419, 1
      %v1516 = vrot.slane %v1420, 1
      %v1517 = vsel %vm395, %v1515, %v1516
      %v1518 = vrot.slane %v1421, 1
      %v1519 = vsel %vm395, %v1516, %v1518
      %v1520 = vrot.slane %v1422, 1
      %v1521 = vrot.slane %v1423, 1
      %v1522 = vsel %vm395, %v1520, %v1521
      %v1523 = vrot.slane %v1424, 1
      %v1524 = vsel %vm395, %v1521, %v1523
      %v1525 = vrot.slane %v1425, 1
      %v1526 = vrot.slane %v1426, 1
      %v1527 = vsel %vm395, %v1525, %v1526
      %v1528 = vrot.slane %v1427, 1
      %v1529 = vsel %vm395, %v1526, %v1528
      %v1530 = vrot.slane %v1428, 1
      %v1531 = vrot.slane %v1429, 1
      %v1532 = vsel %vm395, %v1530, %v1531
      %v1533 = vrot.slane %v1430, 1
      %v1534 = vsel %vm395, %v1531, %v1533
      %v1535 = vrot.slane %v1431, 1
      %v1536 = vrot.slane %v1432, 1
      %v1537 = vsel %vm395, %v1535, %v1536
      %v1538 = vrot.slane %v1433, 1
      %v1539 = vsel %vm395, %v1536, %v1538
      %v1540 = vrot.slane %v1434, 1
      %v1541 = vrot.slane %v1435, 1
      %v1542 = vsel %vm395, %v1540, %v1541
      %v1543 = vrot.slane %v1436, 1
      %v1544 = vsel %vm395, %v1541, %v1543
      %v1545 = vrot.slane %v1437, 1
      %v1546 = vrot.slane %v1438, 1
      %v1547 = vsel %vm395, %v1545, %v1546
      %v1548 = vrot.slane %v1439, 1
      %v1549 = vsel %vm395, %v1546, %v1548
      %v1550 = vrot.slane %v1440, 1
      %v1551 = vrot.slane %v1441, 1
      %v1552 = vsel %vm395, %v1550, %v1551
      %v1553 = vrot.slane %v1442, 1
      %v1554 = vsel %vm395, %v1551, %v1553
      %v1555 = vrot.slane %v1443, 1
      %v1556 = vrot.slane %v1444, 1
      %v1557 = vsel %vm395, %v1555, %v1556
      %v1558 = vrot.slane %v1445, 1
      %v1559 = vsel %vm395, %v1556, %v1558
      %v1560 = vrot.slane %v1446, 1
      %v1561 = vrot.slane %v1447, 1
      %v1562 = vsel %vm395, %v1560, %v1561
      %v1563 = vrot.slane %v1448, 1
      %v1564 = vsel %vm395, %v1561, %v1563
      %v1565 = vrot.slane %v1449, 1
      %v1566 = vrot.slane %v1450, 1
      %v1567 = vsel %vm395, %v1565, %v1566
      %v1568 = vrot.slane %v1451, 1
      %v1569 = vsel %vm395, %v1566, %v1568
      %v1570 = vrot.slane %v1452, 1
      %v1571 = vrot.slane %v1453, 1
      %v1572 = vsel %vm395, %v1570, %v1571
      %v1573 = vrot.slane %v1454, 1
      %v1574 = vsel %vm395, %v1571, %v1573
      %v1575 = vrot.slane %v1455, 1
      %v1576 = vrot.slane %v1456, 1
      %v1577 = vsel %vm395, %v1575, %v1576
      %v1578 = vrot.slane %v1457, 1
      %v1579 = vsel %vm395, %v1576, %v1578
      %v1580 = vrot.slane %v1458, 1
      %v1581 = vrot.slane %v1459, 1
      %v1582 = vsel %vm395, %v1580, %v1581
      %v1583 = vrot.slane %v1460, 1
      %v1584 = vsel %vm395, %v1581, %v1583
      %v1585 = vrot.slane %v1461, 1
      %v1586 = vrot.slane %v1462, 1
      %v1587 = vsel %vm395, %v1585, %v1586
      %v1588 = vrot.slane %v1463, 1
      %v1589 = vsel %vm395, %v1586, %v1588
      %v1590 = vrot.slane %v1464, 1
      %v1591 = vrot.slane %v1465, 1
      %v1592 = vsel %vm395, %v1590, %v1591
      %v1593 = vrot.slane %v1466, 1
      %v1594 = vsel %vm395, %v1591, %v1593
      %v1627 = vadd.f32 %v1382, %v1517
      %v1628 = vadd.f32 %v1383, %v1519
      %v1629 = vadd.f32 %v1384, %v1522
      %v1630 = vadd.f32 %v1385, %v1524
      %v1631 = vadd.f32 %v1386, %v1527
      %v1632 = vadd.f32 %v1387, %v1529
      %v1633 = vadd.f32 %v1388, %v1532
      %v1634 = vadd.f32 %v1389, %v1534
      %v1635 = vadd.f32 %v1390, %v1537
      %v1636 = vadd.f32 %v1391, %v1539
      %v1637 = vadd.f32 %v1392, %v1542
      %v1638 = vadd.f32 %v1393, %v1544
      %v1639 = vadd.f32 %v1394, %v1547
      %v1640 = vadd.f32 %v1395, %v1549
      %v1641 = vadd.f32 %v1396, %v1552
      %v1642 = vadd.f32 %v1397, %v1554
      %v1643 = vadd.f32 %v1398, %v1557
      %v1644 = vadd.f32 %v1399, %v1559
      %v1645 = vadd.f32 %v1400, %v1562
      %v1646 = vadd.f32 %v1401, %v1564
      %v1647 = vadd.f32 %v1402, %v1567
      %v1648 = vadd.f32 %v1403, %v1569
      %v1649 = vadd.f32 %v1404, %v1572
      %v1650 = vadd.f32 %v1405, %v1574
      %v1651 = vadd.f32 %v1406, %v1577
      %v1652 = vadd.f32 %v1407, %v1579
      %v1653 = vadd.f32 %v1408, %v1582
      %v1654 = vadd.f32 %v1409, %v1584
      %v1655 = vadd.f32 %v1410, %v1587
      %v1656 = vadd.f32 %v1411, %v1589
      %v1657 = vadd.f32 %v1412, %v1592
      %v1658 = vadd.f32 %v1413, %v1594
      %v1659 = vld [vmem:[%s1 + $0x8] sm:$0x1]
      %v1660 = vlaneseq
      %v1661 = vshrl.u32 %v1660, 7
      %v1662 = vsub.s32 0, %v1661
      %v1663 = vrot.slane %v1659, %v1662
      %v1664 = vmul.f32 %v177, %v1663
      %v1665 = vmul.f32 %v178, %v1663
      %v1666 = vmul.f32 %v179, %v1663
      %v1667 = vmul.f32 %v180, %v1663
      %v1668 = vmul.f32 %v181, %v1663
      %v1669 = vmul.f32 %v182, %v1663
      %v1670 = vmul.f32 %v183, %v1663
      %v1671 = vmul.f32 %v184, %v1663
      %v1672 = vmul.f32 %v185, %v1663
      %v1673 = vmul.f32 %v186, %v1663
      %v1674 = vmul.f32 %v187, %v1663
      %v1675 = vmul.f32 %v188, %v1663
      %v1676 = vmul.f32 %v189, %v1663
      %v1677 = vmul.f32 %v190, %v1663
      %v1678 = vmul.f32 %v191, %v1663
      %v1679 = vmul.f32 %v192, %v1663
      %v1680 = vmul.f32 %v193, %v1663
      %v1681 = vmul.f32 %v194, %v1663
      %v1682 = vmul.f32 %v195, %v1663
      %v1683 = vmul.f32 %v196, %v1663
      %v1684 = vmul.f32 %v197, %v1663
      %v1685 = vmul.f32 %v198, %v1663
      %v1686 = vmul.f32 %v199, %v1663
      %v1687 = vmul.f32 %v200, %v1663
      %v1688 = vmul.f32 %v201, %v1663
      %v1689 = vmul.f32 %v202, %v1663
      %v1690 = vmul.f32 %v203, %v1663
      %v1691 = vmul.f32 %v204, %v1663
      %v1692 = vmul.f32 %v205, %v1663
      %v1693 = vmul.f32 %v206, %v1663
      %v1694 = vmul.f32 %v207, %v1663
      %v1695 = vmul.f32 %v208, %v1663
      %v1696 = vmul.f32 %v209, %v1663
      %v1697 = vmul.f32 %v210, %v1663
      %v1698 = vmul.f32 %v211, %v1663
      %v1699 = vmul.f32 %v212, %v1663
      %v1700 = vmul.f32 %v213, %v1663
      %v1701 = vmul.f32 %v214, %v1663
      %v1702 = vmul.f32 %v215, %v1663
      %v1703 = vmul.f32 %v216, %v1663
      %v1704 = vmul.f32 %v217, %v1663
      %v1705 = vmul.f32 %v218, %v1663
      %v1706 = vmul.f32 %v219, %v1663
      %v1707 = vmul.f32 %v220, %v1663
      %v1708 = vmul.f32 %v221, %v1663
      %v1709 = vmul.f32 %v222, %v1663
      %v1710 = vmul.f32 %v223, %v1663
      %v1711 = vmul.f32 %v224, %v1663
      %v1760 = vrot.slane %v1664, 2
      %v1761 = vrot.slane %v1665, 2
      %v1762 = vsel %vm641, %v1760, %v1761
      %v1763 = vrot.slane %v1666, 2
      %v1764 = vsel %vm641, %v1761, %v1763
      %v1765 = vrot.slane %v1667, 2
      %v1766 = vrot.slane %v1668, 2
      %v1767 = vsel %vm641, %v1765, %v1766
      %v1768 = vrot.slane %v1669, 2
      %v1769 = vsel %vm641, %v1766, %v1768
      %v1770 = vrot.slane %v1670, 2
      %v1771 = vrot.slane %v1671, 2
      %v1772 = vsel %vm641, %v1770, %v1771
      %v1773 = vrot.slane %v1672, 2
      %v1774 = vsel %vm641, %v1771, %v1773
      %v1775 = vrot.slane %v1673, 2
      %v1776 = vrot.slane %v1674, 2
      %v1777 = vsel %vm641, %v1775, %v1776
      %v1778 = vrot.slane %v1675, 2
      %v1779 = vsel %vm641, %v1776, %v1778
      %v1780 = vrot.slane %v1676, 2
      %v1781 = vrot.slane %v1677, 2
      %v1782 = vsel %vm641, %v1780, %v1781
      %v1783 = vrot.slane %v1678, 2
      %v1784 = vsel %vm641, %v1781, %v1783
      %v1785 = vrot.slane %v1679, 2
      %v1786 = vrot.slane %v1680, 2
      %v1787 = vsel %vm641, %v1785, %v1786
      %v1788 = vrot.slane %v1681, 2
      %v1789 = vsel %vm641, %v1786, %v1788
      %v1790 = vrot.slane %v1682, 2
      %v1791 = vrot.slane %v1683, 2
      %v1792 = vsel %vm641, %v1790, %v1791
      %v1793 = vrot.slane %v1684, 2
      %v1794 = vsel %vm641, %v1791, %v1793
      %v1795 = vrot.slane %v1685, 2
      %v1796 = vrot.slane %v1686, 2
      %v1797 = vsel %vm641, %v1795, %v1796
      %v1798 = vrot.slane %v1687, 2
      %v1799 = vsel %vm641, %v1796, %v1798
      %v1800 = vrot.slane %v1688, 2
      %v1801 = vrot.slane %v1689, 2
      %v1802 = vsel %vm641, %v1800, %v1801
      %v1803 = vrot.slane %v1690, 2
      %v1804 = vsel %vm641, %v1801, %v1803
      %v1805 = vrot.slane %v1691, 2
      %v1806 = vrot.slane %v1692, 2
      %v1807 = vsel %vm641, %v1805, %v1806
      %v1808 = vrot.slane %v1693, 2
      %v1809 = vsel %vm641, %v1806, %v1808
      %v1810 = vrot.slane %v1694, 2
      %v1811 = vrot.slane %v1695, 2
      %v1812 = vsel %vm641, %v1810, %v1811
      %v1813 = vrot.slane %v1696, 2
      %v1814 = vsel %vm641, %v1811, %v1813
      %v1815 = vrot.slane %v1697, 2
      %v1816 = vrot.slane %v1698, 2
      %v1817 = vsel %vm641, %v1815, %v1816
      %v1818 = vrot.slane %v1699, 2
      %v1819 = vsel %vm641, %v1816, %v1818
      %v1820 = vrot.slane %v1700, 2
      %v1821 = vrot.slane %v1701, 2
      %v1822 = vsel %vm641, %v1820, %v1821
      %v1823 = vrot.slane %v1702, 2
      %v1824 = vsel %vm641, %v1821, %v1823
      %v1825 = vrot.slane %v1703, 2
      %v1826 = vrot.slane %v1704, 2
      %v1827 = vsel %vm641, %v1825, %v1826
      %v1828 = vrot.slane %v1705, 2
      %v1829 = vsel %vm641, %v1826, %v1828
      %v1830 = vrot.slane %v1706, 2
      %v1831 = vrot.slane %v1707, 2
      %v1832 = vsel %vm641, %v1830, %v1831
      %v1833 = vrot.slane %v1708, 2
      %v1834 = vsel %vm641, %v1831, %v1833
      %v1835 = vrot.slane %v1709, 2
      %v1836 = vrot.slane %v1710, 2
      %v1837 = vsel %vm641, %v1835, %v1836
      %v1838 = vrot.slane %v1711, 2
      %v1839 = vsel %vm641, %v1836, %v1838
      %v1872 = vadd.f32 %v1627, %v1762
      %v1873 = vadd.f32 %v1628, %v1764
      %v1874 = vadd.f32 %v1629, %v1767
      %v1875 = vadd.f32 %v1630, %v1769
      %v1876 = vadd.f32 %v1631, %v1772
      %v1877 = vadd.f32 %v1632, %v1774
      %v1878 = vadd.f32 %v1633, %v1777
      %v1879 = vadd.f32 %v1634, %v1779
      %v1880 = vadd.f32 %v1635, %v1782
      %v1881 = vadd.f32 %v1636, %v1784
      %v1882 = vadd.f32 %v1637, %v1787
      %v1883 = vadd.f32 %v1638, %v1789
      %v1884 = vadd.f32 %v1639, %v1792
      %v1885 = vadd.f32 %v1640, %v1794
      %v1886 = vadd.f32 %v1641, %v1797
      %v1887 = vadd.f32 %v1642, %v1799
      %v1888 = vadd.f32 %v1643, %v1802
      %v1889 = vadd.f32 %v1644, %v1804
      %v1890 = vadd.f32 %v1645, %v1807
      %v1891 = vadd.f32 %v1646, %v1809
      %v1892 = vadd.f32 %v1647, %v1812
      %v1893 = vadd.f32 %v1648, %v1814
      %v1894 = vadd.f32 %v1649, %v1817
      %v1895 = vadd.f32 %v1650, %v1819
      %v1896 = vadd.f32 %v1651, %v1822
      %v1897 = vadd.f32 %v1652, %v1824
      %v1898 = vadd.f32 %v1653, %v1827
      %v1899 = vadd.f32 %v1654, %v1829
      %v1900 = vadd.f32 %v1655, %v1832
      %v1901 = vadd.f32 %v1656, %v1834
      %v1902 = vadd.f32 %v1657, %v1837
      %v1903 = vadd.f32 %v1658, %v1839
      %v1904 = vld [vmem:[%s2] sm:$0x1]
      %v1906 = vlaneseq
      %v1907 = vshrl.u32 %v1906, 7
      %v1908 = vsub.s32 0, %v1907
      %v1909 = vrot.slane %v1904, %v1908
      %v1911 = vadd.f32 %v1872, %v1909
      %v1912 = vadd.f32 %v1873, %v1909
      %v1913 = vadd.f32 %v1874, %v1909
      %v1914 = vadd.f32 %v1875, %v1909
      %v1915 = vadd.f32 %v1876, %v1909
      %v1916 = vadd.f32 %v1877, %v1909
      %v1917 = vadd.f32 %v1878, %v1909
      %v1918 = vadd.f32 %v1879, %v1909
      %v1919 = vadd.f32 %v1880, %v1909
      %v1920 = vadd.f32 %v1881, %v1909
      %v1921 = vadd.f32 %v1882, %v1909
      %v1922 = vadd.f32 %v1883, %v1909
      %v1923 = vadd.f32 %v1884, %v1909
      %v1924 = vadd.f32 %v1885, %v1909
      %v1925 = vadd.f32 %v1886, %v1909
      %v1926 = vadd.f32 %v1887, %v1909
      %v1927 = vadd.f32 %v1888, %v1909
      %v1928 = vadd.f32 %v1889, %v1909
      %v1929 = vadd.f32 %v1890, %v1909
      %v1930 = vadd.f32 %v1891, %v1909
      %v1931 = vadd.f32 %v1892, %v1909
      %v1932 = vadd.f32 %v1893, %v1909
      %v1933 = vadd.f32 %v1894, %v1909
      %v1934 = vadd.f32 %v1895, %v1909
      %v1935 = vadd.f32 %v1896, %v1909
      %v1936 = vadd.f32 %v1897, %v1909
      %v1937 = vadd.f32 %v1898, %v1909
      %v1938 = vadd.f32 %v1899, %v1909
      %v1939 = vadd.f32 %v1900, %v1909
      %v1940 = vadd.f32 %v1901, %v1909
      %v1941 = vadd.f32 %v1902, %v1909
      %v1942 = vadd.f32 %v1903, %v1909
      %vm1943 = vcmask 392192
      %1944 = vst.msk [vmem:[%s170] sm:$0xff] %vm1943, %v1911
      %1945 = vst.msk [vmem:[%s170 + $0x8] sm:$0xff] %vm1943, %v1912
      %1946 = vst.msk [vmem:[%s170 + $0x10] sm:$0xff] %vm1943, %v1913
      %1947 = vst.msk [vmem:[%s170 + $0x18] sm:$0xff] %vm1943, %v1914
      %1948 = vst.msk [vmem:[%s170 + $0x20] sm:$0xff] %vm1943, %v1915
      %1949 = vst.msk [vmem:[%s170 + $0x28] sm:$0xff] %vm1943, %v1916
      %1950 = vst.msk [vmem:[%s170 + $0x30] sm:$0xff] %vm1943, %v1917
      %1951 = vst.msk [vmem:[%s170 + $0x38] sm:$0xff] %vm1943, %v1918
      %1952 = vst.msk [vmem:[%s170 + $0x40] sm:$0xff] %vm1943, %v1919
      %1953 = vst.msk [vmem:[%s170 + $0x48] sm:$0xff] %vm1943, %v1920
      %1954 = vst.msk [vmem:[%s170 + $0x50] sm:$0xff] %vm1943, %v1921
      %1955 = vst.msk [vmem:[%s170 + $0x58] sm:$0xff] %vm1943, %v1922
      %1956 = vst.msk [vmem:[%s170 + $0x60] sm:$0xff] %vm1943, %v1923
      %1957 = vst.msk [vmem:[%s170 + $0x68] sm:$0xff] %vm1943, %v1924
      %1958 = vst.msk [vmem:[%s170 + $0x70] sm:$0xff] %vm1943, %v1925
      %1959 = vst.msk [vmem:[%s170 + $0x78] sm:$0xff] %vm1943, %v1926
      %1960 = vst.msk [vmem:[%s170 + $0x80] sm:$0xff] %vm1943, %v1927
      %1961 = vst.msk [vmem:[%s170 + $0x88] sm:$0xff] %vm1943, %v1928
      %1962 = vst.msk [vmem:[%s170 + $0x90] sm:$0xff] %vm1943, %v1929
      %1963 = vst.msk [vmem:[%s170 + $0x98] sm:$0xff] %vm1943, %v1930
      %1964 = vst.msk [vmem:[%s170 + $0xa0] sm:$0xff] %vm1943, %v1931
      %1965 = vst.msk [vmem:[%s170 + $0xa8] sm:$0xff] %vm1943, %v1932
      %1966 = vst.msk [vmem:[%s170 + $0xb0] sm:$0xff] %vm1943, %v1933
      %1967 = vst.msk [vmem:[%s170 + $0xb8] sm:$0xff] %vm1943, %v1934
      %1968 = vst.msk [vmem:[%s170 + $0xc0] sm:$0xff] %vm1943, %v1935
      %1969 = vst.msk [vmem:[%s170 + $0xc8] sm:$0xff] %vm1943, %v1936
      %1970 = vst.msk [vmem:[%s170 + $0xd0] sm:$0xff] %vm1943, %v1937
      %1971 = vst.msk [vmem:[%s170 + $0xd8] sm:$0xff] %vm1943, %v1938
      %1972 = vst.msk [vmem:[%s170 + $0xe0] sm:$0xff] %vm1943, %v1939
      %1973 = vst.msk [vmem:[%s170 + $0xe8] sm:$0xff] %vm1943, %v1940
      %1974 = vst.msk [vmem:[%s170 + $0xf0] sm:$0xff] %vm1943, %v1941
      %1975 = vst.msk [vmem:[%s170 + $0xf8] sm:$0xff] %vm1943, %v1942
      %p1976 = scmp.lt.s32.totalorder %s14, 3
      %s1977 = scalar_select %p1976, %s14, 3
      %s1978 = smul.addr %s1977, 32
      %s1979 = smul.addr %s1978, 8
      %s1980 = scalar_lea.vmem %s3, %s1979
      // Predicated region
      $region33: #{transformer_block_forward.8} parent=31 // pred_check
        %p1981 = pneg %p100
      $region34: #{transformer_block_forward.8} parent=31 // pred_check_branch
        %1983 = sbr.rel (%p1981) target = $region36
      $region35: #{transformer_block_forward.8} parent=31 // pred_region
        _
      $region36: #{transformer_block_forward.8} parent=31 // pred_fallthru
        _
    $region32: #{transformer_block_forward.8} parent=5 // pred_fallthru
      _
    %p1984 = scmp.le.s32.totalorder 2, %s9
    // Predicated region
    $region37: #{transformer_block_forward.8} parent=5 // pred_check
      %p1985 = pneg %p1984
    $region38: #{transformer_block_forward.8} parent=5 // pred_check_branch
      %1987 = sbr.rel (%p1985) target = $region40
    $region39: #{transformer_block_forward.8} parent=5 // pred_region
      %s1988 = ssub.s32 %s9, 2
      // Predicated region
      $region41: #{transformer_block_forward.8} parent=39 // pred_check
        %p1989 = pneg %p106
      $region42: #{transformer_block_forward.8} parent=39 // pred_check_branch
        %1991 = sbr.rel (%p1989) target = $region44
      $region43: #{transformer_block_forward.8} parent=39 // pred_region
        %p1992 = scmp.lt.s32.totalorder %s15, 3
        %s1993 = scalar_select %p1992, %s15, 3
        %s1994 = smul.addr %s1993, 32
        %s1995 = smul.addr %s1994, 8
        %s1996 = scalar_lea.vmem %s3, %s1995
      $region44: #{transformer_block_forward.8} parent=39 // pred_fallthru
        _
    $region40: #{transformer_block_forward.8} parent=5 // pred_fallthru
      _
  $region6: #{transformer_block_forward.8} parent=0 // loop_footer
    %s13 = sadd.s32 1, %s9
  $region7: #{transformer_block_forward.8} parent=0 // loop_footer_branch
    %8 = sbr.rel target = $region3
  $region8: #{transformer_block_forward.8} parent=0 // loop_exit
    _

// kernel: transformer_block_forward.9
$region0: #{transformer_block_forward.9}
  #allocation0 [shape = 'u32[]', space=smem, size = 0x4, offset = 0x4, fixed_abs, tag = 'smem constant byte address 0x4 - core index']
  #allocation1 [shape = 'u32[144,128]{1,0:T(1,128)}', space=vmem, size = 0x12000, scoped, tag = 'internal scratch']
  %s0 = inlined_call_operand.vmem [shape: f32[4,2,8,256], index: 0, kind: input, shape index: {}]
  %s1 = inlined_call_operand.vmem [shape: f32[4,2,8,256], index: 1, kind: input, shape index: {}]
  %s2 = inlined_call_operand.vmem [shape: f32[4,2,8,256], index: 2, kind: input, shape index: {}]
  %s3 = inlined_call_operand.vmem [shape: f32[2,1,1], index: 3, kind: input, shape index: {}]
  %s4 = inlined_call_operand.vmem [shape: f32[4,2,8,256], index: 4, kind: output, shape index: {}]
  %s5 = sld [smem:[#allocation0]]
  $region49: #{transformer_block_forward.9} parent=0
    _
  %s7 = ssub.s32 1, %s5
  %s8 = scalar_select 0, %s7, %s5
  loop: start=0, step=1, limit=10
  $region2: #{transformer_block_forward.9} parent=0 // loop_pre_header
    _
  $region3: #{transformer_block_forward.9} parent=0 // loop_header
    %s10 = sphi 0, %s14
    %p11 = scmp.ge.s32.totalorder %s10, 10
    %s17 = sphi 0, %s29
    %s18 = sphi 0, %s25
    %s19 = sphi 0, %s17
    %s20 = sphi 0, %s18
    %s21 = sphi 0, %s19
    %s22 = sphi 0, %s20
    %s34 = sphi 0, %s36
    %s37 = sphi 0, %s34
    %s38 = sphi 0, %s37
    %s54 = sphi 0, %s38
    %s62 = sphi 0, %s64
    %s65 = sphi 0, %s62
    %s66 = sphi 0, %s65
    %s82 = sphi 0, %s66
    %s90 = sphi 0, %s92
    %s93 = sphi 0, %s90
    %s94 = sphi 0, %s93
    %s110 = sphi 0, %s94
    %s116 = sphi 0, %s118
    %s119 = sphi 0, %s116
    %s120 = sphi 0, %s119
    %s136 = sphi 0, %s120
    %s144 = sphi 0, %s146
    %s147 = sphi 0, %s144
    %s148 = sphi 0, %s147
    %s164 = sphi 0, %s148
  $region4: #{transformer_block_forward.9} parent=0 // loop_header_branch
    %13 = sbr.rel (%p11) target = $region8
  $region5: #{transformer_block_forward.9} parent=0 // loop_body
    %s15 = ssub.s32 %s10, 1
    %s16 = ssub.s32 %s10, 2
    %s23 = sadd.s32 1, %s18
    %p24 = scmp.ge.s32.totalorder %s23, 2
    %s25 = scalar_select %p24, 0, %s23
    %s26 = sadd.s32 1, %s17
    %s27 = scalar_select %p24, %s26, %s17
    %p28 = scmp.ge.s32.totalorder %s27, 4
    %s29 = scalar_select %p28, 0, %s27
    %s30 = ssub.s32 %s17, %s29
    %s31 = ssub.s32 %s18, %s25
    %s32 = sor.u32 %s30, %s31
    %p33 = scmp.eq.s32.totalorder %s32, 0
    %s35 = sadd.s32 %s34, 1
    %s36 = scalar_select %p33, %s34, %s35
    %p39 = pneg %p33
    %p40 = scmp.eq.s32.totalorder %s10, 7
    %p41 = por %p39, %p40
    %p42 = scmp.ne.s32.totalorder %s34, %s37
    %p43 = scmp.eq.s32.totalorder %s10, 0
    %p44 = por %p42, %p43
    %p45 = scmp.ne.s32.totalorder %s34, %s37
    %p46 = scmp.eq.s32.totalorder %s15, 7
    %p47 = por %p45, %p46
    %p48 = scmp.ne.s32.totalorder %s37, %s38
    %p49 = scmp.eq.s32.totalorder %s15, 0
    %p50 = por %p48, %p49
    %p51 = scmp.ne.s32.totalorder %s37, %s38
    %p52 = scmp.eq.s32.totalorder %s16, 7
    %p53 = por %p51, %p52
    %p55 = scmp.ne.s32.totalorder %s38, %s54
    %p56 = scmp.eq.s32.totalorder %s16, 0
    %p57 = por %p55, %p56
    %s58 = ssub.s32 %s17, %s29
    %s59 = ssub.s32 %s18, %s25
    %s60 = sor.u32 %s58, %s59
    %p61 = scmp.eq.s32.totalorder %s60, 0
    %s63 = sadd.s32 %s62, 1
    %s64 = scalar_select %p61, %s62, %s63
    %p67 = pneg %p61
    %p68 = scmp.eq.s32.totalorder %s10, 7
    %p69 = por %p67, %p68
    %p70 = scmp.ne.s32.totalorder %s62, %s65
    %p71 = scmp.eq.s32.totalorder %s10, 0
    %p72 = por %p70, %p71
    %p73 = scmp.ne.s32.totalorder %s62, %s65
    %p74 = scmp.eq.s32.totalorder %s15, 7
    %p75 = por %p73, %p74
    %p76 = scmp.ne.s32.totalorder %s65, %s66
    %p77 = scmp.eq.s32.totalorder %s15, 0
    %p78 = por %p76, %p77
    %p79 = scmp.ne.s32.totalorder %s65, %s66
    %p80 = scmp.eq.s32.totalorder %s16, 7
    %p81 = por %p79, %p80
    %p83 = scmp.ne.s32.totalorder %s66, %s82
    %p84 = scmp.eq.s32.totalorder %s16, 0
    %p85 = por %p83, %p84
    %s86 = ssub.s32 %s17, %s29
    %s87 = ssub.s32 %s18, %s25
    %s88 = sor.u32 %s86, %s87
    %p89 = scmp.eq.s32.totalorder %s88, 0
    %s91 = sadd.s32 %s90, 1
    %s92 = scalar_select %p89, %s90, %s91
    %p95 = pneg %p89
    %p96 = scmp.eq.s32.totalorder %s10, 7
    %p97 = por %p95, %p96
    %p98 = scmp.ne.s32.totalorder %s90, %s93
    %p99 = scmp.eq.s32.totalorder %s10, 0
    %p100 = por %p98, %p99
    %p101 = scmp.ne.s32.totalorder %s90, %s93
    %p102 = scmp.eq.s32.totalorder %s15, 7
    %p103 = por %p101, %p102
    %p104 = scmp.ne.s32.totalorder %s93, %s94
    %p105 = scmp.eq.s32.totalorder %s15, 0
    %p106 = por %p104, %p105
    %p107 = scmp.ne.s32.totalorder %s93, %s94
    %p108 = scmp.eq.s32.totalorder %s16, 7
    %p109 = por %p107, %p108
    %p111 = scmp.ne.s32.totalorder %s94, %s110
    %p112 = scmp.eq.s32.totalorder %s16, 0
    %p113 = por %p111, %p112
    %s114 = ssub.s32 %s18, %s25
    %p115 = scmp.eq.s32.totalorder %s114, 0
    %s117 = sadd.s32 %s116, 1
    %s118 = scalar_select %p115, %s116, %s117
    %p121 = pneg %p115
    %p122 = scmp.eq.s32.totalorder %s10, 7
    %p123 = por %p121, %p122
    %p124 = scmp.ne.s32.totalorder %s116, %s119
    %p125 = scmp.eq.s32.totalorder %s10, 0
    %p126 = por %p124, %p125
    %p127 = scmp.ne.s32.totalorder %s116, %s119
    %p128 = scmp.eq.s32.totalorder %s15, 7
    %p129 = por %p127, %p128
    %p130 = scmp.ne.s32.totalorder %s119, %s120
    %p131 = scmp.eq.s32.totalorder %s15, 0
    %p132 = por %p130, %p131
    %p133 = scmp.ne.s32.totalorder %s119, %s120
    %p134 = scmp.eq.s32.totalorder %s16, 7
    %p135 = por %p133, %p134
    %p137 = scmp.ne.s32.totalorder %s120, %s136
    %p138 = scmp.eq.s32.totalorder %s16, 0
    %p139 = por %p137, %p138
    %s140 = ssub.s32 %s17, %s29
    %s141 = ssub.s32 %s18, %s25
    %s142 = sor.u32 %s140, %s141
    %p143 = scmp.eq.s32.totalorder %s142, 0
    %s145 = sadd.s32 %s144, 1
    %s146 = scalar_select %p143, %s144, %s145
    %p149 = pneg %p143
    %p150 = scmp.eq.s32.totalorder %s10, 7
    %p151 = por %p149, %p150
    %p152 = scmp.ne.s32.totalorder %s144, %s147
    %p153 = scmp.eq.s32.totalorder %s10, 0
    %p154 = por %p152, %p153
    %p155 = scmp.ne.s32.totalorder %s144, %s147
    %p156 = scmp.eq.s32.totalorder %s15, 7
    %p157 = por %p155, %p156
    %p158 = scmp.ne.s32.totalorder %s147, %s148
    %p159 = scmp.eq.s32.totalorder %s15, 0
    %p160 = por %p158, %p159
    %p161 = scmp.ne.s32.totalorder %s147, %s148
    %p162 = scmp.eq.s32.totalorder %s16, 7
    %p163 = por %p161, %p162
    %p165 = scmp.ne.s32.totalorder %s148, %s164
    %p166 = scmp.eq.s32.totalorder %s16, 0
    %p167 = por %p165, %p166
    %p168 = scmp.le.s32.totalorder 1, %s10
    %p169 = scmp.lt.s32.totalorder %s10, 9
    %p170 = pnand %p168, %p169
    %p171 = pneg %p170
    // Predicated region
    $region9: #{transformer_block_forward.9} parent=5 // pred_check
      _
    $region10: #{transformer_block_forward.9} parent=5 // pred_check_branch
      %173 = sbr.rel (%p170) target = $region12
    $region11: #{transformer_block_forward.9} parent=5 // pred_region
      %s174 = ssub.s32 %s10, 1
    $region12: #{transformer_block_forward.9} parent=5 // pred_fallthru
      _
    %p175 = scmp.lt.s32.totalorder %s10, 8
    // Predicated region
    $region13: #{transformer_block_forward.9} parent=5 // pred_check
      %p176 = pneg %p175
    $region14: #{transformer_block_forward.9} parent=5 // pred_check_branch
      %178 = sbr.rel (%p176) target = $region16
    $region15: #{transformer_block_forward.9} parent=5 // pred_region
      // Predicated region
      $region17: #{transformer_block_forward.9} parent=15 // pred_check
        %p179 = pneg %p44
      $region18: #{transformer_block_forward.9} parent=15 // pred_check_branch
        %181 = sbr.rel (%p179) target = $region20
      $region19: #{transformer_block_forward.9} parent=15 // pred_region
        %p182 = scmp.lt.s32.totalorder %s17, 3
        %s183 = scalar_select %p182, %s17, 3
        %p184 = scmp.lt.s32.totalorder %s18, 1
        %s185 = scalar_select %p184, %s18, 1
        %s186 = smul.addr %s185, 2
        %s187 = smul.addr %s183, 4
        %s188 = sadd.s32 %s186, %s187
        %s189 = smul.addr %s188, 8
        %s190 = scalar_lea.vmem %s0, %s189
      $region20: #{transformer_block_forward.9} parent=15 // pred_fallthru
        _
      // Predicated region
      $region21: #{transformer_block_forward.9} parent=15 // pred_check
        %p191 = pneg %p72
      $region22: #{transformer_block_forward.9} parent=15 // pred_check_branch
        %193 = sbr.rel (%p191) target = $region24
      $region23: #{transformer_block_forward.9} parent=15 // pred_region
        %p194 = scmp.lt.s32.totalorder %s17, 3
        %s195 = scalar_select %p194, %s17, 3
        %p196 = scmp.lt.s32.totalorder %s18, 1
        %s197 = scalar_select %p196, %s18, 1
        %s198 = smul.addr %s197, 2
        %s199 = smul.addr %s195, 4
        %s200 = sadd.s32 %s198, %s199
        %s201 = smul.addr %s200, 8
        %s202 = scalar_lea.vmem %s1, %s201
      $region24: #{transformer_block_forward.9} parent=15 // pred_fallthru
        _
      // Predicated region
      $region25: #{transformer_block_forward.9} parent=15 // pred_check
        %p203 = pneg %p100
      $region26: #{transformer_block_forward.9} parent=15 // pred_check_branch
        %205 = sbr.rel (%p203) target = $region28
      $region27: #{transformer_block_forward.9} parent=15 // pred_region
        %p206 = scmp.lt.s32.totalorder %s17, 3
        %s207 = scalar_select %p206, %s17, 3
        %p208 = scmp.lt.s32.totalorder %s18, 1
        %s209 = scalar_select %p208, %s18, 1
        %s210 = smul.addr %s209, 2
        %s211 = smul.addr %s207, 4
        %s212 = sadd.s32 %s210, %s211
        %s213 = smul.addr %s212, 8
        %s214 = scalar_lea.vmem %s2, %s213
      $region28: #{transformer_block_forward.9} parent=15 // pred_fallthru
        _
      // Predicated region
      $region29: #{transformer_block_forward.9} parent=15 // pred_check
        %p215 = pneg %p126
      $region30: #{transformer_block_forward.9} parent=15 // pred_check_branch
        %217 = sbr.rel (%p215) target = $region32
      $region31: #{transformer_block_forward.9} parent=15 // pred_region
        %p218 = scmp.lt.s32.totalorder %s18, 1
        %s219 = scalar_select %p218, %s18, 1
        %s220 = scalar_lea.vmem %s3, %s219
      $region32: #{transformer_block_forward.9} parent=15 // pred_fallthru
        _
    $region16: #{transformer_block_forward.9} parent=5 // pred_fallthru
      _
    %p221 = scmp.le.s32.totalorder 1, %s10
    %p222 = scmp.lt.s32.totalorder %s10, 9
    %p223 = pnand %p221, %p222
    %p224 = pneg %p223
    // Predicated region
    $region33: #{transformer_block_forward.9} parent=5 // pred_check
      _
    $region34: #{transformer_block_forward.9} parent=5 // pred_check_branch
      %226 = sbr.rel (%p223) target = $region36
    $region35: #{transformer_block_forward.9} parent=5 // pred_region
      %s227 = ssub.s32 %s10, 1
      %p228 = scmp.lt.s32.totalorder %s19, 3
      %s229 = scalar_select %p228, %s19, 3
      %p230 = scmp.lt.s32.totalorder %s20, 1
      %s231 = scalar_select %p230, %s20, 1
      %s232 = smul.addr %s231, 2
      %s233 = smul.addr %s229, 4
      %s234 = sadd.s32 %s232, %s233
      %s235 = smul.addr %s234, 8
      %s236 = scalar_lea.vmem %s0, %s235
      %p237 = pneg %p50
      %p238 = pneg %p47
      %p239 = scmp.lt.s32.totalorder %s19, 3
      %s240 = scalar_select %p239, %s19, 3
      %p241 = scmp.lt.s32.totalorder %s20, 1
      %s242 = scalar_select %p241, %s20, 1
      %s243 = smul.addr %s242, 2
      %s244 = smul.addr %s240, 4
      %s245 = sadd.s32 %s243, %s244
      %s246 = smul.addr %s245, 8
      %s247 = scalar_lea.vmem %s1, %s246
      %p248 = pneg %p78
      %p249 = pneg %p75
      %p250 = scmp.lt.s32.totalorder %s19, 3
      %s251 = scalar_select %p250, %s19, 3
      %p252 = scmp.lt.s32.totalorder %s20, 1
      %s253 = scalar_select %p252, %s20, 1
      %s254 = smul.addr %s253, 2
      %s255 = smul.addr %s251, 4
      %s256 = sadd.s32 %s254, %s255
      %s257 = smul.addr %s256, 8
      %s258 = scalar_lea.vmem %s2, %s257
      %p259 = pneg %p106
      %p260 = pneg %p103
      %p261 = scmp.lt.s32.totalorder %s20, 1
      %s262 = scalar_select %p261, %s20, 1
      %s263 = scalar_lea.vmem %s3, %s262
      %p264 = pneg %p132
      %p265 = pneg %p129
      %p266 = pneg %p160
      %p267 = pneg %p157
      %p268 = scmp.lt.s32.totalorder %s19, 3
      %s269 = scalar_select %p268, %s19, 3
      %p270 = scmp.lt.s32.totalorder %s20, 1
      %s271 = scalar_select %p270, %s20, 1
      %s272 = smul.addr %s271, 2
      %s273 = smul.addr %s269, 4
      %s274 = sadd.s32 %s272, %s273
      %s275 = smul.addr %s274, 8
      %s276 = scalar_lea.vmem %s4, %s275
      %p277 = scmp.lt.s32.totalorder %s19, 3
      %s278 = scalar_select %p277, %s19, 3
      %p279 = scmp.lt.s32.totalorder %s20, 1
      %s280 = scalar_select %p279, %s20, 1
      %s281 = smul.addr %s280, 2
      %s282 = smul.addr %s278, 4
      %s283 = sadd.s32 %s281, %s282
      %s284 = smul.addr %s283, 8
      %s285 = scalar_lea.vmem %s0, %s284
      %p286 = scmp.lt.s32.totalorder %s19, 3
      %s287 = scalar_select %p286, %s19, 3
      %p288 = scmp.lt.s32.totalorder %s20, 1
      %s289 = scalar_select %p288, %s20, 1
      %s290 = smul.addr %s289, 2
      %s291 = smul.addr %s287, 4
      %s292 = sadd.s32 %s290, %s291
      %s293 = smul.addr %s292, 8
      %s294 = scalar_lea.vmem %s1, %s293
      %p295 = scmp.lt.s32.totalorder %s19, 3
      %s296 = scalar_select %p295, %s19, 3
      %p297 = scmp.lt.s32.totalorder %s20, 1
      %s298 = scalar_select %p297, %s20, 1
      %s299 = smul.addr %s298, 2
      %s300 = smul.addr %s296, 4
      %s301 = sadd.s32 %s299, %s300
      %s302 = smul.addr %s301, 8
      %s303 = scalar_lea.vmem %s2, %s302
      %p304 = scmp.lt.s32.totalorder %s20, 1
      %s305 = scalar_select %p304, %s20, 1
      %s306 = scalar_lea.vmem %s3, %s305
      %p307 = scmp.lt.s32.totalorder %s19, 3
      %s308 = scalar_select %p307, %s19, 3
      %p309 = scmp.lt.s32.totalorder %s20, 1
      %s310 = scalar_select %p309, %s20, 1
      %s311 = smul.addr %s310, 2
      %s312 = smul.addr %s308, 4
      %s313 = sadd.s32 %s311, %s312
      %s314 = smul.addr %s313, 8
      %s315 = scalar_lea.vmem %s4, %s314
      %v316 = vld [vmem:[%s285] sm:$0xff]
      %v317 = vld [vmem:[%s285 + $0x8] sm:$0xff]
      %v318 = vld [vmem:[%s294] sm:$0xff]
      %v319 = vld [vmem:[%s294 + $0x8] sm:$0xff]
      %v320 = vld [vmem:[%s303] sm:$0xff]
      %v321 = vld [vmem:[%s303 + $0x8] sm:$0xff]
      %v322 = vmul.f32 %v316, %v316
      %v323 = vmul.f32 %v317, %v317
      %v324 = vadd.f32 %v322, %v323
      %325 = vadd.xlane.f32.xlu0 %v324
      %v326 = vpop.xlane.xlu0 %325
      %v327 = vadd.f32 %v326, 1e-24
      %v328 = vrsqrt.pop %v327
      %v329 = vmul.f32 %v316, %v328
      %v330 = vmul.f32 %v317, %v328
      %v331 = vmul.f32 %v318, %v318
      %v332 = vmul.f32 %v319, %v319
      %v333 = vadd.f32 %v331, %v332
      %334 = vadd.xlane.f32.xlu0 %v333
      %v335 = vpop.xlane.xlu0 %334
      %v336 = vadd.f32 %v335, 1e-24
      %v337 = vrsqrt.pop %v336
      %v338 = vmul.f32 %v318, %v337
      %v339 = vmul.f32 %v319, %v337
      %340 = vmatprep.subr.mxu0 %v339
      %341 = vmatpush1.xpose.msra.mxu0 %v338
      %342 = vmatprep.subr.mxu0 0.0
      %343 = vmatpush1.xpose.msra.mxu0 0.0
      %344 = vmatprep.subr.mxu0 0.0
      %345 = vmatpush1.xpose.msra.mxu0 0.0
      %346 = vmatprep.subr.mxu0 0.0
      %347 = vmatpush1.xpose.msra.mxu0 0.0
      %348 = vmatprep.subr.mxu0 0.0
      %349 = vmatpush1.xpose.msra.mxu0 0.0
      %350 = vmatprep.subr.mxu0 0.0
      %351 = vmatpush1.xpose.msra.mxu0 0.0
      %352 = vmatprep.subr.mxu0 0.0
      %353 = vmatpush1.xpose.msra.mxu0 0.0
      %354 = vmatprep.subr.mxu0 0.0
      %355 = vmatpush1.xpose.msra.mxu0 0.0
      %356 = vmatprep.subr.mxu0 0.0
      %357 = vmatpush1.xpose.msra.mxu0 0.0
      %358 = vmatprep.subr.mxu0 0.0
      %359 = vmatpush1.xpose.msra.mxu0 0.0
      %360 = vmatprep.subr.mxu0 0.0
      %361 = vmatpush1.xpose.msra.mxu0 0.0
      %362 = vmatprep.subr.mxu0 0.0
      %363 = vmatpush1.xpose.msra.mxu0 0.0
      %364 = vmatprep.subr.mxu0 0.0
      %365 = vmatpush1.xpose.msra.mxu0 0.0
      %366 = vmatprep.subr.mxu0 0.0
      %367 = vmatpush1.xpose.msra.mxu0 0.0
      %368 = vmatprep.subr.mxu0 0.0
      %369 = vmatpush1.xpose.msra.mxu0 0.0
      %370 = vmatprep.subr.mxu0 0.0
      %371 = vmatpush1.xpose.msra.mxu0 0.0
      %372 = vmatprep.subr.mxu0 0.0
      %373 = vmatpush1.xpose.msra.mxu0 0.0
      %374 = vmatprep.subr.mxu0 0.0
      %375 = vmatpush1.xpose.msra.mxu0 0.0
      %376 = vmatprep.subr.mxu0 0.0
      %377 = vmatpush1.xpose.msra.mxu0 0.0
      %378 = vmatprep.subr.mxu0 0.0
      %379 = vmatpush1.xpose.msra.mxu0 0.0
      %380 = vmatprep.subr.mxu0 0.0
      %381 = vmatpush1.xpose.msra.mxu0 0.0
      %382 = vmatprep.subr.mxu0 0.0
      %383 = vmatpush1.xpose.msra.mxu0 0.0
      %384 = vmatprep.subr.mxu0 0.0
      %385 = vmatpush1.xpose.msra.mxu0 0.0
      %386 = vmatprep.subr.mxu0 0.0
      %387 = vmatpush1.xpose.msra.mxu0 0.0
      %388 = vmatprep.subr.mxu0 0.0
      %389 = vmatpush1.xpose.msra.mxu0 0.0
      %390 = vmatprep.subr.mxu0 0.0
      %391 = vmatpush1.xpose.msra.mxu0 0.0
      %392 = vmatprep.subr.mxu0 0.0
      %393 = vmatpush1.xpose.msra.mxu0 0.0
      %394 = vmatprep.subr.mxu0 0.0
      %395 = vmatpush1.xpose.msra.mxu0 0.0
      %396 = vmatprep.subr.mxu0 0.0
      %397 = vmatpush1.xpose.msra.mxu0 0.0
      %398 = vmatprep.subr.mxu0 0.0
      %399 = vmatpush1.xpose.msra.mxu0 0.0
      %400 = vmatprep.subr.mxu0 0.0
      %401 = vmatpush1.xpose.msra.mxu0 0.0
      %402 = vmatprep.subr.mxu0 0.0
      %403 = vmatpush1.xpose.msra.mxu0 0.0
      %404 = vmatprep.mubr.f32.mxu0 %v330
      %405 = vmatmul.mubr.f32.gmra.mrb[0].mxu0 %v329
      %v406 = vpop.f32.mrb[0].mxu0
      %v407 = vadd.f32 0.0, %v406
      %v408 = vpop.f32.mrb[0].mxu0
      %409 = vdwg.mxu0
      %v410 = vld [vmem:[%s306] sm:$0x1]
      %v412 = vlaneseq
      %v413 = vshrl.u32 %v412, 7
      %v414 = vsub.s32 0, %v413
      %v415 = vrot.slane %v410, %v414
      %416 = vset.pattern.permute.xlu0 0
      %417 = vperm.xlu0 %416, %v415
      %v418 = vpop.permute.xlu0 %417
      %v420 = vmul.f32 %v407, %v418
      %vm421 = vcmask 64512
      %v422 = vsel %vm421, %v420, -inf
      %423 = vmax.xlane.f32.xlu0 %v422
      %v424 = vpop.xlane.xlu0 %423
      %v425 = vsub.f32 %v420, %v424
      %v426 = vmul.f32 %v425, 1.442695
      %v427 = vpow.pop %v426
      %v428 = vsel %vm421, %v427, 0.0
      %429 = vadd.xlane.f32.xlu0 %v428
      %v430 = vpop.xlane.xlu0 %429
      %v431 = vrcp.pop %v430
      %v432 = vmul.f32 %v427, %v431
      %v434 = vsel %vm421, %v432, 0
      %436 = vmatprep.subr.mxu0 %v321
      %437 = vmatpush1.msra.mxu0 %v320
      %438 = vmatprep.subr.mxu0 0.0
      %439 = vmatpush1.msra.mxu0 0.0
      %440 = vmatprep.subr.mxu0 0.0
      %441 = vmatpush1.msra.mxu0 0.0
      %442 = vmatprep.subr.mxu0 0.0
      %443 = vmatpush1.msra.mxu0 0.0
      %444 = vmatprep.subr.mxu0 0.0
      %445 = vmatpush1.msra.mxu0 0.0
      %446 = vmatprep.subr.mxu0 0.0
      %447 = vmatpush1.msra.mxu0 0.0
      %448 = vmatprep.subr.mxu0 0.0
      %449 = vmatpush1.msra.mxu0 0.0
      %450 = vmatprep.subr.mxu0 0.0
      %451 = vmatpush1.msra.mxu0 0.0
      %452 = vmatprep.subr.mxu0 0.0
      %453 = vmatpush1.msra.mxu0 0.0
      %454 = vmatprep.subr.mxu0 0.0
      %455 = vmatpush1.msra.mxu0 0.0
      %456 = vmatprep.subr.mxu0 0.0
      %457 = vmatpush1.msra.mxu0 0.0
      %458 = vmatprep.subr.mxu0 0.0
      %459 = vmatpush1.msra.mxu0 0.0
      %460 = vmatprep.subr.mxu0 0.0
      %461 = vmatpush1.msra.mxu0 0.0
      %462 = vmatprep.subr.mxu0 0.0
      %463 = vmatpush1.msra.mxu0 0.0
      %464 = vmatprep.subr.mxu0 0.0
      %465 = vmatpush1.msra.mxu0 0.0
      %466 = vmatprep.subr.mxu0 0.0
      %467 = vmatpush1.msra.mxu0 0.0
      %468 = vmatprep.subr.mxu0 0.0
      %469 = vmatpush1.msra.mxu0 0.0
      %470 = vmatprep.subr.mxu0 0.0
      %471 = vmatpush1.msra.mxu0 0.0
      %472 = vmatprep.subr.mxu0 0.0
      %473 = vmatpush1.msra.mxu0 0.0
      %474 = vmatprep.subr.mxu0 0.0
      %475 = vmatpush1.msra.mxu0 0.0
      %476 = vmatprep.subr.mxu0 0.0
      %477 = vmatpush1.msra.mxu0 0.0
      %478 = vmatprep.subr.mxu0 0.0
      %479 = vmatpush1.msra.mxu0 0.0
      %480 = vmatprep.subr.mxu0 0.0
      %481 = vmatpush1.msra.mxu0 0.0
      %482 = vmatprep.subr.mxu0 0.0
      %483 = vmatpush1.msra.mxu0 0.0
      %484 = vmatprep.subr.mxu0 0.0
      %485 = vmatpush1.msra.mxu0 0.0
      %486 = vmatprep.subr.mxu0 0.0
      %487 = vmatpush1.msra.mxu0 0.0
      %488 = vmatprep.subr.mxu0 0.0
      %489 = vmatpush1.msra.mxu0 0.0
      %490 = vmatprep.subr.mxu0 0.0
      %491 = vmatpush1.msra.mxu0 0.0
      %492 = vmatprep.subr.mxu0 0.0
      %493 = vmatpush1.msra.mxu0 0.0
      %494 = vmatprep.subr.mxu0 0.0
      %495 = vmatpush1.msra.mxu0 0.0
      %496 = vmatprep.subr.mxu0 0.0
      %497 = vmatpush1.msra.mxu0 0.0
      %498 = vmatprep.subr.mxu0 0.0
      %499 = vmatpush1.msra.mxu0 0.0
      %500 = vmatprep.mubr.f32.mxu0 0.0
      %501 = vmatmul.mubr.f32.gmra.mrb[0].mxu0 %v434
      %v502 = vpop.f32.mrb[0].mxu0
      %v503 = vadd.f32 0.0, %v502
      %v504 = vpop.f32.mrb[0].mxu0
      %v505 = vadd.f32 0.0, %v504
      %506 = vdwg.mxu0
      %507 = vst [vmem:[%s315] sm:$0xff] %v503
      %508 = vst [vmem:[%s315 + $0x8] sm:$0xff] %v505
      %p509 = scmp.lt.s32.totalorder %s19, 3
      %s510 = scalar_select %p509, %s19, 3
      %p511 = scmp.lt.s32.totalorder %s20, 1
      %s512 = scalar_select %p511, %s20, 1
      %s513 = smul.addr %s512, 2
      %s514 = smul.addr %s510, 4
      %s515 = sadd.s32 %s513, %s514
      %s516 = smul.addr %s515, 8
      %s517 = scalar_lea.vmem %s4, %s516
      // Predicated region
      $region37: #{transformer_block_forward.9} parent=35 // pred_check
        %p518 = pneg %p157
      $region38: #{transformer_block_forward.9} parent=35 // pred_check_branch
        %520 = sbr.rel (%p518) target = $region40
      $region39: #{transformer_block_forward.9} parent=35 // pred_region
        _
      $region40: #{transformer_block_forward.9} parent=35 // pred_fallthru
        _
    $region36: #{transformer_block_forward.9} parent=5 // pred_fallthru
      _
    %p521 = scmp.le.s32.totalorder 2, %s10
    // Predicated region
    $region41: #{transformer_block_forward.9} parent=5 // pred_check
      %p522 = pneg %p521
    $region42: #{transformer_block_forward.9} parent=5 // pred_check_branch
      %524 = sbr.rel (%p522) target = $region44
    $region43: #{transformer_block_forward.9} parent=5 // pred_region
      %s525 = ssub.s32 %s10, 2
      // Predicated region
      $region45: #{transformer_block_forward.9} parent=43 // pred_check
        %p526 = pneg %p163
      $region46: #{transformer_block_forward.9} parent=43 // pred_check_branch
        %528 = sbr.rel (%p526) target = $region48
      $region47: #{transformer_block_forward.9} parent=43 // pred_region
        %p529 = scmp.lt.s32.totalorder %s21, 3
        %s530 = scalar_select %p529, %s21, 3
        %p531 = scmp.lt.s32.totalorder %s22, 1
        %s532 = scalar_select %p531, %s22, 1
        %s533 = smul.addr %s532, 2
        %s534 = smul.addr %s530, 4
        %s535 = sadd.s32 %s533, %s534
        %s536 = smul.addr %s535, 8
        %s537 = scalar_lea.vmem %s4, %s536
      $region48: #{transformer_block_forward.9} parent=43 // pred_fallthru
        _
    $region44: #{transformer_block_forward.9} parent=5 // pred_fallthru
      _
  $region6: #{transformer_block_forward.9} parent=0 // loop_footer
    %s14 = sadd.s32 1, %s10
  $region7: #{transformer_block_forward.9} parent=0 // loop_footer_branch
    %9 = sbr.rel target = $region3
  $region8: #{transformer_block_forward.9} parent=0 // loop_exit
    _

// kernel: transformer_block_forward.10
$region0: #{transformer_block_forward.10}
  #allocation0 [shape = 'u32[]', space=smem, size = 0x4, offset = 0x4, fixed_abs, tag = 'smem constant byte address 0x4 - core index']
  #allocation1 [shape = 'u32[144,128]{1,0:T(1,128)}', space=vmem, size = 0x12000, scoped, tag = 'internal scratch']
  %s0 = inlined_call_operand.vmem [shape: f32[1024,16], index: 0, kind: input, shape index: {}]
  %s1 = inlined_call_operand.vmem [shape: f32[16,16], index: 1, kind: input, shape index: {}]
  %s2 = inlined_call_operand.vmem [shape: f32[1,16], index: 2, kind: input, shape index: {}]
  %s3 = inlined_call_operand.vmem [shape: f32[1024,16], index: 3, kind: input, shape index: {}]
  %s4 = inlined_call_operand.vmem [shape: f32[1024,16], index: 4, kind: output, shape index: {}]
  %s5 = sld [smem:[#allocation0]]
  $region49: #{transformer_block_forward.10} parent=0
    _
  %s7 = ssub.s32 1, %s5
  %s8 = scalar_select 0, %s7, %s5
  loop: start=0, step=1, limit=4
  $region2: #{transformer_block_forward.10} parent=0 // loop_pre_header
    _
  $region3: #{transformer_block_forward.10} parent=0 // loop_header
    %s10 = sphi 0, %s14
    %p11 = scmp.ge.s32.totalorder %s10, 4
    %s20 = sphi 0, %s22
    %s23 = sphi 0, %s20
    %s24 = sphi 0, %s23
    %s40 = sphi 0, %s24
    %s44 = sphi 0, %s44
    %s46 = sphi 0, %s44
    %s47 = sphi 0, %s46
    %s61 = sphi 0, %s47
    %s65 = sphi 0, %s65
    %s67 = sphi 0, %s65
    %s68 = sphi 0, %s67
    %s82 = sphi 0, %s68
    %s88 = sphi 0, %s90
    %s91 = sphi 0, %s88
    %s92 = sphi 0, %s91
    %s108 = sphi 0, %s92
    %s114 = sphi 0, %s116
    %s117 = sphi 0, %s114
    %s118 = sphi 0, %s117
    %s134 = sphi 0, %s118
  $region4: #{transformer_block_forward.10} parent=0 // loop_header_branch
    %13 = sbr.rel (%p11) target = $region8
  $region5: #{transformer_block_forward.10} parent=0 // loop_body
    %s15 = ssub.s32 %s10, 1
    %s16 = ssub.s32 %s10, 2
    %s17 = sadd.s32 %s10, 1
    %s18 = ssub.s32 %s10, %s17
    %p19 = scmp.eq.s32.totalorder %s18, 0
    %s21 = sadd.s32 %s20, 1
    %s22 = scalar_select %p19, %s20, %s21
    %p25 = pneg %p19
    %p26 = scmp.eq.s32.totalorder %s10, 1
    %p27 = por %p25, %p26
    %p28 = scmp.ne.s32.totalorder %s20, %s23
    %p29 = scmp.eq.s32.totalorder %s10, 0
    %p30 = por %p28, %p29
    %p31 = scmp.ne.s32.totalorder %s20, %s23
    %p32 = scmp.eq.s32.totalorder %s15, 1
    %p33 = por %p31, %p32
    %p34 = scmp.ne.s32.totalorder %s23, %s24
    %p35 = scmp.eq.s32.totalorder %s15, 0
    %p36 = por %p34, %p35
    %p37 = scmp.ne.s32.totalorder %s23, %s24
    %p38 = scmp.eq.s32.totalorder %s16, 1
    %p39 = por %p37, %p38
    %p41 = scmp.ne.s32.totalorder %s24, %s40
    %p42 = scmp.eq.s32.totalorder %s16, 0
    %p43 = por %p41, %p42
    %s45 = sadd.s32 %s44, 1
    %p48 = scmp.eq.s32.totalorder %s10, 1
    %p49 = scmp.ne.s32.totalorder %s44, %s46
    %p50 = scmp.eq.s32.totalorder %s10, 0
    %p51 = por %p49, %p50
    %p52 = scmp.ne.s32.totalorder %s44, %s46
    %p53 = scmp.eq.s32.totalorder %s15, 1
    %p54 = por %p52, %p53
    %p55 = scmp.ne.s32.totalorder %s46, %s47
    %p56 = scmp.eq.s32.totalorder %s15, 0
    %p57 = por %p55, %p56
    %p58 = scmp.ne.s32.totalorder %s46, %s47
    %p59 = scmp.eq.s32.totalorder %s16, 1
    %p60 = por %p58, %p59
    %p62 = scmp.ne.s32.totalorder %s47, %s61
    %p63 = scmp.eq.s32.totalorder %s16, 0
    %p64 = por %p62, %p63
    %s66 = sadd.s32 %s65, 1
    %p69 = scmp.eq.s32.totalorder %s10, 1
    %p70 = scmp.ne.s32.totalorder %s65, %s67
    %p71 = scmp.eq.s32.totalorder %s10, 0
    %p72 = por %p70, %p71
    %p73 = scmp.ne.s32.totalorder %s65, %s67
    %p74 = scmp.eq.s32.totalorder %s15, 1
    %p75 = por %p73, %p74
    %p76 = scmp.ne.s32.totalorder %s67, %s68
    %p77 = scmp.eq.s32.totalorder %s15, 0
    %p78 = por %p76, %p77
    %p79 = scmp.ne.s32.totalorder %s67, %s68
    %p80 = scmp.eq.s32.totalorder %s16, 1
    %p81 = por %p79, %p80
    %p83 = scmp.ne.s32.totalorder %s68, %s82
    %p84 = scmp.eq.s32.totalorder %s16, 0
    %p85 = por %p83, %p84
    %s86 = ssub.s32 %s10, %s17
    %p87 = scmp.eq.s32.totalorder %s86, 0
    %s89 = sadd.s32 %s88, 1
    %s90 = scalar_select %p87, %s88, %s89
    %p93 = pneg %p87
    %p94 = scmp.eq.s32.totalorder %s10, 1
    %p95 = por %p93, %p94
    %p96 = scmp.ne.s32.totalorder %s88, %s91
    %p97 = scmp.eq.s32.totalorder %s10, 0
    %p98 = por %p96, %p97
    %p99 = scmp.ne.s32.totalorder %s88, %s91
    %p100 = scmp.eq.s32.totalorder %s15, 1
    %p101 = por %p99, %p100
    %p102 = scmp.ne.s32.totalorder %s91, %s92
    %p103 = scmp.eq.s32.totalorder %s15, 0
    %p104 = por %p102, %p103
    %p105 = scmp.ne.s32.totalorder %s91, %s92
    %p106 = scmp.eq.s32.totalorder %s16, 1
    %p107 = por %p105, %p106
    %p109 = scmp.ne.s32.totalorder %s92, %s108
    %p110 = scmp.eq.s32.totalorder %s16, 0
    %p111 = por %p109, %p110
    %s112 = ssub.s32 %s10, %s17
    %p113 = scmp.eq.s32.totalorder %s112, 0
    %s115 = sadd.s32 %s114, 1
    %s116 = scalar_select %p113, %s114, %s115
    %p119 = pneg %p113
    %p120 = scmp.eq.s32.totalorder %s10, 1
    %p121 = por %p119, %p120
    %p122 = scmp.ne.s32.totalorder %s114, %s117
    %p123 = scmp.eq.s32.totalorder %s10, 0
    %p124 = por %p122, %p123
    %p125 = scmp.ne.s32.totalorder %s114, %s117
    %p126 = scmp.eq.s32.totalorder %s15, 1
    %p127 = por %p125, %p126
    %p128 = scmp.ne.s32.totalorder %s117, %s118
    %p129 = scmp.eq.s32.totalorder %s15, 0
    %p130 = por %p128, %p129
    %p131 = scmp.ne.s32.totalorder %s117, %s118
    %p132 = scmp.eq.s32.totalorder %s16, 1
    %p133 = por %p131, %p132
    %p135 = scmp.ne.s32.totalorder %s118, %s134
    %p136 = scmp.eq.s32.totalorder %s16, 0
    %p137 = por %p135, %p136
    %p138 = scmp.le.s32.totalorder 1, %s10
    %p139 = scmp.lt.s32.totalorder %s10, 3
    %p140 = pnand %p138, %p139
    %p141 = pneg %p140
    // Predicated region
    $region9: #{transformer_block_forward.10} parent=5 // pred_check
      _
    $region10: #{transformer_block_forward.10} parent=5 // pred_check_branch
      %143 = sbr.rel (%p140) target = $region12
    $region11: #{transformer_block_forward.10} parent=5 // pred_region
      %s144 = ssub.s32 %s10, 1
      // Predicated region
      $region13: #{transformer_block_forward.10} parent=11 // pred_check
        %p145 = pneg %p57
      $region14: #{transformer_block_forward.10} parent=11 // pred_check_branch
        %147 = sbr.rel (%p145) target = $region16
      $region15: #{transformer_block_forward.10} parent=11 // pred_region
        _
      $region16: #{transformer_block_forward.10} parent=11 // pred_fallthru
        _
      // Predicated region
      $region17: #{transformer_block_forward.10} parent=11 // pred_check
        %p148 = pneg %p78
      $region18: #{transformer_block_forward.10} parent=11 // pred_check_branch
        %150 = sbr.rel (%p148) target = $region20
      $region19: #{transformer_block_forward.10} parent=11 // pred_region
        _
      $region20: #{transformer_block_forward.10} parent=11 // pred_fallthru
        _
    $region12: #{transformer_block_forward.10} parent=5 // pred_fallthru
      _
    %p151 = scmp.lt.s32.totalorder %s10, 2
    // Predicated region
    $region21: #{transformer_block_forward.10} parent=5 // pred_check
      %p152 = pneg %p151
    $region22: #{transformer_block_forward.10} parent=5 // pred_check_branch
      %154 = sbr.rel (%p152) target = $region24
    $region23: #{transformer_block_forward.10} parent=5 // pred_region
      // Predicated region
      $region25: #{transformer_block_forward.10} parent=23 // pred_check
        %p155 = pneg %p30
      $region26: #{transformer_block_forward.10} parent=23 // pred_check_branch
        %157 = sbr.rel (%p155) target = $region28
      $region27: #{transformer_block_forward.10} parent=23 // pred_region
        %s158 = smul.u32 64, %s10
        %p159 = scmp.lt.s32.totalorder %s158, 127
        %s160 = scalar_select %p159, %s158, 127
        %s161 = smul.addr %s160, 8
        %s162 = scalar_lea.vmem %s0, %s161
        %s163 = smul.u32 64, %s10
      $region28: #{transformer_block_forward.10} parent=23 // pred_fallthru
        _
      // Predicated region
      $region29: #{transformer_block_forward.10} parent=23 // pred_check
        %p164 = pneg %p98
      $region30: #{transformer_block_forward.10} parent=23 // pred_check_branch
        %166 = sbr.rel (%p164) target = $region32
      $region31: #{transformer_block_forward.10} parent=23 // pred_region
        %s167 = smul.u32 64, %s10
        %p168 = scmp.lt.s32.totalorder %s167, 127
        %s169 = scalar_select %p168, %s167, 127
        %s170 = smul.addr %s169, 8
        %s171 = scalar_lea.vmem %s3, %s170
        %s172 = smul.u32 64, %s10
      $region32: #{transformer_block_forward.10} parent=23 // pred_fallthru
        _
    $region24: #{transformer_block_forward.10} parent=5 // pred_fallthru
      _
    %p173 = scmp.le.s32.totalorder 1, %s10
    %p174 = scmp.lt.s32.totalorder %s10, 3
    %p175 = pnand %p173, %p174
    %p176 = pneg %p175
    // Predicated region
    $region33: #{transformer_block_forward.10} parent=5 // pred_check
      _
    $region34: #{transformer_block_forward.10} parent=5 // pred_check_branch
      %178 = sbr.rel (%p175) target = $region36
    $region35: #{transformer_block_forward.10} parent=5 // pred_region
      %s179 = ssub.s32 %s10, 1
      %s180 = smul.u32 64, %s15
      %p181 = scmp.lt.s32.totalorder %s180, 127
      %s182 = scalar_select %p181, %s180, 127
      %s183 = smul.addr %s182, 8
      %s184 = scalar_lea.vmem %s0, %s183
      %p185 = pneg %p36
      %p186 = pneg %p33
      %p187 = pneg %p57
      %p188 = pneg %p54
      %p189 = pneg %p78
      %p190 = pneg %p75
      %s191 = smul.u32 64, %s15
      %p192 = scmp.lt.s32.totalorder %s191, 127
      %s193 = scalar_select %p192, %s191, 127
      %s194 = smul.addr %s193, 8
      %s195 = scalar_lea.vmem %s3, %s194
      %p196 = pneg %p104
      %p197 = pneg %p101
      %p198 = pneg %p130
      %p199 = pneg %p127
      %s200 = smul.u32 64, %s15
      %p201 = scmp.lt.s32.totalorder %s200, 127
      %s202 = scalar_select %p201, %s200, 127
      %s203 = smul.addr %s202, 8
      %s204 = scalar_lea.vmem %s4, %s203
      %s205 = smul.u32 64, %s15
      %p206 = scmp.lt.s32.totalorder %s205, 127
      %s207 = scalar_select %p206, %s205, 127
      %s208 = smul.addr %s207, 8
      %s209 = scalar_lea.vmem %s0, %s208
      %s210 = smul.u32 64, %s15
      %s211 = smul.u32 64, %s15
      %p212 = scmp.lt.s32.totalorder %s211, 127
      %s213 = scalar_select %p212, %s211, 127
      %s214 = smul.addr %s213, 8
      %s215 = scalar_lea.vmem %s3, %s214
      %s216 = smul.u32 64, %s15
      %s217 = smul.u32 64, %s15
      %p218 = scmp.lt.s32.totalorder %s217, 127
      %s219 = scalar_select %p218, %s217, 127
      %s220 = smul.addr %s219, 8
      %s221 = scalar_lea.vmem %s4, %s220
      %s222 = smul.u32 64, %s15
      %v223 = vld [vmem:[%s209] sm:$0xff]
      %v224 = vld [vmem:[%s209 + $0x8] sm:$0xff]
      %v225 = vld [vmem:[%s209 + $0x10] sm:$0xff]
      %v226 = vld [vmem:[%s209 + $0x18] sm:$0xff]
      %v227 = vld [vmem:[%s209 + $0x20] sm:$0xff]
      %v228 = vld [vmem:[%s209 + $0x28] sm:$0xff]
      %v229 = vld [vmem:[%s209 + $0x30] sm:$0xff]
      %v230 = vld [vmem:[%s209 + $0x38] sm:$0xff]
      %v231 = vld [vmem:[%s209 + $0x40] sm:$0xff]
      %v232 = vld [vmem:[%s209 + $0x48] sm:$0xff]
      %v233 = vld [vmem:[%s209 + $0x50] sm:$0xff]
      %v234 = vld [vmem:[%s209 + $0x58] sm:$0xff]
      %v235 = vld [vmem:[%s209 + $0x60] sm:$0xff]
      %v236 = vld [vmem:[%s209 + $0x68] sm:$0xff]
      %v237 = vld [vmem:[%s209 + $0x70] sm:$0xff]
      %v238 = vld [vmem:[%s209 + $0x78] sm:$0xff]
      %v239 = vld [vmem:[%s209 + $0x80] sm:$0xff]
      %v240 = vld [vmem:[%s209 + $0x88] sm:$0xff]
      %v241 = vld [vmem:[%s209 + $0x90] sm:$0xff]
      %v242 = vld [vmem:[%s209 + $0x98] sm:$0xff]
      %v243 = vld [vmem:[%s209 + $0xa0] sm:$0xff]
      %v244 = vld [vmem:[%s209 + $0xa8] sm:$0xff]
      %v245 = vld [vmem:[%s209 + $0xb0] sm:$0xff]
      %v246 = vld [vmem:[%s209 + $0xb8] sm:$0xff]
      %v247 = vld [vmem:[%s209 + $0xc0] sm:$0xff]
      %v248 = vld [vmem:[%s209 + $0xc8] sm:$0xff]
      %v249 = vld [vmem:[%s209 + $0xd0] sm:$0xff]
      %v250 = vld [vmem:[%s209 + $0xd8] sm:$0xff]
      %v251 = vld [vmem:[%s209 + $0xe0] sm:$0xff]
      %v252 = vld [vmem:[%s209 + $0xe8] sm:$0xff]
      %v253 = vld [vmem:[%s209 + $0xf0] sm:$0xff]
      %v254 = vld [vmem:[%s209 + $0xf8] sm:$0xff]
      %v255 = vld [vmem:[%s209 + $0x100] sm:$0xff]
      %v256 = vld [vmem:[%s209 + $0x108] sm:$0xff]
      %v257 = vld [vmem:[%s209 + $0x110] sm:$0xff]
      %v258 = vld [vmem:[%s209 + $0x118] sm:$0xff]
      %v259 = vld [vmem:[%s209 + $0x120] sm:$0xff]
      %v260 = vld [vmem:[%s209 + $0x128] sm:$0xff]
      %v261 = vld [vmem:[%s209 + $0x130] sm:$0xff]
      %v262 = vld [vmem:[%s209 + $0x138] sm:$0xff]
      %v263 = vld [vmem:[%s209 + $0x140] sm:$0xff]
      %v264 = vld [vmem:[%s209 + $0x148] sm:$0xff]
      %v265 = vld [vmem:[%s209 + $0x150] sm:$0xff]
      %v266 = vld [vmem:[%s209 + $0x158] sm:$0xff]
      %v267 = vld [vmem:[%s209 + $0x160] sm:$0xff]
      %v268 = vld [vmem:[%s209 + $0x168] sm:$0xff]
      %v269 = vld [vmem:[%s209 + $0x170] sm:$0xff]
      %v270 = vld [vmem:[%s209 + $0x178] sm:$0xff]
      %v271 = vld [vmem:[%s209 + $0x180] sm:$0xff]
      %v272 = vld [vmem:[%s209 + $0x188] sm:$0xff]
      %v273 = vld [vmem:[%s209 + $0x190] sm:$0xff]
      %v274 = vld [vmem:[%s209 + $0x198] sm:$0xff]
      %v275 = vld [vmem:[%s209 + $0x1a0] sm:$0xff]
      %v276 = vld [vmem:[%s209 + $0x1a8] sm:$0xff]
      %v277 = vld [vmem:[%s209 + $0x1b0] sm:$0xff]
      %v278 = vld [vmem:[%s209 + $0x1b8] sm:$0xff]
      %v279 = vld [vmem:[%s209 + $0x1c0] sm:$0xff]
      %v280 = vld [vmem:[%s209 + $0x1c8] sm:$0xff]
      %v281 = vld [vmem:[%s209 + $0x1d0] sm:$0xff]
      %v282 = vld [vmem:[%s209 + $0x1d8] sm:$0xff]
      %v283 = vld [vmem:[%s209 + $0x1e0] sm:$0xff]
      %v284 = vld [vmem:[%s209 + $0x1e8] sm:$0xff]
      %v285 = vld [vmem:[%s209 + $0x1f0] sm:$0xff]
      %v286 = vld [vmem:[%s209 + $0x1f8] sm:$0xff]
      %v287 = vld [vmem:[%s1] sm:$0xff]
      %v288 = vld [vmem:[%s1 + $0x8] sm:$0xff]
      %v289 = vld [vmem:[%s2] sm:$0x1]
      %v291 = vlaneseq
      %v292 = vshrl.u32 %v291, 7
      %v293 = vsub.s32 0, %v292
      %v294 = vrot.slane %v289, %v293
      %vm296 = vcmask 130048
      %v298 = vsel %vm296, %v223, 0
      %v301 = vsel %vm296, %v224, 0
      %v304 = vsel %vm296, %v225, 0
      %v307 = vsel %vm296, %v226, 0
      %v310 = vsel %vm296, %v227, 0
      %v313 = vsel %vm296, %v228, 0
      %v316 = vsel %vm296, %v229, 0
      %v319 = vsel %vm296, %v230, 0
      %v322 = vsel %vm296, %v231, 0
      %v325 = vsel %vm296, %v232, 0
      %v328 = vsel %vm296, %v233, 0
      %v331 = vsel %vm296, %v234, 0
      %v334 = vsel %vm296, %v235, 0
      %v337 = vsel %vm296, %v236, 0
      %v340 = vsel %vm296, %v237, 0
      %v343 = vsel %vm296, %v238, 0
      %v346 = vsel %vm296, %v239, 0
      %v349 = vsel %vm296, %v240, 0
      %v352 = vsel %vm296, %v241, 0
      %v355 = vsel %vm296, %v242, 0
      %v358 = vsel %vm296, %v243, 0
      %v361 = vsel %vm296, %v244, 0
      %v364 = vsel %vm296, %v245, 0
      %v367 = vsel %vm296, %v246, 0
      %v370 = vsel %vm296, %v247, 0
      %v373 = vsel %vm296, %v248, 0
      %v376 = vsel %vm296, %v249, 0
      %v379 = vsel %vm296, %v250, 0
      %v382 = vsel %vm296, %v251, 0
      %v385 = vsel %vm296, %v252, 0
      %v388 = vsel %vm296, %v253, 0
      %v391 = vsel %vm296, %v254, 0
      %v394 = vsel %vm296, %v255, 0
      %v397 = vsel %vm296, %v256, 0
      %v400 = vsel %vm296, %v257, 0
      %v403 = vsel %vm296, %v258, 0
      %v406 = vsel %vm296, %v259, 0
      %v409 = vsel %vm296, %v260, 0
      %v412 = vsel %vm296, %v261, 0
      %v415 = vsel %vm296, %v262, 0
      %v418 = vsel %vm296, %v263, 0
      %v421 = vsel %vm296, %v264, 0
      %v424 = vsel %vm296, %v265, 0
      %v427 = vsel %vm296, %v266, 0
      %v430 = vsel %vm296, %v267, 0
      %v433 = vsel %vm296, %v268, 0
      %v436 = vsel %vm296, %v269, 0
      %v439 = vsel %vm296, %v270, 0
      %v442 = vsel %vm296, %v271, 0
      %v445 = vsel %vm296, %v272, 0
      %v448 = vsel %vm296, %v273, 0
      %v451 = vsel %vm296, %v274, 0
      %v454 = vsel %vm296, %v275, 0
      %v457 = vsel %vm296, %v276, 0
      %v460 = vsel %vm296, %v277, 0
      %v463 = vsel %vm296, %v278, 0
      %v466 = vsel %vm296, %v279, 0
      %v469 = vsel %vm296, %v280, 0
      %v472 = vsel %vm296, %v281, 0
      %v475 = vsel %vm296, %v282, 0
      %v478 = vsel %vm296, %v283, 0
      %v481 = vsel %vm296, %v284, 0
      %v484 = vsel %vm296, %v285, 0
      %v487 = vsel %vm296, %v286, 0
      %489 = vmatprep.subr.mxu0 0.0
      %490 = vmatpush1.msra.mxu0 %v287
      %491 = vmatprep.subr.mxu0 0.0
      %492 = vmatpush1.msra.mxu0 %v288
      %493 = vmatprep.subr.mxu0 0.0
      %494 = vmatpush1.msra.mxu0 0.0
      %495 = vmatprep.subr.mxu0 0.0
      %496 = vmatpush1.msra.mxu0 0.0
      %497 = vmatprep.subr.mxu0 0.0
      %498 = vmatpush1.msra.mxu0 0.0
      %499 = vmatprep.subr.mxu0 0.0
      %500 = vmatpush1.msra.mxu0 0.0
      %501 = vmatprep.subr.mxu0 0.0
      %502 = vmatpush1.msra.mxu0 0.0
      %503 = vmatprep.subr.mxu0 0.0
      %504 = vmatpush1.msra.mxu0 0.0
      %505 = vmatprep.subr.mxu0 0.0
      %506 = vmatpush1.msra.mxu0 0.0
      %507 = vmatprep.subr.mxu0 0.0
      %508 = vmatpush1.msra.mxu0 0.0
      %509 = vmatprep.subr.mxu0 0.0
      %510 = vmatpush1.msra.mxu0 0.0
      %511 = vmatprep.subr.mxu0 0.0
      %512 = vmatpush1.msra.mxu0 0.0
      %513 = vmatprep.subr.mxu0 0.0
      %514 = vmatpush1.msra.mxu0 0.0
      %515 = vmatprep.subr.mxu0 0.0
      %516 = vmatpush1.msra.mxu0 0.0
      %517 = vmatprep.subr.mxu0 0.0
      %518 = vmatpush1.msra.mxu0 0.0
      %519 = vmatprep.subr.mxu0 0.0
      %520 = vmatpush1.msra.mxu0 0.0
      %521 = vmatprep.subr.mxu0 0.0
      %522 = vmatpush1.msra.mxu0 0.0
      %523 = vmatprep.subr.mxu0 0.0
      %524 = vmatpush1.msra.mxu0 0.0
      %525 = vmatprep.subr.mxu0 0.0
      %526 = vmatpush1.msra.mxu0 0.0
      %527 = vmatprep.subr.mxu0 0.0
      %528 = vmatpush1.msra.mxu0 0.0
      %529 = vmatprep.subr.mxu0 0.0
      %530 = vmatpush1.msra.mxu0 0.0
      %531 = vmatprep.subr.mxu0 0.0
      %532 = vmatpush1.msra.mxu0 0.0
      %533 = vmatprep.subr.mxu0 0.0
      %534 = vmatpush1.msra.mxu0 0.0
      %535 = vmatprep.subr.mxu0 0.0
      %536 = vmatpush1.msra.mxu0 0.0
      %537 = vmatprep.subr.mxu0 0.0
      %538 = vmatpush1.msra.mxu0 0.0
      %539 = vmatprep.subr.mxu0 0.0
      %540 = vmatpush1.msra.mxu0 0.0
      %541 = vmatprep.subr.mxu0 0.0
      %542 = vmatpush1.msra.mxu0 0.0
      %543 = vmatprep.subr.mxu0 0.0
      %544 = vmatpush1.msra.mxu0 0.0
      %545 = vmatprep.subr.mxu0 0.0
      %546 = vmatpush1.msra.mxu0 0.0
      %547 = vmatprep.subr.mxu0 0.0
      %548 = vmatpush1.msra.mxu0 0.0
      %549 = vmatprep.subr.mxu0 0.0
      %550 = vmatpush1.msra.mxu0 0.0
      %551 = vmatprep.subr.mxu0 0.0
      %552 = vmatpush1.msra.mxu0 0.0
      %553 = vmatprep.mubr.f32.mxu0 0.0
      %554 = vmatmul.mubr.f32.gmra.mrb[0].mxu0 %v298
      %v555 = vpop.f32.mrb[0].mxu0
      %v556 = vadd.f32 %v294, %v555
      %v557 = vpop.f32.mrb[0].mxu0
      %558 = vmatprep.mubr.f32.mxu0 0.0
      %559 = vmatmul.mubr.f32.gmra.mrb[0].mxu0 %v301
      %v560 = vpop.f32.mrb[0].mxu0
      %v561 = vadd.f32 %v294, %v560
      %v562 = vpop.f32.mrb[0].mxu0
      %563 = vmatprep.mubr.f32.mxu0 0.0
      %564 = vmatmul.mubr.f32.gmra.mrb[0].mxu0 %v304
      %v565 = vpop.f32.mrb[0].mxu0
      %v566 = vadd.f32 %v294, %v565
      %v567 = vpop.f32.mrb[0].mxu0
      %568 = vmatprep.mubr.f32.mxu0 0.0
      %569 = vmatmul.mubr.f32.gmra.mrb[0].mxu0 %v307
      %v570 = vpop.f32.mrb[0].mxu0
      %v571 = vadd.f32 %v294, %v570
      %v572 = vpop.f32.mrb[0].mxu0
      %573 = vmatprep.mubr.f32.mxu0 0.0
      %574 = vmatmul.mubr.f32.gmra.mrb[0].mxu0 %v310
      %v575 = vpop.f32.mrb[0].mxu0
      %v576 = vadd.f32 %v294, %v575
      %v577 = vpop.f32.mrb[0].mxu0
      %578 = vmatprep.mubr.f32.mxu0 0.0
      %579 = vmatmul.mubr.f32.gmra.mrb[0].mxu0 %v313
      %v580 = vpop.f32.mrb[0].mxu0
      %v581 = vadd.f32 %v294, %v580
      %v582 = vpop.f32.mrb[0].mxu0
      %583 = vmatprep.mubr.f32.mxu0 0.0
      %584 = vmatmul.mubr.f32.gmra.mrb[0].mxu0 %v316
      %v585 = vpop.f32.mrb[0].mxu0
      %v586 = vadd.f32 %v294, %v585
      %v587 = vpop.f32.mrb[0].mxu0
      %588 = vmatprep.mubr.f32.mxu0 0.0
      %589 = vmatmul.mubr.f32.gmra.mrb[0].mxu0 %v319
      %v590 = vpop.f32.mrb[0].mxu0
      %v591 = vadd.f32 %v294, %v590
      %v592 = vpop.f32.mrb[0].mxu0
      %593 = vmatprep.mubr.f32.mxu0 0.0
      %594 = vmatmul.mubr.f32.gmra.mrb[0].mxu0 %v322
      %v595 = vpop.f32.mrb[0].mxu0
      %v596 = vadd.f32 %v294, %v595
      %v597 = vpop.f32.mrb[0].mxu0
      %598 = vmatprep.mubr.f32.mxu0 0.0
      %599 = vmatmul.mubr.f32.gmra.mrb[0].mxu0 %v325
      %v600 = vpop.f32.mrb[0].mxu0
      %v601 = vadd.f32 %v294, %v600
      %v602 = vpop.f32.mrb[0].mxu0
      %603 = vmatprep.mubr.f32.mxu0 0.0
      %604 = vmatmul.mubr.f32.gmra.mrb[0].mxu0 %v328
      %v605 = vpop.f32.mrb[0].mxu0
      %v606 = vadd.f32 %v294, %v605
      %v607 = vpop.f32.mrb[0].mxu0
      %608 = vmatprep.mubr.f32.mxu0 0.0
      %609 = vmatmul.mubr.f32.gmra.mrb[0].mxu0 %v331
      %v610 = vpop.f32.mrb[0].mxu0
      %v611 = vadd.f32 %v294, %v610
      %v612 = vpop.f32.mrb[0].mxu0
      %613 = vmatprep.mubr.f32.mxu0 0.0
      %614 = vmatmul.mubr.f32.gmra.mrb[0].mxu0 %v334
      %v615 = vpop.f32.mrb[0].mxu0
      %v616 = vadd.f32 %v294, %v615
      %v617 = vpop.f32.mrb[0].mxu0
      %618 = vmatprep.mubr.f32.mxu0 0.0
      %619 = vmatmul.mubr.f32.gmra.mrb[0].mxu0 %v337
      %v620 = vpop.f32.mrb[0].mxu0
      %v621 = vadd.f32 %v294, %v620
      %v622 = vpop.f32.mrb[0].mxu0
      %623 = vmatprep.mubr.f32.mxu0 0.0
      %624 = vmatmul.mubr.f32.gmra.mrb[0].mxu0 %v340
      %v625 = vpop.f32.mrb[0].mxu0
      %v626 = vadd.f32 %v294, %v625
      %v627 = vpop.f32.mrb[0].mxu0
      %628 = vmatprep.mubr.f32.mxu0 0.0
      %629 = vmatmul.mubr.f32.gmra.mrb[0].mxu0 %v343
      %v630 = vpop.f32.mrb[0].mxu0
      %v631 = vadd.f32 %v294, %v630
      %v632 = vpop.f32.mrb[0].mxu0
      %633 = vmatprep.mubr.f32.mxu0 0.0
      %634 = vmatmul.mubr.f32.gmra.mrb[0].mxu0 %v346
      %v635 = vpop.f32.mrb[0].mxu0
      %v636 = vadd.f32 %v294, %v635
      %v637 = vpop.f32.mrb[0].mxu0
      %638 = vmatprep.mubr.f32.mxu0 0.0
      %639 = vmatmul.mubr.f32.gmra.mrb[0].mxu0 %v349
      %v640 = vpop.f32.mrb[0].mxu0
      %v641 = vadd.f32 %v294, %v640
      %v642 = vpop.f32.mrb[0].mxu0
      %643 = vmatprep.mubr.f32.mxu0 0.0
      %644 = vmatmul.mubr.f32.gmra.mrb[0].mxu0 %v352
      %v645 = vpop.f32.mrb[0].mxu0
      %v646 = vadd.f32 %v294, %v645
      %v647 = vpop.f32.mrb[0].mxu0
      %648 = vmatprep.mubr.f32.mxu0 0.0
      %649 = vmatmul.mubr.f32.gmra.mrb[0].mxu0 %v355
      %v650 = vpop.f32.mrb[0].mxu0
      %v651 = vadd.f32 %v294, %v650
      %v652 = vpop.f32.mrb[0].mxu0
      %653 = vmatprep.mubr.f32.mxu0 0.0
      %654 = vmatmul.mubr.f32.gmra.mrb[0].mxu0 %v358
      %v655 = vpop.f32.mrb[0].mxu0
      %v656 = vadd.f32 %v294, %v655
      %v657 = vpop.f32.mrb[0].mxu0
      %658 = vmatprep.mubr.f32.mxu0 0.0
      %659 = vmatmul.mubr.f32.gmra.mrb[0].mxu0 %v361
      %v660 = vpop.f32.mrb[0].mxu0
      %v661 = vadd.f32 %v294, %v660
      %v662 = vpop.f32.mrb[0].mxu0
      %663 = vmatprep.mubr.f32.mxu0 0.0
      %664 = vmatmul.mubr.f32.gmra.mrb[0].mxu0 %v364
      %v665 = vpop.f32.mrb[0].mxu0
      %v666 = vadd.f32 %v294, %v665
      %v667 = vpop.f32.mrb[0].mxu0
      %668 = vmatprep.mubr.f32.mxu0 0.0
      %669 = vmatmul.mubr.f32.gmra.mrb[0].mxu0 %v367
      %v670 = vpop.f32.mrb[0].mxu0
      %v671 = vadd.f32 %v294, %v670
      %v672 = vpop.f32.mrb[0].mxu0
      %673 = vmatprep.mubr.f32.mxu0 0.0
      %674 = vmatmul.mubr.f32.gmra.mrb[0].mxu0 %v370
      %v675 = vpop.f32.mrb[0].mxu0
      %v676 = vadd.f32 %v294, %v675
      %v677 = vpop.f32.mrb[0].mxu0
      %678 = vmatprep.mubr.f32.mxu0 0.0
      %679 = vmatmul.mubr.f32.gmra.mrb[0].mxu0 %v373
      %v680 = vpop.f32.mrb[0].mxu0
      %v681 = vadd.f32 %v294, %v680
      %v682 = vpop.f32.mrb[0].mxu0
      %683 = vmatprep.mubr.f32.mxu0 0.0
      %684 = vmatmul.mubr.f32.gmra.mrb[0].mxu0 %v376
      %v685 = vpop.f32.mrb[0].mxu0
      %v686 = vadd.f32 %v294, %v685
      %v687 = vpop.f32.mrb[0].mxu0
      %688 = vmatprep.mubr.f32.mxu0 0.0
      %689 = vmatmul.mubr.f32.gmra.mrb[0].mxu0 %v379
      %v690 = vpop.f32.mrb[0].mxu0
      %v691 = vadd.f32 %v294, %v690
      %v692 = vpop.f32.mrb[0].mxu0
      %693 = vmatprep.mubr.f32.mxu0 0.0
      %694 = vmatmul.mubr.f32.gmra.mrb[0].mxu0 %v382
      %v695 = vpop.f32.mrb[0].mxu0
      %v696 = vadd.f32 %v294, %v695
      %v697 = vpop.f32.mrb[0].mxu0
      %698 = vmatprep.mubr.f32.mxu0 0.0
      %699 = vmatmul.mubr.f32.gmra.mrb[0].mxu0 %v385
      %v700 = vpop.f32.mrb[0].mxu0
      %v701 = vadd.f32 %v294, %v700
      %v702 = vpop.f32.mrb[0].mxu0
      %703 = vmatprep.mubr.f32.mxu0 0.0
      %704 = vmatmul.mubr.f32.gmra.mrb[0].mxu0 %v388
      %v705 = vpop.f32.mrb[0].mxu0
      %v706 = vadd.f32 %v294, %v705
      %v707 = vpop.f32.mrb[0].mxu0
      %708 = vmatprep.mubr.f32.mxu0 0.0
      %709 = vmatmul.mubr.f32.gmra.mrb[0].mxu0 %v391
      %v710 = vpop.f32.mrb[0].mxu0
      %v711 = vadd.f32 %v294, %v710
      %v712 = vpop.f32.mrb[0].mxu0
      %713 = vmatprep.mubr.f32.mxu0 0.0
      %714 = vmatmul.mubr.f32.gmra.mrb[0].mxu0 %v394
      %v715 = vpop.f32.mrb[0].mxu0
      %v716 = vadd.f32 %v294, %v715
      %v717 = vpop.f32.mrb[0].mxu0
      %718 = vmatprep.mubr.f32.mxu0 0.0
      %719 = vmatmul.mubr.f32.gmra.mrb[0].mxu0 %v397
      %v720 = vpop.f32.mrb[0].mxu0
      %v721 = vadd.f32 %v294, %v720
      %v722 = vpop.f32.mrb[0].mxu0
      %723 = vmatprep.mubr.f32.mxu0 0.0
      %724 = vmatmul.mubr.f32.gmra.mrb[0].mxu0 %v400
      %v725 = vpop.f32.mrb[0].mxu0
      %v726 = vadd.f32 %v294, %v725
      %v727 = vpop.f32.mrb[0].mxu0
      %728 = vmatprep.mubr.f32.mxu0 0.0
      %729 = vmatmul.mubr.f32.gmra.mrb[0].mxu0 %v403
      %v730 = vpop.f32.mrb[0].mxu0
      %v731 = vadd.f32 %v294, %v730
      %v732 = vpop.f32.mrb[0].mxu0
      %733 = vmatprep.mubr.f32.mxu0 0.0
      %734 = vmatmul.mubr.f32.gmra.mrb[0].mxu0 %v406
      %v735 = vpop.f32.mrb[0].mxu0
      %v736 = vadd.f32 %v294, %v735
      %v737 = vpop.f32.mrb[0].mxu0
      %738 = vmatprep.mubr.f32.mxu0 0.0
      %739 = vmatmul.mubr.f32.gmra.mrb[0].mxu0 %v409
      %v740 = vpop.f32.mrb[0].mxu0
      %v741 = vadd.f32 %v294, %v740
      %v742 = vpop.f32.mrb[0].mxu0
      %743 = vmatprep.mubr.f32.mxu0 0.0
      %744 = vmatmul.mubr.f32.gmra.mrb[0].mxu0 %v412
      %v745 = vpop.f32.mrb[0].mxu0
      %v746 = vadd.f32 %v294, %v745
      %v747 = vpop.f32.mrb[0].mxu0
      %748 = vmatprep.mubr.f32.mxu0 0.0
      %749 = vmatmul.mubr.f32.gmra.mrb[0].mxu0 %v415
      %v750 = vpop.f32.mrb[0].mxu0
      %v751 = vadd.f32 %v294, %v750
      %v752 = vpop.f32.mrb[0].mxu0
      %753 = vmatprep.mubr.f32.mxu0 0.0
      %754 = vmatmul.mubr.f32.gmra.mrb[0].mxu0 %v418
      %v755 = vpop.f32.mrb[0].mxu0
      %v756 = vadd.f32 %v294, %v755
      %v757 = vpop.f32.mrb[0].mxu0
      %758 = vmatprep.mubr.f32.mxu0 0.0
      %759 = vmatmul.mubr.f32.gmra.mrb[0].mxu0 %v421
      %v760 = vpop.f32.mrb[0].mxu0
      %v761 = vadd.f32 %v294, %v760
      %v762 = vpop.f32.mrb[0].mxu0
      %763 = vmatprep.mubr.f32.mxu0 0.0
      %764 = vmatmul.mubr.f32.gmra.mrb[0].mxu0 %v424
      %v765 = vpop.f32.mrb[0].mxu0
      %v766 = vadd.f32 %v294, %v765
      %v767 = vpop.f32.mrb[0].mxu0
      %768 = vmatprep.mubr.f32.mxu0 0.0
      %769 = vmatmul.mubr.f32.gmra.mrb[0].mxu0 %v427
      %v770 = vpop.f32.mrb[0].mxu0
      %v771 = vadd.f32 %v294, %v770
      %v772 = vpop.f32.mrb[0].mxu0
      %773 = vmatprep.mubr.f32.mxu0 0.0
      %774 = vmatmul.mubr.f32.gmra.mrb[0].mxu0 %v430
      %v775 = vpop.f32.mrb[0].mxu0
      %v776 = vadd.f32 %v294, %v775
      %v777 = vpop.f32.mrb[0].mxu0
      %778 = vmatprep.mubr.f32.mxu0 0.0
      %779 = vmatmul.mubr.f32.gmra.mrb[0].mxu0 %v433
      %v780 = vpop.f32.mrb[0].mxu0
      %v781 = vadd.f32 %v294, %v780
      %v782 = vpop.f32.mrb[0].mxu0
      %783 = vmatprep.mubr.f32.mxu0 0.0
      %784 = vmatmul.mubr.f32.gmra.mrb[0].mxu0 %v436
      %v785 = vpop.f32.mrb[0].mxu0
      %v786 = vadd.f32 %v294, %v785
      %v787 = vpop.f32.mrb[0].mxu0
      %788 = vmatprep.mubr.f32.mxu0 0.0
      %789 = vmatmul.mubr.f32.gmra.mrb[0].mxu0 %v439
      %v790 = vpop.f32.mrb[0].mxu0
      %v791 = vadd.f32 %v294, %v790
      %v792 = vpop.f32.mrb[0].mxu0
      %793 = vmatprep.mubr.f32.mxu0 0.0
      %794 = vmatmul.mubr.f32.gmra.mrb[0].mxu0 %v442
      %v795 = vpop.f32.mrb[0].mxu0
      %v796 = vadd.f32 %v294, %v795
      %v797 = vpop.f32.mrb[0].mxu0
      %798 = vmatprep.mubr.f32.mxu0 0.0
      %799 = vmatmul.mubr.f32.gmra.mrb[0].mxu0 %v445
      %v800 = vpop.f32.mrb[0].mxu0
      %v801 = vadd.f32 %v294, %v800
      %v802 = vpop.f32.mrb[0].mxu0
      %803 = vmatprep.mubr.f32.mxu0 0.0
      %804 = vmatmul.mubr.f32.gmra.mrb[0].mxu0 %v448
      %v805 = vpop.f32.mrb[0].mxu0
      %v806 = vadd.f32 %v294, %v805
      %v807 = vpop.f32.mrb[0].mxu0
      %808 = vmatprep.mubr.f32.mxu0 0.0
      %809 = vmatmul.mubr.f32.gmra.mrb[0].mxu0 %v451
      %v810 = vpop.f32.mrb[0].mxu0
      %v811 = vadd.f32 %v294, %v810
      %v812 = vpop.f32.mrb[0].mxu0
      %813 = vmatprep.mubr.f32.mxu0 0.0
      %814 = vmatmul.mubr.f32.gmra.mrb[0].mxu0 %v454
      %v815 = vpop.f32.mrb[0].mxu0
      %v816 = vadd.f32 %v294, %v815
      %v817 = vpop.f32.mrb[0].mxu0
      %818 = vmatprep.mubr.f32.mxu0 0.0
      %819 = vmatmul.mubr.f32.gmra.mrb[0].mxu0 %v457
      %v820 = vpop.f32.mrb[0].mxu0
      %v821 = vadd.f32 %v294, %v820
      %v822 = vpop.f32.mrb[0].mxu0
      %823 = vmatprep.mubr.f32.mxu0 0.0
      %824 = vmatmul.mubr.f32.gmra.mrb[0].mxu0 %v460
      %v825 = vpop.f32.mrb[0].mxu0
      %v826 = vadd.f32 %v294, %v825
      %v827 = vpop.f32.mrb[0].mxu0
      %828 = vmatprep.mubr.f32.mxu0 0.0
      %829 = vmatmul.mubr.f32.gmra.mrb[0].mxu0 %v463
      %v830 = vpop.f32.mrb[0].mxu0
      %v831 = vadd.f32 %v294, %v830
      %v832 = vpop.f32.mrb[0].mxu0
      %833 = vmatprep.mubr.f32.mxu0 0.0
      %834 = vmatmul.mubr.f32.gmra.mrb[0].mxu0 %v466
      %v835 = vpop.f32.mrb[0].mxu0
      %v836 = vadd.f32 %v294, %v835
      %v837 = vpop.f32.mrb[0].mxu0
      %838 = vmatprep.mubr.f32.mxu0 0.0
      %839 = vmatmul.mubr.f32.gmra.mrb[0].mxu0 %v469
      %v840 = vpop.f32.mrb[0].mxu0
      %v841 = vadd.f32 %v294, %v840
      %v842 = vpop.f32.mrb[0].mxu0
      %843 = vmatprep.mubr.f32.mxu0 0.0
      %844 = vmatmul.mubr.f32.gmra.mrb[0].mxu0 %v472
      %v845 = vpop.f32.mrb[0].mxu0
      %v846 = vadd.f32 %v294, %v845
      %v847 = vpop.f32.mrb[0].mxu0
      %848 = vmatprep.mubr.f32.mxu0 0.0
      %849 = vmatmul.mubr.f32.gmra.mrb[0].mxu0 %v475
      %v850 = vpop.f32.mrb[0].mxu0
      %v851 = vadd.f32 %v294, %v850
      %v852 = vpop.f32.mrb[0].mxu0
      %853 = vmatprep.mubr.f32.mxu0 0.0
      %854 = vmatmul.mubr.f32.gmra.mrb[0].mxu0 %v478
      %v855 = vpop.f32.mrb[0].mxu0
      %v856 = vadd.f32 %v294, %v855
      %v857 = vpop.f32.mrb[0].mxu0
      %858 = vmatprep.mubr.f32.mxu0 0.0
      %859 = vmatmul.mubr.f32.gmra.mrb[0].mxu0 %v481
      %v860 = vpop.f32.mrb[0].mxu0
      %v861 = vadd.f32 %v294, %v860
      %v862 = vpop.f32.mrb[0].mxu0
      %863 = vmatprep.mubr.f32.mxu0 0.0
      %864 = vmatmul.mubr.f32.gmra.mrb[0].mxu0 %v484
      %v865 = vpop.f32.mrb[0].mxu0
      %v866 = vadd.f32 %v294, %v865
      %v867 = vpop.f32.mrb[0].mxu0
      %868 = vmatprep.mubr.f32.mxu0 0.0
      %869 = vmatmul.mubr.f32.gmra.mrb[0].mxu0 %v487
      %v870 = vpop.f32.mrb[0].mxu0
      %v871 = vadd.f32 %v294, %v870
      %v872 = vpop.f32.mrb[0].mxu0
      %873 = vdwg.mxu0
      %v874 = vld [vmem:[%s215] sm:$0xff]
      %v875 = vld [vmem:[%s215 + $0x8] sm:$0xff]
      %v876 = vld [vmem:[%s215 + $0x10] sm:$0xff]
      %v877 = vld [vmem:[%s215 + $0x18] sm:$0xff]
      %v878 = vld [vmem:[%s215 + $0x20] sm:$0xff]
      %v879 = vld [vmem:[%s215 + $0x28] sm:$0xff]
      %v880 = vld [vmem:[%s215 + $0x30] sm:$0xff]
      %v881 = vld [vmem:[%s215 + $0x38] sm:$0xff]
      %v882 = vld [vmem:[%s215 + $0x40] sm:$0xff]
      %v883 = vld [vmem:[%s215 + $0x48] sm:$0xff]
      %v884 = vld [vmem:[%s215 + $0x50] sm:$0xff]
      %v885 = vld [vmem:[%s215 + $0x58] sm:$0xff]
      %v886 = vld [vmem:[%s215 + $0x60] sm:$0xff]
      %v887 = vld [vmem:[%s215 + $0x68] sm:$0xff]
      %v888 = vld [vmem:[%s215 + $0x70] sm:$0xff]
      %v889 = vld [vmem:[%s215 + $0x78] sm:$0xff]
      %v890 = vld [vmem:[%s215 + $0x80] sm:$0xff]
      %v891 = vld [vmem:[%s215 + $0x88] sm:$0xff]
      %v892 = vld [vmem:[%s215 + $0x90] sm:$0xff]
      %v893 = vld [vmem:[%s215 + $0x98] sm:$0xff]
      %v894 = vld [vmem:[%s215 + $0xa0] sm:$0xff]
      %v895 = vld [vmem:[%s215 + $0xa8] sm:$0xff]
      %v896 = vld [vmem:[%s215 + $0xb0] sm:$0xff]
      %v897 = vld [vmem:[%s215 + $0xb8] sm:$0xff]
      %v898 = vld [vmem:[%s215 + $0xc0] sm:$0xff]
      %v899 = vld [vmem:[%s215 + $0xc8] sm:$0xff]
      %v900 = vld [vmem:[%s215 + $0xd0] sm:$0xff]
      %v901 = vld [vmem:[%s215 + $0xd8] sm:$0xff]
      %v902 = vld [vmem:[%s215 + $0xe0] sm:$0xff]
      %v903 = vld [vmem:[%s215 + $0xe8] sm:$0xff]
      %v904 = vld [vmem:[%s215 + $0xf0] sm:$0xff]
      %v905 = vld [vmem:[%s215 + $0xf8] sm:$0xff]
      %v906 = vld [vmem:[%s215 + $0x100] sm:$0xff]
      %v907 = vld [vmem:[%s215 + $0x108] sm:$0xff]
      %v908 = vld [vmem:[%s215 + $0x110] sm:$0xff]
      %v909 = vld [vmem:[%s215 + $0x118] sm:$0xff]
      %v910 = vld [vmem:[%s215 + $0x120] sm:$0xff]
      %v911 = vld [vmem:[%s215 + $0x128] sm:$0xff]
      %v912 = vld [vmem:[%s215 + $0x130] sm:$0xff]
      %v913 = vld [vmem:[%s215 + $0x138] sm:$0xff]
      %v914 = vld [vmem:[%s215 + $0x140] sm:$0xff]
      %v915 = vld [vmem:[%s215 + $0x148] sm:$0xff]
      %v916 = vld [vmem:[%s215 + $0x150] sm:$0xff]
      %v917 = vld [vmem:[%s215 + $0x158] sm:$0xff]
      %v918 = vld [vmem:[%s215 + $0x160] sm:$0xff]
      %v919 = vld [vmem:[%s215 + $0x168] sm:$0xff]
      %v920 = vld [vmem:[%s215 + $0x170] sm:$0xff]
      %v921 = vld [vmem:[%s215 + $0x178] sm:$0xff]
      %v922 = vld [vmem:[%s215 + $0x180] sm:$0xff]
      %v923 = vld [vmem:[%s215 + $0x188] sm:$0xff]
      %v924 = vld [vmem:[%s215 + $0x190] sm:$0xff]
      %v925 = vld [vmem:[%s215 + $0x198] sm:$0xff]
      %v926 = vld [vmem:[%s215 + $0x1a0] sm:$0xff]
      %v927 = vld [vmem:[%s215 + $0x1a8] sm:$0xff]
      %v928 = vld [vmem:[%s215 + $0x1b0] sm:$0xff]
      %v929 = vld [vmem:[%s215 + $0x1b8] sm:$0xff]
      %v930 = vld [vmem:[%s215 + $0x1c0] sm:$0xff]
      %v931 = vld [vmem:[%s215 + $0x1c8] sm:$0xff]
      %v932 = vld [vmem:[%s215 + $0x1d0] sm:$0xff]
      %v933 = vld [vmem:[%s215 + $0x1d8] sm:$0xff]
      %v934 = vld [vmem:[%s215 + $0x1e0] sm:$0xff]
      %v935 = vld [vmem:[%s215 + $0x1e8] sm:$0xff]
      %v936 = vld [vmem:[%s215 + $0x1f0] sm:$0xff]
      %v937 = vld [vmem:[%s215 + $0x1f8] sm:$0xff]
      %v938 = vadd.f32 %v556, %v874
      %v939 = vadd.f32 %v561, %v875
      %v940 = vadd.f32 %v566, %v876
      %v941 = vadd.f32 %v571, %v877
      %v942 = vadd.f32 %v576, %v878
      %v943 = vadd.f32 %v581, %v879
      %v944 = vadd.f32 %v586, %v880
      %v945 = vadd.f32 %v591, %v881
      %v946 = vadd.f32 %v596, %v882
      %v947 = vadd.f32 %v601, %v883
      %v948 = vadd.f32 %v606, %v884
      %v949 = vadd.f32 %v611, %v885
      %v950 = vadd.f32 %v616, %v886
      %v951 = vadd.f32 %v621, %v887
      %v952 = vadd.f32 %v626, %v888
      %v953 = vadd.f32 %v631, %v889
      %v954 = vadd.f32 %v636, %v890
      %v955 = vadd.f32 %v641, %v891
      %v956 = vadd.f32 %v646, %v892
      %v957 = vadd.f32 %v651, %v893
      %v958 = vadd.f32 %v656, %v894
      %v959 = vadd.f32 %v661, %v895
      %v960 = vadd.f32 %v666, %v896
      %v961 = vadd.f32 %v671, %v897
      %v962 = vadd.f32 %v676, %v898
      %v963 = vadd.f32 %v681, %v899
      %v964 = vadd.f32 %v686, %v900
      %v965 = vadd.f32 %v691, %v901
      %v966 = vadd.f32 %v696, %v902
      %v967 = vadd.f32 %v701, %v903
      %v968 = vadd.f32 %v706, %v904
      %v969 = vadd.f32 %v711, %v905
      %v970 = vadd.f32 %v716, %v906
      %v971 = vadd.f32 %v721, %v907
      %v972 = vadd.f32 %v726, %v908
      %v973 = vadd.f32 %v731, %v909
      %v974 = vadd.f32 %v736, %v910
      %v975 = vadd.f32 %v741, %v911
      %v976 = vadd.f32 %v746, %v912
      %v977 = vadd.f32 %v751, %v913
      %v978 = vadd.f32 %v756, %v914
      %v979 = vadd.f32 %v761, %v915
      %v980 = vadd.f32 %v766, %v916
      %v981 = vadd.f32 %v771, %v917
      %v982 = vadd.f32 %v776, %v918
      %v983 = vadd.f32 %v781, %v919
      %v984 = vadd.f32 %v786, %v920
      %v985 = vadd.f32 %v791, %v921
      %v986 = vadd.f32 %v796, %v922
      %v987 = vadd.f32 %v801, %v923
      %v988 = vadd.f32 %v806, %v924
      %v989 = vadd.f32 %v811, %v925
      %v990 = vadd.f32 %v816, %v926
      %v991 = vadd.f32 %v821, %v927
      %v992 = vadd.f32 %v826, %v928
      %v993 = vadd.f32 %v831, %v929
      %v994 = vadd.f32 %v836, %v930
      %v995 = vadd.f32 %v841, %v931
      %v996 = vadd.f32 %v846, %v932
      %v997 = vadd.f32 %v851, %v933
      %v998 = vadd.f32 %v856, %v934
      %v999 = vadd.f32 %v861, %v935
      %v1000 = vadd.f32 %v866, %v936
      %v1001 = vadd.f32 %v871, %v937
      %1002 = vst.msk [vmem:[%s221] sm:$0xff] %vm296, %v938
      %1003 = vst.msk [vmem:[%s221 + $0x8] sm:$0xff] %vm296, %v939
      %1004 = vst.msk [vmem:[%s221 + $0x10] sm:$0xff] %vm296, %v940
      %1005 = vst.msk [vmem:[%s221 + $0x18] sm:$0xff] %vm296, %v941
      %1006 = vst.msk [vmem:[%s221 + $0x20] sm:$0xff] %vm296, %v942
      %1007 = vst.msk [vmem:[%s221 + $0x28] sm:$0xff] %vm296, %v943
      %1008 = vst.msk [vmem:[%s221 + $0x30] sm:$0xff] %vm296, %v944
      %1009 = vst.msk [vmem:[%s221 + $0x38] sm:$0xff] %vm296, %v945
      %1010 = vst.msk [vmem:[%s221 + $0x40] sm:$0xff] %vm296, %v946
      %1011 = vst.msk [vmem:[%s221 + $0x48] sm:$0xff] %vm296, %v947
      %1012 = vst.msk [vmem:[%s221 + $0x50] sm:$0xff] %vm296, %v948
      %1013 = vst.msk [vmem:[%s221 + $0x58] sm:$0xff] %vm296, %v949
      %1014 = vst.msk [vmem:[%s221 + $0x60] sm:$0xff] %vm296, %v950
      %1015 = vst.msk [vmem:[%s221 + $0x68] sm:$0xff] %vm296, %v951
      %1016 = vst.msk [vmem:[%s221 + $0x70] sm:$0xff] %vm296, %v952
      %1017 = vst.msk [vmem:[%s221 + $0x78] sm:$0xff] %vm296, %v953
      %1018 = vst.msk [vmem:[%s221 + $0x80] sm:$0xff] %vm296, %v954
      %1019 = vst.msk [vmem:[%s221 + $0x88] sm:$0xff] %vm296, %v955
      %1020 = vst.msk [vmem:[%s221 + $0x90] sm:$0xff] %vm296, %v956
      %1021 = vst.msk [vmem:[%s221 + $0x98] sm:$0xff] %vm296, %v957
      %1022 = vst.msk [vmem:[%s221 + $0xa0] sm:$0xff] %vm296, %v958
      %1023 = vst.msk [vmem:[%s221 + $0xa8] sm:$0xff] %vm296, %v959
      %1024 = vst.msk [vmem:[%s221 + $0xb0] sm:$0xff] %vm296, %v960
      %1025 = vst.msk [vmem:[%s221 + $0xb8] sm:$0xff] %vm296, %v961
      %1026 = vst.msk [vmem:[%s221 + $0xc0] sm:$0xff] %vm296, %v962
      %1027 = vst.msk [vmem:[%s221 + $0xc8] sm:$0xff] %vm296, %v963
      %1028 = vst.msk [vmem:[%s221 + $0xd0] sm:$0xff] %vm296, %v964
      %1029 = vst.msk [vmem:[%s221 + $0xd8] sm:$0xff] %vm296, %v965
      %1030 = vst.msk [vmem:[%s221 + $0xe0] sm:$0xff] %vm296, %v966
      %1031 = vst.msk [vmem:[%s221 + $0xe8] sm:$0xff] %vm296, %v967
      %1032 = vst.msk [vmem:[%s221 + $0xf0] sm:$0xff] %vm296, %v968
      %1033 = vst.msk [vmem:[%s221 + $0xf8] sm:$0xff] %vm296, %v969
      %1034 = vst.msk [vmem:[%s221 + $0x100] sm:$0xff] %vm296, %v970
      %1035 = vst.msk [vmem:[%s221 + $0x108] sm:$0xff] %vm296, %v971
      %1036 = vst.msk [vmem:[%s221 + $0x110] sm:$0xff] %vm296, %v972
      %1037 = vst.msk [vmem:[%s221 + $0x118] sm:$0xff] %vm296, %v973
      %1038 = vst.msk [vmem:[%s221 + $0x120] sm:$0xff] %vm296, %v974
      %1039 = vst.msk [vmem:[%s221 + $0x128] sm:$0xff] %vm296, %v975
      %1040 = vst.msk [vmem:[%s221 + $0x130] sm:$0xff] %vm296, %v976
      %1041 = vst.msk [vmem:[%s221 + $0x138] sm:$0xff] %vm296, %v977
      %1042 = vst.msk [vmem:[%s221 + $0x140] sm:$0xff] %vm296, %v978
      %1043 = vst.msk [vmem:[%s221 + $0x148] sm:$0xff] %vm296, %v979
      %1044 = vst.msk [vmem:[%s221 + $0x150] sm:$0xff] %vm296, %v980
      %1045 = vst.msk [vmem:[%s221 + $0x158] sm:$0xff] %vm296, %v981
      %1046 = vst.msk [vmem:[%s221 + $0x160] sm:$0xff] %vm296, %v982
      %1047 = vst.msk [vmem:[%s221 + $0x168] sm:$0xff] %vm296, %v983
      %1048 = vst.msk [vmem:[%s221 + $0x170] sm:$0xff] %vm296, %v984
      %1049 = vst.msk [vmem:[%s221 + $0x178] sm:$0xff] %vm296, %v985
      %1050 = vst.msk [vmem:[%s221 + $0x180] sm:$0xff] %vm296, %v986
      %1051 = vst.msk [vmem:[%s221 + $0x188] sm:$0xff] %vm296, %v987
      %1052 = vst.msk [vmem:[%s221 + $0x190] sm:$0xff] %vm296, %v988
      %1053 = vst.msk [vmem:[%s221 + $0x198] sm:$0xff] %vm296, %v989
      %1054 = vst.msk [vmem:[%s221 + $0x1a0] sm:$0xff] %vm296, %v990
      %1055 = vst.msk [vmem:[%s221 + $0x1a8] sm:$0xff] %vm296, %v991
      %1056 = vst.msk [vmem:[%s221 + $0x1b0] sm:$0xff] %vm296, %v992
      %1057 = vst.msk [vmem:[%s221 + $0x1b8] sm:$0xff] %vm296, %v993
      %1058 = vst.msk [vmem:[%s221 + $0x1c0] sm:$0xff] %vm296, %v994
      %1059 = vst.msk [vmem:[%s221 + $0x1c8] sm:$0xff] %vm296, %v995
      %1060 = vst.msk [vmem:[%s221 + $0x1d0] sm:$0xff] %vm296, %v996
      %1061 = vst.msk [vmem:[%s221 + $0x1d8] sm:$0xff] %vm296, %v997
      %1062 = vst.msk [vmem:[%s221 + $0x1e0] sm:$0xff] %vm296, %v998
      %1063 = vst.msk [vmem:[%s221 + $0x1e8] sm:$0xff] %vm296, %v999
      %1064 = vst.msk [vmem:[%s221 + $0x1f0] sm:$0xff] %vm296, %v1000
      %1065 = vst.msk [vmem:[%s221 + $0x1f8] sm:$0xff] %vm296, %v1001
      %s1066 = smul.u32 64, %s15
      %p1067 = scmp.lt.s32.totalorder %s1066, 127
      %s1068 = scalar_select %p1067, %s1066, 127
      %s1069 = smul.addr %s1068, 8
      %s1070 = scalar_lea.vmem %s4, %s1069
      // Predicated region
      $region37: #{transformer_block_forward.10} parent=35 // pred_check
        %p1071 = pneg %p127
      $region38: #{transformer_block_forward.10} parent=35 // pred_check_branch
        %1073 = sbr.rel (%p1071) target = $region40
      $region39: #{transformer_block_forward.10} parent=35 // pred_region
        %s1074 = smul.u32 64, %s15
      $region40: #{transformer_block_forward.10} parent=35 // pred_fallthru
        _
    $region36: #{transformer_block_forward.10} parent=5 // pred_fallthru
      _
    %p1075 = scmp.le.s32.totalorder 2, %s10
    // Predicated region
    $region41: #{transformer_block_forward.10} parent=5 // pred_check
      %p1076 = pneg %p1075
    $region42: #{transformer_block_forward.10} parent=5 // pred_check_branch
      %1078 = sbr.rel (%p1076) target = $region44
    $region43: #{transformer_block_forward.10} parent=5 // pred_region
      %s1079 = ssub.s32 %s10, 2
      // Predicated region
      $region45: #{transformer_block_forward.10} parent=43 // pred_check
        %p1080 = pneg %p133
      $region46: #{transformer_block_forward.10} parent=43 // pred_check_branch
        %1082 = sbr.rel (%p1080) target = $region48
      $region47: #{transformer_block_forward.10} parent=43 // pred_region
        %s1083 = smul.u32 64, %s16
        %p1084 = scmp.lt.s32.totalorder %s1083, 127
        %s1085 = scalar_select %p1084, %s1083, 127
        %s1086 = smul.addr %s1085, 8
        %s1087 = scalar_lea.vmem %s4, %s1086
      $region48: #{transformer_block_forward.10} parent=43 // pred_fallthru
        _
    $region44: #{transformer_block_forward.10} parent=5 // pred_fallthru
      _
  $region6: #{transformer_block_forward.10} parent=0 // loop_footer
    %s14 = sadd.s32 1, %s10
  $region7: #{transformer_block_forward.10} parent=0 // loop_footer_branch
    %9 = sbr.rel target = $region3
  $region8: #{transformer_block_forward.10} parent=0 // loop_exit
    _

// kernel: transformer_block_forward.11
$region0: #{transformer_block_forward.11}
  #allocation0 [shape = 'u32[]', space=smem, size = 0x4, offset = 0x4, fixed_abs, tag = 'smem constant byte address 0x4 - core index']
  #allocation1 [shape = 'u32[144,128]{1,0:T(1,128)}', space=vmem, size = 0x12000, scoped, tag = 'internal scratch']
  %s0 = inlined_call_operand.vmem [shape: f32[1024,16], index: 0, kind: input, shape index: {}]
  %s1 = inlined_call_operand.vmem [shape: f32[1,16], index: 1, kind: input, shape index: {}]
  %s2 = inlined_call_operand.vmem [shape: f32[1,16], index: 2, kind: input, shape index: {}]
  %s3 = inlined_call_operand.vmem [shape: f32[16,64], index: 3, kind: input, shape index: {}]
  %s4 = inlined_call_operand.vmem [shape: f32[1,64], index: 4, kind: input, shape index: {}]
  %s5 = inlined_call_operand.vmem [shape: f32[1024,64], index: 5, kind: output, shape index: {}]
  %s6 = sld [smem:[#allocation0]]
  $region53: #{transformer_block_forward.11} parent=0
    _
  %s8 = ssub.s32 1, %s6
  %s9 = scalar_select 0, %s8, %s6
  loop: start=0, step=1, limit=4
  $region2: #{transformer_block_forward.11} parent=0 // loop_pre_header
    _
  $region3: #{transformer_block_forward.11} parent=0 // loop_header
    %s11 = sphi 0, %s15
    %p12 = scmp.ge.s32.totalorder %s11, 4
    %s21 = sphi 0, %s23
    %s24 = sphi 0, %s21
    %s25 = sphi 0, %s24
    %s41 = sphi 0, %s25
    %s45 = sphi 0, %s45
    %s47 = sphi 0, %s45
    %s48 = sphi 0, %s47
    %s62 = sphi 0, %s48
    %s66 = sphi 0, %s66
    %s68 = sphi 0, %s66
    %s69 = sphi 0, %s68
    %s83 = sphi 0, %s69
    %s87 = sphi 0, %s87
    %s89 = sphi 0, %s87
    %s90 = sphi 0, %s89
    %s104 = sphi 0, %s90
    %s108 = sphi 0, %s108
    %s110 = sphi 0, %s108
    %s111 = sphi 0, %s110
    %s125 = sphi 0, %s111
    %s131 = sphi 0, %s133
    %s134 = sphi 0, %s131
    %s135 = sphi 0, %s134
    %s151 = sphi 0, %s135
  $region4: #{transformer_block_forward.11} parent=0 // loop_header_branch
    %14 = sbr.rel (%p12) target = $region8
  $region5: #{transformer_block_forward.11} parent=0 // loop_body
    %s16 = ssub.s32 %s11, 1
    %s17 = ssub.s32 %s11, 2
    %s18 = sadd.s32 %s11, 1
    %s19 = ssub.s32 %s11, %s18
    %p20 = scmp.eq.s32.totalorder %s19, 0
    %s22 = sadd.s32 %s21, 1
    %s23 = scalar_select %p20, %s21, %s22
    %p26 = pneg %p20
    %p27 = scmp.eq.s32.totalorder %s11, 1
    %p28 = por %p26, %p27
    %p29 = scmp.ne.s32.totalorder %s21, %s24
    %p30 = scmp.eq.s32.totalorder %s11, 0
    %p31 = por %p29, %p30
    %p32 = scmp.ne.s32.totalorder %s21, %s24
    %p33 = scmp.eq.s32.totalorder %s16, 1
    %p34 = por %p32, %p33
    %p35 = scmp.ne.s32.totalorder %s24, %s25
    %p36 = scmp.eq.s32.totalorder %s16, 0
    %p37 = por %p35, %p36
    %p38 = scmp.ne.s32.totalorder %s24, %s25
    %p39 = scmp.eq.s32.totalorder %s17, 1
    %p40 = por %p38, %p39
    %p42 = scmp.ne.s32.totalorder %s25, %s41
    %p43 = scmp.eq.s32.totalorder %s17, 0
    %p44 = por %p42, %p43
    %s46 = sadd.s32 %s45, 1
    %p49 = scmp.eq.s32.totalorder %s11, 1
    %p50 = scmp.ne.s32.totalorder %s45, %s47
    %p51 = scmp.eq.s32.totalorder %s11, 0
    %p52 = por %p50, %p51
    %p53 = scmp.ne.s32.totalorder %s45, %s47
    %p54 = scmp.eq.s32.totalorder %s16, 1
    %p55 = por %p53, %p54
    %p56 = scmp.ne.s32.totalorder %s47, %s48
    %p57 = scmp.eq.s32.totalorder %s16, 0
    %p58 = por %p56, %p57
    %p59 = scmp.ne.s32.totalorder %s47, %s48
    %p60 = scmp.eq.s32.totalorder %s17, 1
    %p61 = por %p59, %p60
    %p63 = scmp.ne.s32.totalorder %s48, %s62
    %p64 = scmp.eq.s32.totalorder %s17, 0
    %p65 = por %p63, %p64
    %s67 = sadd.s32 %s66, 1
    %p70 = scmp.eq.s32.totalorder %s11, 1
    %p71 = scmp.ne.s32.totalorder %s66, %s68
    %p72 = scmp.eq.s32.totalorder %s11, 0
    %p73 = por %p71, %p72
    %p74 = scmp.ne.s32.totalorder %s66, %s68
    %p75 = scmp.eq.s32.totalorder %s16, 1
    %p76 = por %p74, %p75
    %p77 = scmp.ne.s32.totalorder %s68, %s69
    %p78 = scmp.eq.s32.totalorder %s16, 0
    %p79 = por %p77, %p78
    %p80 = scmp.ne.s32.totalorder %s68, %s69
    %p81 = scmp.eq.s32.totalorder %s17, 1
    %p82 = por %p80, %p81
    %p84 = scmp.ne.s32.totalorder %s69, %s83
    %p85 = scmp.eq.s32.totalorder %s17, 0
    %p86 = por %p84, %p85
    %s88 = sadd.s32 %s87, 1
    %p91 = scmp.eq.s32.totalorder %s11, 1
    %p92 = scmp.ne.s32.totalorder %s87, %s89
    %p93 = scmp.eq.s32.totalorder %s11, 0
    %p94 = por %p92, %p93
    %p95 = scmp.ne.s32.totalorder %s87, %s89
    %p96 = scmp.eq.s32.totalorder %s16, 1
    %p97 = por %p95, %p96
    %p98 = scmp.ne.s32.totalorder %s89, %s90
    %p99 = scmp.eq.s32.totalorder %s16, 0
    %p100 = por %p98, %p99
    %p101 = scmp.ne.s32.totalorder %s89, %s90
    %p102 = scmp.eq.s32.totalorder %s17, 1
    %p103 = por %p101, %p102
    %p105 = scmp.ne.s32.totalorder %s90, %s104
    %p106 = scmp.eq.s32.totalorder %s17, 0
    %p107 = por %p105, %p106
    %s109 = sadd.s32 %s108, 1
    %p112 = scmp.eq.s32.totalorder %s11, 1
    %p113 = scmp.ne.s32.totalorder %s108, %s110
    %p114 = scmp.eq.s32.totalorder %s11, 0
    %p115 = por %p113, %p114
    %p116 = scmp.ne.s32.totalorder %s108, %s110
    %p117 = scmp.eq.s32.totalorder %s16, 1
    %p118 = por %p116, %p117
    %p119 = scmp.ne.s32.totalorder %s110, %s111
    %p120 = scmp.eq.s32.totalorder %s16, 0
    %p121 = por %p119, %p120
    %p122 = scmp.ne.s32.totalorder %s110, %s111
    %p123 = scmp.eq.s32.totalorder %s17, 1
    %p124 = por %p122, %p123
    %p126 = scmp.ne.s32.totalorder %s111, %s125
    %p127 = scmp.eq.s32.totalorder %s17, 0
    %p128 = por %p126, %p127
    %s129 = ssub.s32 %s11, %s18
    %p130 = scmp.eq.s32.totalorder %s129, 0
    %s132 = sadd.s32 %s131, 1
    %s133 = scalar_select %p130, %s131, %s132
    %p136 = pneg %p130
    %p137 = scmp.eq.s32.totalorder %s11, 1
    %p138 = por %p136, %p137
    %p139 = scmp.ne.s32.totalorder %s131, %s134
    %p140 = scmp.eq.s32.totalorder %s11, 0
    %p141 = por %p139, %p140
    %p142 = scmp.ne.s32.totalorder %s131, %s134
    %p143 = scmp.eq.s32.totalorder %s16, 1
    %p144 = por %p142, %p143
    %p145 = scmp.ne.s32.totalorder %s134, %s135
    %p146 = scmp.eq.s32.totalorder %s16, 0
    %p147 = por %p145, %p146
    %p148 = scmp.ne.s32.totalorder %s134, %s135
    %p149 = scmp.eq.s32.totalorder %s17, 1
    %p150 = por %p148, %p149
    %p152 = scmp.ne.s32.totalorder %s135, %s151
    %p153 = scmp.eq.s32.totalorder %s17, 0
    %p154 = por %p152, %p153
    %p155 = scmp.le.s32.totalorder 1, %s11
    %p156 = scmp.lt.s32.totalorder %s11, 3
    %p157 = pnand %p155, %p156
    %p158 = pneg %p157
    // Predicated region
    $region9: #{transformer_block_forward.11} parent=5 // pred_check
      _
    $region10: #{transformer_block_forward.11} parent=5 // pred_check_branch
      %160 = sbr.rel (%p157) target = $region12
    $region11: #{transformer_block_forward.11} parent=5 // pred_region
      %s161 = ssub.s32 %s11, 1
      // Predicated region
      $region13: #{transformer_block_forward.11} parent=11 // pred_check
        %p162 = pneg %p58
      $region14: #{transformer_block_forward.11} parent=11 // pred_check_branch
        %164 = sbr.rel (%p162) target = $region16
      $region15: #{transformer_block_forward.11} parent=11 // pred_region
        _
      $region16: #{transformer_block_forward.11} parent=11 // pred_fallthru
        _
      // Predicated region
      $region17: #{transformer_block_forward.11} parent=11 // pred_check
        %p165 = pneg %p79
      $region18: #{transformer_block_forward.11} parent=11 // pred_check_branch
        %167 = sbr.rel (%p165) target = $region20
      $region19: #{transformer_block_forward.11} parent=11 // pred_region
        _
      $region20: #{transformer_block_forward.11} parent=11 // pred_fallthru
        _
      // Predicated region
      $region21: #{transformer_block_forward.11} parent=11 // pred_check
        %p168 = pneg %p100
      $region22: #{transformer_block_forward.11} parent=11 // pred_check_branch
        %170 = sbr.rel (%p168) target = $region24
      $region23: #{transformer_block_forward.11} parent=11 // pred_region
        _
      $region24: #{transformer_block_forward.11} parent=11 // pred_fallthru
        _
      // Predicated region
      $region25: #{transformer_block_forward.11} parent=11 // pred_check
        %p171 = pneg %p121
      $region26: #{transformer_block_forward.11} parent=11 // pred_check_branch
        %173 = sbr.rel (%p171) target = $region28
      $region27: #{transformer_block_forward.11} parent=11 // pred_region
        _
      $region28: #{transformer_block_forward.11} parent=11 // pred_fallthru
        _
    $region12: #{transformer_block_forward.11} parent=5 // pred_fallthru
      _
    %p174 = scmp.lt.s32.totalorder %s11, 2
    // Predicated region
    $region29: #{transformer_block_forward.11} parent=5 // pred_check
      %p175 = pneg %p174
    $region30: #{transformer_block_forward.11} parent=5 // pred_check_branch
      %177 = sbr.rel (%p175) target = $region32
    $region31: #{transformer_block_forward.11} parent=5 // pred_region
      // Predicated region
      $region33: #{transformer_block_forward.11} parent=31 // pred_check
        %p178 = pneg %p31
      $region34: #{transformer_block_forward.11} parent=31 // pred_check_branch
        %180 = sbr.rel (%p178) target = $region36
      $region35: #{transformer_block_forward.11} parent=31 // pred_region
        %s181 = smul.u32 64, %s11
        %p182 = scmp.lt.s32.totalorder %s181, 127
        %s183 = scalar_select %p182, %s181, 127
        %s184 = smul.addr %s183, 8
        %s185 = scalar_lea.vmem %s0, %s184
        %s186 = smul.u32 64, %s11
      $region36: #{transformer_block_forward.11} parent=31 // pred_fallthru
        _
    $region32: #{transformer_block_forward.11} parent=5 // pred_fallthru
      _
    %p187 = scmp.le.s32.totalorder 1, %s11
    %p188 = scmp.lt.s32.totalorder %s11, 3
    %p189 = pnand %p187, %p188
    %p190 = pneg %p189
    // Predicated region
    $region37: #{transformer_block_forward.11} parent=5 // pred_check
      _
    $region38: #{transformer_block_forward.11} parent=5 // pred_check_branch
      %192 = sbr.rel (%p189) target = $region40
    $region39: #{transformer_block_forward.11} parent=5 // pred_region
      %s193 = ssub.s32 %s11, 1
      %s194 = smul.u32 64, %s16
      %p195 = scmp.lt.s32.totalorder %s194, 127
      %s196 = scalar_select %p195, %s194, 127
      %s197 = smul.addr %s196, 8
      %s198 = scalar_lea.vmem %s0, %s197
      %p199 = pneg %p37
      %p200 = pneg %p34
      %p201 = pneg %p58
      %p202 = pneg %p55
      %p203 = pneg %p79
      %p204 = pneg %p76
      %p205 = pneg %p100
      %p206 = pneg %p97
      %p207 = pneg %p121
      %p208 = pneg %p118
      %p209 = pneg %p147
      %p210 = pneg %p144
      %s211 = smul.u32 64, %s16
      %p212 = scmp.lt.s32.totalorder %s211, 127
      %s213 = scalar_select %p212, %s211, 127
      %s214 = smul.addr %s213, 8
      %s215 = scalar_lea.vmem %s5, %s214
      %s216 = smul.u32 64, %s16
      %p217 = scmp.lt.s32.totalorder %s216, 127
      %s218 = scalar_select %p217, %s216, 127
      %s219 = smul.addr %s218, 8
      %s220 = scalar_lea.vmem %s0, %s219
      %s221 = smul.u32 64, %s16
      %s222 = smul.u32 64, %s16
      %p223 = scmp.lt.s32.totalorder %s222, 127
      %s224 = scalar_select %p223, %s222, 127
      %s225 = smul.addr %s224, 8
      %s226 = scalar_lea.vmem %s5, %s225
      %s227 = smul.u32 64, %s16
      %v228 = vld [vmem:[%s220] sm:$0xff]
      %v229 = vld [vmem:[%s220 + $0x8] sm:$0xff]
      %v230 = vld [vmem:[%s220 + $0x10] sm:$0xff]
      %v231 = vld [vmem:[%s220 + $0x18] sm:$0xff]
      %v232 = vld [vmem:[%s220 + $0x20] sm:$0xff]
      %v233 = vld [vmem:[%s220 + $0x28] sm:$0xff]
      %v234 = vld [vmem:[%s220 + $0x30] sm:$0xff]
      %v235 = vld [vmem:[%s220 + $0x38] sm:$0xff]
      %v236 = vld [vmem:[%s220 + $0x40] sm:$0xff]
      %v237 = vld [vmem:[%s220 + $0x48] sm:$0xff]
      %v238 = vld [vmem:[%s220 + $0x50] sm:$0xff]
      %v239 = vld [vmem:[%s220 + $0x58] sm:$0xff]
      %v240 = vld [vmem:[%s220 + $0x60] sm:$0xff]
      %v241 = vld [vmem:[%s220 + $0x68] sm:$0xff]
      %v242 = vld [vmem:[%s220 + $0x70] sm:$0xff]
      %v243 = vld [vmem:[%s220 + $0x78] sm:$0xff]
      %v244 = vld [vmem:[%s220 + $0x80] sm:$0xff]
      %v245 = vld [vmem:[%s220 + $0x88] sm:$0xff]
      %v246 = vld [vmem:[%s220 + $0x90] sm:$0xff]
      %v247 = vld [vmem:[%s220 + $0x98] sm:$0xff]
      %v248 = vld [vmem:[%s220 + $0xa0] sm:$0xff]
      %v249 = vld [vmem:[%s220 + $0xa8] sm:$0xff]
      %v250 = vld [vmem:[%s220 + $0xb0] sm:$0xff]
      %v251 = vld [vmem:[%s220 + $0xb8] sm:$0xff]
      %v252 = vld [vmem:[%s220 + $0xc0] sm:$0xff]
      %v253 = vld [vmem:[%s220 + $0xc8] sm:$0xff]
      %v254 = vld [vmem:[%s220 + $0xd0] sm:$0xff]
      %v255 = vld [vmem:[%s220 + $0xd8] sm:$0xff]
      %v256 = vld [vmem:[%s220 + $0xe0] sm:$0xff]
      %v257 = vld [vmem:[%s220 + $0xe8] sm:$0xff]
      %v258 = vld [vmem:[%s220 + $0xf0] sm:$0xff]
      %v259 = vld [vmem:[%s220 + $0xf8] sm:$0xff]
      %v260 = vld [vmem:[%s220 + $0x100] sm:$0xff]
      %v261 = vld [vmem:[%s220 + $0x108] sm:$0xff]
      %v262 = vld [vmem:[%s220 + $0x110] sm:$0xff]
      %v263 = vld [vmem:[%s220 + $0x118] sm:$0xff]
      %v264 = vld [vmem:[%s220 + $0x120] sm:$0xff]
      %v265 = vld [vmem:[%s220 + $0x128] sm:$0xff]
      %v266 = vld [vmem:[%s220 + $0x130] sm:$0xff]
      %v267 = vld [vmem:[%s220 + $0x138] sm:$0xff]
      %v268 = vld [vmem:[%s220 + $0x140] sm:$0xff]
      %v269 = vld [vmem:[%s220 + $0x148] sm:$0xff]
      %v270 = vld [vmem:[%s220 + $0x150] sm:$0xff]
      %v271 = vld [vmem:[%s220 + $0x158] sm:$0xff]
      %v272 = vld [vmem:[%s220 + $0x160] sm:$0xff]
      %v273 = vld [vmem:[%s220 + $0x168] sm:$0xff]
      %v274 = vld [vmem:[%s220 + $0x170] sm:$0xff]
      %v275 = vld [vmem:[%s220 + $0x178] sm:$0xff]
      %v276 = vld [vmem:[%s220 + $0x180] sm:$0xff]
      %v277 = vld [vmem:[%s220 + $0x188] sm:$0xff]
      %v278 = vld [vmem:[%s220 + $0x190] sm:$0xff]
      %v279 = vld [vmem:[%s220 + $0x198] sm:$0xff]
      %v280 = vld [vmem:[%s220 + $0x1a0] sm:$0xff]
      %v281 = vld [vmem:[%s220 + $0x1a8] sm:$0xff]
      %v282 = vld [vmem:[%s220 + $0x1b0] sm:$0xff]
      %v283 = vld [vmem:[%s220 + $0x1b8] sm:$0xff]
      %v284 = vld [vmem:[%s220 + $0x1c0] sm:$0xff]
      %v285 = vld [vmem:[%s220 + $0x1c8] sm:$0xff]
      %v286 = vld [vmem:[%s220 + $0x1d0] sm:$0xff]
      %v287 = vld [vmem:[%s220 + $0x1d8] sm:$0xff]
      %v288 = vld [vmem:[%s220 + $0x1e0] sm:$0xff]
      %v289 = vld [vmem:[%s220 + $0x1e8] sm:$0xff]
      %v290 = vld [vmem:[%s220 + $0x1f0] sm:$0xff]
      %v291 = vld [vmem:[%s220 + $0x1f8] sm:$0xff]
      %vm292 = vcmask 130048
      %v293 = vsel %vm292, %v228, 0.0
      %294 = vadd.xlane.f32.xlu0 %v293
      %v295 = vpop.xlane.xlu0 %294
      %v296 = vsel %vm292, %v229, 0.0
      %297 = vadd.xlane.f32.xlu0 %v296
      %v298 = vpop.xlane.xlu0 %297
      %v299 = vsel %vm292, %v230, 0.0
      %300 = vadd.xlane.f32.xlu0 %v299
      %v301 = vpop.xlane.xlu0 %300
      %v302 = vsel %vm292, %v231, 0.0
      %303 = vadd.xlane.f32.xlu0 %v302
      %v304 = vpop.xlane.xlu0 %303
      %v305 = vsel %vm292, %v232, 0.0
      %306 = vadd.xlane.f32.xlu0 %v305
      %v307 = vpop.xlane.xlu0 %306
      %v308 = vsel %vm292, %v233, 0.0
      %309 = vadd.xlane.f32.xlu0 %v308
      %v310 = vpop.xlane.xlu0 %309
      %v311 = vsel %vm292, %v234, 0.0
      %312 = vadd.xlane.f32.xlu0 %v311
      %v313 = vpop.xlane.xlu0 %312
      %v314 = vsel %vm292, %v235, 0.0
      %315 = vadd.xlane.f32.xlu0 %v314
      %v316 = vpop.xlane.xlu0 %315
      %v317 = vsel %vm292, %v236, 0.0
      %318 = vadd.xlane.f32.xlu0 %v317
      %v319 = vpop.xlane.xlu0 %318
      %v320 = vsel %vm292, %v237, 0.0
      %321 = vadd.xlane.f32.xlu0 %v320
      %v322 = vpop.xlane.xlu0 %321
      %v323 = vsel %vm292, %v238, 0.0
      %324 = vadd.xlane.f32.xlu0 %v323
      %v325 = vpop.xlane.xlu0 %324
      %v326 = vsel %vm292, %v239, 0.0
      %327 = vadd.xlane.f32.xlu0 %v326
      %v328 = vpop.xlane.xlu0 %327
      %v329 = vsel %vm292, %v240, 0.0
      %330 = vadd.xlane.f32.xlu0 %v329
      %v331 = vpop.xlane.xlu0 %330
      %v332 = vsel %vm292, %v241, 0.0
      %333 = vadd.xlane.f32.xlu0 %v332
      %v334 = vpop.xlane.xlu0 %333
      %v335 = vsel %vm292, %v242, 0.0
      %336 = vadd.xlane.f32.xlu0 %v335
      %v337 = vpop.xlane.xlu0 %336
      %v338 = vsel %vm292, %v243, 0.0
      %339 = vadd.xlane.f32.xlu0 %v338
      %v340 = vpop.xlane.xlu0 %339
      %v341 = vsel %vm292, %v244, 0.0
      %342 = vadd.xlane.f32.xlu0 %v341
      %v343 = vpop.xlane.xlu0 %342
      %v344 = vsel %vm292, %v245, 0.0
      %345 = vadd.xlane.f32.xlu0 %v344
      %v346 = vpop.xlane.xlu0 %345
      %v347 = vsel %vm292, %v246, 0.0
      %348 = vadd.xlane.f32.xlu0 %v347
      %v349 = vpop.xlane.xlu0 %348
      %v350 = vsel %vm292, %v247, 0.0
      %351 = vadd.xlane.f32.xlu0 %v350
      %v352 = vpop.xlane.xlu0 %351
      %v353 = vsel %vm292, %v248, 0.0
      %354 = vadd.xlane.f32.xlu0 %v353
      %v355 = vpop.xlane.xlu0 %354
      %v356 = vsel %vm292, %v249, 0.0
      %357 = vadd.xlane.f32.xlu0 %v356
      %v358 = vpop.xlane.xlu0 %357
      %v359 = vsel %vm292, %v250, 0.0
      %360 = vadd.xlane.f32.xlu0 %v359
      %v361 = vpop.xlane.xlu0 %360
      %v362 = vsel %vm292, %v251, 0.0
      %363 = vadd.xlane.f32.xlu0 %v362
      %v364 = vpop.xlane.xlu0 %363
      %v365 = vsel %vm292, %v252, 0.0
      %366 = vadd.xlane.f32.xlu0 %v365
      %v367 = vpop.xlane.xlu0 %366
      %v368 = vsel %vm292, %v253, 0.0
      %369 = vadd.xlane.f32.xlu0 %v368
      %v370 = vpop.xlane.xlu0 %369
      %v371 = vsel %vm292, %v254, 0.0
      %372 = vadd.xlane.f32.xlu0 %v371
      %v373 = vpop.xlane.xlu0 %372
      %v374 = vsel %vm292, %v255, 0.0
      %375 = vadd.xlane.f32.xlu0 %v374
      %v376 = vpop.xlane.xlu0 %375
      %v377 = vsel %vm292, %v256, 0.0
      %378 = vadd.xlane.f32.xlu0 %v377
      %v379 = vpop.xlane.xlu0 %378
      %v380 = vsel %vm292, %v257, 0.0
      %381 = vadd.xlane.f32.xlu0 %v380
      %v382 = vpop.xlane.xlu0 %381
      %v383 = vsel %vm292, %v258, 0.0
      %384 = vadd.xlane.f32.xlu0 %v383
      %v385 = vpop.xlane.xlu0 %384
      %v386 = vsel %vm292, %v259, 0.0
      %387 = vadd.xlane.f32.xlu0 %v386
      %v388 = vpop.xlane.xlu0 %387
      %v389 = vsel %vm292, %v260, 0.0
      %390 = vadd.xlane.f32.xlu0 %v389
      %v391 = vpop.xlane.xlu0 %390
      %v392 = vsel %vm292, %v261, 0.0
      %393 = vadd.xlane.f32.xlu0 %v392
      %v394 = vpop.xlane.xlu0 %393
      %v395 = vsel %vm292, %v262, 0.0
      %396 = vadd.xlane.f32.xlu0 %v395
      %v397 = vpop.xlane.xlu0 %396
      %v398 = vsel %vm292, %v263, 0.0
      %399 = vadd.xlane.f32.xlu0 %v398
      %v400 = vpop.xlane.xlu0 %399
      %v401 = vsel %vm292, %v264, 0.0
      %402 = vadd.xlane.f32.xlu0 %v401
      %v403 = vpop.xlane.xlu0 %402
      %v404 = vsel %vm292, %v265, 0.0
      %405 = vadd.xlane.f32.xlu0 %v404
      %v406 = vpop.xlane.xlu0 %405
      %v407 = vsel %vm292, %v266, 0.0
      %408 = vadd.xlane.f32.xlu0 %v407
      %v409 = vpop.xlane.xlu0 %408
      %v410 = vsel %vm292, %v267, 0.0
      %411 = vadd.xlane.f32.xlu0 %v410
      %v412 = vpop.xlane.xlu0 %411
      %v413 = vsel %vm292, %v268, 0.0
      %414 = vadd.xlane.f32.xlu0 %v413
      %v415 = vpop.xlane.xlu0 %414
      %v416 = vsel %vm292, %v269, 0.0
      %417 = vadd.xlane.f32.xlu0 %v416
      %v418 = vpop.xlane.xlu0 %417
      %v419 = vsel %vm292, %v270, 0.0
      %420 = vadd.xlane.f32.xlu0 %v419
      %v421 = vpop.xlane.xlu0 %420
      %v422 = vsel %vm292, %v271, 0.0
      %423 = vadd.xlane.f32.xlu0 %v422
      %v424 = vpop.xlane.xlu0 %423
      %v425 = vsel %vm292, %v272, 0.0
      %426 = vadd.xlane.f32.xlu0 %v425
      %v427 = vpop.xlane.xlu0 %426
      %v428 = vsel %vm292, %v273, 0.0
      %429 = vadd.xlane.f32.xlu0 %v428
      %v430 = vpop.xlane.xlu0 %429
      %v431 = vsel %vm292, %v274, 0.0
      %432 = vadd.xlane.f32.xlu0 %v431
      %v433 = vpop.xlane.xlu0 %432
      %v434 = vsel %vm292, %v275, 0.0
      %435 = vadd.xlane.f32.xlu0 %v434
      %v436 = vpop.xlane.xlu0 %435
      %v437 = vsel %vm292, %v276, 0.0
      %438 = vadd.xlane.f32.xlu0 %v437
      %v439 = vpop.xlane.xlu0 %438
      %v440 = vsel %vm292, %v277, 0.0
      %441 = vadd.xlane.f32.xlu0 %v440
      %v442 = vpop.xlane.xlu0 %441
      %v443 = vsel %vm292, %v278, 0.0
      %444 = vadd.xlane.f32.xlu0 %v443
      %v445 = vpop.xlane.xlu0 %444
      %v446 = vsel %vm292, %v279, 0.0
      %447 = vadd.xlane.f32.xlu0 %v446
      %v448 = vpop.xlane.xlu0 %447
      %v449 = vsel %vm292, %v280, 0.0
      %450 = vadd.xlane.f32.xlu0 %v449
      %v451 = vpop.xlane.xlu0 %450
      %v452 = vsel %vm292, %v281, 0.0
      %453 = vadd.xlane.f32.xlu0 %v452
      %v454 = vpop.xlane.xlu0 %453
      %v455 = vsel %vm292, %v282, 0.0
      %456 = vadd.xlane.f32.xlu0 %v455
      %v457 = vpop.xlane.xlu0 %456
      %v458 = vsel %vm292, %v283, 0.0
      %459 = vadd.xlane.f32.xlu0 %v458
      %v460 = vpop.xlane.xlu0 %459
      %v461 = vsel %vm292, %v284, 0.0
      %462 = vadd.xlane.f32.xlu0 %v461
      %v463 = vpop.xlane.xlu0 %462
      %v464 = vsel %vm292, %v285, 0.0
      %465 = vadd.xlane.f32.xlu0 %v464
      %v466 = vpop.xlane.xlu0 %465
      %v467 = vsel %vm292, %v286, 0.0
      %468 = vadd.xlane.f32.xlu0 %v467
      %v469 = vpop.xlane.xlu0 %468
      %v470 = vsel %vm292, %v287, 0.0
      %471 = vadd.xlane.f32.xlu0 %v470
      %v472 = vpop.xlane.xlu0 %471
      %v473 = vsel %vm292, %v288, 0.0
      %474 = vadd.xlane.f32.xlu0 %v473
      %v475 = vpop.xlane.xlu0 %474
      %v476 = vsel %vm292, %v289, 0.0
      %477 = vadd.xlane.f32.xlu0 %v476
      %v478 = vpop.xlane.xlu0 %477
      %v479 = vsel %vm292, %v290, 0.0
      %480 = vadd.xlane.f32.xlu0 %v479
      %v481 = vpop.xlane.xlu0 %480
      %v482 = vsel %vm292, %v291, 0.0
      %483 = vadd.xlane.f32.xlu0 %v482
      %v484 = vpop.xlane.xlu0 %483
      %v485 = vrcp.pop 16.0
      %v486 = vmul.f32 %v295, %v485
      %v487 = vmul.f32 %v298, %v485
      %v488 = vmul.f32 %v301, %v485
      %v489 = vmul.f32 %v304, %v485
      %v490 = vmul.f32 %v307, %v485
      %v491 = vmul.f32 %v310, %v485
      %v492 = vmul.f32 %v313, %v485
      %v493 = vmul.f32 %v316, %v485
      %v494 = vmul.f32 %v319, %v485
      %v495 = vmul.f32 %v322, %v485
      %v496 = vmul.f32 %v325, %v485
      %v497 = vmul.f32 %v328, %v485
      %v498 = vmul.f32 %v331, %v485
      %v499 = vmul.f32 %v334, %v485
      %v500 = vmul.f32 %v337, %v485
      %v501 = vmul.f32 %v340, %v485
      %v502 = vmul.f32 %v343, %v485
      %v503 = vmul.f32 %v346, %v485
      %v504 = vmul.f32 %v349, %v485
      %v505 = vmul.f32 %v352, %v485
      %v506 = vmul.f32 %v355, %v485
      %v507 = vmul.f32 %v358, %v485
      %v508 = vmul.f32 %v361, %v485
      %v509 = vmul.f32 %v364, %v485
      %v510 = vmul.f32 %v367, %v485
      %v511 = vmul.f32 %v370, %v485
      %v512 = vmul.f32 %v373, %v485
      %v513 = vmul.f32 %v376, %v485
      %v514 = vmul.f32 %v379, %v485
      %v515 = vmul.f32 %v382, %v485
      %v516 = vmul.f32 %v385, %v485
      %v517 = vmul.f32 %v388, %v485
      %v518 = vmul.f32 %v391, %v485
      %v519 = vmul.f32 %v394, %v485
      %v520 = vmul.f32 %v397, %v485
      %v521 = vmul.f32 %v400, %v485
      %v522 = vmul.f32 %v403, %v485
      %v523 = vmul.f32 %v406, %v485
      %v524 = vmul.f32 %v409, %v485
      %v525 = vmul.f32 %v412, %v485
      %v526 = vmul.f32 %v415, %v485
      %v527 = vmul.f32 %v418, %v485
      %v528 = vmul.f32 %v421, %v485
      %v529 = vmul.f32 %v424, %v485
      %v530 = vmul.f32 %v427, %v485
      %v531 = vmul.f32 %v430, %v485
      %v532 = vmul.f32 %v433, %v485
      %v533 = vmul.f32 %v436, %v485
      %v534 = vmul.f32 %v439, %v485
      %v535 = vmul.f32 %v442, %v485
      %v536 = vmul.f32 %v445, %v485
      %v537 = vmul.f32 %v448, %v485
      %v538 = vmul.f32 %v451, %v485
      %v539 = vmul.f32 %v454, %v485
      %v540 = vmul.f32 %v457, %v485
      %v541 = vmul.f32 %v460, %v485
      %v542 = vmul.f32 %v463, %v485
      %v543 = vmul.f32 %v466, %v485
      %v544 = vmul.f32 %v469, %v485
      %v545 = vmul.f32 %v472, %v485
      %v546 = vmul.f32 %v475, %v485
      %v547 = vmul.f32 %v478, %v485
      %v548 = vmul.f32 %v481, %v485
      %v549 = vmul.f32 %v484, %v485
      %v550 = vsub.f32 %v228, %v486
      %v551 = vsub.f32 %v229, %v487
      %v552 = vsub.f32 %v230, %v488
      %v553 = vsub.f32 %v231, %v489
      %v554 = vsub.f32 %v232, %v490
      %v555 = vsub.f32 %v233, %v491
      %v556 = vsub.f32 %v234, %v492
      %v557 = vsub.f32 %v235, %v493
      %v558 = vsub.f32 %v236, %v494
      %v559 = vsub.f32 %v237, %v495
      %v560 = vsub.f32 %v238, %v496
      %v561 = vsub.f32 %v239, %v497
      %v562 = vsub.f32 %v240, %v498
      %v563 = vsub.f32 %v241, %v499
      %v564 = vsub.f32 %v242, %v500
      %v565 = vsub.f32 %v243, %v501
      %v566 = vsub.f32 %v244, %v502
      %v567 = vsub.f32 %v245, %v503
      %v568 = vsub.f32 %v246, %v504
      %v569 = vsub.f32 %v247, %v505
      %v570 = vsub.f32 %v248, %v506
      %v571 = vsub.f32 %v249, %v507
      %v572 = vsub.f32 %v250, %v508
      %v573 = vsub.f32 %v251, %v509
      %v574 = vsub.f32 %v252, %v510
      %v575 = vsub.f32 %v253, %v511
      %v576 = vsub.f32 %v254, %v512
      %v577 = vsub.f32 %v255, %v513
      %v578 = vsub.f32 %v256, %v514
      %v579 = vsub.f32 %v257, %v515
      %v580 = vsub.f32 %v258, %v516
      %v581 = vsub.f32 %v259, %v517
      %v582 = vsub.f32 %v260, %v518
      %v583 = vsub.f32 %v261, %v519
      %v584 = vsub.f32 %v262, %v520
      %v585 = vsub.f32 %v263, %v521
      %v586 = vsub.f32 %v264, %v522
      %v587 = vsub.f32 %v265, %v523
      %v588 = vsub.f32 %v266, %v524
      %v589 = vsub.f32 %v267, %v525
      %v590 = vsub.f32 %v268, %v526
      %v591 = vsub.f32 %v269, %v527
      %v592 = vsub.f32 %v270, %v528
      %v593 = vsub.f32 %v271, %v529
      %v594 = vsub.f32 %v272, %v530
      %v595 = vsub.f32 %v273, %v531
      %v596 = vsub.f32 %v274, %v532
      %v597 = vsub.f32 %v275, %v533
      %v598 = vsub.f32 %v276, %v534
      %v599 = vsub.f32 %v277, %v535
      %v600 = vsub.f32 %v278, %v536
      %v601 = vsub.f32 %v279, %v537
      %v602 = vsub.f32 %v280, %v538
      %v603 = vsub.f32 %v281, %v539
      %v604 = vsub.f32 %v282, %v540
      %v605 = vsub.f32 %v283, %v541
      %v606 = vsub.f32 %v284, %v542
      %v607 = vsub.f32 %v285, %v543
      %v608 = vsub.f32 %v286, %v544
      %v609 = vsub.f32 %v287, %v545
      %v610 = vsub.f32 %v288, %v546
      %v611 = vsub.f32 %v289, %v547
      %v612 = vsub.f32 %v290, %v548
      %v613 = vsub.f32 %v291, %v549
      %v614 = vmul.f32 %v550, %v550
      %v615 = vmul.f32 %v551, %v551
      %v616 = vmul.f32 %v552, %v552
      %v617 = vmul.f32 %v553, %v553
      %v618 = vmul.f32 %v554, %v554
      %v619 = vmul.f32 %v555, %v555
      %v620 = vmul.f32 %v556, %v556
      %v621 = vmul.f32 %v557, %v557
      %v622 = vmul.f32 %v558, %v558
      %v623 = vmul.f32 %v559, %v559
      %v624 = vmul.f32 %v560, %v560
      %v625 = vmul.f32 %v561, %v561
      %v626 = vmul.f32 %v562, %v562
      %v627 = vmul.f32 %v563, %v563
      %v628 = vmul.f32 %v564, %v564
      %v629 = vmul.f32 %v565, %v565
      %v630 = vmul.f32 %v566, %v566
      %v631 = vmul.f32 %v567, %v567
      %v632 = vmul.f32 %v568, %v568
      %v633 = vmul.f32 %v569, %v569
      %v634 = vmul.f32 %v570, %v570
      %v635 = vmul.f32 %v571, %v571
      %v636 = vmul.f32 %v572, %v572
      %v637 = vmul.f32 %v573, %v573
      %v638 = vmul.f32 %v574, %v574
      %v639 = vmul.f32 %v575, %v575
      %v640 = vmul.f32 %v576, %v576
      %v641 = vmul.f32 %v577, %v577
      %v642 = vmul.f32 %v578, %v578
      %v643 = vmul.f32 %v579, %v579
      %v644 = vmul.f32 %v580, %v580
      %v645 = vmul.f32 %v581, %v581
      %v646 = vmul.f32 %v582, %v582
      %v647 = vmul.f32 %v583, %v583
      %v648 = vmul.f32 %v584, %v584
      %v649 = vmul.f32 %v585, %v585
      %v650 = vmul.f32 %v586, %v586
      %v651 = vmul.f32 %v587, %v587
      %v652 = vmul.f32 %v588, %v588
      %v653 = vmul.f32 %v589, %v589
      %v654 = vmul.f32 %v590, %v590
      %v655 = vmul.f32 %v591, %v591
      %v656 = vmul.f32 %v592, %v592
      %v657 = vmul.f32 %v593, %v593
      %v658 = vmul.f32 %v594, %v594
      %v659 = vmul.f32 %v595, %v595
      %v660 = vmul.f32 %v596, %v596
      %v661 = vmul.f32 %v597, %v597
      %v662 = vmul.f32 %v598, %v598
      %v663 = vmul.f32 %v599, %v599
      %v664 = vmul.f32 %v600, %v600
      %v665 = vmul.f32 %v601, %v601
      %v666 = vmul.f32 %v602, %v602
      %v667 = vmul.f32 %v603, %v603
      %v668 = vmul.f32 %v604, %v604
      %v669 = vmul.f32 %v605, %v605
      %v670 = vmul.f32 %v606, %v606
      %v671 = vmul.f32 %v607, %v607
      %v672 = vmul.f32 %v608, %v608
      %v673 = vmul.f32 %v609, %v609
      %v674 = vmul.f32 %v610, %v610
      %v675 = vmul.f32 %v611, %v611
      %v676 = vmul.f32 %v612, %v612
      %v677 = vmul.f32 %v613, %v613
      %v678 = vsel %vm292, %v614, 0.0
      %679 = vadd.xlane.f32.xlu0 %v678
      %v680 = vpop.xlane.xlu0 %679
      %v681 = vsel %vm292, %v615, 0.0
      %682 = vadd.xlane.f32.xlu0 %v681
      %v683 = vpop.xlane.xlu0 %682
      %v684 = vsel %vm292, %v616, 0.0
      %685 = vadd.xlane.f32.xlu0 %v684
      %v686 = vpop.xlane.xlu0 %685
      %v687 = vsel %vm292, %v617, 0.0
      %688 = vadd.xlane.f32.xlu0 %v687
      %v689 = vpop.xlane.xlu0 %688
      %v690 = vsel %vm292, %v618, 0.0
      %691 = vadd.xlane.f32.xlu0 %v690
      %v692 = vpop.xlane.xlu0 %691
      %v693 = vsel %vm292, %v619, 0.0
      %694 = vadd.xlane.f32.xlu0 %v693
      %v695 = vpop.xlane.xlu0 %694
      %v696 = vsel %vm292, %v620, 0.0
      %697 = vadd.xlane.f32.xlu0 %v696
      %v698 = vpop.xlane.xlu0 %697
      %v699 = vsel %vm292, %v621, 0.0
      %700 = vadd.xlane.f32.xlu0 %v699
      %v701 = vpop.xlane.xlu0 %700
      %v702 = vsel %vm292, %v622, 0.0
      %703 = vadd.xlane.f32.xlu0 %v702
      %v704 = vpop.xlane.xlu0 %703
      %v705 = vsel %vm292, %v623, 0.0
      %706 = vadd.xlane.f32.xlu0 %v705
      %v707 = vpop.xlane.xlu0 %706
      %v708 = vsel %vm292, %v624, 0.0
      %709 = vadd.xlane.f32.xlu0 %v708
      %v710 = vpop.xlane.xlu0 %709
      %v711 = vsel %vm292, %v625, 0.0
      %712 = vadd.xlane.f32.xlu0 %v711
      %v713 = vpop.xlane.xlu0 %712
      %v714 = vsel %vm292, %v626, 0.0
      %715 = vadd.xlane.f32.xlu0 %v714
      %v716 = vpop.xlane.xlu0 %715
      %v717 = vsel %vm292, %v627, 0.0
      %718 = vadd.xlane.f32.xlu0 %v717
      %v719 = vpop.xlane.xlu0 %718
      %v720 = vsel %vm292, %v628, 0.0
      %721 = vadd.xlane.f32.xlu0 %v720
      %v722 = vpop.xlane.xlu0 %721
      %v723 = vsel %vm292, %v629, 0.0
      %724 = vadd.xlane.f32.xlu0 %v723
      %v725 = vpop.xlane.xlu0 %724
      %v726 = vsel %vm292, %v630, 0.0
      %727 = vadd.xlane.f32.xlu0 %v726
      %v728 = vpop.xlane.xlu0 %727
      %v729 = vsel %vm292, %v631, 0.0
      %730 = vadd.xlane.f32.xlu0 %v729
      %v731 = vpop.xlane.xlu0 %730
      %v732 = vsel %vm292, %v632, 0.0
      %733 = vadd.xlane.f32.xlu0 %v732
      %v734 = vpop.xlane.xlu0 %733
      %v735 = vsel %vm292, %v633, 0.0
      %736 = vadd.xlane.f32.xlu0 %v735
      %v737 = vpop.xlane.xlu0 %736
      %v738 = vsel %vm292, %v634, 0.0
      %739 = vadd.xlane.f32.xlu0 %v738
      %v740 = vpop.xlane.xlu0 %739
      %v741 = vsel %vm292, %v635, 0.0
      %742 = vadd.xlane.f32.xlu0 %v741
      %v743 = vpop.xlane.xlu0 %742
      %v744 = vsel %vm292, %v636, 0.0
      %745 = vadd.xlane.f32.xlu0 %v744
      %v746 = vpop.xlane.xlu0 %745
      %v747 = vsel %vm292, %v637, 0.0
      %748 = vadd.xlane.f32.xlu0 %v747
      %v749 = vpop.xlane.xlu0 %748
      %v750 = vsel %vm292, %v638, 0.0
      %751 = vadd.xlane.f32.xlu0 %v750
      %v752 = vpop.xlane.xlu0 %751
      %v753 = vsel %vm292, %v639, 0.0
      %754 = vadd.xlane.f32.xlu0 %v753
      %v755 = vpop.xlane.xlu0 %754
      %v756 = vsel %vm292, %v640, 0.0
      %757 = vadd.xlane.f32.xlu0 %v756
      %v758 = vpop.xlane.xlu0 %757
      %v759 = vsel %vm292, %v641, 0.0
      %760 = vadd.xlane.f32.xlu0 %v759
      %v761 = vpop.xlane.xlu0 %760
      %v762 = vsel %vm292, %v642, 0.0
      %763 = vadd.xlane.f32.xlu0 %v762
      %v764 = vpop.xlane.xlu0 %763
      %v765 = vsel %vm292, %v643, 0.0
      %766 = vadd.xlane.f32.xlu0 %v765
      %v767 = vpop.xlane.xlu0 %766
      %v768 = vsel %vm292, %v644, 0.0
      %769 = vadd.xlane.f32.xlu0 %v768
      %v770 = vpop.xlane.xlu0 %769
      %v771 = vsel %vm292, %v645, 0.0
      %772 = vadd.xlane.f32.xlu0 %v771
      %v773 = vpop.xlane.xlu0 %772
      %v774 = vsel %vm292, %v646, 0.0
      %775 = vadd.xlane.f32.xlu0 %v774
      %v776 = vpop.xlane.xlu0 %775
      %v777 = vsel %vm292, %v647, 0.0
      %778 = vadd.xlane.f32.xlu0 %v777
      %v779 = vpop.xlane.xlu0 %778
      %v780 = vsel %vm292, %v648, 0.0
      %781 = vadd.xlane.f32.xlu0 %v780
      %v782 = vpop.xlane.xlu0 %781
      %v783 = vsel %vm292, %v649, 0.0
      %784 = vadd.xlane.f32.xlu0 %v783
      %v785 = vpop.xlane.xlu0 %784
      %v786 = vsel %vm292, %v650, 0.0
      %787 = vadd.xlane.f32.xlu0 %v786
      %v788 = vpop.xlane.xlu0 %787
      %v789 = vsel %vm292, %v651, 0.0
      %790 = vadd.xlane.f32.xlu0 %v789
      %v791 = vpop.xlane.xlu0 %790
      %v792 = vsel %vm292, %v652, 0.0
      %793 = vadd.xlane.f32.xlu0 %v792
      %v794 = vpop.xlane.xlu0 %793
      %v795 = vsel %vm292, %v653, 0.0
      %796 = vadd.xlane.f32.xlu0 %v795
      %v797 = vpop.xlane.xlu0 %796
      %v798 = vsel %vm292, %v654, 0.0
      %799 = vadd.xlane.f32.xlu0 %v798
      %v800 = vpop.xlane.xlu0 %799
      %v801 = vsel %vm292, %v655, 0.0
      %802 = vadd.xlane.f32.xlu0 %v801
      %v803 = vpop.xlane.xlu0 %802
      %v804 = vsel %vm292, %v656, 0.0
      %805 = vadd.xlane.f32.xlu0 %v804
      %v806 = vpop.xlane.xlu0 %805
      %v807 = vsel %vm292, %v657, 0.0
      %808 = vadd.xlane.f32.xlu0 %v807
      %v809 = vpop.xlane.xlu0 %808
      %v810 = vsel %vm292, %v658, 0.0
      %811 = vadd.xlane.f32.xlu0 %v810
      %v812 = vpop.xlane.xlu0 %811
      %v813 = vsel %vm292, %v659, 0.0
      %814 = vadd.xlane.f32.xlu0 %v813
      %v815 = vpop.xlane.xlu0 %814
      %v816 = vsel %vm292, %v660, 0.0
      %817 = vadd.xlane.f32.xlu0 %v816
      %v818 = vpop.xlane.xlu0 %817
      %v819 = vsel %vm292, %v661, 0.0
      %820 = vadd.xlane.f32.xlu0 %v819
      %v821 = vpop.xlane.xlu0 %820
      %v822 = vsel %vm292, %v662, 0.0
      %823 = vadd.xlane.f32.xlu0 %v822
      %v824 = vpop.xlane.xlu0 %823
      %v825 = vsel %vm292, %v663, 0.0
      %826 = vadd.xlane.f32.xlu0 %v825
      %v827 = vpop.xlane.xlu0 %826
      %v828 = vsel %vm292, %v664, 0.0
      %829 = vadd.xlane.f32.xlu0 %v828
      %v830 = vpop.xlane.xlu0 %829
      %v831 = vsel %vm292, %v665, 0.0
      %832 = vadd.xlane.f32.xlu0 %v831
      %v833 = vpop.xlane.xlu0 %832
      %v834 = vsel %vm292, %v666, 0.0
      %835 = vadd.xlane.f32.xlu0 %v834
      %v836 = vpop.xlane.xlu0 %835
      %v837 = vsel %vm292, %v667, 0.0
      %838 = vadd.xlane.f32.xlu0 %v837
      %v839 = vpop.xlane.xlu0 %838
      %v840 = vsel %vm292, %v668, 0.0
      %841 = vadd.xlane.f32.xlu0 %v840
      %v842 = vpop.xlane.xlu0 %841
      %v843 = vsel %vm292, %v669, 0.0
      %844 = vadd.xlane.f32.xlu0 %v843
      %v845 = vpop.xlane.xlu0 %844
      %v846 = vsel %vm292, %v670, 0.0
      %847 = vadd.xlane.f32.xlu0 %v846
      %v848 = vpop.xlane.xlu0 %847
      %v849 = vsel %vm292, %v671, 0.0
      %850 = vadd.xlane.f32.xlu0 %v849
      %v851 = vpop.xlane.xlu0 %850
      %v852 = vsel %vm292, %v672, 0.0
      %853 = vadd.xlane.f32.xlu0 %v852
      %v854 = vpop.xlane.xlu0 %853
      %v855 = vsel %vm292, %v673, 0.0
      %856 = vadd.xlane.f32.xlu0 %v855
      %v857 = vpop.xlane.xlu0 %856
      %v858 = vsel %vm292, %v674, 0.0
      %859 = vadd.xlane.f32.xlu0 %v858
      %v860 = vpop.xlane.xlu0 %859
      %v861 = vsel %vm292, %v675, 0.0
      %862 = vadd.xlane.f32.xlu0 %v861
      %v863 = vpop.xlane.xlu0 %862
      %v864 = vsel %vm292, %v676, 0.0
      %865 = vadd.xlane.f32.xlu0 %v864
      %v866 = vpop.xlane.xlu0 %865
      %v867 = vsel %vm292, %v677, 0.0
      %868 = vadd.xlane.f32.xlu0 %v867
      %v869 = vpop.xlane.xlu0 %868
      %v870 = vmul.f32 %v680, %v485
      %v871 = vmul.f32 %v683, %v485
      %v872 = vmul.f32 %v686, %v485
      %v873 = vmul.f32 %v689, %v485
      %v874 = vmul.f32 %v692, %v485
      %v875 = vmul.f32 %v695, %v485
      %v876 = vmul.f32 %v698, %v485
      %v877 = vmul.f32 %v701, %v485
      %v878 = vmul.f32 %v704, %v485
      %v879 = vmul.f32 %v707, %v485
      %v880 = vmul.f32 %v710, %v485
      %v881 = vmul.f32 %v713, %v485
      %v882 = vmul.f32 %v716, %v485
      %v883 = vmul.f32 %v719, %v485
      %v884 = vmul.f32 %v722, %v485
      %v885 = vmul.f32 %v725, %v485
      %v886 = vmul.f32 %v728, %v485
      %v887 = vmul.f32 %v731, %v485
      %v888 = vmul.f32 %v734, %v485
      %v889 = vmul.f32 %v737, %v485
      %v890 = vmul.f32 %v740, %v485
      %v891 = vmul.f32 %v743, %v485
      %v892 = vmul.f32 %v746, %v485
      %v893 = vmul.f32 %v749, %v485
      %v894 = vmul.f32 %v752, %v485
      %v895 = vmul.f32 %v755, %v485
      %v896 = vmul.f32 %v758, %v485
      %v897 = vmul.f32 %v761, %v485
      %v898 = vmul.f32 %v764, %v485
      %v899 = vmul.f32 %v767, %v485
      %v900 = vmul.f32 %v770, %v485
      %v901 = vmul.f32 %v773, %v485
      %v902 = vmul.f32 %v776, %v485
      %v903 = vmul.f32 %v779, %v485
      %v904 = vmul.f32 %v782, %v485
      %v905 = vmul.f32 %v785, %v485
      %v906 = vmul.f32 %v788, %v485
      %v907 = vmul.f32 %v791, %v485
      %v908 = vmul.f32 %v794, %v485
      %v909 = vmul.f32 %v797, %v485
      %v910 = vmul.f32 %v800, %v485
      %v911 = vmul.f32 %v803, %v485
      %v912 = vmul.f32 %v806, %v485
      %v913 = vmul.f32 %v809, %v485
      %v914 = vmul.f32 %v812, %v485
      %v915 = vmul.f32 %v815, %v485
      %v916 = vmul.f32 %v818, %v485
      %v917 = vmul.f32 %v821, %v485
      %v918 = vmul.f32 %v824, %v485
      %v919 = vmul.f32 %v827, %v485
      %v920 = vmul.f32 %v830, %v485
      %v921 = vmul.f32 %v833, %v485
      %v922 = vmul.f32 %v836, %v485
      %v923 = vmul.f32 %v839, %v485
      %v924 = vmul.f32 %v842, %v485
      %v925 = vmul.f32 %v845, %v485
      %v926 = vmul.f32 %v848, %v485
      %v927 = vmul.f32 %v851, %v485
      %v928 = vmul.f32 %v854, %v485
      %v929 = vmul.f32 %v857, %v485
      %v930 = vmul.f32 %v860, %v485
      %v931 = vmul.f32 %v863, %v485
      %v932 = vmul.f32 %v866, %v485
      %v933 = vmul.f32 %v869, %v485
      %v934 = vadd.f32 %v870, 1e-05
      %v935 = vadd.f32 %v871, 1e-05
      %v936 = vadd.f32 %v872, 1e-05
      %v937 = vadd.f32 %v873, 1e-05
      %v938 = vadd.f32 %v874, 1e-05
      %v939 = vadd.f32 %v875, 1e-05
      %v940 = vadd.f32 %v876, 1e-05
      %v941 = vadd.f32 %v877, 1e-05
      %v942 = vadd.f32 %v878, 1e-05
      %v943 = vadd.f32 %v879, 1e-05
      %v944 = vadd.f32 %v880, 1e-05
      %v945 = vadd.f32 %v881, 1e-05
      %v946 = vadd.f32 %v882, 1e-05
      %v947 = vadd.f32 %v883, 1e-05
      %v948 = vadd.f32 %v884, 1e-05
      %v949 = vadd.f32 %v885, 1e-05
      %v950 = vadd.f32 %v886, 1e-05
      %v951 = vadd.f32 %v887, 1e-05
      %v952 = vadd.f32 %v888, 1e-05
      %v953 = vadd.f32 %v889, 1e-05
      %v954 = vadd.f32 %v890, 1e-05
      %v955 = vadd.f32 %v891, 1e-05
      %v956 = vadd.f32 %v892, 1e-05
      %v957 = vadd.f32 %v893, 1e-05
      %v958 = vadd.f32 %v894, 1e-05
      %v959 = vadd.f32 %v895, 1e-05
      %v960 = vadd.f32 %v896, 1e-05
      %v961 = vadd.f32 %v897, 1e-05
      %v962 = vadd.f32 %v898, 1e-05
      %v963 = vadd.f32 %v899, 1e-05
      %v964 = vadd.f32 %v900, 1e-05
      %v965 = vadd.f32 %v901, 1e-05
      %v966 = vadd.f32 %v902, 1e-05
      %v967 = vadd.f32 %v903, 1e-05
      %v968 = vadd.f32 %v904, 1e-05
      %v969 = vadd.f32 %v905, 1e-05
      %v970 = vadd.f32 %v906, 1e-05
      %v971 = vadd.f32 %v907, 1e-05
      %v972 = vadd.f32 %v908, 1e-05
      %v973 = vadd.f32 %v909, 1e-05
      %v974 = vadd.f32 %v910, 1e-05
      %v975 = vadd.f32 %v911, 1e-05
      %v976 = vadd.f32 %v912, 1e-05
      %v977 = vadd.f32 %v913, 1e-05
      %v978 = vadd.f32 %v914, 1e-05
      %v979 = vadd.f32 %v915, 1e-05
      %v980 = vadd.f32 %v916, 1e-05
      %v981 = vadd.f32 %v917, 1e-05
      %v982 = vadd.f32 %v918, 1e-05
      %v983 = vadd.f32 %v919, 1e-05
      %v984 = vadd.f32 %v920, 1e-05
      %v985 = vadd.f32 %v921, 1e-05
      %v986 = vadd.f32 %v922, 1e-05
      %v987 = vadd.f32 %v923, 1e-05
      %v988 = vadd.f32 %v924, 1e-05
      %v989 = vadd.f32 %v925, 1e-05
      %v990 = vadd.f32 %v926, 1e-05
      %v991 = vadd.f32 %v927, 1e-05
      %v992 = vadd.f32 %v928, 1e-05
      %v993 = vadd.f32 %v929, 1e-05
      %v994 = vadd.f32 %v930, 1e-05
      %v995 = vadd.f32 %v931, 1e-05
      %v996 = vadd.f32 %v932, 1e-05
      %v997 = vadd.f32 %v933, 1e-05
      %v998 = vrsqrt.pop %v934
      %v999 = vrsqrt.pop %v935
      %v1000 = vrsqrt.pop %v936
      %v1001 = vrsqrt.pop %v937
      %v1002 = vrsqrt.pop %v938
      %v1003 = vrsqrt.pop %v939
      %v1004 = vrsqrt.pop %v940
      %v1005 = vrsqrt.pop %v941
      %v1006 = vrsqrt.pop %v942
      %v1007 = vrsqrt.pop %v943
      %v1008 = vrsqrt.pop %v944
      %v1009 = vrsqrt.pop %v945
      %v1010 = vrsqrt.pop %v946
      %v1011 = vrsqrt.pop %v947
      %v1012 = vrsqrt.pop %v948
      %v1013 = vrsqrt.pop %v949
      %v1014 = vrsqrt.pop %v950
      %v1015 = vrsqrt.pop %v951
      %v1016 = vrsqrt.pop %v952
      %v1017 = vrsqrt.pop %v953
      %v1018 = vrsqrt.pop %v954
      %v1019 = vrsqrt.pop %v955
      %v1020 = vrsqrt.pop %v956
      %v1021 = vrsqrt.pop %v957
      %v1022 = vrsqrt.pop %v958
      %v1023 = vrsqrt.pop %v959
      %v1024 = vrsqrt.pop %v960
      %v1025 = vrsqrt.pop %v961
      %v1026 = vrsqrt.pop %v962
      %v1027 = vrsqrt.pop %v963
      %v1028 = vrsqrt.pop %v964
      %v1029 = vrsqrt.pop %v965
      %v1030 = vrsqrt.pop %v966
      %v1031 = vrsqrt.pop %v967
      %v1032 = vrsqrt.pop %v968
      %v1033 = vrsqrt.pop %v969
      %v1034 = vrsqrt.pop %v970
      %v1035 = vrsqrt.pop %v971
      %v1036 = vrsqrt.pop %v972
      %v1037 = vrsqrt.pop %v973
      %v1038 = vrsqrt.pop %v974
      %v1039 = vrsqrt.pop %v975
      %v1040 = vrsqrt.pop %v976
      %v1041 = vrsqrt.pop %v977
      %v1042 = vrsqrt.pop %v978
      %v1043 = vrsqrt.pop %v979
      %v1044 = vrsqrt.pop %v980
      %v1045 = vrsqrt.pop %v981
      %v1046 = vrsqrt.pop %v982
      %v1047 = vrsqrt.pop %v983
      %v1048 = vrsqrt.pop %v984
      %v1049 = vrsqrt.pop %v985
      %v1050 = vrsqrt.pop %v986
      %v1051 = vrsqrt.pop %v987
      %v1052 = vrsqrt.pop %v988
      %v1053 = vrsqrt.pop %v989
      %v1054 = vrsqrt.pop %v990
      %v1055 = vrsqrt.pop %v991
      %v1056 = vrsqrt.pop %v992
      %v1057 = vrsqrt.pop %v993
      %v1058 = vrsqrt.pop %v994
      %v1059 = vrsqrt.pop %v995
      %v1060 = vrsqrt.pop %v996
      %v1061 = vrsqrt.pop %v997
      %v1062 = vmul.f32 %v550, %v998
      %v1063 = vmul.f32 %v551, %v999
      %v1064 = vmul.f32 %v552, %v1000
      %v1065 = vmul.f32 %v553, %v1001
      %v1066 = vmul.f32 %v554, %v1002
      %v1067 = vmul.f32 %v555, %v1003
      %v1068 = vmul.f32 %v556, %v1004
      %v1069 = vmul.f32 %v557, %v1005
      %v1070 = vmul.f32 %v558, %v1006
      %v1071 = vmul.f32 %v559, %v1007
      %v1072 = vmul.f32 %v560, %v1008
      %v1073 = vmul.f32 %v561, %v1009
      %v1074 = vmul.f32 %v562, %v1010
      %v1075 = vmul.f32 %v563, %v1011
      %v1076 = vmul.f32 %v564, %v1012
      %v1077 = vmul.f32 %v565, %v1013
      %v1078 = vmul.f32 %v566, %v1014
      %v1079 = vmul.f32 %v567, %v1015
      %v1080 = vmul.f32 %v568, %v1016
      %v1081 = vmul.f32 %v569, %v1017
      %v1082 = vmul.f32 %v570, %v1018
      %v1083 = vmul.f32 %v571, %v1019
      %v1084 = vmul.f32 %v572, %v1020
      %v1085 = vmul.f32 %v573, %v1021
      %v1086 = vmul.f32 %v574, %v1022
      %v1087 = vmul.f32 %v575, %v1023
      %v1088 = vmul.f32 %v576, %v1024
      %v1089 = vmul.f32 %v577, %v1025
      %v1090 = vmul.f32 %v578, %v1026
      %v1091 = vmul.f32 %v579, %v1027
      %v1092 = vmul.f32 %v580, %v1028
      %v1093 = vmul.f32 %v581, %v1029
      %v1094 = vmul.f32 %v582, %v1030
      %v1095 = vmul.f32 %v583, %v1031
      %v1096 = vmul.f32 %v584, %v1032
      %v1097 = vmul.f32 %v585, %v1033
      %v1098 = vmul.f32 %v586, %v1034
      %v1099 = vmul.f32 %v587, %v1035
      %v1100 = vmul.f32 %v588, %v1036
      %v1101 = vmul.f32 %v589, %v1037
      %v1102 = vmul.f32 %v590, %v1038
      %v1103 = vmul.f32 %v591, %v1039
      %v1104 = vmul.f32 %v592, %v1040
      %v1105 = vmul.f32 %v593, %v1041
      %v1106 = vmul.f32 %v594, %v1042
      %v1107 = vmul.f32 %v595, %v1043
      %v1108 = vmul.f32 %v596, %v1044
      %v1109 = vmul.f32 %v597, %v1045
      %v1110 = vmul.f32 %v598, %v1046
      %v1111 = vmul.f32 %v599, %v1047
      %v1112 = vmul.f32 %v600, %v1048
      %v1113 = vmul.f32 %v601, %v1049
      %v1114 = vmul.f32 %v602, %v1050
      %v1115 = vmul.f32 %v603, %v1051
      %v1116 = vmul.f32 %v604, %v1052
      %v1117 = vmul.f32 %v605, %v1053
      %v1118 = vmul.f32 %v606, %v1054
      %v1119 = vmul.f32 %v607, %v1055
      %v1120 = vmul.f32 %v608, %v1056
      %v1121 = vmul.f32 %v609, %v1057
      %v1122 = vmul.f32 %v610, %v1058
      %v1123 = vmul.f32 %v611, %v1059
      %v1124 = vmul.f32 %v612, %v1060
      %v1125 = vmul.f32 %v613, %v1061
      %v1126 = vld [vmem:[%s1] sm:$0x1]
      %v1128 = vlaneseq
      %v1129 = vshrl.u32 %v1128, 7
      %v1130 = vsub.s32 0, %v1129
      %v1131 = vrot.slane %v1126, %v1130
      %v1133 = vmul.f32 %v1062, %v1131
      %v1134 = vmul.f32 %v1063, %v1131
      %v1135 = vmul.f32 %v1064, %v1131
      %v1136 = vmul.f32 %v1065, %v1131
      %v1137 = vmul.f32 %v1066, %v1131
      %v1138 = vmul.f32 %v1067, %v1131
      %v1139 = vmul.f32 %v1068, %v1131
      %v1140 = vmul.f32 %v1069, %v1131
      %v1141 = vmul.f32 %v1070, %v1131
      %v1142 = vmul.f32 %v1071, %v1131
      %v1143 = vmul.f32 %v1072, %v1131
      %v1144 = vmul.f32 %v1073, %v1131
      %v1145 = vmul.f32 %v1074, %v1131
      %v1146 = vmul.f32 %v1075, %v1131
      %v1147 = vmul.f32 %v1076, %v1131
      %v1148 = vmul.f32 %v1077, %v1131
      %v1149 = vmul.f32 %v1078, %v1131
      %v1150 = vmul.f32 %v1079, %v1131
      %v1151 = vmul.f32 %v1080, %v1131
      %v1152 = vmul.f32 %v1081, %v1131
      %v1153 = vmul.f32 %v1082, %v1131
      %v1154 = vmul.f32 %v1083, %v1131
      %v1155 = vmul.f32 %v1084, %v1131
      %v1156 = vmul.f32 %v1085, %v1131
      %v1157 = vmul.f32 %v1086, %v1131
      %v1158 = vmul.f32 %v1087, %v1131
      %v1159 = vmul.f32 %v1088, %v1131
      %v1160 = vmul.f32 %v1089, %v1131
      %v1161 = vmul.f32 %v1090, %v1131
      %v1162 = vmul.f32 %v1091, %v1131
      %v1163 = vmul.f32 %v1092, %v1131
      %v1164 = vmul.f32 %v1093, %v1131
      %v1165 = vmul.f32 %v1094, %v1131
      %v1166 = vmul.f32 %v1095, %v1131
      %v1167 = vmul.f32 %v1096, %v1131
      %v1168 = vmul.f32 %v1097, %v1131
      %v1169 = vmul.f32 %v1098, %v1131
      %v1170 = vmul.f32 %v1099, %v1131
      %v1171 = vmul.f32 %v1100, %v1131
      %v1172 = vmul.f32 %v1101, %v1131
      %v1173 = vmul.f32 %v1102, %v1131
      %v1174 = vmul.f32 %v1103, %v1131
      %v1175 = vmul.f32 %v1104, %v1131
      %v1176 = vmul.f32 %v1105, %v1131
      %v1177 = vmul.f32 %v1106, %v1131
      %v1178 = vmul.f32 %v1107, %v1131
      %v1179 = vmul.f32 %v1108, %v1131
      %v1180 = vmul.f32 %v1109, %v1131
      %v1181 = vmul.f32 %v1110, %v1131
      %v1182 = vmul.f32 %v1111, %v1131
      %v1183 = vmul.f32 %v1112, %v1131
      %v1184 = vmul.f32 %v1113, %v1131
      %v1185 = vmul.f32 %v1114, %v1131
      %v1186 = vmul.f32 %v1115, %v1131
      %v1187 = vmul.f32 %v1116, %v1131
      %v1188 = vmul.f32 %v1117, %v1131
      %v1189 = vmul.f32 %v1118, %v1131
      %v1190 = vmul.f32 %v1119, %v1131
      %v1191 = vmul.f32 %v1120, %v1131
      %v1192 = vmul.f32 %v1121, %v1131
      %v1193 = vmul.f32 %v1122, %v1131
      %v1194 = vmul.f32 %v1123, %v1131
      %v1195 = vmul.f32 %v1124, %v1131
      %v1196 = vmul.f32 %v1125, %v1131
      %v1197 = vld [vmem:[%s2] sm:$0x1]
      %v1199 = vlaneseq
      %v1200 = vshrl.u32 %v1199, 7
      %v1201 = vsub.s32 0, %v1200
      %v1202 = vrot.slane %v1197, %v1201
      %v1204 = vadd.f32 %v1133, %v1202
      %v1205 = vadd.f32 %v1134, %v1202
      %v1206 = vadd.f32 %v1135, %v1202
      %v1207 = vadd.f32 %v1136, %v1202
      %v1208 = vadd.f32 %v1137, %v1202
      %v1209 = vadd.f32 %v1138, %v1202
      %v1210 = vadd.f32 %v1139, %v1202
      %v1211 = vadd.f32 %v1140, %v1202
      %v1212 = vadd.f32 %v1141, %v1202
      %v1213 = vadd.f32 %v1142, %v1202
      %v1214 = vadd.f32 %v1143, %v1202
      %v1215 = vadd.f32 %v1144, %v1202
      %v1216 = vadd.f32 %v1145, %v1202
      %v1217 = vadd.f32 %v1146, %v1202
      %v1218 = vadd.f32 %v1147, %v1202
      %v1219 = vadd.f32 %v1148, %v1202
      %v1220 = vadd.f32 %v1149, %v1202
      %v1221 = vadd.f32 %v1150, %v1202
      %v1222 = vadd.f32 %v1151, %v1202
      %v1223 = vadd.f32 %v1152, %v1202
      %v1224 = vadd.f32 %v1153, %v1202
      %v1225 = vadd.f32 %v1154, %v1202
      %v1226 = vadd.f32 %v1155, %v1202
      %v1227 = vadd.f32 %v1156, %v1202
      %v1228 = vadd.f32 %v1157, %v1202
      %v1229 = vadd.f32 %v1158, %v1202
      %v1230 = vadd.f32 %v1159, %v1202
      %v1231 = vadd.f32 %v1160, %v1202
      %v1232 = vadd.f32 %v1161, %v1202
      %v1233 = vadd.f32 %v1162, %v1202
      %v1234 = vadd.f32 %v1163, %v1202
      %v1235 = vadd.f32 %v1164, %v1202
      %v1236 = vadd.f32 %v1165, %v1202
      %v1237 = vadd.f32 %v1166, %v1202
      %v1238 = vadd.f32 %v1167, %v1202
      %v1239 = vadd.f32 %v1168, %v1202
      %v1240 = vadd.f32 %v1169, %v1202
      %v1241 = vadd.f32 %v1170, %v1202
      %v1242 = vadd.f32 %v1171, %v1202
      %v1243 = vadd.f32 %v1172, %v1202
      %v1244 = vadd.f32 %v1173, %v1202
      %v1245 = vadd.f32 %v1174, %v1202
      %v1246 = vadd.f32 %v1175, %v1202
      %v1247 = vadd.f32 %v1176, %v1202
      %v1248 = vadd.f32 %v1177, %v1202
      %v1249 = vadd.f32 %v1178, %v1202
      %v1250 = vadd.f32 %v1179, %v1202
      %v1251 = vadd.f32 %v1180, %v1202
      %v1252 = vadd.f32 %v1181, %v1202
      %v1253 = vadd.f32 %v1182, %v1202
      %v1254 = vadd.f32 %v1183, %v1202
      %v1255 = vadd.f32 %v1184, %v1202
      %v1256 = vadd.f32 %v1185, %v1202
      %v1257 = vadd.f32 %v1186, %v1202
      %v1258 = vadd.f32 %v1187, %v1202
      %v1259 = vadd.f32 %v1188, %v1202
      %v1260 = vadd.f32 %v1189, %v1202
      %v1261 = vadd.f32 %v1190, %v1202
      %v1262 = vadd.f32 %v1191, %v1202
      %v1263 = vadd.f32 %v1192, %v1202
      %v1264 = vadd.f32 %v1193, %v1202
      %v1265 = vadd.f32 %v1194, %v1202
      %v1266 = vadd.f32 %v1195, %v1202
      %v1267 = vadd.f32 %v1196, %v1202
      %v1268 = vld [vmem:[%s3] sm:$0xff]
      %v1269 = vld [vmem:[%s3 + $0x8] sm:$0xff]
      %v1270 = vld [vmem:[%s4] sm:$0x1]
      %v1272 = vlaneseq
      %v1273 = vshrl.u32 %v1272, 7
      %v1274 = vsub.s32 0, %v1273
      %v1275 = vrot.slane %v1270, %v1274
      %v1278 = vsel %vm292, %v1204, 0
      %v1281 = vsel %vm292, %v1205, 0
      %v1284 = vsel %vm292, %v1206, 0
      %v1287 = vsel %vm292, %v1207, 0
      %v1290 = vsel %vm292, %v1208, 0
      %v1293 = vsel %vm292, %v1209, 0
      %v1296 = vsel %vm292, %v1210, 0
      %v1299 = vsel %vm292, %v1211, 0
      %v1302 = vsel %vm292, %v1212, 0
      %v1305 = vsel %vm292, %v1213, 0
      %v1308 = vsel %vm292, %v1214, 0
      %v1311 = vsel %vm292, %v1215, 0
      %v1314 = vsel %vm292, %v1216, 0
      %v1317 = vsel %vm292, %v1217, 0
      %v1320 = vsel %vm292, %v1218, 0
      %v1323 = vsel %vm292, %v1219, 0
      %v1326 = vsel %vm292, %v1220, 0
      %v1329 = vsel %vm292, %v1221, 0
      %v1332 = vsel %vm292, %v1222, 0
      %v1335 = vsel %vm292, %v1223, 0
      %v1338 = vsel %vm292, %v1224, 0
      %v1341 = vsel %vm292, %v1225, 0
      %v1344 = vsel %vm292, %v1226, 0
      %v1347 = vsel %vm292, %v1227, 0
      %v1350 = vsel %vm292, %v1228, 0
      %v1353 = vsel %vm292, %v1229, 0
      %v1356 = vsel %vm292, %v1230, 0
      %v1359 = vsel %vm292, %v1231, 0
      %v1362 = vsel %vm292, %v1232, 0
      %v1365 = vsel %vm292, %v1233, 0
      %v1368 = vsel %vm292, %v1234, 0
      %v1371 = vsel %vm292, %v1235, 0
      %v1374 = vsel %vm292, %v1236, 0
      %v1377 = vsel %vm292, %v1237, 0
      %v1380 = vsel %vm292, %v1238, 0
      %v1383 = vsel %vm292, %v1239, 0
      %v1386 = vsel %vm292, %v1240, 0
      %v1389 = vsel %vm292, %v1241, 0
      %v1392 = vsel %vm292, %v1242, 0
      %v1395 = vsel %vm292, %v1243, 0
      %v1398 = vsel %vm292, %v1244, 0
      %v1401 = vsel %vm292, %v1245, 0
      %v1404 = vsel %vm292, %v1246, 0
      %v1407 = vsel %vm292, %v1247, 0
      %v1410 = vsel %vm292, %v1248, 0
      %v1413 = vsel %vm292, %v1249, 0
      %v1416 = vsel %vm292, %v1250, 0
      %v1419 = vsel %vm292, %v1251, 0
      %v1422 = vsel %vm292, %v1252, 0
      %v1425 = vsel %vm292, %v1253, 0
      %v1428 = vsel %vm292, %v1254, 0
      %v1431 = vsel %vm292, %v1255, 0
      %v1434 = vsel %vm292, %v1256, 0
      %v1437 = vsel %vm292, %v1257, 0
      %v1440 = vsel %vm292, %v1258, 0
      %v1443 = vsel %vm292, %v1259, 0
      %v1446 = vsel %vm292, %v1260, 0
      %v1449 = vsel %vm292, %v1261, 0
      %v1452 = vsel %vm292, %v1262, 0
      %v1455 = vsel %vm292, %v1263, 0
      %v1458 = vsel %vm292, %v1264, 0
      %v1461 = vsel %vm292, %v1265, 0
      %v1464 = vsel %vm292, %v1266, 0
      %v1467 = vsel %vm292, %v1267, 0
      %1469 = vmatprep.subr.mxu0 0.0
      %1470 = vmatpush1.msra.mxu0 %v1268
      %1471 = vmatprep.subr.mxu0 0.0
      %1472 = vmatpush1.msra.mxu0 %v1269
      %1473 = vmatprep.subr.mxu0 0.0
      %1474 = vmatpush1.msra.mxu0 0.0
      %1475 = vmatprep.subr.mxu0 0.0
      %1476 = vmatpush1.msra.mxu0 0.0
      %1477 = vmatprep.subr.mxu0 0.0
      %1478 = vmatpush1.msra.mxu0 0.0
      %1479 = vmatprep.subr.mxu0 0.0
      %1480 = vmatpush1.msra.mxu0 0.0
      %1481 = vmatprep.subr.mxu0 0.0
      %1482 = vmatpush1.msra.mxu0 0.0
      %1483 = vmatprep.subr.mxu0 0.0
      %1484 = vmatpush1.msra.mxu0 0.0
      %1485 = vmatprep.subr.mxu0 0.0
      %1486 = vmatpush1.msra.mxu0 0.0
      %1487 = vmatprep.subr.mxu0 0.0
      %1488 = vmatpush1.msra.mxu0 0.0
      %1489 = vmatprep.subr.mxu0 0.0
      %1490 = vmatpush1.msra.mxu0 0.0
      %1491 = vmatprep.subr.mxu0 0.0
      %1492 = vmatpush1.msra.mxu0 0.0
      %1493 = vmatprep.subr.mxu0 0.0
      %1494 = vmatpush1.msra.mxu0 0.0
      %1495 = vmatprep.subr.mxu0 0.0
      %1496 = vmatpush1.msra.mxu0 0.0
      %1497 = vmatprep.subr.mxu0 0.0
      %1498 = vmatpush1.msra.mxu0 0.0
      %1499 = vmatprep.subr.mxu0 0.0
      %1500 = vmatpush1.msra.mxu0 0.0
      %1501 = vmatprep.subr.mxu0 0.0
      %1502 = vmatpush1.msra.mxu0 0.0
      %1503 = vmatprep.subr.mxu0 0.0
      %1504 = vmatpush1.msra.mxu0 0.0
      %1505 = vmatprep.subr.mxu0 0.0
      %1506 = vmatpush1.msra.mxu0 0.0
      %1507 = vmatprep.subr.mxu0 0.0
      %1508 = vmatpush1.msra.mxu0 0.0
      %1509 = vmatprep.subr.mxu0 0.0
      %1510 = vmatpush1.msra.mxu0 0.0
      %1511 = vmatprep.subr.mxu0 0.0
      %1512 = vmatpush1.msra.mxu0 0.0
      %1513 = vmatprep.subr.mxu0 0.0
      %1514 = vmatpush1.msra.mxu0 0.0
      %1515 = vmatprep.subr.mxu0 0.0
      %1516 = vmatpush1.msra.mxu0 0.0
      %1517 = vmatprep.subr.mxu0 0.0
      %1518 = vmatpush1.msra.mxu0 0.0
      %1519 = vmatprep.subr.mxu0 0.0
      %1520 = vmatpush1.msra.mxu0 0.0
      %1521 = vmatprep.subr.mxu0 0.0
      %1522 = vmatpush1.msra.mxu0 0.0
      %1523 = vmatprep.subr.mxu0 0.0
      %1524 = vmatpush1.msra.mxu0 0.0
      %1525 = vmatprep.subr.mxu0 0.0
      %1526 = vmatpush1.msra.mxu0 0.0
      %1527 = vmatprep.subr.mxu0 0.0
      %1528 = vmatpush1.msra.mxu0 0.0
      %1529 = vmatprep.subr.mxu0 0.0
      %1530 = vmatpush1.msra.mxu0 0.0
      %1531 = vmatprep.subr.mxu0 0.0
      %1532 = vmatpush1.msra.mxu0 0.0
      %1533 = vmatprep.mubr.f32.mxu0 0.0
      %1534 = vmatmul.mubr.f32.gmra.mrb[0].mxu0 %v1278
      %v1535 = vpop.f32.mrb[0].mxu0
      %v1536 = vadd.f32 %v1275, %v1535
      %v1537 = vpop.f32.mrb[0].mxu0
      %1538 = vmatprep.mubr.f32.mxu0 0.0
      %1539 = vmatmul.mubr.f32.gmra.mrb[0].mxu0 %v1281
      %v1540 = vpop.f32.mrb[0].mxu0
      %v1541 = vadd.f32 %v1275, %v1540
      %v1542 = vpop.f32.mrb[0].mxu0
      %1543 = vmatprep.mubr.f32.mxu0 0.0
      %1544 = vmatmul.mubr.f32.gmra.mrb[0].mxu0 %v1284
      %v1545 = vpop.f32.mrb[0].mxu0
      %v1546 = vadd.f32 %v1275, %v1545
      %v1547 = vpop.f32.mrb[0].mxu0
      %1548 = vmatprep.mubr.f32.mxu0 0.0
      %1549 = vmatmul.mubr.f32.gmra.mrb[0].mxu0 %v1287
      %v1550 = vpop.f32.mrb[0].mxu0
      %v1551 = vadd.f32 %v1275, %v1550
      %v1552 = vpop.f32.mrb[0].mxu0
      %1553 = vmatprep.mubr.f32.mxu0 0.0
      %1554 = vmatmul.mubr.f32.gmra.mrb[0].mxu0 %v1290
      %v1555 = vpop.f32.mrb[0].mxu0
      %v1556 = vadd.f32 %v1275, %v1555
      %v1557 = vpop.f32.mrb[0].mxu0
      %1558 = vmatprep.mubr.f32.mxu0 0.0
      %1559 = vmatmul.mubr.f32.gmra.mrb[0].mxu0 %v1293
      %v1560 = vpop.f32.mrb[0].mxu0
      %v1561 = vadd.f32 %v1275, %v1560
      %v1562 = vpop.f32.mrb[0].mxu0
      %1563 = vmatprep.mubr.f32.mxu0 0.0
      %1564 = vmatmul.mubr.f32.gmra.mrb[0].mxu0 %v1296
      %v1565 = vpop.f32.mrb[0].mxu0
      %v1566 = vadd.f32 %v1275, %v1565
      %v1567 = vpop.f32.mrb[0].mxu0
      %1568 = vmatprep.mubr.f32.mxu0 0.0
      %1569 = vmatmul.mubr.f32.gmra.mrb[0].mxu0 %v1299
      %v1570 = vpop.f32.mrb[0].mxu0
      %v1571 = vadd.f32 %v1275, %v1570
      %v1572 = vpop.f32.mrb[0].mxu0
      %1573 = vmatprep.mubr.f32.mxu0 0.0
      %1574 = vmatmul.mubr.f32.gmra.mrb[0].mxu0 %v1302
      %v1575 = vpop.f32.mrb[0].mxu0
      %v1576 = vadd.f32 %v1275, %v1575
      %v1577 = vpop.f32.mrb[0].mxu0
      %1578 = vmatprep.mubr.f32.mxu0 0.0
      %1579 = vmatmul.mubr.f32.gmra.mrb[0].mxu0 %v1305
      %v1580 = vpop.f32.mrb[0].mxu0
      %v1581 = vadd.f32 %v1275, %v1580
      %v1582 = vpop.f32.mrb[0].mxu0
      %1583 = vmatprep.mubr.f32.mxu0 0.0
      %1584 = vmatmul.mubr.f32.gmra.mrb[0].mxu0 %v1308
      %v1585 = vpop.f32.mrb[0].mxu0
      %v1586 = vadd.f32 %v1275, %v1585
      %v1587 = vpop.f32.mrb[0].mxu0
      %1588 = vmatprep.mubr.f32.mxu0 0.0
      %1589 = vmatmul.mubr.f32.gmra.mrb[0].mxu0 %v1311
      %v1590 = vpop.f32.mrb[0].mxu0
      %v1591 = vadd.f32 %v1275, %v1590
      %v1592 = vpop.f32.mrb[0].mxu0
      %1593 = vmatprep.mubr.f32.mxu0 0.0
      %1594 = vmatmul.mubr.f32.gmra.mrb[0].mxu0 %v1314
      %v1595 = vpop.f32.mrb[0].mxu0
      %v1596 = vadd.f32 %v1275, %v1595
      %v1597 = vpop.f32.mrb[0].mxu0
      %1598 = vmatprep.mubr.f32.mxu0 0.0
      %1599 = vmatmul.mubr.f32.gmra.mrb[0].mxu0 %v1317
      %v1600 = vpop.f32.mrb[0].mxu0
      %v1601 = vadd.f32 %v1275, %v1600
      %v1602 = vpop.f32.mrb[0].mxu0
      %1603 = vmatprep.mubr.f32.mxu0 0.0
      %1604 = vmatmul.mubr.f32.gmra.mrb[0].mxu0 %v1320
      %v1605 = vpop.f32.mrb[0].mxu0
      %v1606 = vadd.f32 %v1275, %v1605
      %v1607 = vpop.f32.mrb[0].mxu0
      %1608 = vmatprep.mubr.f32.mxu0 0.0
      %1609 = vmatmul.mubr.f32.gmra.mrb[0].mxu0 %v1323
      %v1610 = vpop.f32.mrb[0].mxu0
      %v1611 = vadd.f32 %v1275, %v1610
      %v1612 = vpop.f32.mrb[0].mxu0
      %1613 = vmatprep.mubr.f32.mxu0 0.0
      %1614 = vmatmul.mubr.f32.gmra.mrb[0].mxu0 %v1326
      %v1615 = vpop.f32.mrb[0].mxu0
      %v1616 = vadd.f32 %v1275, %v1615
      %v1617 = vpop.f32.mrb[0].mxu0
      %1618 = vmatprep.mubr.f32.mxu0 0.0
      %1619 = vmatmul.mubr.f32.gmra.mrb[0].mxu0 %v1329
      %v1620 = vpop.f32.mrb[0].mxu0
      %v1621 = vadd.f32 %v1275, %v1620
      %v1622 = vpop.f32.mrb[0].mxu0
      %1623 = vmatprep.mubr.f32.mxu0 0.0
      %1624 = vmatmul.mubr.f32.gmra.mrb[0].mxu0 %v1332
      %v1625 = vpop.f32.mrb[0].mxu0
      %v1626 = vadd.f32 %v1275, %v1625
      %v1627 = vpop.f32.mrb[0].mxu0
      %1628 = vmatprep.mubr.f32.mxu0 0.0
      %1629 = vmatmul.mubr.f32.gmra.mrb[0].mxu0 %v1335
      %v1630 = vpop.f32.mrb[0].mxu0
      %v1631 = vadd.f32 %v1275, %v1630
      %v1632 = vpop.f32.mrb[0].mxu0
      %1633 = vmatprep.mubr.f32.mxu0 0.0
      %1634 = vmatmul.mubr.f32.gmra.mrb[0].mxu0 %v1338
      %v1635 = vpop.f32.mrb[0].mxu0
      %v1636 = vadd.f32 %v1275, %v1635
      %v1637 = vpop.f32.mrb[0].mxu0
      %1638 = vmatprep.mubr.f32.mxu0 0.0
      %1639 = vmatmul.mubr.f32.gmra.mrb[0].mxu0 %v1341
      %v1640 = vpop.f32.mrb[0].mxu0
      %v1641 = vadd.f32 %v1275, %v1640
      %v1642 = vpop.f32.mrb[0].mxu0
      %1643 = vmatprep.mubr.f32.mxu0 0.0
      %1644 = vmatmul.mubr.f32.gmra.mrb[0].mxu0 %v1344
      %v1645 = vpop.f32.mrb[0].mxu0
      %v1646 = vadd.f32 %v1275, %v1645
      %v1647 = vpop.f32.mrb[0].mxu0
      %1648 = vmatprep.mubr.f32.mxu0 0.0
      %1649 = vmatmul.mubr.f32.gmra.mrb[0].mxu0 %v1347
      %v1650 = vpop.f32.mrb[0].mxu0
      %v1651 = vadd.f32 %v1275, %v1650
      %v1652 = vpop.f32.mrb[0].mxu0
      %1653 = vmatprep.mubr.f32.mxu0 0.0
      %1654 = vmatmul.mubr.f32.gmra.mrb[0].mxu0 %v1350
      %v1655 = vpop.f32.mrb[0].mxu0
      %v1656 = vadd.f32 %v1275, %v1655
      %v1657 = vpop.f32.mrb[0].mxu0
      %1658 = vmatprep.mubr.f32.mxu0 0.0
      %1659 = vmatmul.mubr.f32.gmra.mrb[0].mxu0 %v1353
      %v1660 = vpop.f32.mrb[0].mxu0
      %v1661 = vadd.f32 %v1275, %v1660
      %v1662 = vpop.f32.mrb[0].mxu0
      %1663 = vmatprep.mubr.f32.mxu0 0.0
      %1664 = vmatmul.mubr.f32.gmra.mrb[0].mxu0 %v1356
      %v1665 = vpop.f32.mrb[0].mxu0
      %v1666 = vadd.f32 %v1275, %v1665
      %v1667 = vpop.f32.mrb[0].mxu0
      %1668 = vmatprep.mubr.f32.mxu0 0.0
      %1669 = vmatmul.mubr.f32.gmra.mrb[0].mxu0 %v1359
      %v1670 = vpop.f32.mrb[0].mxu0
      %v1671 = vadd.f32 %v1275, %v1670
      %v1672 = vpop.f32.mrb[0].mxu0
      %1673 = vmatprep.mubr.f32.mxu0 0.0
      %1674 = vmatmul.mubr.f32.gmra.mrb[0].mxu0 %v1362
      %v1675 = vpop.f32.mrb[0].mxu0
      %v1676 = vadd.f32 %v1275, %v1675
      %v1677 = vpop.f32.mrb[0].mxu0
      %1678 = vmatprep.mubr.f32.mxu0 0.0
      %1679 = vmatmul.mubr.f32.gmra.mrb[0].mxu0 %v1365
      %v1680 = vpop.f32.mrb[0].mxu0
      %v1681 = vadd.f32 %v1275, %v1680
      %v1682 = vpop.f32.mrb[0].mxu0
      %1683 = vmatprep.mubr.f32.mxu0 0.0
      %1684 = vmatmul.mubr.f32.gmra.mrb[0].mxu0 %v1368
      %v1685 = vpop.f32.mrb[0].mxu0
      %v1686 = vadd.f32 %v1275, %v1685
      %v1687 = vpop.f32.mrb[0].mxu0
      %1688 = vmatprep.mubr.f32.mxu0 0.0
      %1689 = vmatmul.mubr.f32.gmra.mrb[0].mxu0 %v1371
      %v1690 = vpop.f32.mrb[0].mxu0
      %v1691 = vadd.f32 %v1275, %v1690
      %v1692 = vpop.f32.mrb[0].mxu0
      %1693 = vmatprep.mubr.f32.mxu0 0.0
      %1694 = vmatmul.mubr.f32.gmra.mrb[0].mxu0 %v1374
      %v1695 = vpop.f32.mrb[0].mxu0
      %v1696 = vadd.f32 %v1275, %v1695
      %v1697 = vpop.f32.mrb[0].mxu0
      %1698 = vmatprep.mubr.f32.mxu0 0.0
      %1699 = vmatmul.mubr.f32.gmra.mrb[0].mxu0 %v1377
      %v1700 = vpop.f32.mrb[0].mxu0
      %v1701 = vadd.f32 %v1275, %v1700
      %v1702 = vpop.f32.mrb[0].mxu0
      %1703 = vmatprep.mubr.f32.mxu0 0.0
      %1704 = vmatmul.mubr.f32.gmra.mrb[0].mxu0 %v1380
      %v1705 = vpop.f32.mrb[0].mxu0
      %v1706 = vadd.f32 %v1275, %v1705
      %v1707 = vpop.f32.mrb[0].mxu0
      %1708 = vmatprep.mubr.f32.mxu0 0.0
      %1709 = vmatmul.mubr.f32.gmra.mrb[0].mxu0 %v1383
      %v1710 = vpop.f32.mrb[0].mxu0
      %v1711 = vadd.f32 %v1275, %v1710
      %v1712 = vpop.f32.mrb[0].mxu0
      %1713 = vmatprep.mubr.f32.mxu0 0.0
      %1714 = vmatmul.mubr.f32.gmra.mrb[0].mxu0 %v1386
      %v1715 = vpop.f32.mrb[0].mxu0
      %v1716 = vadd.f32 %v1275, %v1715
      %v1717 = vpop.f32.mrb[0].mxu0
      %1718 = vmatprep.mubr.f32.mxu0 0.0
      %1719 = vmatmul.mubr.f32.gmra.mrb[0].mxu0 %v1389
      %v1720 = vpop.f32.mrb[0].mxu0
      %v1721 = vadd.f32 %v1275, %v1720
      %v1722 = vpop.f32.mrb[0].mxu0
      %1723 = vmatprep.mubr.f32.mxu0 0.0
      %1724 = vmatmul.mubr.f32.gmra.mrb[0].mxu0 %v1392
      %v1725 = vpop.f32.mrb[0].mxu0
      %v1726 = vadd.f32 %v1275, %v1725
      %v1727 = vpop.f32.mrb[0].mxu0
      %1728 = vmatprep.mubr.f32.mxu0 0.0
      %1729 = vmatmul.mubr.f32.gmra.mrb[0].mxu0 %v1395
      %v1730 = vpop.f32.mrb[0].mxu0
      %v1731 = vadd.f32 %v1275, %v1730
      %v1732 = vpop.f32.mrb[0].mxu0
      %1733 = vmatprep.mubr.f32.mxu0 0.0
      %1734 = vmatmul.mubr.f32.gmra.mrb[0].mxu0 %v1398
      %v1735 = vpop.f32.mrb[0].mxu0
      %v1736 = vadd.f32 %v1275, %v1735
      %v1737 = vpop.f32.mrb[0].mxu0
      %1738 = vmatprep.mubr.f32.mxu0 0.0
      %1739 = vmatmul.mubr.f32.gmra.mrb[0].mxu0 %v1401
      %v1740 = vpop.f32.mrb[0].mxu0
      %v1741 = vadd.f32 %v1275, %v1740
      %v1742 = vpop.f32.mrb[0].mxu0
      %1743 = vmatprep.mubr.f32.mxu0 0.0
      %1744 = vmatmul.mubr.f32.gmra.mrb[0].mxu0 %v1404
      %v1745 = vpop.f32.mrb[0].mxu0
      %v1746 = vadd.f32 %v1275, %v1745
      %v1747 = vpop.f32.mrb[0].mxu0
      %1748 = vmatprep.mubr.f32.mxu0 0.0
      %1749 = vmatmul.mubr.f32.gmra.mrb[0].mxu0 %v1407
      %v1750 = vpop.f32.mrb[0].mxu0
      %v1751 = vadd.f32 %v1275, %v1750
      %v1752 = vpop.f32.mrb[0].mxu0
      %1753 = vmatprep.mubr.f32.mxu0 0.0
      %1754 = vmatmul.mubr.f32.gmra.mrb[0].mxu0 %v1410
      %v1755 = vpop.f32.mrb[0].mxu0
      %v1756 = vadd.f32 %v1275, %v1755
      %v1757 = vpop.f32.mrb[0].mxu0
      %1758 = vmatprep.mubr.f32.mxu0 0.0
      %1759 = vmatmul.mubr.f32.gmra.mrb[0].mxu0 %v1413
      %v1760 = vpop.f32.mrb[0].mxu0
      %v1761 = vadd.f32 %v1275, %v1760
      %v1762 = vpop.f32.mrb[0].mxu0
      %1763 = vmatprep.mubr.f32.mxu0 0.0
      %1764 = vmatmul.mubr.f32.gmra.mrb[0].mxu0 %v1416
      %v1765 = vpop.f32.mrb[0].mxu0
      %v1766 = vadd.f32 %v1275, %v1765
      %v1767 = vpop.f32.mrb[0].mxu0
      %1768 = vmatprep.mubr.f32.mxu0 0.0
      %1769 = vmatmul.mubr.f32.gmra.mrb[0].mxu0 %v1419
      %v1770 = vpop.f32.mrb[0].mxu0
      %v1771 = vadd.f32 %v1275, %v1770
      %v1772 = vpop.f32.mrb[0].mxu0
      %1773 = vmatprep.mubr.f32.mxu0 0.0
      %1774 = vmatmul.mubr.f32.gmra.mrb[0].mxu0 %v1422
      %v1775 = vpop.f32.mrb[0].mxu0
      %v1776 = vadd.f32 %v1275, %v1775
      %v1777 = vpop.f32.mrb[0].mxu0
      %1778 = vmatprep.mubr.f32.mxu0 0.0
      %1779 = vmatmul.mubr.f32.gmra.mrb[0].mxu0 %v1425
      %v1780 = vpop.f32.mrb[0].mxu0
      %v1781 = vadd.f32 %v1275, %v1780
      %v1782 = vpop.f32.mrb[0].mxu0
      %1783 = vmatprep.mubr.f32.mxu0 0.0
      %1784 = vmatmul.mubr.f32.gmra.mrb[0].mxu0 %v1428
      %v1785 = vpop.f32.mrb[0].mxu0
      %v1786 = vadd.f32 %v1275, %v1785
      %v1787 = vpop.f32.mrb[0].mxu0
      %1788 = vmatprep.mubr.f32.mxu0 0.0
      %1789 = vmatmul.mubr.f32.gmra.mrb[0].mxu0 %v1431
      %v1790 = vpop.f32.mrb[0].mxu0
      %v1791 = vadd.f32 %v1275, %v1790
      %v1792 = vpop.f32.mrb[0].mxu0
      %1793 = vmatprep.mubr.f32.mxu0 0.0
      %1794 = vmatmul.mubr.f32.gmra.mrb[0].mxu0 %v1434
      %v1795 = vpop.f32.mrb[0].mxu0
      %v1796 = vadd.f32 %v1275, %v1795
      %v1797 = vpop.f32.mrb[0].mxu0
      %1798 = vmatprep.mubr.f32.mxu0 0.0
      %1799 = vmatmul.mubr.f32.gmra.mrb[0].mxu0 %v1437
      %v1800 = vpop.f32.mrb[0].mxu0
      %v1801 = vadd.f32 %v1275, %v1800
      %v1802 = vpop.f32.mrb[0].mxu0
      %1803 = vmatprep.mubr.f32.mxu0 0.0
      %1804 = vmatmul.mubr.f32.gmra.mrb[0].mxu0 %v1440
      %v1805 = vpop.f32.mrb[0].mxu0
      %v1806 = vadd.f32 %v1275, %v1805
      %v1807 = vpop.f32.mrb[0].mxu0
      %1808 = vmatprep.mubr.f32.mxu0 0.0
      %1809 = vmatmul.mubr.f32.gmra.mrb[0].mxu0 %v1443
      %v1810 = vpop.f32.mrb[0].mxu0
      %v1811 = vadd.f32 %v1275, %v1810
      %v1812 = vpop.f32.mrb[0].mxu0
      %1813 = vmatprep.mubr.f32.mxu0 0.0
      %1814 = vmatmul.mubr.f32.gmra.mrb[0].mxu0 %v1446
      %v1815 = vpop.f32.mrb[0].mxu0
      %v1816 = vadd.f32 %v1275, %v1815
      %v1817 = vpop.f32.mrb[0].mxu0
      %1818 = vmatprep.mubr.f32.mxu0 0.0
      %1819 = vmatmul.mubr.f32.gmra.mrb[0].mxu0 %v1449
      %v1820 = vpop.f32.mrb[0].mxu0
      %v1821 = vadd.f32 %v1275, %v1820
      %v1822 = vpop.f32.mrb[0].mxu0
      %1823 = vmatprep.mubr.f32.mxu0 0.0
      %1824 = vmatmul.mubr.f32.gmra.mrb[0].mxu0 %v1452
      %v1825 = vpop.f32.mrb[0].mxu0
      %v1826 = vadd.f32 %v1275, %v1825
      %v1827 = vpop.f32.mrb[0].mxu0
      %1828 = vmatprep.mubr.f32.mxu0 0.0
      %1829 = vmatmul.mubr.f32.gmra.mrb[0].mxu0 %v1455
      %v1830 = vpop.f32.mrb[0].mxu0
      %v1831 = vadd.f32 %v1275, %v1830
      %v1832 = vpop.f32.mrb[0].mxu0
      %1833 = vmatprep.mubr.f32.mxu0 0.0
      %1834 = vmatmul.mubr.f32.gmra.mrb[0].mxu0 %v1458
      %v1835 = vpop.f32.mrb[0].mxu0
      %v1836 = vadd.f32 %v1275, %v1835
      %v1837 = vpop.f32.mrb[0].mxu0
      %1838 = vmatprep.mubr.f32.mxu0 0.0
      %1839 = vmatmul.mubr.f32.gmra.mrb[0].mxu0 %v1461
      %v1840 = vpop.f32.mrb[0].mxu0
      %v1841 = vadd.f32 %v1275, %v1840
      %v1842 = vpop.f32.mrb[0].mxu0
      %1843 = vmatprep.mubr.f32.mxu0 0.0
      %1844 = vmatmul.mubr.f32.gmra.mrb[0].mxu0 %v1464
      %v1845 = vpop.f32.mrb[0].mxu0
      %v1846 = vadd.f32 %v1275, %v1845
      %v1847 = vpop.f32.mrb[0].mxu0
      %1848 = vmatprep.mubr.f32.mxu0 0.0
      %1849 = vmatmul.mubr.f32.gmra.mrb[0].mxu0 %v1467
      %v1850 = vpop.f32.mrb[0].mxu0
      %v1851 = vadd.f32 %v1275, %v1850
      %v1852 = vpop.f32.mrb[0].mxu0
      %1853 = vdwg.mxu0
      %vm1854 = vcmask 523264
      %1855 = vst.msk [vmem:[%s226] sm:$0xff] %vm1854, %v1536
      %1856 = vst.msk [vmem:[%s226 + $0x8] sm:$0xff] %vm1854, %v1541
      %1857 = vst.msk [vmem:[%s226 + $0x10] sm:$0xff] %vm1854, %v1546
      %1858 = vst.msk [vmem:[%s226 + $0x18] sm:$0xff] %vm1854, %v1551
      %1859 = vst.msk [vmem:[%s226 + $0x20] sm:$0xff] %vm1854, %v1556
      %1860 = vst.msk [vmem:[%s226 + $0x28] sm:$0xff] %vm1854, %v1561
      %1861 = vst.msk [vmem:[%s226 + $0x30] sm:$0xff] %vm1854, %v1566
      %1862 = vst.msk [vmem:[%s226 + $0x38] sm:$0xff] %vm1854, %v1571
      %1863 = vst.msk [vmem:[%s226 + $0x40] sm:$0xff] %vm1854, %v1576
      %1864 = vst.msk [vmem:[%s226 + $0x48] sm:$0xff] %vm1854, %v1581
      %1865 = vst.msk [vmem:[%s226 + $0x50] sm:$0xff] %vm1854, %v1586
      %1866 = vst.msk [vmem:[%s226 + $0x58] sm:$0xff] %vm1854, %v1591
      %1867 = vst.msk [vmem:[%s226 + $0x60] sm:$0xff] %vm1854, %v1596
      %1868 = vst.msk [vmem:[%s226 + $0x68] sm:$0xff] %vm1854, %v1601
      %1869 = vst.msk [vmem:[%s226 + $0x70] sm:$0xff] %vm1854, %v1606
      %1870 = vst.msk [vmem:[%s226 + $0x78] sm:$0xff] %vm1854, %v1611
      %1871 = vst.msk [vmem:[%s226 + $0x80] sm:$0xff] %vm1854, %v1616
      %1872 = vst.msk [vmem:[%s226 + $0x88] sm:$0xff] %vm1854, %v1621
      %1873 = vst.msk [vmem:[%s226 + $0x90] sm:$0xff] %vm1854, %v1626
      %1874 = vst.msk [vmem:[%s226 + $0x98] sm:$0xff] %vm1854, %v1631
      %1875 = vst.msk [vmem:[%s226 + $0xa0] sm:$0xff] %vm1854, %v1636
      %1876 = vst.msk [vmem:[%s226 + $0xa8] sm:$0xff] %vm1854, %v1641
      %1877 = vst.msk [vmem:[%s226 + $0xb0] sm:$0xff] %vm1854, %v1646
      %1878 = vst.msk [vmem:[%s226 + $0xb8] sm:$0xff] %vm1854, %v1651
      %1879 = vst.msk [vmem:[%s226 + $0xc0] sm:$0xff] %vm1854, %v1656
      %1880 = vst.msk [vmem:[%s226 + $0xc8] sm:$0xff] %vm1854, %v1661
      %1881 = vst.msk [vmem:[%s226 + $0xd0] sm:$0xff] %vm1854, %v1666
      %1882 = vst.msk [vmem:[%s226 + $0xd8] sm:$0xff] %vm1854, %v1671
      %1883 = vst.msk [vmem:[%s226 + $0xe0] sm:$0xff] %vm1854, %v1676
      %1884 = vst.msk [vmem:[%s226 + $0xe8] sm:$0xff] %vm1854, %v1681
      %1885 = vst.msk [vmem:[%s226 + $0xf0] sm:$0xff] %vm1854, %v1686
      %1886 = vst.msk [vmem:[%s226 + $0xf8] sm:$0xff] %vm1854, %v1691
      %1887 = vst.msk [vmem:[%s226 + $0x100] sm:$0xff] %vm1854, %v1696
      %1888 = vst.msk [vmem:[%s226 + $0x108] sm:$0xff] %vm1854, %v1701
      %1889 = vst.msk [vmem:[%s226 + $0x110] sm:$0xff] %vm1854, %v1706
      %1890 = vst.msk [vmem:[%s226 + $0x118] sm:$0xff] %vm1854, %v1711
      %1891 = vst.msk [vmem:[%s226 + $0x120] sm:$0xff] %vm1854, %v1716
      %1892 = vst.msk [vmem:[%s226 + $0x128] sm:$0xff] %vm1854, %v1721
      %1893 = vst.msk [vmem:[%s226 + $0x130] sm:$0xff] %vm1854, %v1726
      %1894 = vst.msk [vmem:[%s226 + $0x138] sm:$0xff] %vm1854, %v1731
      %1895 = vst.msk [vmem:[%s226 + $0x140] sm:$0xff] %vm1854, %v1736
      %1896 = vst.msk [vmem:[%s226 + $0x148] sm:$0xff] %vm1854, %v1741
      %1897 = vst.msk [vmem:[%s226 + $0x150] sm:$0xff] %vm1854, %v1746
      %1898 = vst.msk [vmem:[%s226 + $0x158] sm:$0xff] %vm1854, %v1751
      %1899 = vst.msk [vmem:[%s226 + $0x160] sm:$0xff] %vm1854, %v1756
      %1900 = vst.msk [vmem:[%s226 + $0x168] sm:$0xff] %vm1854, %v1761
      %1901 = vst.msk [vmem:[%s226 + $0x170] sm:$0xff] %vm1854, %v1766
      %1902 = vst.msk [vmem:[%s226 + $0x178] sm:$0xff] %vm1854, %v1771
      %1903 = vst.msk [vmem:[%s226 + $0x180] sm:$0xff] %vm1854, %v1776
      %1904 = vst.msk [vmem:[%s226 + $0x188] sm:$0xff] %vm1854, %v1781
      %1905 = vst.msk [vmem:[%s226 + $0x190] sm:$0xff] %vm1854, %v1786
      %1906 = vst.msk [vmem:[%s226 + $0x198] sm:$0xff] %vm1854, %v1791
      %1907 = vst.msk [vmem:[%s226 + $0x1a0] sm:$0xff] %vm1854, %v1796
      %1908 = vst.msk [vmem:[%s226 + $0x1a8] sm:$0xff] %vm1854, %v1801
      %1909 = vst.msk [vmem:[%s226 + $0x1b0] sm:$0xff] %vm1854, %v1806
      %1910 = vst.msk [vmem:[%s226 + $0x1b8] sm:$0xff] %vm1854, %v1811
      %1911 = vst.msk [vmem:[%s226 + $0x1c0] sm:$0xff] %vm1854, %v1816
      %1912 = vst.msk [vmem:[%s226 + $0x1c8] sm:$0xff] %vm1854, %v1821
      %1913 = vst.msk [vmem:[%s226 + $0x1d0] sm:$0xff] %vm1854, %v1826
      %1914 = vst.msk [vmem:[%s226 + $0x1d8] sm:$0xff] %vm1854, %v1831
      %1915 = vst.msk [vmem:[%s226 + $0x1e0] sm:$0xff] %vm1854, %v1836
      %1916 = vst.msk [vmem:[%s226 + $0x1e8] sm:$0xff] %vm1854, %v1841
      %1917 = vst.msk [vmem:[%s226 + $0x1f0] sm:$0xff] %vm1854, %v1846
      %1918 = vst.msk [vmem:[%s226 + $0x1f8] sm:$0xff] %vm1854, %v1851
      %s1919 = smul.u32 64, %s16
      %p1920 = scmp.lt.s32.totalorder %s1919, 127
      %s1921 = scalar_select %p1920, %s1919, 127
      %s1922 = smul.addr %s1921, 8
      %s1923 = scalar_lea.vmem %s5, %s1922
      // Predicated region
      $region41: #{transformer_block_forward.11} parent=39 // pred_check
        %p1924 = pneg %p144
      $region42: #{transformer_block_forward.11} parent=39 // pred_check_branch
        %1926 = sbr.rel (%p1924) target = $region44
      $region43: #{transformer_block_forward.11} parent=39 // pred_region
        %s1927 = smul.u32 64, %s16
      $region44: #{transformer_block_forward.11} parent=39 // pred_fallthru
        _
    $region40: #{transformer_block_forward.11} parent=5 // pred_fallthru
      _
    %p1928 = scmp.le.s32.totalorder 2, %s11
    // Predicated region
    $region45: #{transformer_block_forward.11} parent=5 // pred_check
      %p1929 = pneg %p1928
    $region46: #{transformer_block_forward.11} parent=5 // pred_check_branch
      %1931 = sbr.rel (%p1929) target = $region48
    $region47: #{transformer_block_forward.11} parent=5 // pred_region
      %s1932 = ssub.s32 %s11, 2
      // Predicated region
      $region49: #{transformer_block_forward.11} parent=47 // pred_check
        %p1933 = pneg %p150
      $region50: #{transformer_block_forward.11} parent=47 // pred_check_branch
        %1935 = sbr.rel (%p1933) target = $region52
      $region51: #{transformer_block_forward.11} parent=47 // pred_region
        %s1936 = smul.u32 64, %s17
        %p1937 = scmp.lt.s32.totalorder %s1936, 127
        %s1938 = scalar_select %p1937, %s1936, 127
        %s1939 = smul.addr %s1938, 8
        %s1940 = scalar_lea.vmem %s5, %s1939
      $region52: #{transformer_block_forward.11} parent=47 // pred_fallthru
        _
    $region48: #{transformer_block_forward.11} parent=5 // pred_fallthru
      _
  $region6: #{transformer_block_forward.11} parent=0 // loop_footer
    %s15 = sadd.s32 1, %s11
  $region7: #{transformer_block_forward.11} parent=0 // loop_footer_branch
    %10 = sbr.rel target = $region3
  $region8: #{transformer_block_forward.11} parent=0 // loop_exit
    _

// kernel: transformer_block_forward.13
$region0: #{transformer_block_forward.13}
  #allocation0 [shape = 'u32[]', space=smem, size = 0x4, offset = 0x4, fixed_abs, tag = 'smem constant byte address 0x4 - core index']
  #allocation1 [shape = 'u32[144,128]{1,0:T(1,128)}', space=vmem, size = 0x12000, scoped, tag = 'internal scratch']
  %s0 = inlined_call_operand.vmem [shape: f32[1024,64], index: 0, kind: input, shape index: {}]
  %s1 = inlined_call_operand.vmem [shape: f32[32,16], index: 1, kind: input, shape index: {}]
  %s2 = inlined_call_operand.vmem [shape: f32[1,16], index: 2, kind: input, shape index: {}]
  %s3 = inlined_call_operand.vmem [shape: f32[1024,16], index: 3, kind: input, shape index: {}]
  %s4 = inlined_call_operand.vmem [shape: f32[1024,16], index: 4, kind: output, shape index: {}]
  %s5 = sld [smem:[#allocation0]]
  $region49: #{transformer_block_forward.13} parent=0
    _
  %s7 = ssub.s32 1, %s5
  %s8 = scalar_select 0, %s7, %s5
  loop: start=0, step=1, limit=4
  $region2: #{transformer_block_forward.13} parent=0 // loop_pre_header
    _
  $region3: #{transformer_block_forward.13} parent=0 // loop_header
    %s10 = sphi 0, %s14
    %p11 = scmp.ge.s32.totalorder %s10, 4
    %s20 = sphi 0, %s22
    %s23 = sphi 0, %s20
    %s24 = sphi 0, %s23
    %s40 = sphi 0, %s24
    %s44 = sphi 0, %s44
    %s46 = sphi 0, %s44
    %s47 = sphi 0, %s46
    %s61 = sphi 0, %s47
    %s65 = sphi 0, %s65
    %s67 = sphi 0, %s65
    %s68 = sphi 0, %s67
    %s82 = sphi 0, %s68
    %s88 = sphi 0, %s90
    %s91 = sphi 0, %s88
    %s92 = sphi 0, %s91
    %s108 = sphi 0, %s92
    %s114 = sphi 0, %s116
    %s117 = sphi 0, %s114
    %s118 = sphi 0, %s117
    %s134 = sphi 0, %s118
  $region4: #{transformer_block_forward.13} parent=0 // loop_header_branch
    %13 = sbr.rel (%p11) target = $region8
  $region5: #{transformer_block_forward.13} parent=0 // loop_body
    %s15 = ssub.s32 %s10, 1
    %s16 = ssub.s32 %s10, 2
    %s17 = sadd.s32 %s10, 1
    %s18 = ssub.s32 %s10, %s17
    %p19 = scmp.eq.s32.totalorder %s18, 0
    %s21 = sadd.s32 %s20, 1
    %s22 = scalar_select %p19, %s20, %s21
    %p25 = pneg %p19
    %p26 = scmp.eq.s32.totalorder %s10, 1
    %p27 = por %p25, %p26
    %p28 = scmp.ne.s32.totalorder %s20, %s23
    %p29 = scmp.eq.s32.totalorder %s10, 0
    %p30 = por %p28, %p29
    %p31 = scmp.ne.s32.totalorder %s20, %s23
    %p32 = scmp.eq.s32.totalorder %s15, 1
    %p33 = por %p31, %p32
    %p34 = scmp.ne.s32.totalorder %s23, %s24
    %p35 = scmp.eq.s32.totalorder %s15, 0
    %p36 = por %p34, %p35
    %p37 = scmp.ne.s32.totalorder %s23, %s24
    %p38 = scmp.eq.s32.totalorder %s16, 1
    %p39 = por %p37, %p38
    %p41 = scmp.ne.s32.totalorder %s24, %s40
    %p42 = scmp.eq.s32.totalorder %s16, 0
    %p43 = por %p41, %p42
    %s45 = sadd.s32 %s44, 1
    %p48 = scmp.eq.s32.totalorder %s10, 1
    %p49 = scmp.ne.s32.totalorder %s44, %s46
    %p50 = scmp.eq.s32.totalorder %s10, 0
    %p51 = por %p49, %p50
    %p52 = scmp.ne.s32.totalorder %s44, %s46
    %p53 = scmp.eq.s32.totalorder %s15, 1
    %p54 = por %p52, %p53
    %p55 = scmp.ne.s32.totalorder %s46, %s47
    %p56 = scmp.eq.s32.totalorder %s15, 0
    %p57 = por %p55, %p56
    %p58 = scmp.ne.s32.totalorder %s46, %s47
    %p59 = scmp.eq.s32.totalorder %s16, 1
    %p60 = por %p58, %p59
    %p62 = scmp.ne.s32.totalorder %s47, %s61
    %p63 = scmp.eq.s32.totalorder %s16, 0
    %p64 = por %p62, %p63
    %s66 = sadd.s32 %s65, 1
    %p69 = scmp.eq.s32.totalorder %s10, 1
    %p70 = scmp.ne.s32.totalorder %s65, %s67
    %p71 = scmp.eq.s32.totalorder %s10, 0
    %p72 = por %p70, %p71
    %p73 = scmp.ne.s32.totalorder %s65, %s67
    %p74 = scmp.eq.s32.totalorder %s15, 1
    %p75 = por %p73, %p74
    %p76 = scmp.ne.s32.totalorder %s67, %s68
    %p77 = scmp.eq.s32.totalorder %s15, 0
    %p78 = por %p76, %p77
    %p79 = scmp.ne.s32.totalorder %s67, %s68
    %p80 = scmp.eq.s32.totalorder %s16, 1
    %p81 = por %p79, %p80
    %p83 = scmp.ne.s32.totalorder %s68, %s82
    %p84 = scmp.eq.s32.totalorder %s16, 0
    %p85 = por %p83, %p84
    %s86 = ssub.s32 %s10, %s17
    %p87 = scmp.eq.s32.totalorder %s86, 0
    %s89 = sadd.s32 %s88, 1
    %s90 = scalar_select %p87, %s88, %s89
    %p93 = pneg %p87
    %p94 = scmp.eq.s32.totalorder %s10, 1
    %p95 = por %p93, %p94
    %p96 = scmp.ne.s32.totalorder %s88, %s91
    %p97 = scmp.eq.s32.totalorder %s10, 0
    %p98 = por %p96, %p97
    %p99 = scmp.ne.s32.totalorder %s88, %s91
    %p100 = scmp.eq.s32.totalorder %s15, 1
    %p101 = por %p99, %p100
    %p102 = scmp.ne.s32.totalorder %s91, %s92
    %p103 = scmp.eq.s32.totalorder %s15, 0
    %p104 = por %p102, %p103
    %p105 = scmp.ne.s32.totalorder %s91, %s92
    %p106 = scmp.eq.s32.totalorder %s16, 1
    %p107 = por %p105, %p106
    %p109 = scmp.ne.s32.totalorder %s92, %s108
    %p110 = scmp.eq.s32.totalorder %s16, 0
    %p111 = por %p109, %p110
    %s112 = ssub.s32 %s10, %s17
    %p113 = scmp.eq.s32.totalorder %s112, 0
    %s115 = sadd.s32 %s114, 1
    %s116 = scalar_select %p113, %s114, %s115
    %p119 = pneg %p113
    %p120 = scmp.eq.s32.totalorder %s10, 1
    %p121 = por %p119, %p120
    %p122 = scmp.ne.s32.totalorder %s114, %s117
    %p123 = scmp.eq.s32.totalorder %s10, 0
    %p124 = por %p122, %p123
    %p125 = scmp.ne.s32.totalorder %s114, %s117
    %p126 = scmp.eq.s32.totalorder %s15, 1
    %p127 = por %p125, %p126
    %p128 = scmp.ne.s32.totalorder %s117, %s118
    %p129 = scmp.eq.s32.totalorder %s15, 0
    %p130 = por %p128, %p129
    %p131 = scmp.ne.s32.totalorder %s117, %s118
    %p132 = scmp.eq.s32.totalorder %s16, 1
    %p133 = por %p131, %p132
    %p135 = scmp.ne.s32.totalorder %s118, %s134
    %p136 = scmp.eq.s32.totalorder %s16, 0
    %p137 = por %p135, %p136
    %p138 = scmp.le.s32.totalorder 1, %s10
    %p139 = scmp.lt.s32.totalorder %s10, 3
    %p140 = pnand %p138, %p139
    %p141 = pneg %p140
    // Predicated region
    $region9: #{transformer_block_forward.13} parent=5 // pred_check
      _
    $region10: #{transformer_block_forward.13} parent=5 // pred_check_branch
      %143 = sbr.rel (%p140) target = $region12
    $region11: #{transformer_block_forward.13} parent=5 // pred_region
      %s144 = ssub.s32 %s10, 1
      // Predicated region
      $region13: #{transformer_block_forward.13} parent=11 // pred_check
        %p145 = pneg %p57
      $region14: #{transformer_block_forward.13} parent=11 // pred_check_branch
        %147 = sbr.rel (%p145) target = $region16
      $region15: #{transformer_block_forward.13} parent=11 // pred_region
        _
      $region16: #{transformer_block_forward.13} parent=11 // pred_fallthru
        _
      // Predicated region
      $region17: #{transformer_block_forward.13} parent=11 // pred_check
        %p148 = pneg %p78
      $region18: #{transformer_block_forward.13} parent=11 // pred_check_branch
        %150 = sbr.rel (%p148) target = $region20
      $region19: #{transformer_block_forward.13} parent=11 // pred_region
        _
      $region20: #{transformer_block_forward.13} parent=11 // pred_fallthru
        _
    $region12: #{transformer_block_forward.13} parent=5 // pred_fallthru
      _
    %p151 = scmp.lt.s32.totalorder %s10, 2
    // Predicated region
    $region21: #{transformer_block_forward.13} parent=5 // pred_check
      %p152 = pneg %p151
    $region22: #{transformer_block_forward.13} parent=5 // pred_check_branch
      %154 = sbr.rel (%p152) target = $region24
    $region23: #{transformer_block_forward.13} parent=5 // pred_region
      // Predicated region
      $region25: #{transformer_block_forward.13} parent=23 // pred_check
        %p155 = pneg %p30
      $region26: #{transformer_block_forward.13} parent=23 // pred_check_branch
        %157 = sbr.rel (%p155) target = $region28
      $region27: #{transformer_block_forward.13} parent=23 // pred_region
        %s158 = smul.u32 64, %s10
        %p159 = scmp.lt.s32.totalorder %s158, 127
        %s160 = scalar_select %p159, %s158, 127
        %s161 = smul.addr %s160, 8
        %s162 = scalar_lea.vmem %s0, %s161
        %s163 = smul.u32 64, %s10
      $region28: #{transformer_block_forward.13} parent=23 // pred_fallthru
        _
      // Predicated region
      $region29: #{transformer_block_forward.13} parent=23 // pred_check
        %p164 = pneg %p98
      $region30: #{transformer_block_forward.13} parent=23 // pred_check_branch
        %166 = sbr.rel (%p164) target = $region32
      $region31: #{transformer_block_forward.13} parent=23 // pred_region
        %s167 = smul.u32 64, %s10
        %p168 = scmp.lt.s32.totalorder %s167, 127
        %s169 = scalar_select %p168, %s167, 127
        %s170 = smul.addr %s169, 8
        %s171 = scalar_lea.vmem %s3, %s170
        %s172 = smul.u32 64, %s10
      $region32: #{transformer_block_forward.13} parent=23 // pred_fallthru
        _
    $region24: #{transformer_block_forward.13} parent=5 // pred_fallthru
      _
    %p173 = scmp.le.s32.totalorder 1, %s10
    %p174 = scmp.lt.s32.totalorder %s10, 3
    %p175 = pnand %p173, %p174
    %p176 = pneg %p175
    // Predicated region
    $region33: #{transformer_block_forward.13} parent=5 // pred_check
      _
    $region34: #{transformer_block_forward.13} parent=5 // pred_check_branch
      %178 = sbr.rel (%p175) target = $region36
    $region35: #{transformer_block_forward.13} parent=5 // pred_region
      %s179 = ssub.s32 %s10, 1
      %s180 = smul.u32 64, %s15
      %p181 = scmp.lt.s32.totalorder %s180, 127
      %s182 = scalar_select %p181, %s180, 127
      %s183 = smul.addr %s182, 8
      %s184 = scalar_lea.vmem %s0, %s183
      %p185 = pneg %p36
      %p186 = pneg %p33
      %p187 = pneg %p57
      %p188 = pneg %p54
      %p189 = pneg %p78
      %p190 = pneg %p75
      %s191 = smul.u32 64, %s15
      %p192 = scmp.lt.s32.totalorder %s191, 127
      %s193 = scalar_select %p192, %s191, 127
      %s194 = smul.addr %s193, 8
      %s195 = scalar_lea.vmem %s3, %s194
      %p196 = pneg %p104
      %p197 = pneg %p101
      %p198 = pneg %p130
      %p199 = pneg %p127
      %s200 = smul.u32 64, %s15
      %p201 = scmp.lt.s32.totalorder %s200, 127
      %s202 = scalar_select %p201, %s200, 127
      %s203 = smul.addr %s202, 8
      %s204 = scalar_lea.vmem %s4, %s203
      %s205 = smul.u32 64, %s15
      %p206 = scmp.lt.s32.totalorder %s205, 127
      %s207 = scalar_select %p206, %s205, 127
      %s208 = smul.addr %s207, 8
      %s209 = scalar_lea.vmem %s0, %s208
      %s210 = smul.u32 64, %s15
      %s211 = smul.u32 64, %s15
      %p212 = scmp.lt.s32.totalorder %s211, 127
      %s213 = scalar_select %p212, %s211, 127
      %s214 = smul.addr %s213, 8
      %s215 = scalar_lea.vmem %s3, %s214
      %s216 = smul.u32 64, %s15
      %s217 = smul.u32 64, %s15
      %p218 = scmp.lt.s32.totalorder %s217, 127
      %s219 = scalar_select %p218, %s217, 127
      %s220 = smul.addr %s219, 8
      %s221 = scalar_lea.vmem %s4, %s220
      %s222 = smul.u32 64, %s15
      %v223 = vld [vmem:[%s209] sm:$0xff]
      %v224 = vld [vmem:[%s209 + $0x8] sm:$0xff]
      %v225 = vld [vmem:[%s209 + $0x10] sm:$0xff]
      %v226 = vld [vmem:[%s209 + $0x18] sm:$0xff]
      %v227 = vld [vmem:[%s209 + $0x20] sm:$0xff]
      %v228 = vld [vmem:[%s209 + $0x28] sm:$0xff]
      %v229 = vld [vmem:[%s209 + $0x30] sm:$0xff]
      %v230 = vld [vmem:[%s209 + $0x38] sm:$0xff]
      %v231 = vld [vmem:[%s209 + $0x40] sm:$0xff]
      %v232 = vld [vmem:[%s209 + $0x48] sm:$0xff]
      %v233 = vld [vmem:[%s209 + $0x50] sm:$0xff]
      %v234 = vld [vmem:[%s209 + $0x58] sm:$0xff]
      %v235 = vld [vmem:[%s209 + $0x60] sm:$0xff]
      %v236 = vld [vmem:[%s209 + $0x68] sm:$0xff]
      %v237 = vld [vmem:[%s209 + $0x70] sm:$0xff]
      %v238 = vld [vmem:[%s209 + $0x78] sm:$0xff]
      %v239 = vld [vmem:[%s209 + $0x80] sm:$0xff]
      %v240 = vld [vmem:[%s209 + $0x88] sm:$0xff]
      %v241 = vld [vmem:[%s209 + $0x90] sm:$0xff]
      %v242 = vld [vmem:[%s209 + $0x98] sm:$0xff]
      %v243 = vld [vmem:[%s209 + $0xa0] sm:$0xff]
      %v244 = vld [vmem:[%s209 + $0xa8] sm:$0xff]
      %v245 = vld [vmem:[%s209 + $0xb0] sm:$0xff]
      %v246 = vld [vmem:[%s209 + $0xb8] sm:$0xff]
      %v247 = vld [vmem:[%s209 + $0xc0] sm:$0xff]
      %v248 = vld [vmem:[%s209 + $0xc8] sm:$0xff]
      %v249 = vld [vmem:[%s209 + $0xd0] sm:$0xff]
      %v250 = vld [vmem:[%s209 + $0xd8] sm:$0xff]
      %v251 = vld [vmem:[%s209 + $0xe0] sm:$0xff]
      %v252 = vld [vmem:[%s209 + $0xe8] sm:$0xff]
      %v253 = vld [vmem:[%s209 + $0xf0] sm:$0xff]
      %v254 = vld [vmem:[%s209 + $0xf8] sm:$0xff]
      %v255 = vld [vmem:[%s209 + $0x100] sm:$0xff]
      %v256 = vld [vmem:[%s209 + $0x108] sm:$0xff]
      %v257 = vld [vmem:[%s209 + $0x110] sm:$0xff]
      %v258 = vld [vmem:[%s209 + $0x118] sm:$0xff]
      %v259 = vld [vmem:[%s209 + $0x120] sm:$0xff]
      %v260 = vld [vmem:[%s209 + $0x128] sm:$0xff]
      %v261 = vld [vmem:[%s209 + $0x130] sm:$0xff]
      %v262 = vld [vmem:[%s209 + $0x138] sm:$0xff]
      %v263 = vld [vmem:[%s209 + $0x140] sm:$0xff]
      %v264 = vld [vmem:[%s209 + $0x148] sm:$0xff]
      %v265 = vld [vmem:[%s209 + $0x150] sm:$0xff]
      %v266 = vld [vmem:[%s209 + $0x158] sm:$0xff]
      %v267 = vld [vmem:[%s209 + $0x160] sm:$0xff]
      %v268 = vld [vmem:[%s209 + $0x168] sm:$0xff]
      %v269 = vld [vmem:[%s209 + $0x170] sm:$0xff]
      %v270 = vld [vmem:[%s209 + $0x178] sm:$0xff]
      %v271 = vld [vmem:[%s209 + $0x180] sm:$0xff]
      %v272 = vld [vmem:[%s209 + $0x188] sm:$0xff]
      %v273 = vld [vmem:[%s209 + $0x190] sm:$0xff]
      %v274 = vld [vmem:[%s209 + $0x198] sm:$0xff]
      %v275 = vld [vmem:[%s209 + $0x1a0] sm:$0xff]
      %v276 = vld [vmem:[%s209 + $0x1a8] sm:$0xff]
      %v277 = vld [vmem:[%s209 + $0x1b0] sm:$0xff]
      %v278 = vld [vmem:[%s209 + $0x1b8] sm:$0xff]
      %v279 = vld [vmem:[%s209 + $0x1c0] sm:$0xff]
      %v280 = vld [vmem:[%s209 + $0x1c8] sm:$0xff]
      %v281 = vld [vmem:[%s209 + $0x1d0] sm:$0xff]
      %v282 = vld [vmem:[%s209 + $0x1d8] sm:$0xff]
      %v283 = vld [vmem:[%s209 + $0x1e0] sm:$0xff]
      %v284 = vld [vmem:[%s209 + $0x1e8] sm:$0xff]
      %v285 = vld [vmem:[%s209 + $0x1f0] sm:$0xff]
      %v286 = vld [vmem:[%s209 + $0x1f8] sm:$0xff]
      %v287 = vmul.f32 %v223, 0.5
      %v288 = vmul.f32 %v224, 0.5
      %v289 = vmul.f32 %v225, 0.5
      %v290 = vmul.f32 %v226, 0.5
      %v291 = vmul.f32 %v227, 0.5
      %v292 = vmul.f32 %v228, 0.5
      %v293 = vmul.f32 %v229, 0.5
      %v294 = vmul.f32 %v230, 0.5
      %v295 = vmul.f32 %v231, 0.5
      %v296 = vmul.f32 %v232, 0.5
      %v297 = vmul.f32 %v233, 0.5
      %v298 = vmul.f32 %v234, 0.5
      %v299 = vmul.f32 %v235, 0.5
      %v300 = vmul.f32 %v236, 0.5
      %v301 = vmul.f32 %v237, 0.5
      %v302 = vmul.f32 %v238, 0.5
      %v303 = vmul.f32 %v239, 0.5
      %v304 = vmul.f32 %v240, 0.5
      %v305 = vmul.f32 %v241, 0.5
      %v306 = vmul.f32 %v242, 0.5
      %v307 = vmul.f32 %v243, 0.5
      %v308 = vmul.f32 %v244, 0.5
      %v309 = vmul.f32 %v245, 0.5
      %v310 = vmul.f32 %v246, 0.5
      %v311 = vmul.f32 %v247, 0.5
      %v312 = vmul.f32 %v248, 0.5
      %v313 = vmul.f32 %v249, 0.5
      %v314 = vmul.f32 %v250, 0.5
      %v315 = vmul.f32 %v251, 0.5
      %v316 = vmul.f32 %v252, 0.5
      %v317 = vmul.f32 %v253, 0.5
      %v318 = vmul.f32 %v254, 0.5
      %v319 = vmul.f32 %v255, 0.5
      %v320 = vmul.f32 %v256, 0.5
      %v321 = vmul.f32 %v257, 0.5
      %v322 = vmul.f32 %v258, 0.5
      %v323 = vmul.f32 %v259, 0.5
      %v324 = vmul.f32 %v260, 0.5
      %v325 = vmul.f32 %v261, 0.5
      %v326 = vmul.f32 %v262, 0.5
      %v327 = vmul.f32 %v263, 0.5
      %v328 = vmul.f32 %v264, 0.5
      %v329 = vmul.f32 %v265, 0.5
      %v330 = vmul.f32 %v266, 0.5
      %v331 = vmul.f32 %v267, 0.5
      %v332 = vmul.f32 %v268, 0.5
      %v333 = vmul.f32 %v269, 0.5
      %v334 = vmul.f32 %v270, 0.5
      %v335 = vmul.f32 %v271, 0.5
      %v336 = vmul.f32 %v272, 0.5
      %v337 = vmul.f32 %v273, 0.5
      %v338 = vmul.f32 %v274, 0.5
      %v339 = vmul.f32 %v275, 0.5
      %v340 = vmul.f32 %v276, 0.5
      %v341 = vmul.f32 %v277, 0.5
      %v342 = vmul.f32 %v278, 0.5
      %v343 = vmul.f32 %v279, 0.5
      %v344 = vmul.f32 %v280, 0.5
      %v345 = vmul.f32 %v281, 0.5
      %v346 = vmul.f32 %v282, 0.5
      %v347 = vmul.f32 %v283, 0.5
      %v348 = vmul.f32 %v284, 0.5
      %v349 = vmul.f32 %v285, 0.5
      %v350 = vmul.f32 %v286, 0.5
      %v351 = vmul.f32 %v223, 0.044715
      %v352 = vmul.f32 %v224, 0.044715
      %v353 = vmul.f32 %v225, 0.044715
      %v354 = vmul.f32 %v226, 0.044715
      %v355 = vmul.f32 %v227, 0.044715
      %v356 = vmul.f32 %v228, 0.044715
      %v357 = vmul.f32 %v229, 0.044715
      %v358 = vmul.f32 %v230, 0.044715
      %v359 = vmul.f32 %v231, 0.044715
      %v360 = vmul.f32 %v232, 0.044715
      %v361 = vmul.f32 %v233, 0.044715
      %v362 = vmul.f32 %v234, 0.044715
      %v363 = vmul.f32 %v235, 0.044715
      %v364 = vmul.f32 %v236, 0.044715
      %v365 = vmul.f32 %v237, 0.044715
      %v366 = vmul.f32 %v238, 0.044715
      %v367 = vmul.f32 %v239, 0.044715
      %v368 = vmul.f32 %v240, 0.044715
      %v369 = vmul.f32 %v241, 0.044715
      %v370 = vmul.f32 %v242, 0.044715
      %v371 = vmul.f32 %v243, 0.044715
      %v372 = vmul.f32 %v244, 0.044715
      %v373 = vmul.f32 %v245, 0.044715
      %v374 = vmul.f32 %v246, 0.044715
      %v375 = vmul.f32 %v247, 0.044715
      %v376 = vmul.f32 %v248, 0.044715
      %v377 = vmul.f32 %v249, 0.044715
      %v378 = vmul.f32 %v250, 0.044715
      %v379 = vmul.f32 %v251, 0.044715
      %v380 = vmul.f32 %v252, 0.044715
      %v381 = vmul.f32 %v253, 0.044715
      %v382 = vmul.f32 %v254, 0.044715
      %v383 = vmul.f32 %v255, 0.044715
      %v384 = vmul.f32 %v256, 0.044715
      %v385 = vmul.f32 %v257, 0.044715
      %v386 = vmul.f32 %v258, 0.044715
      %v387 = vmul.f32 %v259, 0.044715
      %v388 = vmul.f32 %v260, 0.044715
      %v389 = vmul.f32 %v261, 0.044715
      %v390 = vmul.f32 %v262, 0.044715
      %v391 = vmul.f32 %v263, 0.044715
      %v392 = vmul.f32 %v264, 0.044715
      %v393 = vmul.f32 %v265, 0.044715
      %v394 = vmul.f32 %v266, 0.044715
      %v395 = vmul.f32 %v267, 0.044715
      %v396 = vmul.f32 %v268, 0.044715
      %v397 = vmul.f32 %v269, 0.044715
      %v398 = vmul.f32 %v270, 0.044715
      %v399 = vmul.f32 %v271, 0.044715
      %v400 = vmul.f32 %v272, 0.044715
      %v401 = vmul.f32 %v273, 0.044715
      %v402 = vmul.f32 %v274, 0.044715
      %v403 = vmul.f32 %v275, 0.044715
      %v404 = vmul.f32 %v276, 0.044715
      %v405 = vmul.f32 %v277, 0.044715
      %v406 = vmul.f32 %v278, 0.044715
      %v407 = vmul.f32 %v279, 0.044715
      %v408 = vmul.f32 %v280, 0.044715
      %v409 = vmul.f32 %v281, 0.044715
      %v410 = vmul.f32 %v282, 0.044715
      %v411 = vmul.f32 %v283, 0.044715
      %v412 = vmul.f32 %v284, 0.044715
      %v413 = vmul.f32 %v285, 0.044715
      %v414 = vmul.f32 %v286, 0.044715
      %v415 = vmul.f32 %v351, %v223
      %v416 = vmul.f32 %v352, %v224
      %v417 = vmul.f32 %v353, %v225
      %v418 = vmul.f32 %v354, %v226
      %v419 = vmul.f32 %v355, %v227
      %v420 = vmul.f32 %v356, %v228
      %v421 = vmul.f32 %v357, %v229
      %v422 = vmul.f32 %v358, %v230
      %v423 = vmul.f32 %v359, %v231
      %v424 = vmul.f32 %v360, %v232
      %v425 = vmul.f32 %v361, %v233
      %v426 = vmul.f32 %v362, %v234
      %v427 = vmul.f32 %v363, %v235
      %v428 = vmul.f32 %v364, %v236
      %v429 = vmul.f32 %v365, %v237
      %v430 = vmul.f32 %v366, %v238
      %v431 = vmul.f32 %v367, %v239
      %v432 = vmul.f32 %v368, %v240
      %v433 = vmul.f32 %v369, %v241
      %v434 = vmul.f32 %v370, %v242
      %v435 = vmul.f32 %v371, %v243
      %v436 = vmul.f32 %v372, %v244
      %v437 = vmul.f32 %v373, %v245
      %v438 = vmul.f32 %v374, %v246
      %v439 = vmul.f32 %v375, %v247
      %v440 = vmul.f32 %v376, %v248
      %v441 = vmul.f32 %v377, %v249
      %v442 = vmul.f32 %v378, %v250
      %v443 = vmul.f32 %v379, %v251
      %v444 = vmul.f32 %v380, %v252
      %v445 = vmul.f32 %v381, %v253
      %v446 = vmul.f32 %v382, %v254
      %v447 = vmul.f32 %v383, %v255
      %v448 = vmul.f32 %v384, %v256
      %v449 = vmul.f32 %v385, %v257
      %v450 = vmul.f32 %v386, %v258
      %v451 = vmul.f32 %v387, %v259
      %v452 = vmul.f32 %v388, %v260
      %v453 = vmul.f32 %v389, %v261
      %v454 = vmul.f32 %v390, %v262
      %v455 = vmul.f32 %v391, %v263
      %v456 = vmul.f32 %v392, %v264
      %v457 = vmul.f32 %v393, %v265
      %v458 = vmul.f32 %v394, %v266
      %v459 = vmul.f32 %v395, %v267
      %v460 = vmul.f32 %v396, %v268
      %v461 = vmul.f32 %v397, %v269
      %v462 = vmul.f32 %v398, %v270
      %v463 = vmul.f32 %v399, %v271
      %v464 = vmul.f32 %v400, %v272
      %v465 = vmul.f32 %v401, %v273
      %v466 = vmul.f32 %v402, %v274
      %v467 = vmul.f32 %v403, %v275
      %v468 = vmul.f32 %v404, %v276
      %v469 = vmul.f32 %v405, %v277
      %v470 = vmul.f32 %v406, %v278
      %v471 = vmul.f32 %v407, %v279
      %v472 = vmul.f32 %v408, %v280
      %v473 = vmul.f32 %v409, %v281
      %v474 = vmul.f32 %v410, %v282
      %v475 = vmul.f32 %v411, %v283
      %v476 = vmul.f32 %v412, %v284
      %v477 = vmul.f32 %v413, %v285
      %v478 = vmul.f32 %v414, %v286
      %v479 = vmul.f32 %v415, %v223
      %v480 = vmul.f32 %v416, %v224
      %v481 = vmul.f32 %v417, %v225
      %v482 = vmul.f32 %v418, %v226
      %v483 = vmul.f32 %v419, %v227
      %v484 = vmul.f32 %v420, %v228
      %v485 = vmul.f32 %v421, %v229
      %v486 = vmul.f32 %v422, %v230
      %v487 = vmul.f32 %v423, %v231
      %v488 = vmul.f32 %v424, %v232
      %v489 = vmul.f32 %v425, %v233
      %v490 = vmul.f32 %v426, %v234
      %v491 = vmul.f32 %v427, %v235
      %v492 = vmul.f32 %v428, %v236
      %v493 = vmul.f32 %v429, %v237
      %v494 = vmul.f32 %v430, %v238
      %v495 = vmul.f32 %v431, %v239
      %v496 = vmul.f32 %v432, %v240
      %v497 = vmul.f32 %v433, %v241
      %v498 = vmul.f32 %v434, %v242
      %v499 = vmul.f32 %v435, %v243
      %v500 = vmul.f32 %v436, %v244
      %v501 = vmul.f32 %v437, %v245
      %v502 = vmul.f32 %v438, %v246
      %v503 = vmul.f32 %v439, %v247
      %v504 = vmul.f32 %v440, %v248
      %v505 = vmul.f32 %v441, %v249
      %v506 = vmul.f32 %v442, %v250
      %v507 = vmul.f32 %v443, %v251
      %v508 = vmul.f32 %v444, %v252
      %v509 = vmul.f32 %v445, %v253
      %v510 = vmul.f32 %v446, %v254
      %v511 = vmul.f32 %v447, %v255
      %v512 = vmul.f32 %v448, %v256
      %v513 = vmul.f32 %v449, %v257
      %v514 = vmul.f32 %v450, %v258
      %v515 = vmul.f32 %v451, %v259
      %v516 = vmul.f32 %v452, %v260
      %v517 = vmul.f32 %v453, %v261
      %v518 = vmul.f32 %v454, %v262
      %v519 = vmul.f32 %v455, %v263
      %v520 = vmul.f32 %v456, %v264
      %v521 = vmul.f32 %v457, %v265
      %v522 = vmul.f32 %v458, %v266
      %v523 = vmul.f32 %v459, %v267
      %v524 = vmul.f32 %v460, %v268
      %v525 = vmul.f32 %v461, %v269
      %v526 = vmul.f32 %v462, %v270
      %v527 = vmul.f32 %v463, %v271
      %v528 = vmul.f32 %v464, %v272
      %v529 = vmul.f32 %v465, %v273
      %v530 = vmul.f32 %v466, %v274
      %v531 = vmul.f32 %v467, %v275
      %v532 = vmul.f32 %v468, %v276
      %v533 = vmul.f32 %v469, %v277
      %v534 = vmul.f32 %v470, %v278
      %v535 = vmul.f32 %v471, %v279
      %v536 = vmul.f32 %v472, %v280
      %v537 = vmul.f32 %v473, %v281
      %v538 = vmul.f32 %v474, %v282
      %v539 = vmul.f32 %v475, %v283
      %v540 = vmul.f32 %v476, %v284
      %v541 = vmul.f32 %v477, %v285
      %v542 = vmul.f32 %v478, %v286
      %v543 = vadd.f32 %v223, %v479
      %v544 = vadd.f32 %v224, %v480
      %v545 = vadd.f32 %v225, %v481
      %v546 = vadd.f32 %v226, %v482
      %v547 = vadd.f32 %v227, %v483
      %v548 = vadd.f32 %v228, %v484
      %v549 = vadd.f32 %v229, %v485
      %v550 = vadd.f32 %v230, %v486
      %v551 = vadd.f32 %v231, %v487
      %v552 = vadd.f32 %v232, %v488
      %v553 = vadd.f32 %v233, %v489
      %v554 = vadd.f32 %v234, %v490
      %v555 = vadd.f32 %v235, %v491
      %v556 = vadd.f32 %v236, %v492
      %v557 = vadd.f32 %v237, %v493
      %v558 = vadd.f32 %v238, %v494
      %v559 = vadd.f32 %v239, %v495
      %v560 = vadd.f32 %v240, %v496
      %v561 = vadd.f32 %v241, %v497
      %v562 = vadd.f32 %v242, %v498
      %v563 = vadd.f32 %v243, %v499
      %v564 = vadd.f32 %v244, %v500
      %v565 = vadd.f32 %v245, %v501
      %v566 = vadd.f32 %v246, %v502
      %v567 = vadd.f32 %v247, %v503
      %v568 = vadd.f32 %v248, %v504
      %v569 = vadd.f32 %v249, %v505
      %v570 = vadd.f32 %v250, %v506
      %v571 = vadd.f32 %v251, %v507
      %v572 = vadd.f32 %v252, %v508
      %v573 = vadd.f32 %v253, %v509
      %v574 = vadd.f32 %v254, %v510
      %v575 = vadd.f32 %v255, %v511
      %v576 = vadd.f32 %v256, %v512
      %v577 = vadd.f32 %v257, %v513
      %v578 = vadd.f32 %v258, %v514
      %v579 = vadd.f32 %v259, %v515
      %v580 = vadd.f32 %v260, %v516
      %v581 = vadd.f32 %v261, %v517
      %v582 = vadd.f32 %v262, %v518
      %v583 = vadd.f32 %v263, %v519
      %v584 = vadd.f32 %v264, %v520
      %v585 = vadd.f32 %v265, %v521
      %v586 = vadd.f32 %v266, %v522
      %v587 = vadd.f32 %v267, %v523
      %v588 = vadd.f32 %v268, %v524
      %v589 = vadd.f32 %v269, %v525
      %v590 = vadd.f32 %v270, %v526
      %v591 = vadd.f32 %v271, %v527
      %v592 = vadd.f32 %v272, %v528
      %v593 = vadd.f32 %v273, %v529
      %v594 = vadd.f32 %v274, %v530
      %v595 = vadd.f32 %v275, %v531
      %v596 = vadd.f32 %v276, %v532
      %v597 = vadd.f32 %v277, %v533
      %v598 = vadd.f32 %v278, %v534
      %v599 = vadd.f32 %v279, %v535
      %v600 = vadd.f32 %v280, %v536
      %v601 = vadd.f32 %v281, %v537
      %v602 = vadd.f32 %v282, %v538
      %v603 = vadd.f32 %v283, %v539
      %v604 = vadd.f32 %v284, %v540
      %v605 = vadd.f32 %v285, %v541
      %v606 = vadd.f32 %v286, %v542
      %v607 = vmul.f32 %v543, 0.7978846
      %v608 = vmul.f32 %v544, 0.7978846
      %v609 = vmul.f32 %v545, 0.7978846
      %v610 = vmul.f32 %v546, 0.7978846
      %v611 = vmul.f32 %v547, 0.7978846
      %v612 = vmul.f32 %v548, 0.7978846
      %v613 = vmul.f32 %v549, 0.7978846
      %v614 = vmul.f32 %v550, 0.7978846
      %v615 = vmul.f32 %v551, 0.7978846
      %v616 = vmul.f32 %v552, 0.7978846
      %v617 = vmul.f32 %v553, 0.7978846
      %v618 = vmul.f32 %v554, 0.7978846
      %v619 = vmul.f32 %v555, 0.7978846
      %v620 = vmul.f32 %v556, 0.7978846
      %v621 = vmul.f32 %v557, 0.7978846
      %v622 = vmul.f32 %v558, 0.7978846
      %v623 = vmul.f32 %v559, 0.7978846
      %v624 = vmul.f32 %v560, 0.7978846
      %v625 = vmul.f32 %v561, 0.7978846
      %v626 = vmul.f32 %v562, 0.7978846
      %v627 = vmul.f32 %v563, 0.7978846
      %v628 = vmul.f32 %v564, 0.7978846
      %v629 = vmul.f32 %v565, 0.7978846
      %v630 = vmul.f32 %v566, 0.7978846
      %v631 = vmul.f32 %v567, 0.7978846
      %v632 = vmul.f32 %v568, 0.7978846
      %v633 = vmul.f32 %v569, 0.7978846
      %v634 = vmul.f32 %v570, 0.7978846
      %v635 = vmul.f32 %v571, 0.7978846
      %v636 = vmul.f32 %v572, 0.7978846
      %v637 = vmul.f32 %v573, 0.7978846
      %v638 = vmul.f32 %v574, 0.7978846
      %v639 = vmul.f32 %v575, 0.7978846
      %v640 = vmul.f32 %v576, 0.7978846
      %v641 = vmul.f32 %v577, 0.7978846
      %v642 = vmul.f32 %v578, 0.7978846
      %v643 = vmul.f32 %v579, 0.7978846
      %v644 = vmul.f32 %v580, 0.7978846
      %v645 = vmul.f32 %v581, 0.7978846
      %v646 = vmul.f32 %v582, 0.7978846
      %v647 = vmul.f32 %v583, 0.7978846
      %v648 = vmul.f32 %v584, 0.7978846
      %v649 = vmul.f32 %v585, 0.7978846
      %v650 = vmul.f32 %v586, 0.7978846
      %v651 = vmul.f32 %v587, 0.7978846
      %v652 = vmul.f32 %v588, 0.7978846
      %v653 = vmul.f32 %v589, 0.7978846
      %v654 = vmul.f32 %v590, 0.7978846
      %v655 = vmul.f32 %v591, 0.7978846
      %v656 = vmul.f32 %v592, 0.7978846
      %v657 = vmul.f32 %v593, 0.7978846
      %v658 = vmul.f32 %v594, 0.7978846
      %v659 = vmul.f32 %v595, 0.7978846
      %v660 = vmul.f32 %v596, 0.7978846
      %v661 = vmul.f32 %v597, 0.7978846
      %v662 = vmul.f32 %v598, 0.7978846
      %v663 = vmul.f32 %v599, 0.7978846
      %v664 = vmul.f32 %v600, 0.7978846
      %v665 = vmul.f32 %v601, 0.7978846
      %v666 = vmul.f32 %v602, 0.7978846
      %v667 = vmul.f32 %v603, 0.7978846
      %v668 = vmul.f32 %v604, 0.7978846
      %v669 = vmul.f32 %v605, 0.7978846
      %v670 = vmul.f32 %v606, 0.7978846
      %v671 = vtanh.pop %v607
      %v672 = vtanh.pop %v608
      %v673 = vtanh.pop %v609
      %v674 = vtanh.pop %v610
      %v675 = vtanh.pop %v611
      %v676 = vtanh.pop %v612
      %v677 = vtanh.pop %v613
      %v678 = vtanh.pop %v614
      %v679 = vtanh.pop %v615
      %v680 = vtanh.pop %v616
      %v681 = vtanh.pop %v617
      %v682 = vtanh.pop %v618
      %v683 = vtanh.pop %v619
      %v684 = vtanh.pop %v620
      %v685 = vtanh.pop %v621
      %v686 = vtanh.pop %v622
      %v687 = vtanh.pop %v623
      %v688 = vtanh.pop %v624
      %v689 = vtanh.pop %v625
      %v690 = vtanh.pop %v626
      %v691 = vtanh.pop %v627
      %v692 = vtanh.pop %v628
      %v693 = vtanh.pop %v629
      %v694 = vtanh.pop %v630
      %v695 = vtanh.pop %v631
      %v696 = vtanh.pop %v632
      %v697 = vtanh.pop %v633
      %v698 = vtanh.pop %v634
      %v699 = vtanh.pop %v635
      %v700 = vtanh.pop %v636
      %v701 = vtanh.pop %v637
      %v702 = vtanh.pop %v638
      %v703 = vtanh.pop %v639
      %v704 = vtanh.pop %v640
      %v705 = vtanh.pop %v641
      %v706 = vtanh.pop %v642
      %v707 = vtanh.pop %v643
      %v708 = vtanh.pop %v644
      %v709 = vtanh.pop %v645
      %v710 = vtanh.pop %v646
      %v711 = vtanh.pop %v647
      %v712 = vtanh.pop %v648
      %v713 = vtanh.pop %v649
      %v714 = vtanh.pop %v650
      %v715 = vtanh.pop %v651
      %v716 = vtanh.pop %v652
      %v717 = vtanh.pop %v653
      %v718 = vtanh.pop %v654
      %v719 = vtanh.pop %v655
      %v720 = vtanh.pop %v656
      %v721 = vtanh.pop %v657
      %v722 = vtanh.pop %v658
      %v723 = vtanh.pop %v659
      %v724 = vtanh.pop %v660
      %v725 = vtanh.pop %v661
      %v726 = vtanh.pop %v662
      %v727 = vtanh.pop %v663
      %v728 = vtanh.pop %v664
      %v729 = vtanh.pop %v665
      %v730 = vtanh.pop %v666
      %v731 = vtanh.pop %v667
      %v732 = vtanh.pop %v668
      %v733 = vtanh.pop %v669
      %v734 = vtanh.pop %v670
      %v735 = vadd.f32 %v671, 1.0
      %v736 = vadd.f32 %v672, 1.0
      %v737 = vadd.f32 %v673, 1.0
      %v738 = vadd.f32 %v674, 1.0
      %v739 = vadd.f32 %v675, 1.0
      %v740 = vadd.f32 %v676, 1.0
      %v741 = vadd.f32 %v677, 1.0
      %v742 = vadd.f32 %v678, 1.0
      %v743 = vadd.f32 %v679, 1.0
      %v744 = vadd.f32 %v680, 1.0
      %v745 = vadd.f32 %v681, 1.0
      %v746 = vadd.f32 %v682, 1.0
      %v747 = vadd.f32 %v683, 1.0
      %v748 = vadd.f32 %v684, 1.0
      %v749 = vadd.f32 %v685, 1.0
      %v750 = vadd.f32 %v686, 1.0
      %v751 = vadd.f32 %v687, 1.0
      %v752 = vadd.f32 %v688, 1.0
      %v753 = vadd.f32 %v689, 1.0
      %v754 = vadd.f32 %v690, 1.0
      %v755 = vadd.f32 %v691, 1.0
      %v756 = vadd.f32 %v692, 1.0
      %v757 = vadd.f32 %v693, 1.0
      %v758 = vadd.f32 %v694, 1.0
      %v759 = vadd.f32 %v695, 1.0
      %v760 = vadd.f32 %v696, 1.0
      %v761 = vadd.f32 %v697, 1.0
      %v762 = vadd.f32 %v698, 1.0
      %v763 = vadd.f32 %v699, 1.0
      %v764 = vadd.f32 %v700, 1.0
      %v765 = vadd.f32 %v701, 1.0
      %v766 = vadd.f32 %v702, 1.0
      %v767 = vadd.f32 %v703, 1.0
      %v768 = vadd.f32 %v704, 1.0
      %v769 = vadd.f32 %v705, 1.0
      %v770 = vadd.f32 %v706, 1.0
      %v771 = vadd.f32 %v707, 1.0
      %v772 = vadd.f32 %v708, 1.0
      %v773 = vadd.f32 %v709, 1.0
      %v774 = vadd.f32 %v710, 1.0
      %v775 = vadd.f32 %v711, 1.0
      %v776 = vadd.f32 %v712, 1.0
      %v777 = vadd.f32 %v713, 1.0
      %v778 = vadd.f32 %v714, 1.0
      %v779 = vadd.f32 %v715, 1.0
      %v780 = vadd.f32 %v716, 1.0
      %v781 = vadd.f32 %v717, 1.0
      %v782 = vadd.f32 %v718, 1.0
      %v783 = vadd.f32 %v719, 1.0
      %v784 = vadd.f32 %v720, 1.0
      %v785 = vadd.f32 %v721, 1.0
      %v786 = vadd.f32 %v722, 1.0
      %v787 = vadd.f32 %v723, 1.0
      %v788 = vadd.f32 %v724, 1.0
      %v789 = vadd.f32 %v725, 1.0
      %v790 = vadd.f32 %v726, 1.0
      %v791 = vadd.f32 %v727, 1.0
      %v792 = vadd.f32 %v728, 1.0
      %v793 = vadd.f32 %v729, 1.0
      %v794 = vadd.f32 %v730, 1.0
      %v795 = vadd.f32 %v731, 1.0
      %v796 = vadd.f32 %v732, 1.0
      %v797 = vadd.f32 %v733, 1.0
      %v798 = vadd.f32 %v734, 1.0
      %v799 = vmul.f32 %v287, %v735
      %v800 = vmul.f32 %v288, %v736
      %v801 = vmul.f32 %v289, %v737
      %v802 = vmul.f32 %v290, %v738
      %v803 = vmul.f32 %v291, %v739
      %v804 = vmul.f32 %v292, %v740
      %v805 = vmul.f32 %v293, %v741
      %v806 = vmul.f32 %v294, %v742
      %v807 = vmul.f32 %v295, %v743
      %v808 = vmul.f32 %v296, %v744
      %v809 = vmul.f32 %v297, %v745
      %v810 = vmul.f32 %v298, %v746
      %v811 = vmul.f32 %v299, %v747
      %v812 = vmul.f32 %v300, %v748
      %v813 = vmul.f32 %v301, %v749
      %v814 = vmul.f32 %v302, %v750
      %v815 = vmul.f32 %v303, %v751
      %v816 = vmul.f32 %v304, %v752
      %v817 = vmul.f32 %v305, %v753
      %v818 = vmul.f32 %v306, %v754
      %v819 = vmul.f32 %v307, %v755
      %v820 = vmul.f32 %v308, %v756
      %v821 = vmul.f32 %v309, %v757
      %v822 = vmul.f32 %v310, %v758
      %v823 = vmul.f32 %v311, %v759
      %v824 = vmul.f32 %v312, %v760
      %v825 = vmul.f32 %v313, %v761
      %v826 = vmul.f32 %v314, %v762
      %v827 = vmul.f32 %v315, %v763
      %v828 = vmul.f32 %v316, %v764
      %v829 = vmul.f32 %v317, %v765
      %v830 = vmul.f32 %v318, %v766
      %v831 = vmul.f32 %v319, %v767
      %v832 = vmul.f32 %v320, %v768
      %v833 = vmul.f32 %v321, %v769
      %v834 = vmul.f32 %v322, %v770
      %v835 = vmul.f32 %v323, %v771
      %v836 = vmul.f32 %v324, %v772
      %v837 = vmul.f32 %v325, %v773
      %v838 = vmul.f32 %v326, %v774
      %v839 = vmul.f32 %v327, %v775
      %v840 = vmul.f32 %v328, %v776
      %v841 = vmul.f32 %v329, %v777
      %v842 = vmul.f32 %v330, %v778
      %v843 = vmul.f32 %v331, %v779
      %v844 = vmul.f32 %v332, %v780
      %v845 = vmul.f32 %v333, %v781
      %v846 = vmul.f32 %v334, %v782
      %v847 = vmul.f32 %v335, %v783
      %v848 = vmul.f32 %v336, %v784
      %v849 = vmul.f32 %v337, %v785
      %v850 = vmul.f32 %v338, %v786
      %v851 = vmul.f32 %v339, %v787
      %v852 = vmul.f32 %v340, %v788
      %v853 = vmul.f32 %v341, %v789
      %v854 = vmul.f32 %v342, %v790
      %v855 = vmul.f32 %v343, %v791
      %v856 = vmul.f32 %v344, %v792
      %v857 = vmul.f32 %v345, %v793
      %v858 = vmul.f32 %v346, %v794
      %v859 = vmul.f32 %v347, %v795
      %v860 = vmul.f32 %v348, %v796
      %v861 = vmul.f32 %v349, %v797
      %v862 = vmul.f32 %v350, %v798
      %927 = vrot.lane.b32.xlu0 %v223, 96
      %v928 = vpop.permute.xlu0 %927
      %929 = vrot.lane.b32.xlu0 %v224, 96
      %v930 = vpop.permute.xlu0 %929
      %931 = vrot.lane.b32.xlu0 %v225, 96
      %v932 = vpop.permute.xlu0 %931
      %933 = vrot.lane.b32.xlu0 %v226, 96
      %v934 = vpop.permute.xlu0 %933
      %935 = vrot.lane.b32.xlu0 %v227, 96
      %v936 = vpop.permute.xlu0 %935
      %937 = vrot.lane.b32.xlu0 %v228, 96
      %v938 = vpop.permute.xlu0 %937
      %939 = vrot.lane.b32.xlu0 %v229, 96
      %v940 = vpop.permute.xlu0 %939
      %941 = vrot.lane.b32.xlu0 %v230, 96
      %v942 = vpop.permute.xlu0 %941
      %943 = vrot.lane.b32.xlu0 %v231, 96
      %v944 = vpop.permute.xlu0 %943
      %945 = vrot.lane.b32.xlu0 %v232, 96
      %v946 = vpop.permute.xlu0 %945
      %947 = vrot.lane.b32.xlu0 %v233, 96
      %v948 = vpop.permute.xlu0 %947
      %949 = vrot.lane.b32.xlu0 %v234, 96
      %v950 = vpop.permute.xlu0 %949
      %951 = vrot.lane.b32.xlu0 %v235, 96
      %v952 = vpop.permute.xlu0 %951
      %953 = vrot.lane.b32.xlu0 %v236, 96
      %v954 = vpop.permute.xlu0 %953
      %955 = vrot.lane.b32.xlu0 %v237, 96
      %v956 = vpop.permute.xlu0 %955
      %957 = vrot.lane.b32.xlu0 %v238, 96
      %v958 = vpop.permute.xlu0 %957
      %959 = vrot.lane.b32.xlu0 %v239, 96
      %v960 = vpop.permute.xlu0 %959
      %961 = vrot.lane.b32.xlu0 %v240, 96
      %v962 = vpop.permute.xlu0 %961
      %963 = vrot.lane.b32.xlu0 %v241, 96
      %v964 = vpop.permute.xlu0 %963
      %965 = vrot.lane.b32.xlu0 %v242, 96
      %v966 = vpop.permute.xlu0 %965
      %967 = vrot.lane.b32.xlu0 %v243, 96
      %v968 = vpop.permute.xlu0 %967
      %969 = vrot.lane.b32.xlu0 %v244, 96
      %v970 = vpop.permute.xlu0 %969
      %971 = vrot.lane.b32.xlu0 %v245, 96
      %v972 = vpop.permute.xlu0 %971
      %973 = vrot.lane.b32.xlu0 %v246, 96
      %v974 = vpop.permute.xlu0 %973
      %975 = vrot.lane.b32.xlu0 %v247, 96
      %v976 = vpop.permute.xlu0 %975
      %977 = vrot.lane.b32.xlu0 %v248, 96
      %v978 = vpop.permute.xlu0 %977
      %979 = vrot.lane.b32.xlu0 %v249, 96
      %v980 = vpop.permute.xlu0 %979
      %981 = vrot.lane.b32.xlu0 %v250, 96
      %v982 = vpop.permute.xlu0 %981
      %983 = vrot.lane.b32.xlu0 %v251, 96
      %v984 = vpop.permute.xlu0 %983
      %985 = vrot.lane.b32.xlu0 %v252, 96
      %v986 = vpop.permute.xlu0 %985
      %987 = vrot.lane.b32.xlu0 %v253, 96
      %v988 = vpop.permute.xlu0 %987
      %989 = vrot.lane.b32.xlu0 %v254, 96
      %v990 = vpop.permute.xlu0 %989
      %991 = vrot.lane.b32.xlu0 %v255, 96
      %v992 = vpop.permute.xlu0 %991
      %993 = vrot.lane.b32.xlu0 %v256, 96
      %v994 = vpop.permute.xlu0 %993
      %995 = vrot.lane.b32.xlu0 %v257, 96
      %v996 = vpop.permute.xlu0 %995
      %997 = vrot.lane.b32.xlu0 %v258, 96
      %v998 = vpop.permute.xlu0 %997
      %999 = vrot.lane.b32.xlu0 %v259, 96
      %v1000 = vpop.permute.xlu0 %999
      %1001 = vrot.lane.b32.xlu0 %v260, 96
      %v1002 = vpop.permute.xlu0 %1001
      %1003 = vrot.lane.b32.xlu0 %v261, 96
      %v1004 = vpop.permute.xlu0 %1003
      %1005 = vrot.lane.b32.xlu0 %v262, 96
      %v1006 = vpop.permute.xlu0 %1005
      %1007 = vrot.lane.b32.xlu0 %v263, 96
      %v1008 = vpop.permute.xlu0 %1007
      %1009 = vrot.lane.b32.xlu0 %v264, 96
      %v1010 = vpop.permute.xlu0 %1009
      %1011 = vrot.lane.b32.xlu0 %v265, 96
      %v1012 = vpop.permute.xlu0 %1011
      %1013 = vrot.lane.b32.xlu0 %v266, 96
      %v1014 = vpop.permute.xlu0 %1013
      %1015 = vrot.lane.b32.xlu0 %v267, 96
      %v1016 = vpop.permute.xlu0 %1015
      %1017 = vrot.lane.b32.xlu0 %v268, 96
      %v1018 = vpop.permute.xlu0 %1017
      %1019 = vrot.lane.b32.xlu0 %v269, 96
      %v1020 = vpop.permute.xlu0 %1019
      %1021 = vrot.lane.b32.xlu0 %v270, 96
      %v1022 = vpop.permute.xlu0 %1021
      %1023 = vrot.lane.b32.xlu0 %v271, 96
      %v1024 = vpop.permute.xlu0 %1023
      %1025 = vrot.lane.b32.xlu0 %v272, 96
      %v1026 = vpop.permute.xlu0 %1025
      %1027 = vrot.lane.b32.xlu0 %v273, 96
      %v1028 = vpop.permute.xlu0 %1027
      %1029 = vrot.lane.b32.xlu0 %v274, 96
      %v1030 = vpop.permute.xlu0 %1029
      %1031 = vrot.lane.b32.xlu0 %v275, 96
      %v1032 = vpop.permute.xlu0 %1031
      %1033 = vrot.lane.b32.xlu0 %v276, 96
      %v1034 = vpop.permute.xlu0 %1033
      %1035 = vrot.lane.b32.xlu0 %v277, 96
      %v1036 = vpop.permute.xlu0 %1035
      %1037 = vrot.lane.b32.xlu0 %v278, 96
      %v1038 = vpop.permute.xlu0 %1037
      %1039 = vrot.lane.b32.xlu0 %v279, 96
      %v1040 = vpop.permute.xlu0 %1039
      %1041 = vrot.lane.b32.xlu0 %v280, 96
      %v1042 = vpop.permute.xlu0 %1041
      %1043 = vrot.lane.b32.xlu0 %v281, 96
      %v1044 = vpop.permute.xlu0 %1043
      %1045 = vrot.lane.b32.xlu0 %v282, 96
      %v1046 = vpop.permute.xlu0 %1045
      %1047 = vrot.lane.b32.xlu0 %v283, 96
      %v1048 = vpop.permute.xlu0 %1047
      %1049 = vrot.lane.b32.xlu0 %v284, 96
      %v1050 = vpop.permute.xlu0 %1049
      %1051 = vrot.lane.b32.xlu0 %v285, 96
      %v1052 = vpop.permute.xlu0 %1051
      %1053 = vrot.lane.b32.xlu0 %v286, 96
      %v1054 = vpop.permute.xlu0 %1053
      %v1119 = vmul.f32 %v799, %v928
      %v1120 = vmul.f32 %v800, %v930
      %v1121 = vmul.f32 %v801, %v932
      %v1122 = vmul.f32 %v802, %v934
      %v1123 = vmul.f32 %v803, %v936
      %v1124 = vmul.f32 %v804, %v938
      %v1125 = vmul.f32 %v805, %v940
      %v1126 = vmul.f32 %v806, %v942
      %v1127 = vmul.f32 %v807, %v944
      %v1128 = vmul.f32 %v808, %v946
      %v1129 = vmul.f32 %v809, %v948
      %v1130 = vmul.f32 %v810, %v950
      %v1131 = vmul.f32 %v811, %v952
      %v1132 = vmul.f32 %v812, %v954
      %v1133 = vmul.f32 %v813, %v956
      %v1134 = vmul.f32 %v814, %v958
      %v1135 = vmul.f32 %v815, %v960
      %v1136 = vmul.f32 %v816, %v962
      %v1137 = vmul.f32 %v817, %v964
      %v1138 = vmul.f32 %v818, %v966
      %v1139 = vmul.f32 %v819, %v968
      %v1140 = vmul.f32 %v820, %v970
      %v1141 = vmul.f32 %v821, %v972
      %v1142 = vmul.f32 %v822, %v974
      %v1143 = vmul.f32 %v823, %v976
      %v1144 = vmul.f32 %v824, %v978
      %v1145 = vmul.f32 %v825, %v980
      %v1146 = vmul.f32 %v826, %v982
      %v1147 = vmul.f32 %v827, %v984
      %v1148 = vmul.f32 %v828, %v986
      %v1149 = vmul.f32 %v829, %v988
      %v1150 = vmul.f32 %v830, %v990
      %v1151 = vmul.f32 %v831, %v992
      %v1152 = vmul.f32 %v832, %v994
      %v1153 = vmul.f32 %v833, %v996
      %v1154 = vmul.f32 %v834, %v998
      %v1155 = vmul.f32 %v835, %v1000
      %v1156 = vmul.f32 %v836, %v1002
      %v1157 = vmul.f32 %v837, %v1004
      %v1158 = vmul.f32 %v838, %v1006
      %v1159 = vmul.f32 %v839, %v1008
      %v1160 = vmul.f32 %v840, %v1010
      %v1161 = vmul.f32 %v841, %v1012
      %v1162 = vmul.f32 %v842, %v1014
      %v1163 = vmul.f32 %v843, %v1016
      %v1164 = vmul.f32 %v844, %v1018
      %v1165 = vmul.f32 %v845, %v1020
      %v1166 = vmul.f32 %v846, %v1022
      %v1167 = vmul.f32 %v847, %v1024
      %v1168 = vmul.f32 %v848, %v1026
      %v1169 = vmul.f32 %v849, %v1028
      %v1170 = vmul.f32 %v850, %v1030
      %v1171 = vmul.f32 %v851, %v1032
      %v1172 = vmul.f32 %v852, %v1034
      %v1173 = vmul.f32 %v853, %v1036
      %v1174 = vmul.f32 %v854, %v1038
      %v1175 = vmul.f32 %v855, %v1040
      %v1176 = vmul.f32 %v856, %v1042
      %v1177 = vmul.f32 %v857, %v1044
      %v1178 = vmul.f32 %v858, %v1046
      %v1179 = vmul.f32 %v859, %v1048
      %v1180 = vmul.f32 %v860, %v1050
      %v1181 = vmul.f32 %v861, %v1052
      %v1182 = vmul.f32 %v862, %v1054
      %v1183 = vld [vmem:[%s1] sm:$0xff]
      %v1184 = vld [vmem:[%s1 + $0x8] sm:$0xff]
      %v1185 = vld [vmem:[%s1 + $0x10] sm:$0xff]
      %v1186 = vld [vmem:[%s1 + $0x18] sm:$0xff]
      %v1187 = vld [vmem:[%s2] sm:$0x1]
      %v1189 = vlaneseq
      %v1190 = vshrl.u32 %v1189, 7
      %v1191 = vsub.s32 0, %v1190
      %v1192 = vrot.slane %v1187, %v1191
      %vm1194 = vcmask 261120
      %v1196 = vsel %vm1194, %v1119, 0
      %v1199 = vsel %vm1194, %v1120, 0
      %v1202 = vsel %vm1194, %v1121, 0
      %v1205 = vsel %vm1194, %v1122, 0
      %v1208 = vsel %vm1194, %v1123, 0
      %v1211 = vsel %vm1194, %v1124, 0
      %v1214 = vsel %vm1194, %v1125, 0
      %v1217 = vsel %vm1194, %v1126, 0
      %v1220 = vsel %vm1194, %v1127, 0
      %v1223 = vsel %vm1194, %v1128, 0
      %v1226 = vsel %vm1194, %v1129, 0
      %v1229 = vsel %vm1194, %v1130, 0
      %v1232 = vsel %vm1194, %v1131, 0
      %v1235 = vsel %vm1194, %v1132, 0
      %v1238 = vsel %vm1194, %v1133, 0
      %v1241 = vsel %vm1194, %v1134, 0
      %v1244 = vsel %vm1194, %v1135, 0
      %v1247 = vsel %vm1194, %v1136, 0
      %v1250 = vsel %vm1194, %v1137, 0
      %v1253 = vsel %vm1194, %v1138, 0
      %v1256 = vsel %vm1194, %v1139, 0
      %v1259 = vsel %vm1194, %v1140, 0
      %v1262 = vsel %vm1194, %v1141, 0
      %v1265 = vsel %vm1194, %v1142, 0
      %v1268 = vsel %vm1194, %v1143, 0
      %v1271 = vsel %vm1194, %v1144, 0
      %v1274 = vsel %vm1194, %v1145, 0
      %v1277 = vsel %vm1194, %v1146, 0
      %v1280 = vsel %vm1194, %v1147, 0
      %v1283 = vsel %vm1194, %v1148, 0
      %v1286 = vsel %vm1194, %v1149, 0
      %v1289 = vsel %vm1194, %v1150, 0
      %v1292 = vsel %vm1194, %v1151, 0
      %v1295 = vsel %vm1194, %v1152, 0
      %v1298 = vsel %vm1194, %v1153, 0
      %v1301 = vsel %vm1194, %v1154, 0
      %v1304 = vsel %vm1194, %v1155, 0
      %v1307 = vsel %vm1194, %v1156, 0
      %v1310 = vsel %vm1194, %v1157, 0
      %v1313 = vsel %vm1194, %v1158, 0
      %v1316 = vsel %vm1194, %v1159, 0
      %v1319 = vsel %vm1194, %v1160, 0
      %v1322 = vsel %vm1194, %v1161, 0
      %v1325 = vsel %vm1194, %v1162, 0
      %v1328 = vsel %vm1194, %v1163, 0
      %v1331 = vsel %vm1194, %v1164, 0
      %v1334 = vsel %vm1194, %v1165, 0
      %v1337 = vsel %vm1194, %v1166, 0
      %v1340 = vsel %vm1194, %v1167, 0
      %v1343 = vsel %vm1194, %v1168, 0
      %v1346 = vsel %vm1194, %v1169, 0
      %v1349 = vsel %vm1194, %v1170, 0
      %v1352 = vsel %vm1194, %v1171, 0
      %v1355 = vsel %vm1194, %v1172, 0
      %v1358 = vsel %vm1194, %v1173, 0
      %v1361 = vsel %vm1194, %v1174, 0
      %v1364 = vsel %vm1194, %v1175, 0
      %v1367 = vsel %vm1194, %v1176, 0
      %v1370 = vsel %vm1194, %v1177, 0
      %v1373 = vsel %vm1194, %v1178, 0
      %v1376 = vsel %vm1194, %v1179, 0
      %v1379 = vsel %vm1194, %v1180, 0
      %v1382 = vsel %vm1194, %v1181, 0
      %v1385 = vsel %vm1194, %v1182, 0
      %1387 = vmatprep.subr.mxu0 0.0
      %1388 = vmatpush1.msra.mxu0 %v1183
      %1389 = vmatprep.subr.mxu0 0.0
      %1390 = vmatpush1.msra.mxu0 %v1184
      %1391 = vmatprep.subr.mxu0 0.0
      %1392 = vmatpush1.msra.mxu0 %v1185
      %1393 = vmatprep.subr.mxu0 0.0
      %1394 = vmatpush1.msra.mxu0 %v1186
      %1395 = vmatprep.subr.mxu0 0.0
      %1396 = vmatpush1.msra.mxu0 0.0
      %1397 = vmatprep.subr.mxu0 0.0
      %1398 = vmatpush1.msra.mxu0 0.0
      %1399 = vmatprep.subr.mxu0 0.0
      %1400 = vmatpush1.msra.mxu0 0.0
      %1401 = vmatprep.subr.mxu0 0.0
      %1402 = vmatpush1.msra.mxu0 0.0
      %1403 = vmatprep.subr.mxu0 0.0
      %1404 = vmatpush1.msra.mxu0 0.0
      %1405 = vmatprep.subr.mxu0 0.0
      %1406 = vmatpush1.msra.mxu0 0.0
      %1407 = vmatprep.subr.mxu0 0.0
      %1408 = vmatpush1.msra.mxu0 0.0
      %1409 = vmatprep.subr.mxu0 0.0
      %1410 = vmatpush1.msra.mxu0 0.0
      %1411 = vmatprep.subr.mxu0 0.0
      %1412 = vmatpush1.msra.mxu0 0.0
      %1413 = vmatprep.subr.mxu0 0.0
      %1414 = vmatpush1.msra.mxu0 0.0
      %1415 = vmatprep.subr.mxu0 0.0
      %1416 = vmatpush1.msra.mxu0 0.0
      %1417 = vmatprep.subr.mxu0 0.0
      %1418 = vmatpush1.msra.mxu0 0.0
      %1419 = vmatprep.subr.mxu0 0.0
      %1420 = vmatpush1.msra.mxu0 0.0
      %1421 = vmatprep.subr.mxu0 0.0
      %1422 = vmatpush1.msra.mxu0 0.0
      %1423 = vmatprep.subr.mxu0 0.0
      %1424 = vmatpush1.msra.mxu0 0.0
      %1425 = vmatprep.subr.mxu0 0.0
      %1426 = vmatpush1.msra.mxu0 0.0
      %1427 = vmatprep.subr.mxu0 0.0
      %1428 = vmatpush1.msra.mxu0 0.0
      %1429 = vmatprep.subr.mxu0 0.0
      %1430 = vmatpush1.msra.mxu0 0.0
      %1431 = vmatprep.subr.mxu0 0.0
      %1432 = vmatpush1.msra.mxu0 0.0
      %1433 = vmatprep.subr.mxu0 0.0
      %1434 = vmatpush1.msra.mxu0 0.0
      %1435 = vmatprep.subr.mxu0 0.0
      %1436 = vmatpush1.msra.mxu0 0.0
      %1437 = vmatprep.subr.mxu0 0.0
      %1438 = vmatpush1.msra.mxu0 0.0
      %1439 = vmatprep.subr.mxu0 0.0
      %1440 = vmatpush1.msra.mxu0 0.0
      %1441 = vmatprep.subr.mxu0 0.0
      %1442 = vmatpush1.msra.mxu0 0.0
      %1443 = vmatprep.subr.mxu0 0.0
      %1444 = vmatpush1.msra.mxu0 0.0
      %1445 = vmatprep.subr.mxu0 0.0
      %1446 = vmatpush1.msra.mxu0 0.0
      %1447 = vmatprep.subr.mxu0 0.0
      %1448 = vmatpush1.msra.mxu0 0.0
      %1449 = vmatprep.subr.mxu0 0.0
      %1450 = vmatpush1.msra.mxu0 0.0
      %1451 = vmatprep.mubr.f32.mxu0 0.0
      %1452 = vmatmul.mubr.f32.gmra.mrb[0].mxu0 %v1196
      %v1453 = vpop.f32.mrb[0].mxu0
      %v1454 = vadd.f32 %v1192, %v1453
      %v1455 = vpop.f32.mrb[0].mxu0
      %1456 = vmatprep.mubr.f32.mxu0 0.0
      %1457 = vmatmul.mubr.f32.gmra.mrb[0].mxu0 %v1199
      %v1458 = vpop.f32.mrb[0].mxu0
      %v1459 = vadd.f32 %v1192, %v1458
      %v1460 = vpop.f32.mrb[0].mxu0
      %1461 = vmatprep.mubr.f32.mxu0 0.0
      %1462 = vmatmul.mubr.f32.gmra.mrb[0].mxu0 %v1202
      %v1463 = vpop.f32.mrb[0].mxu0
      %v1464 = vadd.f32 %v1192, %v1463
      %v1465 = vpop.f32.mrb[0].mxu0
      %1466 = vmatprep.mubr.f32.mxu0 0.0
      %1467 = vmatmul.mubr.f32.gmra.mrb[0].mxu0 %v1205
      %v1468 = vpop.f32.mrb[0].mxu0
      %v1469 = vadd.f32 %v1192, %v1468
      %v1470 = vpop.f32.mrb[0].mxu0
      %1471 = vmatprep.mubr.f32.mxu0 0.0
      %1472 = vmatmul.mubr.f32.gmra.mrb[0].mxu0 %v1208
      %v1473 = vpop.f32.mrb[0].mxu0
      %v1474 = vadd.f32 %v1192, %v1473
      %v1475 = vpop.f32.mrb[0].mxu0
      %1476 = vmatprep.mubr.f32.mxu0 0.0
      %1477 = vmatmul.mubr.f32.gmra.mrb[0].mxu0 %v1211
      %v1478 = vpop.f32.mrb[0].mxu0
      %v1479 = vadd.f32 %v1192, %v1478
      %v1480 = vpop.f32.mrb[0].mxu0
      %1481 = vmatprep.mubr.f32.mxu0 0.0
      %1482 = vmatmul.mubr.f32.gmra.mrb[0].mxu0 %v1214
      %v1483 = vpop.f32.mrb[0].mxu0
      %v1484 = vadd.f32 %v1192, %v1483
      %v1485 = vpop.f32.mrb[0].mxu0
      %1486 = vmatprep.mubr.f32.mxu0 0.0
      %1487 = vmatmul.mubr.f32.gmra.mrb[0].mxu0 %v1217
      %v1488 = vpop.f32.mrb[0].mxu0
      %v1489 = vadd.f32 %v1192, %v1488
      %v1490 = vpop.f32.mrb[0].mxu0
      %1491 = vmatprep.mubr.f32.mxu0 0.0
      %1492 = vmatmul.mubr.f32.gmra.mrb[0].mxu0 %v1220
      %v1493 = vpop.f32.mrb[0].mxu0
      %v1494 = vadd.f32 %v1192, %v1493
      %v1495 = vpop.f32.mrb[0].mxu0
      %1496 = vmatprep.mubr.f32.mxu0 0.0
      %1497 = vmatmul.mubr.f32.gmra.mrb[0].mxu0 %v1223
      %v1498 = vpop.f32.mrb[0].mxu0
      %v1499 = vadd.f32 %v1192, %v1498
      %v1500 = vpop.f32.mrb[0].mxu0
      %1501 = vmatprep.mubr.f32.mxu0 0.0
      %1502 = vmatmul.mubr.f32.gmra.mrb[0].mxu0 %v1226
      %v1503 = vpop.f32.mrb[0].mxu0
      %v1504 = vadd.f32 %v1192, %v1503
      %v1505 = vpop.f32.mrb[0].mxu0
      %1506 = vmatprep.mubr.f32.mxu0 0.0
      %1507 = vmatmul.mubr.f32.gmra.mrb[0].mxu0 %v1229
      %v1508 = vpop.f32.mrb[0].mxu0
      %v1509 = vadd.f32 %v1192, %v1508
      %v1510 = vpop.f32.mrb[0].mxu0
      %1511 = vmatprep.mubr.f32.mxu0 0.0
      %1512 = vmatmul.mubr.f32.gmra.mrb[0].mxu0 %v1232
      %v1513 = vpop.f32.mrb[0].mxu0
      %v1514 = vadd.f32 %v1192, %v1513
      %v1515 = vpop.f32.mrb[0].mxu0
      %1516 = vmatprep.mubr.f32.mxu0 0.0
      %1517 = vmatmul.mubr.f32.gmra.mrb[0].mxu0 %v1235
      %v1518 = vpop.f32.mrb[0].mxu0
      %v1519 = vadd.f32 %v1192, %v1518
      %v1520 = vpop.f32.mrb[0].mxu0
      %1521 = vmatprep.mubr.f32.mxu0 0.0
      %1522 = vmatmul.mubr.f32.gmra.mrb[0].mxu0 %v1238
      %v1523 = vpop.f32.mrb[0].mxu0
      %v1524 = vadd.f32 %v1192, %v1523
      %v1525 = vpop.f32.mrb[0].mxu0
      %1526 = vmatprep.mubr.f32.mxu0 0.0
      %1527 = vmatmul.mubr.f32.gmra.mrb[0].mxu0 %v1241
      %v1528 = vpop.f32.mrb[0].mxu0
      %v1529 = vadd.f32 %v1192, %v1528
      %v1530 = vpop.f32.mrb[0].mxu0
      %1531 = vmatprep.mubr.f32.mxu0 0.0
      %1532 = vmatmul.mubr.f32.gmra.mrb[0].mxu0 %v1244
      %v1533 = vpop.f32.mrb[0].mxu0
      %v1534 = vadd.f32 %v1192, %v1533
      %v1535 = vpop.f32.mrb[0].mxu0
      %1536 = vmatprep.mubr.f32.mxu0 0.0
      %1537 = vmatmul.mubr.f32.gmra.mrb[0].mxu0 %v1247
      %v1538 = vpop.f32.mrb[0].mxu0
      %v1539 = vadd.f32 %v1192, %v1538
      %v1540 = vpop.f32.mrb[0].mxu0
      %1541 = vmatprep.mubr.f32.mxu0 0.0
      %1542 = vmatmul.mubr.f32.gmra.mrb[0].mxu0 %v1250
      %v1543 = vpop.f32.mrb[0].mxu0
      %v1544 = vadd.f32 %v1192, %v1543
      %v1545 = vpop.f32.mrb[0].mxu0
      %1546 = vmatprep.mubr.f32.mxu0 0.0
      %1547 = vmatmul.mubr.f32.gmra.mrb[0].mxu0 %v1253
      %v1548 = vpop.f32.mrb[0].mxu0
      %v1549 = vadd.f32 %v1192, %v1548
      %v1550 = vpop.f32.mrb[0].mxu0
      %1551 = vmatprep.mubr.f32.mxu0 0.0
      %1552 = vmatmul.mubr.f32.gmra.mrb[0].mxu0 %v1256
      %v1553 = vpop.f32.mrb[0].mxu0
      %v1554 = vadd.f32 %v1192, %v1553
      %v1555 = vpop.f32.mrb[0].mxu0
      %1556 = vmatprep.mubr.f32.mxu0 0.0
      %1557 = vmatmul.mubr.f32.gmra.mrb[0].mxu0 %v1259
      %v1558 = vpop.f32.mrb[0].mxu0
      %v1559 = vadd.f32 %v1192, %v1558
      %v1560 = vpop.f32.mrb[0].mxu0
      %1561 = vmatprep.mubr.f32.mxu0 0.0
      %1562 = vmatmul.mubr.f32.gmra.mrb[0].mxu0 %v1262
      %v1563 = vpop.f32.mrb[0].mxu0
      %v1564 = vadd.f32 %v1192, %v1563
      %v1565 = vpop.f32.mrb[0].mxu0
      %1566 = vmatprep.mubr.f32.mxu0 0.0
      %1567 = vmatmul.mubr.f32.gmra.mrb[0].mxu0 %v1265
      %v1568 = vpop.f32.mrb[0].mxu0
      %v1569 = vadd.f32 %v1192, %v1568
      %v1570 = vpop.f32.mrb[0].mxu0
      %1571 = vmatprep.mubr.f32.mxu0 0.0
      %1572 = vmatmul.mubr.f32.gmra.mrb[0].mxu0 %v1268
      %v1573 = vpop.f32.mrb[0].mxu0
      %v1574 = vadd.f32 %v1192, %v1573
      %v1575 = vpop.f32.mrb[0].mxu0
      %1576 = vmatprep.mubr.f32.mxu0 0.0
      %1577 = vmatmul.mubr.f32.gmra.mrb[0].mxu0 %v1271
      %v1578 = vpop.f32.mrb[0].mxu0
      %v1579 = vadd.f32 %v1192, %v1578
      %v1580 = vpop.f32.mrb[0].mxu0
      %1581 = vmatprep.mubr.f32.mxu0 0.0
      %1582 = vmatmul.mubr.f32.gmra.mrb[0].mxu0 %v1274
      %v1583 = vpop.f32.mrb[0].mxu0
      %v1584 = vadd.f32 %v1192, %v1583
      %v1585 = vpop.f32.mrb[0].mxu0
      %1586 = vmatprep.mubr.f32.mxu0 0.0
      %1587 = vmatmul.mubr.f32.gmra.mrb[0].mxu0 %v1277
      %v1588 = vpop.f32.mrb[0].mxu0
      %v1589 = vadd.f32 %v1192, %v1588
      %v1590 = vpop.f32.mrb[0].mxu0
      %1591 = vmatprep.mubr.f32.mxu0 0.0
      %1592 = vmatmul.mubr.f32.gmra.mrb[0].mxu0 %v1280
      %v1593 = vpop.f32.mrb[0].mxu0
      %v1594 = vadd.f32 %v1192, %v1593
      %v1595 = vpop.f32.mrb[0].mxu0
      %1596 = vmatprep.mubr.f32.mxu0 0.0
      %1597 = vmatmul.mubr.f32.gmra.mrb[0].mxu0 %v1283
      %v1598 = vpop.f32.mrb[0].mxu0
      %v1599 = vadd.f32 %v1192, %v1598
      %v1600 = vpop.f32.mrb[0].mxu0
      %1601 = vmatprep.mubr.f32.mxu0 0.0
      %1602 = vmatmul.mubr.f32.gmra.mrb[0].mxu0 %v1286
      %v1603 = vpop.f32.mrb[0].mxu0
      %v1604 = vadd.f32 %v1192, %v1603
      %v1605 = vpop.f32.mrb[0].mxu0
      %1606 = vmatprep.mubr.f32.mxu0 0.0
      %1607 = vmatmul.mubr.f32.gmra.mrb[0].mxu0 %v1289
      %v1608 = vpop.f32.mrb[0].mxu0
      %v1609 = vadd.f32 %v1192, %v1608
      %v1610 = vpop.f32.mrb[0].mxu0
      %1611 = vmatprep.mubr.f32.mxu0 0.0
      %1612 = vmatmul.mubr.f32.gmra.mrb[0].mxu0 %v1292
      %v1613 = vpop.f32.mrb[0].mxu0
      %v1614 = vadd.f32 %v1192, %v1613
      %v1615 = vpop.f32.mrb[0].mxu0
      %1616 = vmatprep.mubr.f32.mxu0 0.0
      %1617 = vmatmul.mubr.f32.gmra.mrb[0].mxu0 %v1295
      %v1618 = vpop.f32.mrb[0].mxu0
      %v1619 = vadd.f32 %v1192, %v1618
      %v1620 = vpop.f32.mrb[0].mxu0
      %1621 = vmatprep.mubr.f32.mxu0 0.0
      %1622 = vmatmul.mubr.f32.gmra.mrb[0].mxu0 %v1298
      %v1623 = vpop.f32.mrb[0].mxu0
      %v1624 = vadd.f32 %v1192, %v1623
      %v1625 = vpop.f32.mrb[0].mxu0
      %1626 = vmatprep.mubr.f32.mxu0 0.0
      %1627 = vmatmul.mubr.f32.gmra.mrb[0].mxu0 %v1301
      %v1628 = vpop.f32.mrb[0].mxu0
      %v1629 = vadd.f32 %v1192, %v1628
      %v1630 = vpop.f32.mrb[0].mxu0
      %1631 = vmatprep.mubr.f32.mxu0 0.0
      %1632 = vmatmul.mubr.f32.gmra.mrb[0].mxu0 %v1304
      %v1633 = vpop.f32.mrb[0].mxu0
      %v1634 = vadd.f32 %v1192, %v1633
      %v1635 = vpop.f32.mrb[0].mxu0
      %1636 = vmatprep.mubr.f32.mxu0 0.0
      %1637 = vmatmul.mubr.f32.gmra.mrb[0].mxu0 %v1307
      %v1638 = vpop.f32.mrb[0].mxu0
      %v1639 = vadd.f32 %v1192, %v1638
      %v1640 = vpop.f32.mrb[0].mxu0
      %1641 = vmatprep.mubr.f32.mxu0 0.0
      %1642 = vmatmul.mubr.f32.gmra.mrb[0].mxu0 %v1310
      %v1643 = vpop.f32.mrb[0].mxu0
      %v1644 = vadd.f32 %v1192, %v1643
      %v1645 = vpop.f32.mrb[0].mxu0
      %1646 = vmatprep.mubr.f32.mxu0 0.0
      %1647 = vmatmul.mubr.f32.gmra.mrb[0].mxu0 %v1313
      %v1648 = vpop.f32.mrb[0].mxu0
      %v1649 = vadd.f32 %v1192, %v1648
      %v1650 = vpop.f32.mrb[0].mxu0
      %1651 = vmatprep.mubr.f32.mxu0 0.0
      %1652 = vmatmul.mubr.f32.gmra.mrb[0].mxu0 %v1316
      %v1653 = vpop.f32.mrb[0].mxu0
      %v1654 = vadd.f32 %v1192, %v1653
      %v1655 = vpop.f32.mrb[0].mxu0
      %1656 = vmatprep.mubr.f32.mxu0 0.0
      %1657 = vmatmul.mubr.f32.gmra.mrb[0].mxu0 %v1319
      %v1658 = vpop.f32.mrb[0].mxu0
      %v1659 = vadd.f32 %v1192, %v1658
      %v1660 = vpop.f32.mrb[0].mxu0
      %1661 = vmatprep.mubr.f32.mxu0 0.0
      %1662 = vmatmul.mubr.f32.gmra.mrb[0].mxu0 %v1322
      %v1663 = vpop.f32.mrb[0].mxu0
      %v1664 = vadd.f32 %v1192, %v1663
      %v1665 = vpop.f32.mrb[0].mxu0
      %1666 = vmatprep.mubr.f32.mxu0 0.0
      %1667 = vmatmul.mubr.f32.gmra.mrb[0].mxu0 %v1325
      %v1668 = vpop.f32.mrb[0].mxu0
      %v1669 = vadd.f32 %v1192, %v1668
      %v1670 = vpop.f32.mrb[0].mxu0
      %1671 = vmatprep.mubr.f32.mxu0 0.0
      %1672 = vmatmul.mubr.f32.gmra.mrb[0].mxu0 %v1328
      %v1673 = vpop.f32.mrb[0].mxu0
      %v1674 = vadd.f32 %v1192, %v1673
      %v1675 = vpop.f32.mrb[0].mxu0
      %1676 = vmatprep.mubr.f32.mxu0 0.0
      %1677 = vmatmul.mubr.f32.gmra.mrb[0].mxu0 %v1331
      %v1678 = vpop.f32.mrb[0].mxu0
      %v1679 = vadd.f32 %v1192, %v1678
      %v1680 = vpop.f32.mrb[0].mxu0
      %1681 = vmatprep.mubr.f32.mxu0 0.0
      %1682 = vmatmul.mubr.f32.gmra.mrb[0].mxu0 %v1334
      %v1683 = vpop.f32.mrb[0].mxu0
      %v1684 = vadd.f32 %v1192, %v1683
      %v1685 = vpop.f32.mrb[0].mxu0
      %1686 = vmatprep.mubr.f32.mxu0 0.0
      %1687 = vmatmul.mubr.f32.gmra.mrb[0].mxu0 %v1337
      %v1688 = vpop.f32.mrb[0].mxu0
      %v1689 = vadd.f32 %v1192, %v1688
      %v1690 = vpop.f32.mrb[0].mxu0
      %1691 = vmatprep.mubr.f32.mxu0 0.0
      %1692 = vmatmul.mubr.f32.gmra.mrb[0].mxu0 %v1340
      %v1693 = vpop.f32.mrb[0].mxu0
      %v1694 = vadd.f32 %v1192, %v1693
      %v1695 = vpop.f32.mrb[0].mxu0
      %1696 = vmatprep.mubr.f32.mxu0 0.0
      %1697 = vmatmul.mubr.f32.gmra.mrb[0].mxu0 %v1343
      %v1698 = vpop.f32.mrb[0].mxu0
      %v1699 = vadd.f32 %v1192, %v1698
      %v1700 = vpop.f32.mrb[0].mxu0
      %1701 = vmatprep.mubr.f32.mxu0 0.0
      %1702 = vmatmul.mubr.f32.gmra.mrb[0].mxu0 %v1346
      %v1703 = vpop.f32.mrb[0].mxu0
      %v1704 = vadd.f32 %v1192, %v1703
      %v1705 = vpop.f32.mrb[0].mxu0
      %1706 = vmatprep.mubr.f32.mxu0 0.0
      %1707 = vmatmul.mubr.f32.gmra.mrb[0].mxu0 %v1349
      %v1708 = vpop.f32.mrb[0].mxu0
      %v1709 = vadd.f32 %v1192, %v1708
      %v1710 = vpop.f32.mrb[0].mxu0
      %1711 = vmatprep.mubr.f32.mxu0 0.0
      %1712 = vmatmul.mubr.f32.gmra.mrb[0].mxu0 %v1352
      %v1713 = vpop.f32.mrb[0].mxu0
      %v1714 = vadd.f32 %v1192, %v1713
      %v1715 = vpop.f32.mrb[0].mxu0
      %1716 = vmatprep.mubr.f32.mxu0 0.0
      %1717 = vmatmul.mubr.f32.gmra.mrb[0].mxu0 %v1355
      %v1718 = vpop.f32.mrb[0].mxu0
      %v1719 = vadd.f32 %v1192, %v1718
      %v1720 = vpop.f32.mrb[0].mxu0
      %1721 = vmatprep.mubr.f32.mxu0 0.0
      %1722 = vmatmul.mubr.f32.gmra.mrb[0].mxu0 %v1358
      %v1723 = vpop.f32.mrb[0].mxu0
      %v1724 = vadd.f32 %v1192, %v1723
      %v1725 = vpop.f32.mrb[0].mxu0
      %1726 = vmatprep.mubr.f32.mxu0 0.0
      %1727 = vmatmul.mubr.f32.gmra.mrb[0].mxu0 %v1361
      %v1728 = vpop.f32.mrb[0].mxu0
      %v1729 = vadd.f32 %v1192, %v1728
      %v1730 = vpop.f32.mrb[0].mxu0
      %1731 = vmatprep.mubr.f32.mxu0 0.0
      %1732 = vmatmul.mubr.f32.gmra.mrb[0].mxu0 %v1364
      %v1733 = vpop.f32.mrb[0].mxu0
      %v1734 = vadd.f32 %v1192, %v1733
      %v1735 = vpop.f32.mrb[0].mxu0
      %1736 = vmatprep.mubr.f32.mxu0 0.0
      %1737 = vmatmul.mubr.f32.gmra.mrb[0].mxu0 %v1367
      %v1738 = vpop.f32.mrb[0].mxu0
      %v1739 = vadd.f32 %v1192, %v1738
      %v1740 = vpop.f32.mrb[0].mxu0
      %1741 = vmatprep.mubr.f32.mxu0 0.0
      %1742 = vmatmul.mubr.f32.gmra.mrb[0].mxu0 %v1370
      %v1743 = vpop.f32.mrb[0].mxu0
      %v1744 = vadd.f32 %v1192, %v1743
      %v1745 = vpop.f32.mrb[0].mxu0
      %1746 = vmatprep.mubr.f32.mxu0 0.0
      %1747 = vmatmul.mubr.f32.gmra.mrb[0].mxu0 %v1373
      %v1748 = vpop.f32.mrb[0].mxu0
      %v1749 = vadd.f32 %v1192, %v1748
      %v1750 = vpop.f32.mrb[0].mxu0
      %1751 = vmatprep.mubr.f32.mxu0 0.0
      %1752 = vmatmul.mubr.f32.gmra.mrb[0].mxu0 %v1376
      %v1753 = vpop.f32.mrb[0].mxu0
      %v1754 = vadd.f32 %v1192, %v1753
      %v1755 = vpop.f32.mrb[0].mxu0
      %1756 = vmatprep.mubr.f32.mxu0 0.0
      %1757 = vmatmul.mubr.f32.gmra.mrb[0].mxu0 %v1379
      %v1758 = vpop.f32.mrb[0].mxu0
      %v1759 = vadd.f32 %v1192, %v1758
      %v1760 = vpop.f32.mrb[0].mxu0
      %1761 = vmatprep.mubr.f32.mxu0 0.0
      %1762 = vmatmul.mubr.f32.gmra.mrb[0].mxu0 %v1382
      %v1763 = vpop.f32.mrb[0].mxu0
      %v1764 = vadd.f32 %v1192, %v1763
      %v1765 = vpop.f32.mrb[0].mxu0
      %1766 = vmatprep.mubr.f32.mxu0 0.0
      %1767 = vmatmul.mubr.f32.gmra.mrb[0].mxu0 %v1385
      %v1768 = vpop.f32.mrb[0].mxu0
      %v1769 = vadd.f32 %v1192, %v1768
      %v1770 = vpop.f32.mrb[0].mxu0
      %1771 = vdwg.mxu0
      %v1772 = vld [vmem:[%s215] sm:$0xff]
      %v1773 = vld [vmem:[%s215 + $0x8] sm:$0xff]
      %v1774 = vld [vmem:[%s215 + $0x10] sm:$0xff]
      %v1775 = vld [vmem:[%s215 + $0x18] sm:$0xff]
      %v1776 = vld [vmem:[%s215 + $0x20] sm:$0xff]
      %v1777 = vld [vmem:[%s215 + $0x28] sm:$0xff]
      %v1778 = vld [vmem:[%s215 + $0x30] sm:$0xff]
      %v1779 = vld [vmem:[%s215 + $0x38] sm:$0xff]
      %v1780 = vld [vmem:[%s215 + $0x40] sm:$0xff]
      %v1781 = vld [vmem:[%s215 + $0x48] sm:$0xff]
      %v1782 = vld [vmem:[%s215 + $0x50] sm:$0xff]
      %v1783 = vld [vmem:[%s215 + $0x58] sm:$0xff]
      %v1784 = vld [vmem:[%s215 + $0x60] sm:$0xff]
      %v1785 = vld [vmem:[%s215 + $0x68] sm:$0xff]
      %v1786 = vld [vmem:[%s215 + $0x70] sm:$0xff]
      %v1787 = vld [vmem:[%s215 + $0x78] sm:$0xff]
      %v1788 = vld [vmem:[%s215 + $0x80] sm:$0xff]
      %v1789 = vld [vmem:[%s215 + $0x88] sm:$0xff]
      %v1790 = vld [vmem:[%s215 + $0x90] sm:$0xff]
      %v1791 = vld [vmem:[%s215 + $0x98] sm:$0xff]
      %v1792 = vld [vmem:[%s215 + $0xa0] sm:$0xff]
      %v1793 = vld [vmem:[%s215 + $0xa8] sm:$0xff]
      %v1794 = vld [vmem:[%s215 + $0xb0] sm:$0xff]
      %v1795 = vld [vmem:[%s215 + $0xb8] sm:$0xff]
      %v1796 = vld [vmem:[%s215 + $0xc0] sm:$0xff]
      %v1797 = vld [vmem:[%s215 + $0xc8] sm:$0xff]
      %v1798 = vld [vmem:[%s215 + $0xd0] sm:$0xff]
      %v1799 = vld [vmem:[%s215 + $0xd8] sm:$0xff]
      %v1800 = vld [vmem:[%s215 + $0xe0] sm:$0xff]
      %v1801 = vld [vmem:[%s215 + $0xe8] sm:$0xff]
      %v1802 = vld [vmem:[%s215 + $0xf0] sm:$0xff]
      %v1803 = vld [vmem:[%s215 + $0xf8] sm:$0xff]
      %v1804 = vld [vmem:[%s215 + $0x100] sm:$0xff]
      %v1805 = vld [vmem:[%s215 + $0x108] sm:$0xff]
      %v1806 = vld [vmem:[%s215 + $0x110] sm:$0xff]
      %v1807 = vld [vmem:[%s215 + $0x118] sm:$0xff]
      %v1808 = vld [vmem:[%s215 + $0x120] sm:$0xff]
      %v1809 = vld [vmem:[%s215 + $0x128] sm:$0xff]
      %v1810 = vld [vmem:[%s215 + $0x130] sm:$0xff]
      %v1811 = vld [vmem:[%s215 + $0x138] sm:$0xff]
      %v1812 = vld [vmem:[%s215 + $0x140] sm:$0xff]
      %v1813 = vld [vmem:[%s215 + $0x148] sm:$0xff]
      %v1814 = vld [vmem:[%s215 + $0x150] sm:$0xff]
      %v1815 = vld [vmem:[%s215 + $0x158] sm:$0xff]
      %v1816 = vld [vmem:[%s215 + $0x160] sm:$0xff]
      %v1817 = vld [vmem:[%s215 + $0x168] sm:$0xff]
      %v1818 = vld [vmem:[%s215 + $0x170] sm:$0xff]
      %v1819 = vld [vmem:[%s215 + $0x178] sm:$0xff]
      %v1820 = vld [vmem:[%s215 + $0x180] sm:$0xff]
      %v1821 = vld [vmem:[%s215 + $0x188] sm:$0xff]
      %v1822 = vld [vmem:[%s215 + $0x190] sm:$0xff]
      %v1823 = vld [vmem:[%s215 + $0x198] sm:$0xff]
      %v1824 = vld [vmem:[%s215 + $0x1a0] sm:$0xff]
      %v1825 = vld [vmem:[%s215 + $0x1a8] sm:$0xff]
      %v1826 = vld [vmem:[%s215 + $0x1b0] sm:$0xff]
      %v1827 = vld [vmem:[%s215 + $0x1b8] sm:$0xff]
      %v1828 = vld [vmem:[%s215 + $0x1c0] sm:$0xff]
      %v1829 = vld [vmem:[%s215 + $0x1c8] sm:$0xff]
      %v1830 = vld [vmem:[%s215 + $0x1d0] sm:$0xff]
      %v1831 = vld [vmem:[%s215 + $0x1d8] sm:$0xff]
      %v1832 = vld [vmem:[%s215 + $0x1e0] sm:$0xff]
      %v1833 = vld [vmem:[%s215 + $0x1e8] sm:$0xff]
      %v1834 = vld [vmem:[%s215 + $0x1f0] sm:$0xff]
      %v1835 = vld [vmem:[%s215 + $0x1f8] sm:$0xff]
      %v1836 = vadd.f32 %v1454, %v1772
      %v1837 = vadd.f32 %v1459, %v1773
      %v1838 = vadd.f32 %v1464, %v1774
      %v1839 = vadd.f32 %v1469, %v1775
      %v1840 = vadd.f32 %v1474, %v1776
      %v1841 = vadd.f32 %v1479, %v1777
      %v1842 = vadd.f32 %v1484, %v1778
      %v1843 = vadd.f32 %v1489, %v1779
      %v1844 = vadd.f32 %v1494, %v1780
      %v1845 = vadd.f32 %v1499, %v1781
      %v1846 = vadd.f32 %v1504, %v1782
      %v1847 = vadd.f32 %v1509, %v1783
      %v1848 = vadd.f32 %v1514, %v1784
      %v1849 = vadd.f32 %v1519, %v1785
      %v1850 = vadd.f32 %v1524, %v1786
      %v1851 = vadd.f32 %v1529, %v1787
      %v1852 = vadd.f32 %v1534, %v1788
      %v1853 = vadd.f32 %v1539, %v1789
      %v1854 = vadd.f32 %v1544, %v1790
      %v1855 = vadd.f32 %v1549, %v1791
      %v1856 = vadd.f32 %v1554, %v1792
      %v1857 = vadd.f32 %v1559, %v1793
      %v1858 = vadd.f32 %v1564, %v1794
      %v1859 = vadd.f32 %v1569, %v1795
      %v1860 = vadd.f32 %v1574, %v1796
      %v1861 = vadd.f32 %v1579, %v1797
      %v1862 = vadd.f32 %v1584, %v1798
      %v1863 = vadd.f32 %v1589, %v1799
      %v1864 = vadd.f32 %v1594, %v1800
      %v1865 = vadd.f32 %v1599, %v1801
      %v1866 = vadd.f32 %v1604, %v1802
      %v1867 = vadd.f32 %v1609, %v1803
      %v1868 = vadd.f32 %v1614, %v1804
      %v1869 = vadd.f32 %v1619, %v1805
      %v1870 = vadd.f32 %v1624, %v1806
      %v1871 = vadd.f32 %v1629, %v1807
      %v1872 = vadd.f32 %v1634, %v1808
      %v1873 = vadd.f32 %v1639, %v1809
      %v1874 = vadd.f32 %v1644, %v1810
      %v1875 = vadd.f32 %v1649, %v1811
      %v1876 = vadd.f32 %v1654, %v1812
      %v1877 = vadd.f32 %v1659, %v1813
      %v1878 = vadd.f32 %v1664, %v1814
      %v1879 = vadd.f32 %v1669, %v1815
      %v1880 = vadd.f32 %v1674, %v1816
      %v1881 = vadd.f32 %v1679, %v1817
      %v1882 = vadd.f32 %v1684, %v1818
      %v1883 = vadd.f32 %v1689, %v1819
      %v1884 = vadd.f32 %v1694, %v1820
      %v1885 = vadd.f32 %v1699, %v1821
      %v1886 = vadd.f32 %v1704, %v1822
      %v1887 = vadd.f32 %v1709, %v1823
      %v1888 = vadd.f32 %v1714, %v1824
      %v1889 = vadd.f32 %v1719, %v1825
      %v1890 = vadd.f32 %v1724, %v1826
      %v1891 = vadd.f32 %v1729, %v1827
      %v1892 = vadd.f32 %v1734, %v1828
      %v1893 = vadd.f32 %v1739, %v1829
      %v1894 = vadd.f32 %v1744, %v1830
      %v1895 = vadd.f32 %v1749, %v1831
      %v1896 = vadd.f32 %v1754, %v1832
      %v1897 = vadd.f32 %v1759, %v1833
      %v1898 = vadd.f32 %v1764, %v1834
      %v1899 = vadd.f32 %v1769, %v1835
      %vm1900 = vcmask 130048
      %1901 = vst.msk [vmem:[%s221] sm:$0xff] %vm1900, %v1836
      %1902 = vst.msk [vmem:[%s221 + $0x8] sm:$0xff] %vm1900, %v1837
      %1903 = vst.msk [vmem:[%s221 + $0x10] sm:$0xff] %vm1900, %v1838
      %1904 = vst.msk [vmem:[%s221 + $0x18] sm:$0xff] %vm1900, %v1839
      %1905 = vst.msk [vmem:[%s221 + $0x20] sm:$0xff] %vm1900, %v1840
      %1906 = vst.msk [vmem:[%s221 + $0x28] sm:$0xff] %vm1900, %v1841
      %1907 = vst.msk [vmem:[%s221 + $0x30] sm:$0xff] %vm1900, %v1842
      %1908 = vst.msk [vmem:[%s221 + $0x38] sm:$0xff] %vm1900, %v1843
      %1909 = vst.msk [vmem:[%s221 + $0x40] sm:$0xff] %vm1900, %v1844
      %1910 = vst.msk [vmem:[%s221 + $0x48] sm:$0xff] %vm1900, %v1845
      %1911 = vst.msk [vmem:[%s221 + $0x50] sm:$0xff] %vm1900, %v1846
      %1912 = vst.msk [vmem:[%s221 + $0x58] sm:$0xff] %vm1900, %v1847
      %1913 = vst.msk [vmem:[%s221 + $0x60] sm:$0xff] %vm1900, %v1848
      %1914 = vst.msk [vmem:[%s221 + $0x68] sm:$0xff] %vm1900, %v1849
      %1915 = vst.msk [vmem:[%s221 + $0x70] sm:$0xff] %vm1900, %v1850
      %1916 = vst.msk [vmem:[%s221 + $0x78] sm:$0xff] %vm1900, %v1851
      %1917 = vst.msk [vmem:[%s221 + $0x80] sm:$0xff] %vm1900, %v1852
      %1918 = vst.msk [vmem:[%s221 + $0x88] sm:$0xff] %vm1900, %v1853
      %1919 = vst.msk [vmem:[%s221 + $0x90] sm:$0xff] %vm1900, %v1854
      %1920 = vst.msk [vmem:[%s221 + $0x98] sm:$0xff] %vm1900, %v1855
      %1921 = vst.msk [vmem:[%s221 + $0xa0] sm:$0xff] %vm1900, %v1856
      %1922 = vst.msk [vmem:[%s221 + $0xa8] sm:$0xff] %vm1900, %v1857
      %1923 = vst.msk [vmem:[%s221 + $0xb0] sm:$0xff] %vm1900, %v1858
      %1924 = vst.msk [vmem:[%s221 + $0xb8] sm:$0xff] %vm1900, %v1859
      %1925 = vst.msk [vmem:[%s221 + $0xc0] sm:$0xff] %vm1900, %v1860
      %1926 = vst.msk [vmem:[%s221 + $0xc8] sm:$0xff] %vm1900, %v1861
      %1927 = vst.msk [vmem:[%s221 + $0xd0] sm:$0xff] %vm1900, %v1862
      %1928 = vst.msk [vmem:[%s221 + $0xd8] sm:$0xff] %vm1900, %v1863
      %1929 = vst.msk [vmem:[%s221 + $0xe0] sm:$0xff] %vm1900, %v1864
      %1930 = vst.msk [vmem:[%s221 + $0xe8] sm:$0xff] %vm1900, %v1865
      %1931 = vst.msk [vmem:[%s221 + $0xf0] sm:$0xff] %vm1900, %v1866
      %1932 = vst.msk [vmem:[%s221 + $0xf8] sm:$0xff] %vm1900, %v1867
      %1933 = vst.msk [vmem:[%s221 + $0x100] sm:$0xff] %vm1900, %v1868
      %1934 = vst.msk [vmem:[%s221 + $0x108] sm:$0xff] %vm1900, %v1869
      %1935 = vst.msk [vmem:[%s221 + $0x110] sm:$0xff] %vm1900, %v1870
      %1936 = vst.msk [vmem:[%s221 + $0x118] sm:$0xff] %vm1900, %v1871
      %1937 = vst.msk [vmem:[%s221 + $0x120] sm:$0xff] %vm1900, %v1872
      %1938 = vst.msk [vmem:[%s221 + $0x128] sm:$0xff] %vm1900, %v1873
      %1939 = vst.msk [vmem:[%s221 + $0x130] sm:$0xff] %vm1900, %v1874
      %1940 = vst.msk [vmem:[%s221 + $0x138] sm:$0xff] %vm1900, %v1875
      %1941 = vst.msk [vmem:[%s221 + $0x140] sm:$0xff] %vm1900, %v1876
      %1942 = vst.msk [vmem:[%s221 + $0x148] sm:$0xff] %vm1900, %v1877
      %1943 = vst.msk [vmem:[%s221 + $0x150] sm:$0xff] %vm1900, %v1878
      %1944 = vst.msk [vmem:[%s221 + $0x158] sm:$0xff] %vm1900, %v1879
      %1945 = vst.msk [vmem:[%s221 + $0x160] sm:$0xff] %vm1900, %v1880
      %1946 = vst.msk [vmem:[%s221 + $0x168] sm:$0xff] %vm1900, %v1881
      %1947 = vst.msk [vmem:[%s221 + $0x170] sm:$0xff] %vm1900, %v1882
      %1948 = vst.msk [vmem:[%s221 + $0x178] sm:$0xff] %vm1900, %v1883
      %1949 = vst.msk [vmem:[%s221 + $0x180] sm:$0xff] %vm1900, %v1884
      %1950 = vst.msk [vmem:[%s221 + $0x188] sm:$0xff] %vm1900, %v1885
      %1951 = vst.msk [vmem:[%s221 + $0x190] sm:$0xff] %vm1900, %v1886
      %1952 = vst.msk [vmem:[%s221 + $0x198] sm:$0xff] %vm1900, %v1887
      %1953 = vst.msk [vmem:[%s221 + $0x1a0] sm:$0xff] %vm1900, %v1888
      %1954 = vst.msk [vmem:[%s221 + $0x1a8] sm:$0xff] %vm1900, %v1889
      %1955 = vst.msk [vmem:[%s221 + $0x1b0] sm:$0xff] %vm1900, %v1890
      %1956 = vst.msk [vmem:[%s221 + $0x1b8] sm:$0xff] %vm1900, %v1891
      %1957 = vst.msk [vmem:[%s221 + $0x1c0] sm:$0xff] %vm1900, %v1892
      %1958 = vst.msk [vmem:[%s221 + $0x1c8] sm:$0xff] %vm1900, %v1893
      %1959 = vst.msk [vmem:[%s221 + $0x1d0] sm:$0xff] %vm1900, %v1894
      %1960 = vst.msk [vmem:[%s221 + $0x1d8] sm:$0xff] %vm1900, %v1895
      %1961 = vst.msk [vmem:[%s221 + $0x1e0] sm:$0xff] %vm1900, %v1896
      %1962 = vst.msk [vmem:[%s221 + $0x1e8] sm:$0xff] %vm1900, %v1897
      %1963 = vst.msk [vmem:[%s221 + $0x1f0] sm:$0xff] %vm1900, %v1898
      %1964 = vst.msk [vmem:[%s221 + $0x1f8] sm:$0xff] %vm1900, %v1899
      %s1965 = smul.u32 64, %s15
      %p1966 = scmp.lt.s32.totalorder %s1965, 127
      %s1967 = scalar_select %p1966, %s1965, 127
      %s1968 = smul.addr %s1967, 8
      %s1969 = scalar_lea.vmem %s4, %s1968
      // Predicated region
      $region37: #{transformer_block_forward.13} parent=35 // pred_check
        %p1970 = pneg %p127
      $region38: #{transformer_block_forward.13} parent=35 // pred_check_branch
        %1972 = sbr.rel (%p1970) target = $region40
      $region39: #{transformer_block_forward.13} parent=35 // pred_region
        %s1973 = smul.u32 64, %s15
      $region40: #{transformer_block_forward.13} parent=35 // pred_fallthru
        _
    $region36: #{transformer_block_forward.13} parent=5 // pred_fallthru
      _
    %p1974 = scmp.le.s32.totalorder 2, %s10
    // Predicated region
    $region41: #{transformer_block_forward.13} parent=5 // pred_check
      %p1975 = pneg %p1974
    $region42: #{transformer_block_forward.13} parent=5 // pred_check_branch
      %1977 = sbr.rel (%p1975) target = $region44
    $region43: #{transformer_block_forward.13} parent=5 // pred_region
      %s1978 = ssub.s32 %s10, 2
      // Predicated region
      $region45: #{transformer_block_forward.13} parent=43 // pred_check
        %p1979 = pneg %p133
      $region46: #{transformer_block_forward.13} parent=43 // pred_check_branch
        %1981 = sbr.rel (%p1979) target = $region48
      $region47: #{transformer_block_forward.13} parent=43 // pred_region
        %s1982 = smul.u32 64, %s16
        %p1983 = scmp.lt.s32.totalorder %s1982, 127
        %s1984 = scalar_select %p1983, %s1982, 127
        %s1985 = smul.addr %s1984, 8
        %s1986 = scalar_lea.vmem %s4, %s1985
      $region48: #{transformer_block_forward.13} parent=43 // pred_fallthru
        _
    $region44: #{transformer_block_forward.13} parent=5 // pred_fallthru
      _
  $region6: #{transformer_block_forward.13} parent=0 // loop_footer
    %s14 = sadd.s32 1, %s10
  $region7: #{transformer_block_forward.13} parent=0 // loop_footer_branch
    %9 = sbr.rel target = $region3
  $region8: #{transformer_block_forward.13} parent=0 // loop_exit
    _

// kernel: transformer_block_forward.12
$region0: #{transformer_block_forward.12}
  #allocation0 [shape = 'u32[]', space=smem, size = 0x4, offset = 0x4, fixed_abs, tag = 'smem constant byte address 0x4 - core index']
  #allocation1 [shape = 'u32[144,128]{1,0:T(1,128)}', space=vmem, size = 0x12000, scoped, tag = 'internal scratch']
  %s0 = inlined_call_operand.vmem [shape: f32[4,18,18,64], index: 0, kind: input, shape index: {}]
  %s1 = inlined_call_operand.vmem [shape: f32[9,64], index: 1, kind: input, shape index: {}]
  %s2 = inlined_call_operand.vmem [shape: f32[1,64], index: 2, kind: input, shape index: {}]
  %s3 = inlined_call_operand.vmem [shape: f32[4,16,16,64], index: 3, kind: output, shape index: {}]
  %s4 = sld [smem:[#allocation0]]
  $region45: #{transformer_block_forward.12} parent=0
    _
  %s6 = ssub.s32 1, %s4
  %s7 = scalar_select 0, %s6, %s4
  loop: start=0, step=1, limit=6
  $region2: #{transformer_block_forward.12} parent=0 // loop_pre_header
    _
  $region3: #{transformer_block_forward.12} parent=0 // loop_header
    %s9 = sphi 0, %s13
    %p10 = scmp.ge.s32.totalorder %s9, 6
    %s19 = sphi 0, %s21
    %s22 = sphi 0, %s19
    %s23 = sphi 0, %s22
    %s39 = sphi 0, %s23
    %s43 = sphi 0, %s43
    %s45 = sphi 0, %s43
    %s46 = sphi 0, %s45
    %s60 = sphi 0, %s46
    %s64 = sphi 0, %s64
    %s66 = sphi 0, %s64
    %s67 = sphi 0, %s66
    %s81 = sphi 0, %s67
    %s87 = sphi 0, %s89
    %s90 = sphi 0, %s87
    %s91 = sphi 0, %s90
    %s107 = sphi 0, %s91
  $region4: #{transformer_block_forward.12} parent=0 // loop_header_branch
    %12 = sbr.rel (%p10) target = $region8
  $region5: #{transformer_block_forward.12} parent=0 // loop_body
    %s14 = ssub.s32 %s9, 1
    %s15 = ssub.s32 %s9, 2
    %s16 = sadd.s32 %s9, 1
    %s17 = ssub.s32 %s9, %s16
    %p18 = scmp.eq.s32.totalorder %s17, 0
    %s20 = sadd.s32 %s19, 1
    %s21 = scalar_select %p18, %s19, %s20
    %p24 = pneg %p18
    %p25 = scmp.eq.s32.totalorder %s9, 3
    %p26 = por %p24, %p25
    %p27 = scmp.ne.s32.totalorder %s19, %s22
    %p28 = scmp.eq.s32.totalorder %s9, 0
    %p29 = por %p27, %p28
    %p30 = scmp.ne.s32.totalorder %s19, %s22
    %p31 = scmp.eq.s32.totalorder %s14, 3
    %p32 = por %p30, %p31
    %p33 = scmp.ne.s32.totalorder %s22, %s23
    %p34 = scmp.eq.s32.totalorder %s14, 0
    %p35 = por %p33, %p34
    %p36 = scmp.ne.s32.totalorder %s22, %s23
    %p37 = scmp.eq.s32.totalorder %s15, 3
    %p38 = por %p36, %p37
    %p40 = scmp.ne.s32.totalorder %s23, %s39
    %p41 = scmp.eq.s32.totalorder %s15, 0
    %p42 = por %p40, %p41
    %s44 = sadd.s32 %s43, 1
    %p47 = scmp.eq.s32.totalorder %s9, 3
    %p48 = scmp.ne.s32.totalorder %s43, %s45
    %p49 = scmp.eq.s32.totalorder %s9, 0
    %p50 = por %p48, %p49
    %p51 = scmp.ne.s32.totalorder %s43, %s45
    %p52 = scmp.eq.s32.totalorder %s14, 3
    %p53 = por %p51, %p52
    %p54 = scmp.ne.s32.totalorder %s45, %s46
    %p55 = scmp.eq.s32.totalorder %s14, 0
    %p56 = por %p54, %p55
    %p57 = scmp.ne.s32.totalorder %s45, %s46
    %p58 = scmp.eq.s32.totalorder %s15, 3
    %p59 = por %p57, %p58
    %p61 = scmp.ne.s32.totalorder %s46, %s60
    %p62 = scmp.eq.s32.totalorder %s15, 0
    %p63 = por %p61, %p62
    %s65 = sadd.s32 %s64, 1
    %p68 = scmp.eq.s32.totalorder %s9, 3
    %p69 = scmp.ne.s32.totalorder %s64, %s66
    %p70 = scmp.eq.s32.totalorder %s9, 0
    %p71 = por %p69, %p70
    %p72 = scmp.ne.s32.totalorder %s64, %s66
    %p73 = scmp.eq.s32.totalorder %s14, 3
    %p74 = por %p72, %p73
    %p75 = scmp.ne.s32.totalorder %s66, %s67
    %p76 = scmp.eq.s32.totalorder %s14, 0
    %p77 = por %p75, %p76
    %p78 = scmp.ne.s32.totalorder %s66, %s67
    %p79 = scmp.eq.s32.totalorder %s15, 3
    %p80 = por %p78, %p79
    %p82 = scmp.ne.s32.totalorder %s67, %s81
    %p83 = scmp.eq.s32.totalorder %s15, 0
    %p84 = por %p82, %p83
    %s85 = ssub.s32 %s9, %s16
    %p86 = scmp.eq.s32.totalorder %s85, 0
    %s88 = sadd.s32 %s87, 1
    %s89 = scalar_select %p86, %s87, %s88
    %p92 = pneg %p86
    %p93 = scmp.eq.s32.totalorder %s9, 3
    %p94 = por %p92, %p93
    %p95 = scmp.ne.s32.totalorder %s87, %s90
    %p96 = scmp.eq.s32.totalorder %s9, 0
    %p97 = por %p95, %p96
    %p98 = scmp.ne.s32.totalorder %s87, %s90
    %p99 = scmp.eq.s32.totalorder %s14, 3
    %p100 = por %p98, %p99
    %p101 = scmp.ne.s32.totalorder %s90, %s91
    %p102 = scmp.eq.s32.totalorder %s14, 0
    %p103 = por %p101, %p102
    %p104 = scmp.ne.s32.totalorder %s90, %s91
    %p105 = scmp.eq.s32.totalorder %s15, 3
    %p106 = por %p104, %p105
    %p108 = scmp.ne.s32.totalorder %s91, %s107
    %p109 = scmp.eq.s32.totalorder %s15, 0
    %p110 = por %p108, %p109
    %p111 = scmp.le.s32.totalorder 1, %s9
    %p112 = scmp.lt.s32.totalorder %s9, 5
    %p113 = pnand %p111, %p112
    %p114 = pneg %p113
    // Predicated region
    $region9: #{transformer_block_forward.12} parent=5 // pred_check
      _
    $region10: #{transformer_block_forward.12} parent=5 // pred_check_branch
      %116 = sbr.rel (%p113) target = $region12
    $region11: #{transformer_block_forward.12} parent=5 // pred_region
      %s117 = ssub.s32 %s9, 1
      // Predicated region
      $region13: #{transformer_block_forward.12} parent=11 // pred_check
        %p118 = pneg %p56
      $region14: #{transformer_block_forward.12} parent=11 // pred_check_branch
        %120 = sbr.rel (%p118) target = $region16
      $region15: #{transformer_block_forward.12} parent=11 // pred_region
        _
      $region16: #{transformer_block_forward.12} parent=11 // pred_fallthru
        _
      // Predicated region
      $region17: #{transformer_block_forward.12} parent=11 // pred_check
        %p121 = pneg %p77
      $region18: #{transformer_block_forward.12} parent=11 // pred_check_branch
        %123 = sbr.rel (%p121) target = $region20
      $region19: #{transformer_block_forward.12} parent=11 // pred_region
        _
      $region20: #{transformer_block_forward.12} parent=11 // pred_fallthru
        _
    $region12: #{transformer_block_forward.12} parent=5 // pred_fallthru
      _
    %p124 = scmp.lt.s32.totalorder %s9, 4
    // Predicated region
    $region21: #{transformer_block_forward.12} parent=5 // pred_check
      %p125 = pneg %p124
    $region22: #{transformer_block_forward.12} parent=5 // pred_check_branch
      %127 = sbr.rel (%p125) target = $region24
    $region23: #{transformer_block_forward.12} parent=5 // pred_region
      // Predicated region
      $region25: #{transformer_block_forward.12} parent=23 // pred_check
        %p128 = pneg %p29
      $region26: #{transformer_block_forward.12} parent=23 // pred_check_branch
        %130 = sbr.rel (%p128) target = $region28
      $region27: #{transformer_block_forward.12} parent=23 // pred_region
        %p131 = scmp.lt.s32.totalorder %s9, 3
        %s132 = scalar_select %p131, %s9, 3
        %s133 = smul.addr %s132, 54
        %s134 = smul.addr %s133, 8
        %s135 = scalar_lea.vmem %s0, %s134
      $region28: #{transformer_block_forward.12} parent=23 // pred_fallthru
        _
    $region24: #{transformer_block_forward.12} parent=5 // pred_fallthru
      _
    %p136 = scmp.le.s32.totalorder 1, %s9
    %p137 = scmp.lt.s32.totalorder %s9, 5
    %p138 = pnand %p136, %p137
    %p139 = pneg %p138
    // Predicated region
    $region29: #{transformer_block_forward.12} parent=5 // pred_check
      _
    $region30: #{transformer_block_forward.12} parent=5 // pred_check_branch
      %141 = sbr.rel (%p138) target = $region32
    $region31: #{transformer_block_forward.12} parent=5 // pred_region
      %s142 = ssub.s32 %s9, 1
      %p143 = scmp.lt.s32.totalorder %s14, 3
      %s144 = scalar_select %p143, %s14, 3
      %s145 = smul.addr %s144, 54
      %s146 = smul.addr %s145, 8
      %s147 = scalar_lea.vmem %s0, %s146
      %p148 = pneg %p35
      %p149 = pneg %p32
      %p150 = pneg %p56
      %p151 = pneg %p53
      %p152 = pneg %p77
      %p153 = pneg %p74
      %p154 = pneg %p103
      %p155 = pneg %p100
      %p156 = scmp.lt.s32.totalorder %s14, 3
      %s157 = scalar_select %p156, %s14, 3
      %s158 = smul.addr %s157, 32
      %s159 = smul.addr %s158, 8
      %s160 = scalar_lea.vmem %s3, %s159
      %p161 = scmp.lt.s32.totalorder %s14, 3
      %s162 = scalar_select %p161, %s14, 3
      %s163 = smul.addr %s162, 54
      %s164 = smul.addr %s163, 8
      %s165 = scalar_lea.vmem %s0, %s164
      %p166 = scmp.lt.s32.totalorder %s14, 3
      %s167 = scalar_select %p166, %s14, 3
      %s168 = smul.addr %s167, 32
      %s169 = smul.addr %s168, 8
      %s170 = scalar_lea.vmem %s3, %s169
      %v171 = vld [vmem:[%s165] sm:$0xff]
      %v172 = vld [vmem:[%s165 + $0x8] sm:$0xff]
      %v173 = vld [vmem:[%s165 + $0x10] sm:$0x3]
      %v174 = vld [vmem:[%s165 + $0x18] sm:$0xff]
      %v175 = vld [vmem:[%s165 + $0x20] sm:$0xff]
      %v176 = vld [vmem:[%s165 + $0x28] sm:$0x3]
      %v177 = vld [vmem:[%s165 + $0x30] sm:$0xff]
      %v178 = vld [vmem:[%s165 + $0x38] sm:$0xff]
      %v179 = vld [vmem:[%s165 + $0x40] sm:$0x3]
      %v180 = vld [vmem:[%s165 + $0x48] sm:$0xff]
      %v181 = vld [vmem:[%s165 + $0x50] sm:$0xff]
      %v182 = vld [vmem:[%s165 + $0x58] sm:$0x3]
      %v183 = vld [vmem:[%s165 + $0x60] sm:$0xff]
      %v184 = vld [vmem:[%s165 + $0x68] sm:$0xff]
      %v185 = vld [vmem:[%s165 + $0x70] sm:$0x3]
      %v186 = vld [vmem:[%s165 + $0x78] sm:$0xff]
      %v187 = vld [vmem:[%s165 + $0x80] sm:$0xff]
      %v188 = vld [vmem:[%s165 + $0x88] sm:$0x3]
      %v189 = vld [vmem:[%s165 + $0x90] sm:$0xff]
      %v190 = vld [vmem:[%s165 + $0x98] sm:$0xff]
      %v191 = vld [vmem:[%s165 + $0xa0] sm:$0x3]
      %v192 = vld [vmem:[%s165 + $0xa8] sm:$0xff]
      %v193 = vld [vmem:[%s165 + $0xb0] sm:$0xff]
      %v194 = vld [vmem:[%s165 + $0xb8] sm:$0x3]
      %v195 = vld [vmem:[%s165 + $0xc0] sm:$0xff]
      %v196 = vld [vmem:[%s165 + $0xc8] sm:$0xff]
      %v197 = vld [vmem:[%s165 + $0xd0] sm:$0x3]
      %v198 = vld [vmem:[%s165 + $0xd8] sm:$0xff]
      %v199 = vld [vmem:[%s165 + $0xe0] sm:$0xff]
      %v200 = vld [vmem:[%s165 + $0xe8] sm:$0x3]
      %v201 = vld [vmem:[%s165 + $0xf0] sm:$0xff]
      %v202 = vld [vmem:[%s165 + $0xf8] sm:$0xff]
      %v203 = vld [vmem:[%s165 + $0x100] sm:$0x3]
      %v204 = vld [vmem:[%s165 + $0x108] sm:$0xff]
      %v205 = vld [vmem:[%s165 + $0x110] sm:$0xff]
      %v206 = vld [vmem:[%s165 + $0x118] sm:$0x3]
      %v207 = vld [vmem:[%s165 + $0x120] sm:$0xff]
      %v208 = vld [vmem:[%s165 + $0x128] sm:$0xff]
      %v209 = vld [vmem:[%s165 + $0x130] sm:$0x3]
      %v210 = vld [vmem:[%s165 + $0x138] sm:$0xff]
      %v211 = vld [vmem:[%s165 + $0x140] sm:$0xff]
      %v212 = vld [vmem:[%s165 + $0x148] sm:$0x3]
      %v213 = vld [vmem:[%s165 + $0x150] sm:$0xff]
      %v214 = vld [vmem:[%s165 + $0x158] sm:$0xff]
      %v215 = vld [vmem:[%s165 + $0x160] sm:$0x3]
      %v216 = vld [vmem:[%s165 + $0x168] sm:$0xff]
      %v217 = vld [vmem:[%s165 + $0x170] sm:$0xff]
      %v218 = vld [vmem:[%s165 + $0x178] sm:$0x3]
      %v219 = vld [vmem:[%s165 + $0x180] sm:$0xff]
      %v220 = vld [vmem:[%s165 + $0x188] sm:$0xff]
      %v221 = vld [vmem:[%s165 + $0x190] sm:$0x3]
      %v222 = vld [vmem:[%s165 + $0x198] sm:$0xff]
      %v223 = vld [vmem:[%s165 + $0x1a0] sm:$0xff]
      %v224 = vld [vmem:[%s165 + $0x1a8] sm:$0x3]
      %v225 = vld [vmem:[%s1] sm:$0x1]
      %v226 = vlaneseq
      %v227 = vshrl.u32 %v226, 7
      %v228 = vsub.s32 0, %v227
      %v229 = vrot.slane %v225, %v228
      %v230 = vmul.f32 %v171, %v229
      %v231 = vmul.f32 %v172, %v229
      %v232 = vmul.f32 %v174, %v229
      %v233 = vmul.f32 %v175, %v229
      %v234 = vmul.f32 %v177, %v229
      %v235 = vmul.f32 %v178, %v229
      %v236 = vmul.f32 %v180, %v229
      %v237 = vmul.f32 %v181, %v229
      %v238 = vmul.f32 %v183, %v229
      %v239 = vmul.f32 %v184, %v229
      %v240 = vmul.f32 %v186, %v229
      %v241 = vmul.f32 %v187, %v229
      %v242 = vmul.f32 %v189, %v229
      %v243 = vmul.f32 %v190, %v229
      %v244 = vmul.f32 %v192, %v229
      %v245 = vmul.f32 %v193, %v229
      %v246 = vmul.f32 %v195, %v229
      %v247 = vmul.f32 %v196, %v229
      %v248 = vmul.f32 %v198, %v229
      %v249 = vmul.f32 %v199, %v229
      %v250 = vmul.f32 %v201, %v229
      %v251 = vmul.f32 %v202, %v229
      %v252 = vmul.f32 %v204, %v229
      %v253 = vmul.f32 %v205, %v229
      %v254 = vmul.f32 %v207, %v229
      %v255 = vmul.f32 %v208, %v229
      %v256 = vmul.f32 %v210, %v229
      %v257 = vmul.f32 %v211, %v229
      %v258 = vmul.f32 %v213, %v229
      %v259 = vmul.f32 %v214, %v229
      %v260 = vmul.f32 %v216, %v229
      %v261 = vmul.f32 %v217, %v229
      %v262 = vadd.f32 %v230, 0.0
      %v263 = vadd.f32 %v231, 0.0
      %v264 = vadd.f32 %v232, 0.0
      %v265 = vadd.f32 %v233, 0.0
      %v266 = vadd.f32 %v234, 0.0
      %v267 = vadd.f32 %v235, 0.0
      %v268 = vadd.f32 %v236, 0.0
      %v269 = vadd.f32 %v237, 0.0
      %v270 = vadd.f32 %v238, 0.0
      %v271 = vadd.f32 %v239, 0.0
      %v272 = vadd.f32 %v240, 0.0
      %v273 = vadd.f32 %v241, 0.0
      %v274 = vadd.f32 %v242, 0.0
      %v275 = vadd.f32 %v243, 0.0
      %v276 = vadd.f32 %v244, 0.0
      %v277 = vadd.f32 %v245, 0.0
      %v278 = vadd.f32 %v246, 0.0
      %v279 = vadd.f32 %v247, 0.0
      %v280 = vadd.f32 %v248, 0.0
      %v281 = vadd.f32 %v249, 0.0
      %v282 = vadd.f32 %v250, 0.0
      %v283 = vadd.f32 %v251, 0.0
      %v284 = vadd.f32 %v252, 0.0
      %v285 = vadd.f32 %v253, 0.0
      %v286 = vadd.f32 %v254, 0.0
      %v287 = vadd.f32 %v255, 0.0
      %v288 = vadd.f32 %v256, 0.0
      %v289 = vadd.f32 %v257, 0.0
      %v290 = vadd.f32 %v258, 0.0
      %v291 = vadd.f32 %v259, 0.0
      %v292 = vadd.f32 %v260, 0.0
      %v293 = vadd.f32 %v261, 0.0
      %v294 = vld [vmem:[%s1 + $0x1] sm:$0x1]
      %v295 = vlaneseq
      %v296 = vshrl.u32 %v295, 7
      %v297 = vsub.s32 0, %v296
      %v298 = vrot.slane %v294, %v297
      %v299 = vmul.f32 %v171, %v298
      %v300 = vmul.f32 %v172, %v298
      %v301 = vmul.f32 %v173, %v298
      %v302 = vmul.f32 %v174, %v298
      %v303 = vmul.f32 %v175, %v298
      %v304 = vmul.f32 %v176, %v298
      %v305 = vmul.f32 %v177, %v298
      %v306 = vmul.f32 %v178, %v298
      %v307 = vmul.f32 %v179, %v298
      %v308 = vmul.f32 %v180, %v298
      %v309 = vmul.f32 %v181, %v298
      %v310 = vmul.f32 %v182, %v298
      %v311 = vmul.f32 %v183, %v298
      %v312 = vmul.f32 %v184, %v298
      %v313 = vmul.f32 %v185, %v298
      %v314 = vmul.f32 %v186, %v298
      %v315 = vmul.f32 %v187, %v298
      %v316 = vmul.f32 %v188, %v298
      %v317 = vmul.f32 %v189, %v298
      %v318 = vmul.f32 %v190, %v298
      %v319 = vmul.f32 %v191, %v298
      %v320 = vmul.f32 %v192, %v298
      %v321 = vmul.f32 %v193, %v298
      %v322 = vmul.f32 %v194, %v298
      %v323 = vmul.f32 %v195, %v298
      %v324 = vmul.f32 %v196, %v298
      %v325 = vmul.f32 %v197, %v298
      %v326 = vmul.f32 %v198, %v298
      %v327 = vmul.f32 %v199, %v298
      %v328 = vmul.f32 %v200, %v298
      %v329 = vmul.f32 %v201, %v298
      %v330 = vmul.f32 %v202, %v298
      %v331 = vmul.f32 %v203, %v298
      %v332 = vmul.f32 %v204, %v298
      %v333 = vmul.f32 %v205, %v298
      %v334 = vmul.f32 %v206, %v298
      %v335 = vmul.f32 %v207, %v298
      %v336 = vmul.f32 %v208, %v298
      %v337 = vmul.f32 %v209, %v298
      %v338 = vmul.f32 %v210, %v298
      %v339 = vmul.f32 %v211, %v298
      %v340 = vmul.f32 %v212, %v298
      %v341 = vmul.f32 %v213, %v298
      %v342 = vmul.f32 %v214, %v298
      %v343 = vmul.f32 %v215, %v298
      %v344 = vmul.f32 %v216, %v298
      %v345 = vmul.f32 %v217, %v298
      %v346 = vmul.f32 %v218, %v298
      %vm395 = vcmask 1046528
      %v396 = vrot.slane %v299, 1
      %v397 = vrot.slane %v300, 1
      %v398 = vsel %vm395, %v396, %v397
      %v399 = vrot.slane %v301, 1
      %v400 = vsel %vm395, %v397, %v399
      %v401 = vrot.slane %v302, 1
      %v402 = vrot.slane %v303, 1
      %v403 = vsel %vm395, %v401, %v402
      %v404 = vrot.slane %v304, 1
      %v405 = vsel %vm395, %v402, %v404
      %v406 = vrot.slane %v305, 1
      %v407 = vrot.slane %v306, 1
      %v408 = vsel %vm395, %v406, %v407
      %v409 = vrot.slane %v307, 1
      %v410 = vsel %vm395, %v407, %v409
      %v411 = vrot.slane %v308, 1
      %v412 = vrot.slane %v309, 1
      %v413 = vsel %vm395, %v411, %v412
      %v414 = vrot.slane %v310, 1
      %v415 = vsel %vm395, %v412, %v414
      %v416 = vrot.slane %v311, 1
      %v417 = vrot.slane %v312, 1
      %v418 = vsel %vm395, %v416, %v417
      %v419 = vrot.slane %v313, 1
      %v420 = vsel %vm395, %v417, %v419
      %v421 = vrot.slane %v314, 1
      %v422 = vrot.slane %v315, 1
      %v423 = vsel %vm395, %v421, %v422
      %v424 = vrot.slane %v316, 1
      %v425 = vsel %vm395, %v422, %v424
      %v426 = vrot.slane %v317, 1
      %v427 = vrot.slane %v318, 1
      %v428 = vsel %vm395, %v426, %v427
      %v429 = vrot.slane %v319, 1
      %v430 = vsel %vm395, %v427, %v429
      %v431 = vrot.slane %v320, 1
      %v432 = vrot.slane %v321, 1
      %v433 = vsel %vm395, %v431, %v432
      %v434 = vrot.slane %v322, 1
      %v435 = vsel %vm395, %v432, %v434
      %v436 = vrot.slane %v323, 1
      %v437 = vrot.slane %v324, 1
      %v438 = vsel %vm395, %v436, %v437
      %v439 = vrot.slane %v325, 1
      %v440 = vsel %vm395, %v437, %v439
      %v441 = vrot.slane %v326, 1
      %v442 = vrot.slane %v327, 1
      %v443 = vsel %vm395, %v441, %v442
      %v444 = vrot.slane %v328, 1
      %v445 = vsel %vm395, %v442, %v444
      %v446 = vrot.slane %v329, 1
      %v447 = vrot.slane %v330, 1
      %v448 = vsel %vm395, %v446, %v447
      %v449 = vrot.slane %v331, 1
      %v450 = vsel %vm395, %v447, %v449
      %v451 = vrot.slane %v332, 1
      %v452 = vrot.slane %v333, 1
      %v453 = vsel %vm395, %v451, %v452
      %v454 = vrot.slane %v334, 1
      %v455 = vsel %vm395, %v452, %v454
      %v456 = vrot.slane %v335, 1
      %v457 = vrot.slane %v336, 1
      %v458 = vsel %vm395, %v456, %v457
      %v459 = vrot.slane %v337, 1
      %v460 = vsel %vm395, %v457, %v459
      %v461 = vrot.slane %v338, 1
      %v462 = vrot.slane %v339, 1
      %v463 = vsel %vm395, %v461, %v462
      %v464 = vrot.slane %v340, 1
      %v465 = vsel %vm395, %v462, %v464
      %v466 = vrot.slane %v341, 1
      %v467 = vrot.slane %v342, 1
      %v468 = vsel %vm395, %v466, %v467
      %v469 = vrot.slane %v343, 1
      %v470 = vsel %vm395, %v467, %v469
      %v471 = vrot.slane %v344, 1
      %v472 = vrot.slane %v345, 1
      %v473 = vsel %vm395, %v471, %v472
      %v474 = vrot.slane %v346, 1
      %v475 = vsel %vm395, %v472, %v474
      %v508 = vadd.f32 %v262, %v398
      %v509 = vadd.f32 %v263, %v400
      %v510 = vadd.f32 %v264, %v403
      %v511 = vadd.f32 %v265, %v405
      %v512 = vadd.f32 %v266, %v408
      %v513 = vadd.f32 %v267, %v410
      %v514 = vadd.f32 %v268, %v413
      %v515 = vadd.f32 %v269, %v415
      %v516 = vadd.f32 %v270, %v418
      %v517 = vadd.f32 %v271, %v420
      %v518 = vadd.f32 %v272, %v423
      %v519 = vadd.f32 %v273, %v425
      %v520 = vadd.f32 %v274, %v428
      %v521 = vadd.f32 %v275, %v430
      %v522 = vadd.f32 %v276, %v433
      %v523 = vadd.f32 %v277, %v435
      %v524 = vadd.f32 %v278, %v438
      %v525 = vadd.f32 %v279, %v440
      %v526 = vadd.f32 %v280, %v443
      %v527 = vadd.f32 %v281, %v445
      %v528 = vadd.f32 %v282, %v448
      %v529 = vadd.f32 %v283, %v450
      %v530 = vadd.f32 %v284, %v453
      %v531 = vadd.f32 %v285, %v455
      %v532 = vadd.f32 %v286, %v458
      %v533 = vadd.f32 %v287, %v460
      %v534 = vadd.f32 %v288, %v463
      %v535 = vadd.f32 %v289, %v465
      %v536 = vadd.f32 %v290, %v468
      %v537 = vadd.f32 %v291, %v470
      %v538 = vadd.f32 %v292, %v473
      %v539 = vadd.f32 %v293, %v475
      %v540 = vld [vmem:[%s1 + $0x2] sm:$0x1]
      %v541 = vlaneseq
      %v542 = vshrl.u32 %v541, 7
      %v543 = vsub.s32 0, %v542
      %v544 = vrot.slane %v540, %v543
      %v545 = vmul.f32 %v171, %v544
      %v546 = vmul.f32 %v172, %v544
      %v547 = vmul.f32 %v173, %v544
      %v548 = vmul.f32 %v174, %v544
      %v549 = vmul.f32 %v175, %v544
      %v550 = vmul.f32 %v176, %v544
      %v551 = vmul.f32 %v177, %v544
      %v552 = vmul.f32 %v178, %v544
      %v553 = vmul.f32 %v179, %v544
      %v554 = vmul.f32 %v180, %v544
      %v555 = vmul.f32 %v181, %v544
      %v556 = vmul.f32 %v182, %v544
      %v557 = vmul.f32 %v183, %v544
      %v558 = vmul.f32 %v184, %v544
      %v559 = vmul.f32 %v185, %v544
      %v560 = vmul.f32 %v186, %v544
      %v561 = vmul.f32 %v187, %v544
      %v562 = vmul.f32 %v188, %v544
      %v563 = vmul.f32 %v189, %v544
      %v564 = vmul.f32 %v190, %v544
      %v565 = vmul.f32 %v191, %v544
      %v566 = vmul.f32 %v192, %v544
      %v567 = vmul.f32 %v193, %v544
      %v568 = vmul.f32 %v194, %v544
      %v569 = vmul.f32 %v195, %v544
      %v570 = vmul.f32 %v196, %v544
      %v571 = vmul.f32 %v197, %v544
      %v572 = vmul.f32 %v198, %v544
      %v573 = vmul.f32 %v199, %v544
      %v574 = vmul.f32 %v200, %v544
      %v575 = vmul.f32 %v201, %v544
      %v576 = vmul.f32 %v202, %v544
      %v577 = vmul.f32 %v203, %v544
      %v578 = vmul.f32 %v204, %v544
      %v579 = vmul.f32 %v205, %v544
      %v580 = vmul.f32 %v206, %v544
      %v581 = vmul.f32 %v207, %v544
      %v582 = vmul.f32 %v208, %v544
      %v583 = vmul.f32 %v209, %v544
      %v584 = vmul.f32 %v210, %v544
      %v585 = vmul.f32 %v211, %v544
      %v586 = vmul.f32 %v212, %v544
      %v587 = vmul.f32 %v213, %v544
      %v588 = vmul.f32 %v214, %v544
      %v589 = vmul.f32 %v215, %v544
      %v590 = vmul.f32 %v216, %v544
      %v591 = vmul.f32 %v217, %v544
      %v592 = vmul.f32 %v218, %v544
      %vm641 = vcmask 1045504
      %v642 = vrot.slane %v545, 2
      %v643 = vrot.slane %v546, 2
      %v644 = vsel %vm641, %v642, %v643
      %v645 = vrot.slane %v547, 2
      %v646 = vsel %vm641, %v643, %v645
      %v647 = vrot.slane %v548, 2
      %v648 = vrot.slane %v549, 2
      %v649 = vsel %vm641, %v647, %v648
      %v650 = vrot.slane %v550, 2
      %v651 = vsel %vm641, %v648, %v650
      %v652 = vrot.slane %v551, 2
      %v653 = vrot.slane %v552, 2
      %v654 = vsel %vm641, %v652, %v653
      %v655 = vrot.slane %v553, 2
      %v656 = vsel %vm641, %v653, %v655
      %v657 = vrot.slane %v554, 2
      %v658 = vrot.slane %v555, 2
      %v659 = vsel %vm641, %v657, %v658
      %v660 = vrot.slane %v556, 2
      %v661 = vsel %vm641, %v658, %v660
      %v662 = vrot.slane %v557, 2
      %v663 = vrot.slane %v558, 2
      %v664 = vsel %vm641, %v662, %v663
      %v665 = vrot.slane %v559, 2
      %v666 = vsel %vm641, %v663, %v665
      %v667 = vrot.slane %v560, 2
      %v668 = vrot.slane %v561, 2
      %v669 = vsel %vm641, %v667, %v668
      %v670 = vrot.slane %v562, 2
      %v671 = vsel %vm641, %v668, %v670
      %v672 = vrot.slane %v563, 2
      %v673 = vrot.slane %v564, 2
      %v674 = vsel %vm641, %v672, %v673
      %v675 = vrot.slane %v565, 2
      %v676 = vsel %vm641, %v673, %v675
      %v677 = vrot.slane %v566, 2
      %v678 = vrot.slane %v567, 2
      %v679 = vsel %vm641, %v677, %v678
      %v680 = vrot.slane %v568, 2
      %v681 = vsel %vm641, %v678, %v680
      %v682 = vrot.slane %v569, 2
      %v683 = vrot.slane %v570, 2
      %v684 = vsel %vm641, %v682, %v683
      %v685 = vrot.slane %v571, 2
      %v686 = vsel %vm641, %v683, %v685
      %v687 = vrot.slane %v572, 2
      %v688 = vrot.slane %v573, 2
      %v689 = vsel %vm641, %v687, %v688
      %v690 = vrot.slane %v574, 2
      %v691 = vsel %vm641, %v688, %v690
      %v692 = vrot.slane %v575, 2
      %v693 = vrot.slane %v576, 2
      %v694 = vsel %vm641, %v692, %v693
      %v695 = vrot.slane %v577, 2
      %v696 = vsel %vm641, %v693, %v695
      %v697 = vrot.slane %v578, 2
      %v698 = vrot.slane %v579, 2
      %v699 = vsel %vm641, %v697, %v698
      %v700 = vrot.slane %v580, 2
      %v701 = vsel %vm641, %v698, %v700
      %v702 = vrot.slane %v581, 2
      %v703 = vrot.slane %v582, 2
      %v704 = vsel %vm641, %v702, %v703
      %v705 = vrot.slane %v583, 2
      %v706 = vsel %vm641, %v703, %v705
      %v707 = vrot.slane %v584, 2
      %v708 = vrot.slane %v585, 2
      %v709 = vsel %vm641, %v707, %v708
      %v710 = vrot.slane %v586, 2
      %v711 = vsel %vm641, %v708, %v710
      %v712 = vrot.slane %v587, 2
      %v713 = vrot.slane %v588, 2
      %v714 = vsel %vm641, %v712, %v713
      %v715 = vrot.slane %v589, 2
      %v716 = vsel %vm641, %v713, %v715
      %v717 = vrot.slane %v590, 2
      %v718 = vrot.slane %v591, 2
      %v719 = vsel %vm641, %v717, %v718
      %v720 = vrot.slane %v592, 2
      %v721 = vsel %vm641, %v718, %v720
      %v754 = vadd.f32 %v508, %v644
      %v755 = vadd.f32 %v509, %v646
      %v756 = vadd.f32 %v510, %v649
      %v757 = vadd.f32 %v511, %v651
      %v758 = vadd.f32 %v512, %v654
      %v759 = vadd.f32 %v513, %v656
      %v760 = vadd.f32 %v514, %v659
      %v761 = vadd.f32 %v515, %v661
      %v762 = vadd.f32 %v516, %v664
      %v763 = vadd.f32 %v517, %v666
      %v764 = vadd.f32 %v518, %v669
      %v765 = vadd.f32 %v519, %v671
      %v766 = vadd.f32 %v520, %v674
      %v767 = vadd.f32 %v521, %v676
      %v768 = vadd.f32 %v522, %v679
      %v769 = vadd.f32 %v523, %v681
      %v770 = vadd.f32 %v524, %v684
      %v771 = vadd.f32 %v525, %v686
      %v772 = vadd.f32 %v526, %v689
      %v773 = vadd.f32 %v527, %v691
      %v774 = vadd.f32 %v528, %v694
      %v775 = vadd.f32 %v529, %v696
      %v776 = vadd.f32 %v530, %v699
      %v777 = vadd.f32 %v531, %v701
      %v778 = vadd.f32 %v532, %v704
      %v779 = vadd.f32 %v533, %v706
      %v780 = vadd.f32 %v534, %v709
      %v781 = vadd.f32 %v535, %v711
      %v782 = vadd.f32 %v536, %v714
      %v783 = vadd.f32 %v537, %v716
      %v784 = vadd.f32 %v538, %v719
      %v785 = vadd.f32 %v539, %v721
      %v786 = vld [vmem:[%s1 + $0x3] sm:$0x1]
      %v787 = vlaneseq
      %v788 = vshrl.u32 %v787, 7
      %v789 = vsub.s32 0, %v788
      %v790 = vrot.slane %v786, %v789
      %v791 = vmul.f32 %v174, %v790
      %v792 = vmul.f32 %v175, %v790
      %v793 = vmul.f32 %v177, %v790
      %v794 = vmul.f32 %v178, %v790
      %v795 = vmul.f32 %v180, %v790
      %v796 = vmul.f32 %v181, %v790
      %v797 = vmul.f32 %v183, %v790
      %v798 = vmul.f32 %v184, %v790
      %v799 = vmul.f32 %v186, %v790
      %v800 = vmul.f32 %v187, %v790
      %v801 = vmul.f32 %v189, %v790
      %v802 = vmul.f32 %v190, %v790
      %v803 = vmul.f32 %v192, %v790
      %v804 = vmul.f32 %v193, %v790
      %v805 = vmul.f32 %v195, %v790
      %v806 = vmul.f32 %v196, %v790
      %v807 = vmul.f32 %v198, %v790
      %v808 = vmul.f32 %v199, %v790
      %v809 = vmul.f32 %v201, %v790
      %v810 = vmul.f32 %v202, %v790
      %v811 = vmul.f32 %v204, %v790
      %v812 = vmul.f32 %v205, %v790
      %v813 = vmul.f32 %v207, %v790
      %v814 = vmul.f32 %v208, %v790
      %v815 = vmul.f32 %v210, %v790
      %v816 = vmul.f32 %v211, %v790
      %v817 = vmul.f32 %v213, %v790
      %v818 = vmul.f32 %v214, %v790
      %v819 = vmul.f32 %v216, %v790
      %v820 = vmul.f32 %v217, %v790
      %v821 = vmul.f32 %v219, %v790
      %v822 = vmul.f32 %v220, %v790
      %v823 = vadd.f32 %v754, %v791
      %v824 = vadd.f32 %v755, %v792
      %v825 = vadd.f32 %v756, %v793
      %v826 = vadd.f32 %v757, %v794
      %v827 = vadd.f32 %v758, %v795
      %v828 = vadd.f32 %v759, %v796
      %v829 = vadd.f32 %v760, %v797
      %v830 = vadd.f32 %v761, %v798
      %v831 = vadd.f32 %v762, %v799
      %v832 = vadd.f32 %v763, %v800
      %v833 = vadd.f32 %v764, %v801
      %v834 = vadd.f32 %v765, %v802
      %v835 = vadd.f32 %v766, %v803
      %v836 = vadd.f32 %v767, %v804
      %v837 = vadd.f32 %v768, %v805
      %v838 = vadd.f32 %v769, %v806
      %v839 = vadd.f32 %v770, %v807
      %v840 = vadd.f32 %v771, %v808
      %v841 = vadd.f32 %v772, %v809
      %v842 = vadd.f32 %v773, %v810
      %v843 = vadd.f32 %v774, %v811
      %v844 = vadd.f32 %v775, %v812
      %v845 = vadd.f32 %v776, %v813
      %v846 = vadd.f32 %v777, %v814
      %v847 = vadd.f32 %v778, %v815
      %v848 = vadd.f32 %v779, %v816
      %v849 = vadd.f32 %v780, %v817
      %v850 = vadd.f32 %v781, %v818
      %v851 = vadd.f32 %v782, %v819
      %v852 = vadd.f32 %v783, %v820
      %v853 = vadd.f32 %v784, %v821
      %v854 = vadd.f32 %v785, %v822
      %v855 = vld [vmem:[%s1 + $0x4] sm:$0x1]
      %v856 = vlaneseq
      %v857 = vshrl.u32 %v856, 7
      %v858 = vsub.s32 0, %v857
      %v859 = vrot.slane %v855, %v858
      %v860 = vmul.f32 %v174, %v859
      %v861 = vmul.f32 %v175, %v859
      %v862 = vmul.f32 %v176, %v859
      %v863 = vmul.f32 %v177, %v859
      %v864 = vmul.f32 %v178, %v859
      %v865 = vmul.f32 %v179, %v859
      %v866 = vmul.f32 %v180, %v859
      %v867 = vmul.f32 %v181, %v859
      %v868 = vmul.f32 %v182, %v859
      %v869 = vmul.f32 %v183, %v859
      %v870 = vmul.f32 %v184, %v859
      %v871 = vmul.f32 %v185, %v859
      %v872 = vmul.f32 %v186, %v859
      %v873 = vmul.f32 %v187, %v859
      %v874 = vmul.f32 %v188, %v859
      %v875 = vmul.f32 %v189, %v859
      %v876 = vmul.f32 %v190, %v859
      %v877 = vmul.f32 %v191, %v859
      %v878 = vmul.f32 %v192, %v859
      %v879 = vmul.f32 %v193, %v859
      %v880 = vmul.f32 %v194, %v859
      %v881 = vmul.f32 %v195, %v859
      %v882 = vmul.f32 %v196, %v859
      %v883 = vmul.f32 %v197, %v859
      %v884 = vmul.f32 %v198, %v859
      %v885 = vmul.f32 %v199, %v859
      %v886 = vmul.f32 %v200, %v859
      %v887 = vmul.f32 %v201, %v859
      %v888 = vmul.f32 %v202, %v859
      %v889 = vmul.f32 %v203, %v859
      %v890 = vmul.f32 %v204, %v859
      %v891 = vmul.f32 %v205, %v859
      %v892 = vmul.f32 %v206, %v859
      %v893 = vmul.f32 %v207, %v859
      %v894 = vmul.f32 %v208, %v859
      %v895 = vmul.f32 %v209, %v859
      %v896 = vmul.f32 %v210, %v859
      %v897 = vmul.f32 %v211, %v859
      %v898 = vmul.f32 %v212, %v859
      %v899 = vmul.f32 %v213, %v859
      %v900 = vmul.f32 %v214, %v859
      %v901 = vmul.f32 %v215, %v859
      %v902 = vmul.f32 %v216, %v859
      %v903 = vmul.f32 %v217, %v859
      %v904 = vmul.f32 %v218, %v859
      %v905 = vmul.f32 %v219, %v859
      %v906 = vmul.f32 %v220, %v859
      %v907 = vmul.f32 %v221, %v859
      %v956 = vrot.slane %v860, 1
      %v957 = vrot.slane %v861, 1
      %v958 = vsel %vm395, %v956, %v957
      %v959 = vrot.slane %v862, 1
      %v960 = vsel %vm395, %v957, %v959
      %v961 = vrot.slane %v863, 1
      %v962 = vrot.slane %v864, 1
      %v963 = vsel %vm395, %v961, %v962
      %v964 = vrot.slane %v865, 1
      %v965 = vsel %vm395, %v962, %v964
      %v966 = vrot.slane %v866, 1
      %v967 = vrot.slane %v867, 1
      %v968 = vsel %vm395, %v966, %v967
      %v969 = vrot.slane %v868, 1
      %v970 = vsel %vm395, %v967, %v969
      %v971 = vrot.slane %v869, 1
      %v972 = vrot.slane %v870, 1
      %v973 = vsel %vm395, %v971, %v972
      %v974 = vrot.slane %v871, 1
      %v975 = vsel %vm395, %v972, %v974
      %v976 = vrot.slane %v872, 1
      %v977 = vrot.slane %v873, 1
      %v978 = vsel %vm395, %v976, %v977
      %v979 = vrot.slane %v874, 1
      %v980 = vsel %vm395, %v977, %v979
      %v981 = vrot.slane %v875, 1
      %v982 = vrot.slane %v876, 1
      %v983 = vsel %vm395, %v981, %v982
      %v984 = vrot.slane %v877, 1
      %v985 = vsel %vm395, %v982, %v984
      %v986 = vrot.slane %v878, 1
      %v987 = vrot.slane %v879, 1
      %v988 = vsel %vm395, %v986, %v987
      %v989 = vrot.slane %v880, 1
      %v990 = vsel %vm395, %v987, %v989
      %v991 = vrot.slane %v881, 1
      %v992 = vrot.slane %v882, 1
      %v993 = vsel %vm395, %v991, %v992
      %v994 = vrot.slane %v883, 1
      %v995 = vsel %vm395, %v992, %v994
      %v996 = vrot.slane %v884, 1
      %v997 = vrot.slane %v885, 1
      %v998 = vsel %vm395, %v996, %v997
      %v999 = vrot.slane %v886, 1
      %v1000 = vsel %vm395, %v997, %v999
      %v1001 = vrot.slane %v887, 1
      %v1002 = vrot.slane %v888, 1
      %v1003 = vsel %vm395, %v1001, %v1002
      %v1004 = vrot.slane %v889, 1
      %v1005 = vsel %vm395, %v1002, %v1004
      %v1006 = vrot.slane %v890, 1
      %v1007 = vrot.slane %v891, 1
      %v1008 = vsel %vm395, %v1006, %v1007
      %v1009 = vrot.slane %v892, 1
      %v1010 = vsel %vm395, %v1007, %v1009
      %v1011 = vrot.slane %v893, 1
      %v1012 = vrot.slane %v894, 1
      %v1013 = vsel %vm395, %v1011, %v1012
      %v1014 = vrot.slane %v895, 1
      %v1015 = vsel %vm395, %v1012, %v1014
      %v1016 = vrot.slane %v896, 1
      %v1017 = vrot.slane %v897, 1
      %v1018 = vsel %vm395, %v1016, %v1017
      %v1019 = vrot.slane %v898, 1
      %v1020 = vsel %vm395, %v1017, %v1019
      %v1021 = vrot.slane %v899, 1
      %v1022 = vrot.slane %v900, 1
      %v1023 = vsel %vm395, %v1021, %v1022
      %v1024 = vrot.slane %v901, 1
      %v1025 = vsel %vm395, %v1022, %v1024
      %v1026 = vrot.slane %v902, 1
      %v1027 = vrot.slane %v903, 1
      %v1028 = vsel %vm395, %v1026, %v1027
      %v1029 = vrot.slane %v904, 1
      %v1030 = vsel %vm395, %v1027, %v1029
      %v1031 = vrot.slane %v905, 1
      %v1032 = vrot.slane %v906, 1
      %v1033 = vsel %vm395, %v1031, %v1032
      %v1034 = vrot.slane %v907, 1
      %v1035 = vsel %vm395, %v1032, %v1034
      %v1068 = vadd.f32 %v823, %v958
      %v1069 = vadd.f32 %v824, %v960
      %v1070 = vadd.f32 %v825, %v963
      %v1071 = vadd.f32 %v826, %v965
      %v1072 = vadd.f32 %v827, %v968
      %v1073 = vadd.f32 %v828, %v970
      %v1074 = vadd.f32 %v829, %v973
      %v1075 = vadd.f32 %v830, %v975
      %v1076 = vadd.f32 %v831, %v978
      %v1077 = vadd.f32 %v832, %v980
      %v1078 = vadd.f32 %v833, %v983
      %v1079 = vadd.f32 %v834, %v985
      %v1080 = vadd.f32 %v835, %v988
      %v1081 = vadd.f32 %v836, %v990
      %v1082 = vadd.f32 %v837, %v993
      %v1083 = vadd.f32 %v838, %v995
      %v1084 = vadd.f32 %v839, %v998
      %v1085 = vadd.f32 %v840, %v1000
      %v1086 = vadd.f32 %v841, %v1003
      %v1087 = vadd.f32 %v842, %v1005
      %v1088 = vadd.f32 %v843, %v1008
      %v1089 = vadd.f32 %v844, %v1010
      %v1090 = vadd.f32 %v845, %v1013
      %v1091 = vadd.f32 %v846, %v1015
      %v1092 = vadd.f32 %v847, %v1018
      %v1093 = vadd.f32 %v848, %v1020
      %v1094 = vadd.f32 %v849, %v1023
      %v1095 = vadd.f32 %v850, %v1025
      %v1096 = vadd.f32 %v851, %v1028
      %v1097 = vadd.f32 %v852, %v1030
      %v1098 = vadd.f32 %v853, %v1033
      %v1099 = vadd.f32 %v854, %v1035
      %v1100 = vld [vmem:[%s1 + $0x5] sm:$0x1]
      %v1101 = vlaneseq
      %v1102 = vshrl.u32 %v1101, 7
      %v1103 = vsub.s32 0, %v1102
      %v1104 = vrot.slane %v1100, %v1103
      %v1105 = vmul.f32 %v174, %v1104
      %v1106 = vmul.f32 %v175, %v1104
      %v1107 = vmul.f32 %v176, %v1104
      %v1108 = vmul.f32 %v177, %v1104
      %v1109 = vmul.f32 %v178, %v1104
      %v1110 = vmul.f32 %v179, %v1104
      %v1111 = vmul.f32 %v180, %v1104
      %v1112 = vmul.f32 %v181, %v1104
      %v1113 = vmul.f32 %v182, %v1104
      %v1114 = vmul.f32 %v183, %v1104
      %v1115 = vmul.f32 %v184, %v1104
      %v1116 = vmul.f32 %v185, %v1104
      %v1117 = vmul.f32 %v186, %v1104
      %v1118 = vmul.f32 %v187, %v1104
      %v1119 = vmul.f32 %v188, %v1104
      %v1120 = vmul.f32 %v189, %v1104
      %v1121 = vmul.f32 %v190, %v1104
      %v1122 = vmul.f32 %v191, %v1104
      %v1123 = vmul.f32 %v192, %v1104
      %v1124 = vmul.f32 %v193, %v1104
      %v1125 = vmul.f32 %v194, %v1104
      %v1126 = vmul.f32 %v195, %v1104
      %v1127 = vmul.f32 %v196, %v1104
      %v1128 = vmul.f32 %v197, %v1104
      %v1129 = vmul.f32 %v198, %v1104
      %v1130 = vmul.f32 %v199, %v1104
      %v1131 = vmul.f32 %v200, %v1104
      %v1132 = vmul.f32 %v201, %v1104
      %v1133 = vmul.f32 %v202, %v1104
      %v1134 = vmul.f32 %v203, %v1104
      %v1135 = vmul.f32 %v204, %v1104
      %v1136 = vmul.f32 %v205, %v1104
      %v1137 = vmul.f32 %v206, %v1104
      %v1138 = vmul.f32 %v207, %v1104
      %v1139 = vmul.f32 %v208, %v1104
      %v1140 = vmul.f32 %v209, %v1104
      %v1141 = vmul.f32 %v210, %v1104
      %v1142 = vmul.f32 %v211, %v1104
      %v1143 = vmul.f32 %v212, %v1104
      %v1144 = vmul.f32 %v213, %v1104
      %v1145 = vmul.f32 %v214, %v1104
      %v1146 = vmul.f32 %v215, %v1104
      %v1147 = vmul.f32 %v216, %v1104
      %v1148 = vmul.f32 %v217, %v1104
      %v1149 = vmul.f32 %v218, %v1104
      %v1150 = vmul.f32 %v219, %v1104
      %v1151 = vmul.f32 %v220, %v1104
      %v1152 = vmul.f32 %v221, %v1104
      %v1201 = vrot.slane %v1105, 2
      %v1202 = vrot.slane %v1106, 2
      %v1203 = vsel %vm641, %v1201, %v1202
      %v1204 = vrot.slane %v1107, 2
      %v1205 = vsel %vm641, %v1202, %v1204
      %v1206 = vrot.slane %v1108, 2
      %v1207 = vrot.slane %v1109, 2
      %v1208 = vsel %vm641, %v1206, %v1207
      %v1209 = vrot.slane %v1110, 2
      %v1210 = vsel %vm641, %v1207, %v1209
      %v1211 = vrot.slane %v1111, 2
      %v1212 = vrot.slane %v1112, 2
      %v1213 = vsel %vm641, %v1211, %v1212
      %v1214 = vrot.slane %v1113, 2
      %v1215 = vsel %vm641, %v1212, %v1214
      %v1216 = vrot.slane %v1114, 2
      %v1217 = vrot.slane %v1115, 2
      %v1218 = vsel %vm641, %v1216, %v1217
      %v1219 = vrot.slane %v1116, 2
      %v1220 = vsel %vm641, %v1217, %v1219
      %v1221 = vrot.slane %v1117, 2
      %v1222 = vrot.slane %v1118, 2
      %v1223 = vsel %vm641, %v1221, %v1222
      %v1224 = vrot.slane %v1119, 2
      %v1225 = vsel %vm641, %v1222, %v1224
      %v1226 = vrot.slane %v1120, 2
      %v1227 = vrot.slane %v1121, 2
      %v1228 = vsel %vm641, %v1226, %v1227
      %v1229 = vrot.slane %v1122, 2
      %v1230 = vsel %vm641, %v1227, %v1229
      %v1231 = vrot.slane %v1123, 2
      %v1232 = vrot.slane %v1124, 2
      %v1233 = vsel %vm641, %v1231, %v1232
      %v1234 = vrot.slane %v1125, 2
      %v1235 = vsel %vm641, %v1232, %v1234
      %v1236 = vrot.slane %v1126, 2
      %v1237 = vrot.slane %v1127, 2
      %v1238 = vsel %vm641, %v1236, %v1237
      %v1239 = vrot.slane %v1128, 2
      %v1240 = vsel %vm641, %v1237, %v1239
      %v1241 = vrot.slane %v1129, 2
      %v1242 = vrot.slane %v1130, 2
      %v1243 = vsel %vm641, %v1241, %v1242
      %v1244 = vrot.slane %v1131, 2
      %v1245 = vsel %vm641, %v1242, %v1244
      %v1246 = vrot.slane %v1132, 2
      %v1247 = vrot.slane %v1133, 2
      %v1248 = vsel %vm641, %v1246, %v1247
      %v1249 = vrot.slane %v1134, 2
      %v1250 = vsel %vm641, %v1247, %v1249
      %v1251 = vrot.slane %v1135, 2
      %v1252 = vrot.slane %v1136, 2
      %v1253 = vsel %vm641, %v1251, %v1252
      %v1254 = vrot.slane %v1137, 2
      %v1255 = vsel %vm641, %v1252, %v1254
      %v1256 = vrot.slane %v1138, 2
      %v1257 = vrot.slane %v1139, 2
      %v1258 = vsel %vm641, %v1256, %v1257
      %v1259 = vrot.slane %v1140, 2
      %v1260 = vsel %vm641, %v1257, %v1259
      %v1261 = vrot.slane %v1141, 2
      %v1262 = vrot.slane %v1142, 2
      %v1263 = vsel %vm641, %v1261, %v1262
      %v1264 = vrot.slane %v1143, 2
      %v1265 = vsel %vm641, %v1262, %v1264
      %v1266 = vrot.slane %v1144, 2
      %v1267 = vrot.slane %v1145, 2
      %v1268 = vsel %vm641, %v1266, %v1267
      %v1269 = vrot.slane %v1146, 2
      %v1270 = vsel %vm641, %v1267, %v1269
      %v1271 = vrot.slane %v1147, 2
      %v1272 = vrot.slane %v1148, 2
      %v1273 = vsel %vm641, %v1271, %v1272
      %v1274 = vrot.slane %v1149, 2
      %v1275 = vsel %vm641, %v1272, %v1274
      %v1276 = vrot.slane %v1150, 2
      %v1277 = vrot.slane %v1151, 2
      %v1278 = vsel %vm641, %v1276, %v1277
      %v1279 = vrot.slane %v1152, 2
      %v1280 = vsel %vm641, %v1277, %v1279
      %v1313 = vadd.f32 %v1068, %v1203
      %v1314 = vadd.f32 %v1069, %v1205
      %v1315 = vadd.f32 %v1070, %v1208
      %v1316 = vadd.f32 %v1071, %v1210
      %v1317 = vadd.f32 %v1072, %v1213
      %v1318 = vadd.f32 %v1073, %v1215
      %v1319 = vadd.f32 %v1074, %v1218
      %v1320 = vadd.f32 %v1075, %v1220
      %v1321 = vadd.f32 %v1076, %v1223
      %v1322 = vadd.f32 %v1077, %v1225
      %v1323 = vadd.f32 %v1078, %v1228
      %v1324 = vadd.f32 %v1079, %v1230
      %v1325 = vadd.f32 %v1080, %v1233
      %v1326 = vadd.f32 %v1081, %v1235
      %v1327 = vadd.f32 %v1082, %v1238
      %v1328 = vadd.f32 %v1083, %v1240
      %v1329 = vadd.f32 %v1084, %v1243
      %v1330 = vadd.f32 %v1085, %v1245
      %v1331 = vadd.f32 %v1086, %v1248
      %v1332 = vadd.f32 %v1087, %v1250
      %v1333 = vadd.f32 %v1088, %v1253
      %v1334 = vadd.f32 %v1089, %v1255
      %v1335 = vadd.f32 %v1090, %v1258
      %v1336 = vadd.f32 %v1091, %v1260
      %v1337 = vadd.f32 %v1092, %v1263
      %v1338 = vadd.f32 %v1093, %v1265
      %v1339 = vadd.f32 %v1094, %v1268
      %v1340 = vadd.f32 %v1095, %v1270
      %v1341 = vadd.f32 %v1096, %v1273
      %v1342 = vadd.f32 %v1097, %v1275
      %v1343 = vadd.f32 %v1098, %v1278
      %v1344 = vadd.f32 %v1099, %v1280
      %v1345 = vld [vmem:[%s1 + $0x6] sm:$0x1]
      %v1346 = vlaneseq
      %v1347 = vshrl.u32 %v1346, 7
      %v1348 = vsub.s32 0, %v1347
      %v1349 = vrot.slane %v1345, %v1348
      %v1350 = vmul.f32 %v177, %v1349
      %v1351 = vmul.f32 %v178, %v1349
      %v1352 = vmul.f32 %v180, %v1349
      %v1353 = vmul.f32 %v181, %v1349
      %v1354 = vmul.f32 %v183, %v1349
      %v1355 = vmul.f32 %v184, %v1349
      %v1356 = vmul.f32 %v186, %v1349
      %v1357 = vmul.f32 %v187, %v1349
      %v1358 = vmul.f32 %v189, %v1349
      %v1359 = vmul.f32 %v190, %v1349
      %v1360 = vmul.f32 %v192, %v1349
      %v1361 = vmul.f32 %v193, %v1349
      %v1362 = vmul.f32 %v195, %v1349
      %v1363 = vmul.f32 %v196, %v1349
      %v1364 = vmul.f32 %v198, %v1349
      %v1365 = vmul.f32 %v199, %v1349
      %v1366 = vmul.f32 %v201, %v1349
      %v1367 = vmul.f32 %v202, %v1349
      %v1368 = vmul.f32 %v204, %v1349
      %v1369 = vmul.f32 %v205, %v1349
      %v1370 = vmul.f32 %v207, %v1349
      %v1371 = vmul.f32 %v208, %v1349
      %v1372 = vmul.f32 %v210, %v1349
      %v1373 = vmul.f32 %v211, %v1349
      %v1374 = vmul.f32 %v213, %v1349
      %v1375 = vmul.f32 %v214, %v1349
      %v1376 = vmul.f32 %v216, %v1349
      %v1377 = vmul.f32 %v217, %v1349
      %v1378 = vmul.f32 %v219, %v1349
      %v1379 = vmul.f32 %v220, %v1349
      %v1380 = vmul.f32 %v222, %v1349
      %v1381 = vmul.f32 %v223, %v1349
      %v1382 = vadd.f32 %v1313, %v1350
      %v1383 = vadd.f32 %v1314, %v1351
      %v1384 = vadd.f32 %v1315, %v1352
      %v1385 = vadd.f32 %v1316, %v1353
      %v1386 = vadd.f32 %v1317, %v1354
      %v1387 = vadd.f32 %v1318, %v1355
      %v1388 = vadd.f32 %v1319, %v1356
      %v1389 = vadd.f32 %v1320, %v1357
      %v1390 = vadd.f32 %v1321, %v1358
      %v1391 = vadd.f32 %v1322, %v1359
      %v1392 = vadd.f32 %v1323, %v1360
      %v1393 = vadd.f32 %v1324, %v1361
      %v1394 = vadd.f32 %v1325, %v1362
      %v1395 = vadd.f32 %v1326, %v1363
      %v1396 = vadd.f32 %v1327, %v1364
      %v1397 = vadd.f32 %v1328, %v1365
      %v1398 = vadd.f32 %v1329, %v1366
      %v1399 = vadd.f32 %v1330, %v1367
      %v1400 = vadd.f32 %v1331, %v1368
      %v1401 = vadd.f32 %v1332, %v1369
      %v1402 = vadd.f32 %v1333, %v1370
      %v1403 = vadd.f32 %v1334, %v1371
      %v1404 = vadd.f32 %v1335, %v1372
      %v1405 = vadd.f32 %v1336, %v1373
      %v1406 = vadd.f32 %v1337, %v1374
      %v1407 = vadd.f32 %v1338, %v1375
      %v1408 = vadd.f32 %v1339, %v1376
      %v1409 = vadd.f32 %v1340, %v1377
      %v1410 = vadd.f32 %v1341, %v1378
      %v1411 = vadd.f32 %v1342, %v1379
      %v1412 = vadd.f32 %v1343, %v1380
      %v1413 = vadd.f32 %v1344, %v1381
      %v1414 = vld [vmem:[%s1 + $0x7] sm:$0x1]
      %v1415 = vlaneseq
      %v1416 = vshrl.u32 %v1415, 7
      %v1417 = vsub.s32 0, %v1416
      %v1418 = vrot.slane %v1414, %v1417
      %v1419 = vmul.f32 %v177, %v1418
      %v1420 = vmul.f32 %v178, %v1418
      %v1421 = vmul.f32 %v179, %v1418
      %v1422 = vmul.f32 %v180, %v1418
      %v1423 = vmul.f32 %v181, %v1418
      %v1424 = vmul.f32 %v182, %v1418
      %v1425 = vmul.f32 %v183, %v1418
      %v1426 = vmul.f32 %v184, %v1418
      %v1427 = vmul.f32 %v185, %v1418
      %v1428 = vmul.f32 %v186, %v1418
      %v1429 = vmul.f32 %v187, %v1418
      %v1430 = vmul.f32 %v188, %v1418
      %v1431 = vmul.f32 %v189, %v1418
      %v1432 = vmul.f32 %v190, %v1418
      %v1433 = vmul.f32 %v191, %v1418
      %v1434 = vmul.f32 %v192, %v1418
      %v1435 = vmul.f32 %v193, %v1418
      %v1436 = vmul.f32 %v194, %v1418
      %v1437 = vmul.f32 %v195, %v1418
      %v1438 = vmul.f32 %v196, %v1418
      %v1439 = vmul.f32 %v197, %v1418
      %v1440 = vmul.f32 %v198, %v1418
      %v1441 = vmul.f32 %v199, %v1418
      %v1442 = vmul.f32 %v200, %v1418
      %v1443 = vmul.f32 %v201, %v1418
      %v1444 = vmul.f32 %v202, %v1418
      %v1445 = vmul.f32 %v203, %v1418
      %v1446 = vmul.f32 %v204, %v1418
      %v1447 = vmul.f32 %v205, %v1418
      %v1448 = vmul.f32 %v206, %v1418
      %v1449 = vmul.f32 %v207, %v1418
      %v1450 = vmul.f32 %v208, %v1418
      %v1451 = vmul.f32 %v209, %v1418
      %v1452 = vmul.f32 %v210, %v1418
      %v1453 = vmul.f32 %v211, %v1418
      %v1454 = vmul.f32 %v212, %v1418
      %v1455 = vmul.f32 %v213, %v1418
      %v1456 = vmul.f32 %v214, %v1418
      %v1457 = vmul.f32 %v215, %v1418
      %v1458 = vmul.f32 %v216, %v1418
      %v1459 = vmul.f32 %v217, %v1418
      %v1460 = vmul.f32 %v218, %v1418
      %v1461 = vmul.f32 %v219, %v1418
      %v1462 = vmul.f32 %v220, %v1418
      %v1463 = vmul.f32 %v221, %v1418
      %v1464 = vmul.f32 %v222, %v1418
      %v1465 = vmul.f32 %v223, %v1418
      %v1466 = vmul.f32 %v224, %v1418
      %v1515 = vrot.slane %v1419, 1
      %v1516 = vrot.slane %v1420, 1
      %v1517 = vsel %vm395, %v1515, %v1516
      %v1518 = vrot.slane %v1421, 1
      %v1519 = vsel %vm395, %v1516, %v1518
      %v1520 = vrot.slane %v1422, 1
      %v1521 = vrot.slane %v1423, 1
      %v1522 = vsel %vm395, %v1520, %v1521
      %v1523 = vrot.slane %v1424, 1
      %v1524 = vsel %vm395, %v1521, %v1523
      %v1525 = vrot.slane %v1425, 1
      %v1526 = vrot.slane %v1426, 1
      %v1527 = vsel %vm395, %v1525, %v1526
      %v1528 = vrot.slane %v1427, 1
      %v1529 = vsel %vm395, %v1526, %v1528
      %v1530 = vrot.slane %v1428, 1
      %v1531 = vrot.slane %v1429, 1
      %v1532 = vsel %vm395, %v1530, %v1531
      %v1533 = vrot.slane %v1430, 1
      %v1534 = vsel %vm395, %v1531, %v1533
      %v1535 = vrot.slane %v1431, 1
      %v1536 = vrot.slane %v1432, 1
      %v1537 = vsel %vm395, %v1535, %v1536
      %v1538 = vrot.slane %v1433, 1
      %v1539 = vsel %vm395, %v1536, %v1538
      %v1540 = vrot.slane %v1434, 1
      %v1541 = vrot.slane %v1435, 1
      %v1542 = vsel %vm395, %v1540, %v1541
      %v1543 = vrot.slane %v1436, 1
      %v1544 = vsel %vm395, %v1541, %v1543
      %v1545 = vrot.slane %v1437, 1
      %v1546 = vrot.slane %v1438, 1
      %v1547 = vsel %vm395, %v1545, %v1546
      %v1548 = vrot.slane %v1439, 1
      %v1549 = vsel %vm395, %v1546, %v1548
      %v1550 = vrot.slane %v1440, 1
      %v1551 = vrot.slane %v1441, 1
      %v1552 = vsel %vm395, %v1550, %v1551
      %v1553 = vrot.slane %v1442, 1
      %v1554 = vsel %vm395, %v1551, %v1553
      %v1555 = vrot.slane %v1443, 1
      %v1556 = vrot.slane %v1444, 1
      %v1557 = vsel %vm395, %v1555, %v1556
      %v1558 = vrot.slane %v1445, 1
      %v1559 = vsel %vm395, %v1556, %v1558
      %v1560 = vrot.slane %v1446, 1
      %v1561 = vrot.slane %v1447, 1
      %v1562 = vsel %vm395, %v1560, %v1561
      %v1563 = vrot.slane %v1448, 1
      %v1564 = vsel %vm395, %v1561, %v1563
      %v1565 = vrot.slane %v1449, 1
      %v1566 = vrot.slane %v1450, 1
      %v1567 = vsel %vm395, %v1565, %v1566
      %v1568 = vrot.slane %v1451, 1
      %v1569 = vsel %vm395, %v1566, %v1568
      %v1570 = vrot.slane %v1452, 1
      %v1571 = vrot.slane %v1453, 1
      %v1572 = vsel %vm395, %v1570, %v1571
      %v1573 = vrot.slane %v1454, 1
      %v1574 = vsel %vm395, %v1571, %v1573
      %v1575 = vrot.slane %v1455, 1
      %v1576 = vrot.slane %v1456, 1
      %v1577 = vsel %vm395, %v1575, %v1576
      %v1578 = vrot.slane %v1457, 1
      %v1579 = vsel %vm395, %v1576, %v1578
      %v1580 = vrot.slane %v1458, 1
      %v1581 = vrot.slane %v1459, 1
      %v1582 = vsel %vm395, %v1580, %v1581
      %v1583 = vrot.slane %v1460, 1
      %v1584 = vsel %vm395, %v1581, %v1583
      %v1585 = vrot.slane %v1461, 1
      %v1586 = vrot.slane %v1462, 1
      %v1587 = vsel %vm395, %v1585, %v1586
      %v1588 = vrot.slane %v1463, 1
      %v1589 = vsel %vm395, %v1586, %v1588
      %v1590 = vrot.slane %v1464, 1
      %v1591 = vrot.slane %v1465, 1
      %v1592 = vsel %vm395, %v1590, %v1591
      %v1593 = vrot.slane %v1466, 1
      %v1594 = vsel %vm395, %v1591, %v1593
      %v1627 = vadd.f32 %v1382, %v1517
      %v1628 = vadd.f32 %v1383, %v1519
      %v1629 = vadd.f32 %v1384, %v1522
      %v1630 = vadd.f32 %v1385, %v1524
      %v1631 = vadd.f32 %v1386, %v1527
      %v1632 = vadd.f32 %v1387, %v1529
      %v1633 = vadd.f32 %v1388, %v1532
      %v1634 = vadd.f32 %v1389, %v1534
      %v1635 = vadd.f32 %v1390, %v1537
      %v1636 = vadd.f32 %v1391, %v1539
      %v1637 = vadd.f32 %v1392, %v1542
      %v1638 = vadd.f32 %v1393, %v1544
      %v1639 = vadd.f32 %v1394, %v1547
      %v1640 = vadd.f32 %v1395, %v1549
      %v1641 = vadd.f32 %v1396, %v1552
      %v1642 = vadd.f32 %v1397, %v1554
      %v1643 = vadd.f32 %v1398, %v1557
      %v1644 = vadd.f32 %v1399, %v1559
      %v1645 = vadd.f32 %v1400, %v1562
      %v1646 = vadd.f32 %v1401, %v1564
      %v1647 = vadd.f32 %v1402, %v1567
      %v1648 = vadd.f32 %v1403, %v1569
      %v1649 = vadd.f32 %v1404, %v1572
      %v1650 = vadd.f32 %v1405, %v1574
      %v1651 = vadd.f32 %v1406, %v1577
      %v1652 = vadd.f32 %v1407, %v1579
      %v1653 = vadd.f32 %v1408, %v1582
      %v1654 = vadd.f32 %v1409, %v1584
      %v1655 = vadd.f32 %v1410, %v1587
      %v1656 = vadd.f32 %v1411, %v1589
      %v1657 = vadd.f32 %v1412, %v1592
      %v1658 = vadd.f32 %v1413, %v1594
      %v1659 = vld [vmem:[%s1 + $0x8] sm:$0x1]
      %v1660 = vlaneseq
      %v1661 = vshrl.u32 %v1660, 7
      %v1662 = vsub.s32 0, %v1661
      %v1663 = vrot.slane %v1659, %v1662
      %v1664 = vmul.f32 %v177, %v1663
      %v1665 = vmul.f32 %v178, %v1663
      %v1666 = vmul.f32 %v179, %v1663
      %v1667 = vmul.f32 %v180, %v1663
      %v1668 = vmul.f32 %v181, %v1663
      %v1669 = vmul.f32 %v182, %v1663
      %v1670 = vmul.f32 %v183, %v1663
      %v1671 = vmul.f32 %v184, %v1663
      %v1672 = vmul.f32 %v185, %v1663
      %v1673 = vmul.f32 %v186, %v1663
      %v1674 = vmul.f32 %v187, %v1663
      %v1675 = vmul.f32 %v188, %v1663
      %v1676 = vmul.f32 %v189, %v1663
      %v1677 = vmul.f32 %v190, %v1663
      %v1678 = vmul.f32 %v191, %v1663
      %v1679 = vmul.f32 %v192, %v1663
      %v1680 = vmul.f32 %v193, %v1663
      %v1681 = vmul.f32 %v194, %v1663
      %v1682 = vmul.f32 %v195, %v1663
      %v1683 = vmul.f32 %v196, %v1663
      %v1684 = vmul.f32 %v197, %v1663
      %v1685 = vmul.f32 %v198, %v1663
      %v1686 = vmul.f32 %v199, %v1663
      %v1687 = vmul.f32 %v200, %v1663
      %v1688 = vmul.f32 %v201, %v1663
      %v1689 = vmul.f32 %v202, %v1663
      %v1690 = vmul.f32 %v203, %v1663
      %v1691 = vmul.f32 %v204, %v1663
      %v1692 = vmul.f32 %v205, %v1663
      %v1693 = vmul.f32 %v206, %v1663
      %v1694 = vmul.f32 %v207, %v1663
      %v1695 = vmul.f32 %v208, %v1663
      %v1696 = vmul.f32 %v209, %v1663
      %v1697 = vmul.f32 %v210, %v1663
      %v1698 = vmul.f32 %v211, %v1663
      %v1699 = vmul.f32 %v212, %v1663
      %v1700 = vmul.f32 %v213, %v1663
      %v1701 = vmul.f32 %v214, %v1663
      %v1702 = vmul.f32 %v215, %v1663
      %v1703 = vmul.f32 %v216, %v1663
      %v1704 = vmul.f32 %v217, %v1663
      %v1705 = vmul.f32 %v218, %v1663
      %v1706 = vmul.f32 %v219, %v1663
      %v1707 = vmul.f32 %v220, %v1663
      %v1708 = vmul.f32 %v221, %v1663
      %v1709 = vmul.f32 %v222, %v1663
      %v1710 = vmul.f32 %v223, %v1663
      %v1711 = vmul.f32 %v224, %v1663
      %v1760 = vrot.slane %v1664, 2
      %v1761 = vrot.slane %v1665, 2
      %v1762 = vsel %vm641, %v1760, %v1761
      %v1763 = vrot.slane %v1666, 2
      %v1764 = vsel %vm641, %v1761, %v1763
      %v1765 = vrot.slane %v1667, 2
      %v1766 = vrot.slane %v1668, 2
      %v1767 = vsel %vm641, %v1765, %v1766
      %v1768 = vrot.slane %v1669, 2
      %v1769 = vsel %vm641, %v1766, %v1768
      %v1770 = vrot.slane %v1670, 2
      %v1771 = vrot.slane %v1671, 2
      %v1772 = vsel %vm641, %v1770, %v1771
      %v1773 = vrot.slane %v1672, 2
      %v1774 = vsel %vm641, %v1771, %v1773
      %v1775 = vrot.slane %v1673, 2
      %v1776 = vrot.slane %v1674, 2
      %v1777 = vsel %vm641, %v1775, %v1776
      %v1778 = vrot.slane %v1675, 2
      %v1779 = vsel %vm641, %v1776, %v1778
      %v1780 = vrot.slane %v1676, 2
      %v1781 = vrot.slane %v1677, 2
      %v1782 = vsel %vm641, %v1780, %v1781
      %v1783 = vrot.slane %v1678, 2
      %v1784 = vsel %vm641, %v1781, %v1783
      %v1785 = vrot.slane %v1679, 2
      %v1786 = vrot.slane %v1680, 2
      %v1787 = vsel %vm641, %v1785, %v1786
      %v1788 = vrot.slane %v1681, 2
      %v1789 = vsel %vm641, %v1786, %v1788
      %v1790 = vrot.slane %v1682, 2
      %v1791 = vrot.slane %v1683, 2
      %v1792 = vsel %vm641, %v1790, %v1791
      %v1793 = vrot.slane %v1684, 2
      %v1794 = vsel %vm641, %v1791, %v1793
      %v1795 = vrot.slane %v1685, 2
      %v1796 = vrot.slane %v1686, 2
      %v1797 = vsel %vm641, %v1795, %v1796
      %v1798 = vrot.slane %v1687, 2
      %v1799 = vsel %vm641, %v1796, %v1798
      %v1800 = vrot.slane %v1688, 2
      %v1801 = vrot.slane %v1689, 2
      %v1802 = vsel %vm641, %v1800, %v1801
      %v1803 = vrot.slane %v1690, 2
      %v1804 = vsel %vm641, %v1801, %v1803
      %v1805 = vrot.slane %v1691, 2
      %v1806 = vrot.slane %v1692, 2
      %v1807 = vsel %vm641, %v1805, %v1806
      %v1808 = vrot.slane %v1693, 2
      %v1809 = vsel %vm641, %v1806, %v1808
      %v1810 = vrot.slane %v1694, 2
      %v1811 = vrot.slane %v1695, 2
      %v1812 = vsel %vm641, %v1810, %v1811
      %v1813 = vrot.slane %v1696, 2
      %v1814 = vsel %vm641, %v1811, %v1813
      %v1815 = vrot.slane %v1697, 2
      %v1816 = vrot.slane %v1698, 2
      %v1817 = vsel %vm641, %v1815, %v1816
      %v1818 = vrot.slane %v1699, 2
      %v1819 = vsel %vm641, %v1816, %v1818
      %v1820 = vrot.slane %v1700, 2
      %v1821 = vrot.slane %v1701, 2
      %v1822 = vsel %vm641, %v1820, %v1821
      %v1823 = vrot.slane %v1702, 2
      %v1824 = vsel %vm641, %v1821, %v1823
      %v1825 = vrot.slane %v1703, 2
      %v1826 = vrot.slane %v1704, 2
      %v1827 = vsel %vm641, %v1825, %v1826
      %v1828 = vrot.slane %v1705, 2
      %v1829 = vsel %vm641, %v1826, %v1828
      %v1830 = vrot.slane %v1706, 2
      %v1831 = vrot.slane %v1707, 2
      %v1832 = vsel %vm641, %v1830, %v1831
      %v1833 = vrot.slane %v1708, 2
      %v1834 = vsel %vm641, %v1831, %v1833
      %v1835 = vrot.slane %v1709, 2
      %v1836 = vrot.slane %v1710, 2
      %v1837 = vsel %vm641, %v1835, %v1836
      %v1838 = vrot.slane %v1711, 2
      %v1839 = vsel %vm641, %v1836, %v1838
      %v1872 = vadd.f32 %v1627, %v1762
      %v1873 = vadd.f32 %v1628, %v1764
      %v1874 = vadd.f32 %v1629, %v1767
      %v1875 = vadd.f32 %v1630, %v1769
      %v1876 = vadd.f32 %v1631, %v1772
      %v1877 = vadd.f32 %v1632, %v1774
      %v1878 = vadd.f32 %v1633, %v1777
      %v1879 = vadd.f32 %v1634, %v1779
      %v1880 = vadd.f32 %v1635, %v1782
      %v1881 = vadd.f32 %v1636, %v1784
      %v1882 = vadd.f32 %v1637, %v1787
      %v1883 = vadd.f32 %v1638, %v1789
      %v1884 = vadd.f32 %v1639, %v1792
      %v1885 = vadd.f32 %v1640, %v1794
      %v1886 = vadd.f32 %v1641, %v1797
      %v1887 = vadd.f32 %v1642, %v1799
      %v1888 = vadd.f32 %v1643, %v1802
      %v1889 = vadd.f32 %v1644, %v1804
      %v1890 = vadd.f32 %v1645, %v1807
      %v1891 = vadd.f32 %v1646, %v1809
      %v1892 = vadd.f32 %v1647, %v1812
      %v1893 = vadd.f32 %v1648, %v1814
      %v1894 = vadd.f32 %v1649, %v1817
      %v1895 = vadd.f32 %v1650, %v1819
      %v1896 = vadd.f32 %v1651, %v1822
      %v1897 = vadd.f32 %v1652, %v1824
      %v1898 = vadd.f32 %v1653, %v1827
      %v1899 = vadd.f32 %v1654, %v1829
      %v1900 = vadd.f32 %v1655, %v1832
      %v1901 = vadd.f32 %v1656, %v1834
      %v1902 = vadd.f32 %v1657, %v1837
      %v1903 = vadd.f32 %v1658, %v1839
      %v1904 = vld [vmem:[%s2] sm:$0x1]
      %v1906 = vlaneseq
      %v1907 = vshrl.u32 %v1906, 7
      %v1908 = vsub.s32 0, %v1907
      %v1909 = vrot.slane %v1904, %v1908
      %v1911 = vadd.f32 %v1872, %v1909
      %v1912 = vadd.f32 %v1873, %v1909
      %v1913 = vadd.f32 %v1874, %v1909
      %v1914 = vadd.f32 %v1875, %v1909
      %v1915 = vadd.f32 %v1876, %v1909
      %v1916 = vadd.f32 %v1877, %v1909
      %v1917 = vadd.f32 %v1878, %v1909
      %v1918 = vadd.f32 %v1879, %v1909
      %v1919 = vadd.f32 %v1880, %v1909
      %v1920 = vadd.f32 %v1881, %v1909
      %v1921 = vadd.f32 %v1882, %v1909
      %v1922 = vadd.f32 %v1883, %v1909
      %v1923 = vadd.f32 %v1884, %v1909
      %v1924 = vadd.f32 %v1885, %v1909
      %v1925 = vadd.f32 %v1886, %v1909
      %v1926 = vadd.f32 %v1887, %v1909
      %v1927 = vadd.f32 %v1888, %v1909
      %v1928 = vadd.f32 %v1889, %v1909
      %v1929 = vadd.f32 %v1890, %v1909
      %v1930 = vadd.f32 %v1891, %v1909
      %v1931 = vadd.f32 %v1892, %v1909
      %v1932 = vadd.f32 %v1893, %v1909
      %v1933 = vadd.f32 %v1894, %v1909
      %v1934 = vadd.f32 %v1895, %v1909
      %v1935 = vadd.f32 %v1896, %v1909
      %v1936 = vadd.f32 %v1897, %v1909
      %v1937 = vadd.f32 %v1898, %v1909
      %v1938 = vadd.f32 %v1899, %v1909
      %v1939 = vadd.f32 %v1900, %v1909
      %v1940 = vadd.f32 %v1901, %v1909
      %v1941 = vadd.f32 %v1902, %v1909
      %v1942 = vadd.f32 %v1903, %v1909
      %vm1943 = vcmask 523264
      %1944 = vst.msk [vmem:[%s170] sm:$0xff] %vm1943, %v1911
      %1945 = vst.msk [vmem:[%s170 + $0x8] sm:$0xff] %vm1943, %v1912
      %1946 = vst.msk [vmem:[%s170 + $0x10] sm:$0xff] %vm1943, %v1913
      %1947 = vst.msk [vmem:[%s170 + $0x18] sm:$0xff] %vm1943, %v1914
      %1948 = vst.msk [vmem:[%s170 + $0x20] sm:$0xff] %vm1943, %v1915
      %1949 = vst.msk [vmem:[%s170 + $0x28] sm:$0xff] %vm1943, %v1916
      %1950 = vst.msk [vmem:[%s170 + $0x30] sm:$0xff] %vm1943, %v1917
      %1951 = vst.msk [vmem:[%s170 + $0x38] sm:$0xff] %vm1943, %v1918
      %1952 = vst.msk [vmem:[%s170 + $0x40] sm:$0xff] %vm1943, %v1919
      %1953 = vst.msk [vmem:[%s170 + $0x48] sm:$0xff] %vm1943, %v1920
      %1954 = vst.msk [vmem:[%s170 + $0x50] sm:$0xff] %vm1943, %v1921
      %1955 = vst.msk [vmem:[%s170 + $0x58] sm:$0xff] %vm1943, %v1922
      %1956 = vst.msk [vmem:[%s170 + $0x60] sm:$0xff] %vm1943, %v1923
      %1957 = vst.msk [vmem:[%s170 + $0x68] sm:$0xff] %vm1943, %v1924
      %1958 = vst.msk [vmem:[%s170 + $0x70] sm:$0xff] %vm1943, %v1925
      %1959 = vst.msk [vmem:[%s170 + $0x78] sm:$0xff] %vm1943, %v1926
      %1960 = vst.msk [vmem:[%s170 + $0x80] sm:$0xff] %vm1943, %v1927
      %1961 = vst.msk [vmem:[%s170 + $0x88] sm:$0xff] %vm1943, %v1928
      %1962 = vst.msk [vmem:[%s170 + $0x90] sm:$0xff] %vm1943, %v1929
      %1963 = vst.msk [vmem:[%s170 + $0x98] sm:$0xff] %vm1943, %v1930
      %1964 = vst.msk [vmem:[%s170 + $0xa0] sm:$0xff] %vm1943, %v1931
      %1965 = vst.msk [vmem:[%s170 + $0xa8] sm:$0xff] %vm1943, %v1932
      %1966 = vst.msk [vmem:[%s170 + $0xb0] sm:$0xff] %vm1943, %v1933
      %1967 = vst.msk [vmem:[%s170 + $0xb8] sm:$0xff] %vm1943, %v1934
      %1968 = vst.msk [vmem:[%s170 + $0xc0] sm:$0xff] %vm1943, %v1935
      %1969 = vst.msk [vmem:[%s170 + $0xc8] sm:$0xff] %vm1943, %v1936
      %1970 = vst.msk [vmem:[%s170 + $0xd0] sm:$0xff] %vm1943, %v1937
      %1971 = vst.msk [vmem:[%s170 + $0xd8] sm:$0xff] %vm1943, %v1938
      %1972 = vst.msk [vmem:[%s170 + $0xe0] sm:$0xff] %vm1943, %v1939
      %1973 = vst.msk [vmem:[%s170 + $0xe8] sm:$0xff] %vm1943, %v1940
      %1974 = vst.msk [vmem:[%s170 + $0xf0] sm:$0xff] %vm1943, %v1941
      %1975 = vst.msk [vmem:[%s170 + $0xf8] sm:$0xff] %vm1943, %v1942
      %p1976 = scmp.lt.s32.totalorder %s14, 3
      %s1977 = scalar_select %p1976, %s14, 3
      %s1978 = smul.addr %s1977, 32
      %s1979 = smul.addr %s1978, 8
      %s1980 = scalar_lea.vmem %s3, %s1979
      // Predicated region
      $region33: #{transformer_block_forward.12} parent=31 // pred_check
        %p1981 = pneg %p100
      $region34: #{transformer_block_forward.12} parent=31 // pred_check_branch
        %1983 = sbr.rel (%p1981) target = $region36
      $region35: #{transformer_block_forward.12} parent=31 // pred_region
        _
      $region36: #{transformer_block_forward.12} parent=31 // pred_fallthru
        _
    $region32: #{transformer_block_forward.12} parent=5 // pred_fallthru
      _
    %p1984 = scmp.le.s32.totalorder 2, %s9
    // Predicated region
    $region37: #{transformer_block_forward.12} parent=5 // pred_check
      %p1985 = pneg %p1984
    $region38: #{transformer_block_forward.12} parent=5 // pred_check_branch
      %1987 = sbr.rel (%p1985) target = $region40
    $region39: #{transformer_block_forward.12} parent=5 // pred_region
      %s1988 = ssub.s32 %s9, 2
      // Predicated region
      $region41: #{transformer_block_forward.12} parent=39 // pred_check
        %p1989 = pneg %p106
      $region42: #{transformer_block_forward.12} parent=39 // pred_check_branch
        %1991 = sbr.rel (%p1989) target = $region44
      $region43: #{transformer_block_forward.12} parent=39 // pred_region
        %p1992 = scmp.lt.s32.totalorder %s15, 3
        %s1993 = scalar_select %p1992, %s15, 3
        %s1994 = smul.addr %s1993, 32
        %s1995 = smul.addr %s1994, 8
        %s1996 = scalar_lea.vmem %s3, %s1995
      $region44: #{transformer_block_forward.12} parent=39 // pred_fallthru
        _
    $region40: #{transformer_block_forward.12} parent=5 // pred_fallthru
      _
  $region6: #{transformer_block_forward.12} parent=0 // loop_footer
    %s13 = sadd.s32 1, %s9
  $region7: #{transformer_block_forward.12} parent=0 // loop_footer_branch
    %8 = sbr.rel target = $region3
  $region8: #{transformer_block_forward.12} parent=0 // loop_exit
    _

</llo_original>
